<compile_context>
chip_gen: v6e
topology: v6e:2x2x1
jax: 0.10.0
libtpu: 0.0.40
codegen_flags: <defaults>
</compile_context>

<pallas_src>
import functools

import jax
import jax.numpy as jnp
import numpy as np
from jax.experimental import pallas as pl
from jax.experimental.pallas import tpu as pltpu

WIN_SIZE = 11
SIGMA = 1.5
MAX_VAL = 1.0
C1 = (0.01 * MAX_VAL) ** 2
C2 = (0.03 * MAX_VAL) ** 2
MS_WEIGHTS = (0.0448, 0.2856, 0.3001, 0.2363, 0.1333)
LEVELS = 5
_MXU_M = 256        # target M (sublane) fill of one MXU call
_OUT_LANES = 128    # lane-dense per-step output width


# ----------------------------------------------------------------------------
# host-side (numpy) constant construction
# ----------------------------------------------------------------------------
def _gaussian_1d(size=WIN_SIZE, sigma=SIGMA):
    x = np.arange(size, dtype=np.float64)
    g = np.exp(-((x - (size - 1) / 2.0) ** 2) / (2.0 * sigma ** 2))
    return (g / g.sum()).astype(np.float32)


def _conv_band(n, win):
    """(n, n) banded matrix L, L[i, j] = win[j - i + pad]: L @ x is the
    zero-padded 'same' cross-correlation along rows; x @ L.T along columns."""
    k = win.shape[0]
    pad = (k - 1) // 2
    i = np.arange(n)[:, None]
    j = np.arange(n)[None, :]
    d = j - i + pad
    valid = (d >= 0) & (d < k)
    return np.where(valid, win[np.clip(d, 0, k - 1)], 0.0).astype(np.float32)


def _pool_half(n):
    """(n//2, n) matrix: P @ x is an exact 2x average pool along rows."""
    i = np.arange(n // 2)[:, None]
    j = np.arange(n)[None, :]
    return np.where((j == 2 * i) | (j == 2 * i + 1), 0.5, 0.0).astype(np.float32)


def _block_diag(m, g):
    if g == 1:
        return m
    r, c = m.shape
    out = np.zeros((g * r, g * c), m.dtype)
    for t in range(g):
        out[t * r:(t + 1) * r, t * c:(t + 1) * c] = m
    return out


# ----------------------------------------------------------------------------
# kernel: one grid step = one group of G images, all 5 scales computed in VMEM
# ----------------------------------------------------------------------------
def _msssim_kernel(x1_ref, x2_ref, *refs, levels, group, out_rows, c1, c2):
    a_refs = refs[0:levels]                        # block-diag vertical bands
    b_refs = refs[levels:2 * levels]               # shared horizontal bands
    ph_refs = refs[2 * levels:3 * levels - 1]      # block-diag vertical pools
    pw_refs = refs[3 * levels - 1:4 * levels - 2]  # shared horizontal pools
    out_ref = refs[4 * levels - 2]

    G, R = group, out_rows
    GH, W = x1_ref.shape
    H = GH // G

    # bf16 HBM blocks -> f32 for all elementwise SSIM math.
    x1 = x1_ref[...].astype(jnp.float32)           # (G*H, W)
    x2 = x2_ref[...].astype(jnp.float32)

    lane = jax.lax.broadcasted_iota(jnp.int32, (R, _OUT_LANES), 1)
    row = jnp.zeros((R, _OUT_LANES), jnp.float32)  # lanes 0..L-1: ssim, L..2L-1: cs

    h, w = H, W
    for lvl in range(levels):                      # unrolled at trace time
        a = a_refs[lvl][...]                       # (G*h, G*h) bf16
        b = b_refs[lvl][...]                       # (w, w)     bf16

        def gconv(z, a=a, b=b):
            # separable zero-padded 'same' Gaussian conv of the whole group:
            # bf16 MXU operands, f32 accumulation.
            t = jnp.dot(z.astype(jnp.bfloat16), b,
                        preferred_element_type=jnp.float32)
            return jnp.dot(a, t.astype(jnp.bfloat16),
                           preferred_element_type=jnp.float32)

        mu1 = gconv(x1)
        mu2 = gconv(x2)
        s11 = gconv(x1 * x1) - mu1 * mu1
        s22 = gconv(x2 * x2) - mu2 * mu2
        s12 = gconv(x1 * x2) - mu1 * mu2

        # divides -> EUP reciprocal (approx), frees VALU slots
        cs_map = (2.0 * s12 + c2) * pl.reciprocal(s11 + s22 + c2, approx=True)
        l_map = (2.0 * mu1 * mu2 + c1) * pl.reciprocal(
            mu1 * mu1 + mu2 * mu2 + c1, approx=True)
        ssim_map = l_map * cs_map

        # per-image means via a tiny f32 selector matmul (keeps everything 2D,
        # no reshapes); rows >= G of the selector are zero (output padding).
        gh = G * h
        ridx = jax.lax.broadcasted_iota(jnp.int32, (R, gh), 1)
        gidx = jax.lax.broadcasted_iota(jnp.int32, (R, gh), 0)
        sel = jnp.where((ridx >= gidx * h) & (ridx < (gidx + 1) * h), 1.0, 0.0)
        inv_n = 1.0 / (h * w)
        s_mean = jnp.sum(jnp.dot(sel, ssim_map,
                                 preferred_element_type=jnp.float32),
                         axis=1, keepdims=True) * inv_n        # (R, 1)
        c_mean = jnp.sum(jnp.dot(sel, cs_map,
                                 preferred_element_type=jnp.float32),
                         axis=1, keepdims=True) * inv_n        # (R, 1)
        row = jnp.where(lane == lvl, s_mean, row)
        row = jnp.where(lane == levels + lvl, c_mean, row)

        if lvl < levels - 1:
            # exact 2x2 average pool, VMEM-resident, bf16 MXU operands
            ph = ph_refs[lvl][...]                 # (G*h//2, G*h) bf16
            pw = pw_refs[lvl][...]                 # (w, w//2)     bf16

            def pool2(z, ph=ph, pw=pw):
                t = jnp.dot(z.astype(jnp.bfloat16), pw,
                            preferred_element_type=jnp.float32)
                return jnp.dot(ph, t.astype(jnp.bfloat16),
                               preferred_element_type=jnp.float32)

            x1 = pool2(x1)
            x2 = pool2(x2)
            h //= 2
            w //= 2

    out_ref[0] = row                               # one unmasked (R, 128) store


def _cost_estimate(steps, G, H, W, R, const_elems):
    flops = 0
    trans = 0
    h, w = H, W
    for lvl in range(LEVELS):
        gh = G * h
        flops += 5 * (2 * gh * w * w + 2 * gh * gh * w)   # five Gaussian convs
        flops += 2 * (2 * R * gh * w)                     # per-image mean matmuls
        trans += 2 * gh * w                               # two EUP reciprocals / px
        if lvl < LEVELS - 1:
            flops += 2 * (2 * gh * w * (w // 2) + 2 * (gh // 2) * gh * (w // 2))
            h //= 2
            w //= 2
    bytes_accessed = steps * (2 * G * H * W * 2 + R * _OUT_LANES * 4) + const_elems * 2
    return pl.CostEstimate(flops=int(steps * flops),
                           transcendentals=int(steps * trans),
                           bytes_accessed=int(bytes_accessed))


# ----------------------------------------------------------------------------
# wrapper: grouping, constants, pallas_call
# ----------------------------------------------------------------------------
def msssim_per_image(x1, x2):
    """Per-image, per-level mean SSIM / CS of (B, H, W) batches.

    Returns (ssim, cs), each (B, LEVELS) float32, from a single pallas_call.
    """
    B, H, W = x1.shape
    assert H % (1 << (LEVELS - 1)) == 0 and W % (1 << (LEVELS - 1)) == 0, (
        "spatial dims must be divisible by 2**(LEVELS-1)")

    # Group G images into the M (sublane) dimension so G*H ~ 256, but keep at
    # least 2 grid steps so v7x's two TensorCores can both be used.
    G = max(1, min(B, max(1, _MXU_M // H)))
    steps = -(-B // G)
    if steps < 2 and B >= 2:
        G = -(-B // 2)
        steps = -(-B // G)
    B_pad = steps * G
    R = ((G + 7) // 8) * 8            # sublane-padded per-step output rows

    if B_pad != B:                    # dummy images; their results are dropped
        pad = B_pad - B
        x1 = jnp.concatenate([x1, jnp.zeros((pad, H, W), x1.dtype)], axis=0)
        x2 = jnp.concatenate([x2, jnp.zeros((pad, H, W), x2.dtype)], axis=0)

    # bf16 inputs: halve the HBM DMA and feed the MXU natively.
    x1v = x1.astype(jnp.bfloat16).reshape(B_pad * H, W)
    x2v = x2.astype(jnp.bfloat16).reshape(B_pad * H, W)

    # Banded Gaussian / pool matrices.  The H-axis matrices are block-diagonal
    # over the group so a single (G*H, W) matmul convolves every image in the
    # group with no cross-image leakage; the W-axis matrices are shared.
    win = _gaussian_1d()
    a_np, b_np, ph_np, pw_np = [], [], [], []
    h, w = H, W
    for lvl in range(LEVELS):
        a_np.append(_block_diag(_conv_band(h, win), G))      # (G*h, G*h)
        b_np.append(_conv_band(w, win).T)                    # (w, w)
        if lvl < LEVELS - 1:
            ph_np.append(_block_diag(_pool_half(h), G))      # (G*h//2, G*h)
            pw_np.append(_pool_half(w).T)                    # (w, w//2)
            h //= 2
            w //= 2
    const_np = a_np + b_np + ph_np + pw_np
    consts = [jnp.asarray(m, dtype=jnp.bfloat16) for m in const_np]
    const_elems = sum(int(m.size) for m in const_np)

    in_specs = [pl.BlockSpec((G * H, W), lambda i: (i, 0)),
                pl.BlockSpec((G * H, W), lambda i: (i, 0))]
    # TODO(synk): these constants never change across grid steps; single-buffer
    # them (pl.Buffered(1) pipeline_mode or a one-time scratch copy) to halve
    # their VMEM footprint for very large H, W (matters on v7x's 64 MiB VMEM).
    for m in consts:
        in_specs.append(pl.BlockSpec(m.shape, lambda i: (0, 0)))

    out_specs = pl.BlockSpec((1, R, _OUT_LANES), lambda i: (i, 0, 0))

    # Explicit VMEM budget (feedback: defaults are 16/32 MiB scoped).
    const_bytes = const_elems * 2
    est = (2 * const_bytes                       # double-buffered bf16 constants
           + 2 * 2 * G * H * W * 2               # two bf16 inputs, double-buffered
           + 2 * R * _OUT_LANES * 4              # output block, double-buffered
           + 12 * G * H * W * 4)                 # live f32 maps at level 0
    vmem_limit = int(min(max(2 * est, 32 * 2 ** 20), 64 * 2 ** 20))

    kernel = functools.partial(_msssim_kernel, levels=LEVELS, group=G,
                               out_rows=R, c1=C1, c2=C2)
    out = pl.pallas_call(
        kernel,
        out_shape=jax.ShapeDtypeStruct((steps, R, _OUT_LANES), jnp.float32),
        grid=(steps,),
        in_specs=in_specs,
        out_specs=out_specs,
        compiler_params=pltpu.CompilerParams(
            dimension_semantics=("parallel",),   # independent per-group work
            vmem_limit_bytes=vmem_limit),
        cost_estimate=_cost_estimate(steps, G, H, W, R, const_elems),
    )(x1v, x2v, *consts)

    vals = out[:, :G, :].reshape(steps * G, _OUT_LANES)[:B]
    return vals[:, :LEVELS], vals[:, LEVELS:2 * LEVELS]


def msssim_loss(x_hat, code):
    """Forward pass of MSSSIMLoss: returns (loss, msssim)."""
    N, C, H, W = x_hat.shape
    # get_y_u_v: split the channel axis of the NCHW YUV 4:4:4 tensor; every
    # channel shares (N, H, W), so all channels fuse into one (N*C, H, W) batch.
    x1 = x_hat.astype(jnp.float32).reshape(N * C, H, W)
    x2 = code.astype(jnp.float32).reshape(N * C, H, W)

    ssim, cs = msssim_per_image(x1, x2)            # (N*C, LEVELS) each
    ssim = ssim.reshape(N, C, LEVELS)
    cs = cs.reshape(N, C, LEVELS)

    weights = jnp.array(MS_WEIGHTS, dtype=jnp.float32)
    # per-channel batch means at each level (== mean over that channel's maps)
    mssim = jnp.maximum(jnp.mean(ssim, axis=0), 0.0)     # (C, LEVELS)
    mcs = jnp.maximum(jnp.mean(cs, axis=0), 0.0)         # (C, LEVELS)
    ms_per_chan = jnp.prod(mcs[:, :LEVELS - 1] ** weights[:LEVELS - 1], axis=1) * (
        mssim[:, LEVELS - 1] ** weights[LEVELS - 1])     # (C,)

    numel = jnp.float32(N * H * W)        # per-channel numel (4:4:4 => all equal)
    nb_values = jnp.float32(C) * numel
    msssim = jnp.sum(ms_per_chan * numel) / nb_values
    loss = 1.0 - msssim
    return loss, msssim


if __name__ == "__main__":
    key = jax.random.PRNGKey(0)
    k1, k2 = jax.random.split(key)
    N, C, H, W = 2, 3, 32, 32   # H, W >= 16 so that all 5 scales (2x2 pools) exist
    x_hat = jax.random.uniform(k1, (N, C, H, W), dtype=jnp.float32)
    code = jax.random.uniform(k2, (N, C, H, W), dtype=jnp.float32)

    loss_fn = jax.jit(msssim_loss)
    loss, msssim = loss_fn(x_hat, code)
    jax.block_until_ready((loss, msssim))

    # sanity: identical inputs give msssim ~= 1, loss ~= 0 (tolerance covers the
    # bf16 MXU operands and the approx EUP reciprocal)
    loss_id, msssim_id = loss_fn(code, code)
    jax.block_until_ready((loss_id, msssim_id))
    assert abs(float(msssim_id) - 1.0) < 1e-2 and abs(float(loss_id)) < 1e-2

    print("KERNEL_OK")
</pallas_src>

<mosaic_0001>
module attributes {stable_mosaic.version = 11 : i64} {
  func.func @_msssim_kernel(%arg0: i32, %arg1: memref<96x32xbf16, #tpu.memory_space<vmem>>, %arg2: memref<96x32xbf16, #tpu.memory_space<vmem>>, %arg3: memref<96x96xbf16, #tpu.memory_space<vmem>>, %arg4: memref<48x48xbf16, #tpu.memory_space<vmem>>, %arg5: memref<24x24xbf16, #tpu.memory_space<vmem>>, %arg6: memref<12x12xbf16, #tpu.memory_space<vmem>>, %arg7: memref<6x6xbf16, #tpu.memory_space<vmem>>, %arg8: memref<32x32xbf16, #tpu.memory_space<vmem>>, %arg9: memref<16x16xbf16, #tpu.memory_space<vmem>>, %arg10: memref<8x8xbf16, #tpu.memory_space<vmem>>, %arg11: memref<4x4xbf16, #tpu.memory_space<vmem>>, %arg12: memref<2x2xbf16, #tpu.memory_space<vmem>>, %arg13: memref<48x96xbf16, #tpu.memory_space<vmem>>, %arg14: memref<24x48xbf16, #tpu.memory_space<vmem>>, %arg15: memref<12x24xbf16, #tpu.memory_space<vmem>>, %arg16: memref<6x12xbf16, #tpu.memory_space<vmem>>, %arg17: memref<32x16xbf16, #tpu.memory_space<vmem>>, %arg18: memref<16x8xbf16, #tpu.memory_space<vmem>>, %arg19: memref<8x4xbf16, #tpu.memory_space<vmem>>, %arg20: memref<4x2xbf16, #tpu.memory_space<vmem>>, %arg21: memref<1x8x128xf32, #tpu.memory_space<vmem>>) attributes {dimension_semantics = [#tpu.dimension_semantics<parallel>], iteration_bounds = array<i64: 2>, scalar_prefetch = 0 : i64, scratch_operands = 0 : i64, tpu.core_type = #tpu.core_type<tc>, window_params = [{transform_indices = @transform_0, window_bounds = array<i64: 96, 32>}, {transform_indices = @transform_1, window_bounds = array<i64: 96, 32>}, {pipeline_mode = #tpu.pipeline_mode<synchronous>, transform_indices = @transform_2, window_bounds = array<i64: 96, 96>}, {pipeline_mode = #tpu.pipeline_mode<synchronous>, transform_indices = @transform_3, window_bounds = array<i64: 48, 48>}, {pipeline_mode = #tpu.pipeline_mode<synchronous>, transform_indices = @transform_4, window_bounds = array<i64: 24, 24>}, {pipeline_mode = #tpu.pipeline_mode<synchronous>, transform_indices = @transform_5, window_bounds = array<i64: 12, 12>}, {pipeline_mode = #tpu.pipeline_mode<synchronous>, transform_indices = @transform_6, window_bounds = array<i64: 6, 6>}, {pipeline_mode = #tpu.pipeline_mode<synchronous>, transform_indices = @transform_7, window_bounds = array<i64: 32, 32>}, {pipeline_mode = #tpu.pipeline_mode<synchronous>, transform_indices = @transform_8, window_bounds = array<i64: 16, 16>}, {pipeline_mode = #tpu.pipeline_mode<synchronous>, transform_indices = @transform_9, window_bounds = array<i64: 8, 8>}, {pipeline_mode = #tpu.pipeline_mode<synchronous>, transform_indices = @transform_10, window_bounds = array<i64: 4, 4>}, {pipeline_mode = #tpu.pipeline_mode<synchronous>, transform_indices = @transform_11, window_bounds = array<i64: 2, 2>}, {pipeline_mode = #tpu.pipeline_mode<synchronous>, transform_indices = @transform_12, window_bounds = array<i64: 48, 96>}, {pipeline_mode = #tpu.pipeline_mode<synchronous>, transform_indices = @transform_13, window_bounds = array<i64: 24, 48>}, {pipeline_mode = #tpu.pipeline_mode<synchronous>, transform_indices = @transform_14, window_bounds = array<i64: 12, 24>}, {pipeline_mode = #tpu.pipeline_mode<synchronous>, transform_indices = @transform_15, window_bounds = array<i64: 6, 12>}, {pipeline_mode = #tpu.pipeline_mode<synchronous>, transform_indices = @transform_16, window_bounds = array<i64: 32, 16>}, {pipeline_mode = #tpu.pipeline_mode<synchronous>, transform_indices = @transform_17, window_bounds = array<i64: 16, 8>}, {pipeline_mode = #tpu.pipeline_mode<synchronous>, transform_indices = @transform_18, window_bounds = array<i64: 8, 4>}, {pipeline_mode = #tpu.pipeline_mode<synchronous>, transform_indices = @transform_19, window_bounds = array<i64: 4, 2>}, {transform_indices = @transform_20, window_bounds = array<i64: 1, 8, 128>}]} {
    %c0 = arith.constant 0 : index
    %c0_0 = arith.constant 0 : index
    %0 = vector.load %arg1[%c0, %c0_0] : memref<96x32xbf16, #tpu.memory_space<vmem>>, vector<96x32xbf16>
    %1 = arith.extf %0 : vector<96x32xbf16> to vector<96x32xf32>
    %c0_1 = arith.constant 0 : index
    %c0_2 = arith.constant 0 : index
    %2 = vector.load %arg2[%c0_1, %c0_2] : memref<96x32xbf16, #tpu.memory_space<vmem>>, vector<96x32xbf16>
    %3 = arith.extf %2 : vector<96x32xbf16> to vector<96x32xf32>
    %4 = tpu.iota {dimensions = array<i32: 1>} : vector<8x128xi32>
    %cst = arith.constant 0.000000e+00 : f32
    %5 = vector.broadcast %cst : f32 to vector<8x128xf32>
    %c0_3 = arith.constant 0 : index
    %c0_4 = arith.constant 0 : index
    %6 = vector.load %arg3[%c0_3, %c0_4] : memref<96x96xbf16, #tpu.memory_space<vmem>>, vector<96x96xbf16>
    %c0_5 = arith.constant 0 : index
    %c0_6 = arith.constant 0 : index
    %7 = vector.load %arg8[%c0_5, %c0_6] : memref<32x32xbf16, #tpu.memory_space<vmem>>, vector<32x32xbf16>
    %8 = arith.truncf %1 : vector<96x32xf32> to vector<96x32xbf16>
    %cst_7 = arith.constant dense<0.000000e+00> : vector<96x32xf32>
    %9 = tpu.matmul %8, %7, %cst_7 {dimension_numbers = #tpu.dot_dimension_numbers<[1], [0], [0], [1], [0, 0, 1, 1], [], []>} : vector<96x32xbf16>, vector<32x32xbf16>, vector<96x32xf32> -> vector<96x32xf32>
    %10 = arith.truncf %9 : vector<96x32xf32> to vector<96x32xbf16>
    %cst_8 = arith.constant dense<0.000000e+00> : vector<96x32xf32>
    %11 = tpu.matmul %6, %10, %cst_8 {dimension_numbers = #tpu.dot_dimension_numbers<[1], [0], [0], [1], [0, 0, 1, 1], [], []>} : vector<96x96xbf16>, vector<96x32xbf16>, vector<96x32xf32> -> vector<96x32xf32>
    %12 = arith.truncf %3 : vector<96x32xf32> to vector<96x32xbf16>
    %cst_9 = arith.constant dense<0.000000e+00> : vector<96x32xf32>
    %13 = tpu.matmul %12, %7, %cst_9 {dimension_numbers = #tpu.dot_dimension_numbers<[1], [0], [0], [1], [0, 0, 1, 1], [], []>} : vector<96x32xbf16>, vector<32x32xbf16>, vector<96x32xf32> -> vector<96x32xf32>
    %14 = arith.truncf %13 : vector<96x32xf32> to vector<96x32xbf16>
    %cst_10 = arith.constant dense<0.000000e+00> : vector<96x32xf32>
    %15 = tpu.matmul %6, %14, %cst_10 {dimension_numbers = #tpu.dot_dimension_numbers<[1], [0], [0], [1], [0, 0, 1, 1], [], []>} : vector<96x96xbf16>, vector<96x32xbf16>, vector<96x32xf32> -> vector<96x32xf32>
    %16 = arith.mulf %1, %1 : vector<96x32xf32>
    %17 = arith.truncf %16 : vector<96x32xf32> to vector<96x32xbf16>
    %cst_11 = arith.constant dense<0.000000e+00> : vector<96x32xf32>
    %18 = tpu.matmul %17, %7, %cst_11 {dimension_numbers = #tpu.dot_dimension_numbers<[1], [0], [0], [1], [0, 0, 1, 1], [], []>} : vector<96x32xbf16>, vector<32x32xbf16>, vector<96x32xf32> -> vector<96x32xf32>
    %19 = arith.truncf %18 : vector<96x32xf32> to vector<96x32xbf16>
    %cst_12 = arith.constant dense<0.000000e+00> : vector<96x32xf32>
    %20 = tpu.matmul %6, %19, %cst_12 {dimension_numbers = #tpu.dot_dimension_numbers<[1], [0], [0], [1], [0, 0, 1, 1], [], []>} : vector<96x96xbf16>, vector<96x32xbf16>, vector<96x32xf32> -> vector<96x32xf32>
    %21 = arith.mulf %11, %11 : vector<96x32xf32>
    %22 = arith.subf %20, %21 : vector<96x32xf32>
    %23 = arith.mulf %3, %3 : vector<96x32xf32>
    %24 = arith.truncf %23 : vector<96x32xf32> to vector<96x32xbf16>
    %cst_13 = arith.constant dense<0.000000e+00> : vector<96x32xf32>
    %25 = tpu.matmul %24, %7, %cst_13 {dimension_numbers = #tpu.dot_dimension_numbers<[1], [0], [0], [1], [0, 0, 1, 1], [], []>} : vector<96x32xbf16>, vector<32x32xbf16>, vector<96x32xf32> -> vector<96x32xf32>
    %26 = arith.truncf %25 : vector<96x32xf32> to vector<96x32xbf16>
    %cst_14 = arith.constant dense<0.000000e+00> : vector<96x32xf32>
    %27 = tpu.matmul %6, %26, %cst_14 {dimension_numbers = #tpu.dot_dimension_numbers<[1], [0], [0], [1], [0, 0, 1, 1], [], []>} : vector<96x96xbf16>, vector<96x32xbf16>, vector<96x32xf32> -> vector<96x32xf32>
    %28 = arith.mulf %15, %15 : vector<96x32xf32>
    %29 = arith.subf %27, %28 : vector<96x32xf32>
    %30 = arith.mulf %1, %3 : vector<96x32xf32>
    %31 = arith.truncf %30 : vector<96x32xf32> to vector<96x32xbf16>
    %cst_15 = arith.constant dense<0.000000e+00> : vector<96x32xf32>
    %32 = tpu.matmul %31, %7, %cst_15 {dimension_numbers = #tpu.dot_dimension_numbers<[1], [0], [0], [1], [0, 0, 1, 1], [], []>} : vector<96x32xbf16>, vector<32x32xbf16>, vector<96x32xf32> -> vector<96x32xf32>
    %33 = arith.truncf %32 : vector<96x32xf32> to vector<96x32xbf16>
    %cst_16 = arith.constant dense<0.000000e+00> : vector<96x32xf32>
    %34 = tpu.matmul %6, %33, %cst_16 {dimension_numbers = #tpu.dot_dimension_numbers<[1], [0], [0], [1], [0, 0, 1, 1], [], []>} : vector<96x96xbf16>, vector<96x32xbf16>, vector<96x32xf32> -> vector<96x32xf32>
    %35 = arith.mulf %11, %15 : vector<96x32xf32>
    %36 = arith.subf %34, %35 : vector<96x32xf32>
    %cst_17 = arith.constant 2.000000e+00 : f32
    %37 = vector.broadcast %cst_17 : f32 to vector<96x32xf32>
    %38 = arith.mulf %37, %36 : vector<96x32xf32>
    %cst_18 = arith.constant 8.99999984E-4 : f32
    %39 = vector.broadcast %cst_18 : f32 to vector<96x32xf32>
    %40 = arith.addf %38, %39 : vector<96x32xf32>
    %41 = arith.addf %22, %29 : vector<96x32xf32>
    %cst_19 = arith.constant 8.99999984E-4 : f32
    %42 = vector.broadcast %cst_19 : f32 to vector<96x32xf32>
    %43 = arith.addf %41, %42 : vector<96x32xf32>
    %44 = tpu.reciprocal %43 {approx = true} : vector<96x32xf32> -> vector<96x32xf32>
    %45 = arith.mulf %40, %44 : vector<96x32xf32>
    %cst_20 = arith.constant 2.000000e+00 : f32
    %46 = vector.broadcast %cst_20 : f32 to vector<96x32xf32>
    %47 = arith.mulf %46, %11 : vector<96x32xf32>
    %48 = arith.mulf %47, %15 : vector<96x32xf32>
    %cst_21 = arith.constant 9.99999974E-5 : f32
    %49 = vector.broadcast %cst_21 : f32 to vector<96x32xf32>
    %50 = arith.addf %48, %49 : vector<96x32xf32>
    %51 = arith.mulf %11, %11 : vector<96x32xf32>
    %52 = arith.mulf %15, %15 : vector<96x32xf32>
    %53 = arith.addf %51, %52 : vector<96x32xf32>
    %cst_22 = arith.constant 9.99999974E-5 : f32
    %54 = vector.broadcast %cst_22 : f32 to vector<96x32xf32>
    %55 = arith.addf %53, %54 : vector<96x32xf32>
    %56 = tpu.reciprocal %55 {approx = true} : vector<96x32xf32> -> vector<96x32xf32>
    %57 = arith.mulf %50, %56 : vector<96x32xf32>
    %58 = arith.mulf %57, %45 : vector<96x32xf32>
    %59 = tpu.iota {dimensions = array<i32: 1>} : vector<8x96xi32>
    %60 = tpu.iota {dimensions = array<i32: 0>} : vector<8x96xi32>
    %c32_i32 = arith.constant 32 : i32
    %61 = vector.broadcast %c32_i32 : i32 to vector<8x96xi32>
    %62 = arith.muli %60, %61 : vector<8x96xi32>
    %63 = arith.cmpi sge, %59, %62 : vector<8x96xi32>
    %c1_i32 = arith.constant 1 : i32
    %64 = vector.broadcast %c1_i32 : i32 to vector<8x96xi32>
    %65 = arith.addi %60, %64 : vector<8x96xi32>
    %c32_i32_23 = arith.constant 32 : i32
    %66 = vector.broadcast %c32_i32_23 : i32 to vector<8x96xi32>
    %67 = arith.muli %65, %66 : vector<8x96xi32>
    %68 = arith.cmpi slt, %59, %67 : vector<8x96xi32>
    %69 = arith.andi %63, %68 : vector<8x96xi1>
    %cst_24 = arith.constant 1.000000e+00 : f32
    %cst_25 = arith.constant 0.000000e+00 : f32
    %70 = vector.broadcast %cst_24 : f32 to vector<8x96xf32>
    %71 = vector.broadcast %cst_25 : f32 to vector<8x96xf32>
    %72 = arith.select %69, %70, %71 : vector<8x96xi1>, vector<8x96xf32>
    %cst_26 = arith.constant dense<0.000000e+00> : vector<8x32xf32>
    %73 = tpu.matmul %72, %58, %cst_26 {dimension_numbers = #tpu.dot_dimension_numbers<[1], [0], [0], [1], [0, 0, 1, 1], [], []>} : vector<8x96xf32>, vector<96x32xf32>, vector<8x32xf32> -> vector<8x32xf32>
    %cst_27 = arith.constant dense<0.000000e+00> : vector<8xf32>
    %74 = vector.multi_reduction <add>, %73, %cst_27 [1] : vector<8x32xf32> to vector<8xf32>
    %75 = vector.shape_cast %74 : vector<8xf32> to vector<8x1xf32>
    %cst_28 = arith.constant 9.765625E-4 : f32
    %76 = vector.broadcast %cst_28 : f32 to vector<8x1xf32>
    %77 = arith.mulf %75, %76 : vector<8x1xf32>
    %cst_29 = arith.constant dense<0.000000e+00> : vector<8x32xf32>
    %78 = tpu.matmul %72, %45, %cst_29 {dimension_numbers = #tpu.dot_dimension_numbers<[1], [0], [0], [1], [0, 0, 1, 1], [], []>} : vector<8x96xf32>, vector<96x32xf32>, vector<8x32xf32> -> vector<8x32xf32>
    %cst_30 = arith.constant dense<0.000000e+00> : vector<8xf32>
    %79 = vector.multi_reduction <add>, %78, %cst_30 [1] : vector<8x32xf32> to vector<8xf32>
    %80 = vector.shape_cast %79 : vector<8xf32> to vector<8x1xf32>
    %cst_31 = arith.constant 9.765625E-4 : f32
    %81 = vector.broadcast %cst_31 : f32 to vector<8x1xf32>
    %82 = arith.mulf %80, %81 : vector<8x1xf32>
    %c0_i32 = arith.constant 0 : i32
    %83 = vector.broadcast %c0_i32 : i32 to vector<8x128xi32>
    %84 = arith.cmpi eq, %4, %83 : vector<8x128xi32>
    %85 = vector.shape_cast %77 : vector<8x1xf32> to vector<8x1xf32>
    %86 = vector.broadcast %85 : vector<8x1xf32> to vector<8x128xf32>
    %87 = arith.select %84, %86, %5 : vector<8x128xi1>, vector<8x128xf32>
    %c5_i32 = arith.constant 5 : i32
    %88 = vector.broadcast %c5_i32 : i32 to vector<8x128xi32>
    %89 = arith.cmpi eq, %4, %88 : vector<8x128xi32>
    %90 = vector.shape_cast %82 : vector<8x1xf32> to vector<8x1xf32>
    %91 = vector.broadcast %90 : vector<8x1xf32> to vector<8x128xf32>
    %92 = arith.select %89, %91, %87 : vector<8x128xi1>, vector<8x128xf32>
    %c0_32 = arith.constant 0 : index
    %c0_33 = arith.constant 0 : index
    %93 = vector.load %arg13[%c0_32, %c0_33] : memref<48x96xbf16, #tpu.memory_space<vmem>>, vector<48x96xbf16>
    %c0_34 = arith.constant 0 : index
    %c0_35 = arith.constant 0 : index
    %94 = vector.load %arg17[%c0_34, %c0_35] : memref<32x16xbf16, #tpu.memory_space<vmem>>, vector<32x16xbf16>
    %95 = arith.truncf %1 : vector<96x32xf32> to vector<96x32xbf16>
    %cst_36 = arith.constant dense<0.000000e+00> : vector<96x16xf32>
    %96 = tpu.matmul %95, %94, %cst_36 {dimension_numbers = #tpu.dot_dimension_numbers<[1], [0], [0], [1], [0, 0, 1, 1], [], []>} : vector<96x32xbf16>, vector<32x16xbf16>, vector<96x16xf32> -> vector<96x16xf32>
    %97 = arith.truncf %96 : vector<96x16xf32> to vector<96x16xbf16>
    %cst_37 = arith.constant dense<0.000000e+00> : vector<48x16xf32>
    %98 = tpu.matmul %93, %97, %cst_37 {dimension_numbers = #tpu.dot_dimension_numbers<[1], [0], [0], [1], [0, 0, 1, 1], [], []>} : vector<48x96xbf16>, vector<96x16xbf16>, vector<48x16xf32> -> vector<48x16xf32>
    %99 = arith.truncf %3 : vector<96x32xf32> to vector<96x32xbf16>
    %cst_38 = arith.constant dense<0.000000e+00> : vector<96x16xf32>
    %100 = tpu.matmul %99, %94, %cst_38 {dimension_numbers = #tpu.dot_dimension_numbers<[1], [0], [0], [1], [0, 0, 1, 1], [], []>} : vector<96x32xbf16>, vector<32x16xbf16>, vector<96x16xf32> -> vector<96x16xf32>
    %101 = arith.truncf %100 : vector<96x16xf32> to vector<96x16xbf16>
    %cst_39 = arith.constant dense<0.000000e+00> : vector<48x16xf32>
    %102 = tpu.matmul %93, %101, %cst_39 {dimension_numbers = #tpu.dot_dimension_numbers<[1], [0], [0], [1], [0, 0, 1, 1], [], []>} : vector<48x96xbf16>, vector<96x16xbf16>, vector<48x16xf32> -> vector<48x16xf32>
    %c0_40 = arith.constant 0 : index
    %c0_41 = arith.constant 0 : index
    %103 = vector.load %arg4[%c0_40, %c0_41] : memref<48x48xbf16, #tpu.memory_space<vmem>>, vector<48x48xbf16>
    %c0_42 = arith.constant 0 : index
    %c0_43 = arith.constant 0 : index
    %104 = vector.load %arg9[%c0_42, %c0_43] : memref<16x16xbf16, #tpu.memory_space<vmem>>, vector<16x16xbf16>
    %105 = arith.truncf %98 : vector<48x16xf32> to vector<48x16xbf16>
    %cst_44 = arith.constant dense<0.000000e+00> : vector<48x16xf32>
    %106 = tpu.matmul %105, %104, %cst_44 {dimension_numbers = #tpu.dot_dimension_numbers<[1], [0], [0], [1], [0, 0, 1, 1], [], []>} : vector<48x16xbf16>, vector<16x16xbf16>, vector<48x16xf32> -> vector<48x16xf32>
    %107 = arith.truncf %106 : vector<48x16xf32> to vector<48x16xbf16>
    %cst_45 = arith.constant dense<0.000000e+00> : vector<48x16xf32>
    %108 = tpu.matmul %103, %107, %cst_45 {dimension_numbers = #tpu.dot_dimension_numbers<[1], [0], [0], [1], [0, 0, 1, 1], [], []>} : vector<48x48xbf16>, vector<48x16xbf16>, vector<48x16xf32> -> vector<48x16xf32>
    %109 = arith.truncf %102 : vector<48x16xf32> to vector<48x16xbf16>
    %cst_46 = arith.constant dense<0.000000e+00> : vector<48x16xf32>
    %110 = tpu.matmul %109, %104, %cst_46 {dimension_numbers = #tpu.dot_dimension_numbers<[1], [0], [0], [1], [0, 0, 1, 1], [], []>} : vector<48x16xbf16>, vector<16x16xbf16>, vector<48x16xf32> -> vector<48x16xf32>
    %111 = arith.truncf %110 : vector<48x16xf32> to vector<48x16xbf16>
    %cst_47 = arith.constant dense<0.000000e+00> : vector<48x16xf32>
    %112 = tpu.matmul %103, %111, %cst_47 {dimension_numbers = #tpu.dot_dimension_numbers<[1], [0], [0], [1], [0, 0, 1, 1], [], []>} : vector<48x48xbf16>, vector<48x16xbf16>, vector<48x16xf32> -> vector<48x16xf32>
    %113 = arith.mulf %98, %98 : vector<48x16xf32>
    %114 = arith.truncf %113 : vector<48x16xf32> to vector<48x16xbf16>
    %cst_48 = arith.constant dense<0.000000e+00> : vector<48x16xf32>
    %115 = tpu.matmul %114, %104, %cst_48 {dimension_numbers = #tpu.dot_dimension_numbers<[1], [0], [0], [1], [0, 0, 1, 1], [], []>} : vector<48x16xbf16>, vector<16x16xbf16>, vector<48x16xf32> -> vector<48x16xf32>
    %116 = arith.truncf %115 : vector<48x16xf32> to vector<48x16xbf16>
    %cst_49 = arith.constant dense<0.000000e+00> : vector<48x16xf32>
    %117 = tpu.matmul %103, %116, %cst_49 {dimension_numbers = #tpu.dot_dimension_numbers<[1], [0], [0], [1], [0, 0, 1, 1], [], []>} : vector<48x48xbf16>, vector<48x16xbf16>, vector<48x16xf32> -> vector<48x16xf32>
    %118 = arith.mulf %108, %108 : vector<48x16xf32>
    %119 = arith.subf %117, %118 : vector<48x16xf32>
    %120 = arith.mulf %102, %102 : vector<48x16xf32>
    %121 = arith.truncf %120 : vector<48x16xf32> to vector<48x16xbf16>
    %cst_50 = arith.constant dense<0.000000e+00> : vector<48x16xf32>
    %122 = tpu.matmul %121, %104, %cst_50 {dimension_numbers = #tpu.dot_dimension_numbers<[1], [0], [0], [1], [0, 0, 1, 1], [], []>} : vector<48x16xbf16>, vector<16x16xbf16>, vector<48x16xf32> -> vector<48x16xf32>
    %123 = arith.truncf %122 : vector<48x16xf32> to vector<48x16xbf16>
    %cst_51 = arith.constant dense<0.000000e+00> : vector<48x16xf32>
    %124 = tpu.matmul %103, %123, %cst_51 {dimension_numbers = #tpu.dot_dimension_numbers<[1], [0], [0], [1], [0, 0, 1, 1], [], []>} : vector<48x48xbf16>, vector<48x16xbf16>, vector<48x16xf32> -> vector<48x16xf32>
    %125 = arith.mulf %112, %112 : vector<48x16xf32>
    %126 = arith.subf %124, %125 : vector<48x16xf32>
    %127 = arith.mulf %98, %102 : vector<48x16xf32>
    %128 = arith.truncf %127 : vector<48x16xf32> to vector<48x16xbf16>
    %cst_52 = arith.constant dense<0.000000e+00> : vector<48x16xf32>
    %129 = tpu.matmul %128, %104, %cst_52 {dimension_numbers = #tpu.dot_dimension_numbers<[1], [0], [0], [1], [0, 0, 1, 1], [], []>} : vector<48x16xbf16>, vector<16x16xbf16>, vector<48x16xf32> -> vector<48x16xf32>
    %130 = arith.truncf %129 : vector<48x16xf32> to vector<48x16xbf16>
    %cst_53 = arith.constant dense<0.000000e+00> : vector<48x16xf32>
    %131 = tpu.matmul %103, %130, %cst_53 {dimension_numbers = #tpu.dot_dimension_numbers<[1], [0], [0], [1], [0, 0, 1, 1], [], []>} : vector<48x48xbf16>, vector<48x16xbf16>, vector<48x16xf32> -> vector<48x16xf32>
    %132 = arith.mulf %108, %112 : vector<48x16xf32>
    %133 = arith.subf %131, %132 : vector<48x16xf32>
    %cst_54 = arith.constant 2.000000e+00 : f32
    %134 = vector.broadcast %cst_54 : f32 to vector<48x16xf32>
    %135 = arith.mulf %134, %133 : vector<48x16xf32>
    %cst_55 = arith.constant 8.99999984E-4 : f32
    %136 = vector.broadcast %cst_55 : f32 to vector<48x16xf32>
    %137 = arith.addf %135, %136 : vector<48x16xf32>
    %138 = arith.addf %119, %126 : vector<48x16xf32>
    %cst_56 = arith.constant 8.99999984E-4 : f32
    %139 = vector.broadcast %cst_56 : f32 to vector<48x16xf32>
    %140 = arith.addf %138, %139 : vector<48x16xf32>
    %141 = tpu.reciprocal %140 {approx = true} : vector<48x16xf32> -> vector<48x16xf32>
    %142 = arith.mulf %137, %141 : vector<48x16xf32>
    %cst_57 = arith.constant 2.000000e+00 : f32
    %143 = vector.broadcast %cst_57 : f32 to vector<48x16xf32>
    %144 = arith.mulf %143, %108 : vector<48x16xf32>
    %145 = arith.mulf %144, %112 : vector<48x16xf32>
    %cst_58 = arith.constant 9.99999974E-5 : f32
    %146 = vector.broadcast %cst_58 : f32 to vector<48x16xf32>
    %147 = arith.addf %145, %146 : vector<48x16xf32>
    %148 = arith.mulf %108, %108 : vector<48x16xf32>
    %149 = arith.mulf %112, %112 : vector<48x16xf32>
    %150 = arith.addf %148, %149 : vector<48x16xf32>
    %cst_59 = arith.constant 9.99999974E-5 : f32
    %151 = vector.broadcast %cst_59 : f32 to vector<48x16xf32>
    %152 = arith.addf %150, %151 : vector<48x16xf32>
    %153 = tpu.reciprocal %152 {approx = true} : vector<48x16xf32> -> vector<48x16xf32>
    %154 = arith.mulf %147, %153 : vector<48x16xf32>
    %155 = arith.mulf %154, %142 : vector<48x16xf32>
    %156 = tpu.iota {dimensions = array<i32: 1>} : vector<8x48xi32>
    %157 = tpu.iota {dimensions = array<i32: 0>} : vector<8x48xi32>
    %c16_i32 = arith.constant 16 : i32
    %158 = vector.broadcast %c16_i32 : i32 to vector<8x48xi32>
    %159 = arith.muli %157, %158 : vector<8x48xi32>
    %160 = arith.cmpi sge, %156, %159 : vector<8x48xi32>
    %c1_i32_60 = arith.constant 1 : i32
    %161 = vector.broadcast %c1_i32_60 : i32 to vector<8x48xi32>
    %162 = arith.addi %157, %161 : vector<8x48xi32>
    %c16_i32_61 = arith.constant 16 : i32
    %163 = vector.broadcast %c16_i32_61 : i32 to vector<8x48xi32>
    %164 = arith.muli %162, %163 : vector<8x48xi32>
    %165 = arith.cmpi slt, %156, %164 : vector<8x48xi32>
    %166 = arith.andi %160, %165 : vector<8x48xi1>
    %cst_62 = arith.constant 1.000000e+00 : f32
    %cst_63 = arith.constant 0.000000e+00 : f32
    %167 = vector.broadcast %cst_62 : f32 to vector<8x48xf32>
    %168 = vector.broadcast %cst_63 : f32 to vector<8x48xf32>
    %169 = arith.select %166, %167, %168 : vector<8x48xi1>, vector<8x48xf32>
    %cst_64 = arith.constant dense<0.000000e+00> : vector<8x16xf32>
    %170 = tpu.matmul %169, %155, %cst_64 {dimension_numbers = #tpu.dot_dimension_numbers<[1], [0], [0], [1], [0, 0, 1, 1], [], []>} : vector<8x48xf32>, vector<48x16xf32>, vector<8x16xf32> -> vector<8x16xf32>
    %cst_65 = arith.constant dense<0.000000e+00> : vector<8xf32>
    %171 = vector.multi_reduction <add>, %170, %cst_65 [1] : vector<8x16xf32> to vector<8xf32>
    %172 = vector.shape_cast %171 : vector<8xf32> to vector<8x1xf32>
    %cst_66 = arith.constant 3.906250e-03 : f32
    %173 = vector.broadcast %cst_66 : f32 to vector<8x1xf32>
    %174 = arith.mulf %172, %173 : vector<8x1xf32>
    %cst_67 = arith.constant dense<0.000000e+00> : vector<8x16xf32>
    %175 = tpu.matmul %169, %142, %cst_67 {dimension_numbers = #tpu.dot_dimension_numbers<[1], [0], [0], [1], [0, 0, 1, 1], [], []>} : vector<8x48xf32>, vector<48x16xf32>, vector<8x16xf32> -> vector<8x16xf32>
    %cst_68 = arith.constant dense<0.000000e+00> : vector<8xf32>
    %176 = vector.multi_reduction <add>, %175, %cst_68 [1] : vector<8x16xf32> to vector<8xf32>
    %177 = vector.shape_cast %176 : vector<8xf32> to vector<8x1xf32>
    %cst_69 = arith.constant 3.906250e-03 : f32
    %178 = vector.broadcast %cst_69 : f32 to vector<8x1xf32>
    %179 = arith.mulf %177, %178 : vector<8x1xf32>
    %c1_i32_70 = arith.constant 1 : i32
    %180 = vector.broadcast %c1_i32_70 : i32 to vector<8x128xi32>
    %181 = arith.cmpi eq, %4, %180 : vector<8x128xi32>
    %182 = vector.shape_cast %174 : vector<8x1xf32> to vector<8x1xf32>
    %183 = vector.broadcast %182 : vector<8x1xf32> to vector<8x128xf32>
    %184 = arith.select %181, %183, %92 : vector<8x128xi1>, vector<8x128xf32>
    %c6_i32 = arith.constant 6 : i32
    %185 = vector.broadcast %c6_i32 : i32 to vector<8x128xi32>
    %186 = arith.cmpi eq, %4, %185 : vector<8x128xi32>
    %187 = vector.shape_cast %179 : vector<8x1xf32> to vector<8x1xf32>
    %188 = vector.broadcast %187 : vector<8x1xf32> to vector<8x128xf32>
    %189 = arith.select %186, %188, %184 : vector<8x128xi1>, vector<8x128xf32>
    %c0_71 = arith.constant 0 : index
    %c0_72 = arith.constant 0 : index
    %190 = vector.load %arg14[%c0_71, %c0_72] : memref<24x48xbf16, #tpu.memory_space<vmem>>, vector<24x48xbf16>
    %c0_73 = arith.constant 0 : index
    %c0_74 = arith.constant 0 : index
    %191 = vector.load %arg18[%c0_73, %c0_74] : memref<16x8xbf16, #tpu.memory_space<vmem>>, vector<16x8xbf16>
    %192 = arith.truncf %98 : vector<48x16xf32> to vector<48x16xbf16>
    %cst_75 = arith.constant dense<0.000000e+00> : vector<48x8xf32>
    %193 = tpu.matmul %192, %191, %cst_75 {dimension_numbers = #tpu.dot_dimension_numbers<[1], [0], [0], [1], [0, 0, 1, 1], [], []>} : vector<48x16xbf16>, vector<16x8xbf16>, vector<48x8xf32> -> vector<48x8xf32>
    %194 = arith.truncf %193 : vector<48x8xf32> to vector<48x8xbf16>
    %cst_76 = arith.constant dense<0.000000e+00> : vector<24x8xf32>
    %195 = tpu.matmul %190, %194, %cst_76 {dimension_numbers = #tpu.dot_dimension_numbers<[1], [0], [0], [1], [0, 0, 1, 1], [], []>} : vector<24x48xbf16>, vector<48x8xbf16>, vector<24x8xf32> -> vector<24x8xf32>
    %196 = arith.truncf %102 : vector<48x16xf32> to vector<48x16xbf16>
    %cst_77 = arith.constant dense<0.000000e+00> : vector<48x8xf32>
    %197 = tpu.matmul %196, %191, %cst_77 {dimension_numbers = #tpu.dot_dimension_numbers<[1], [0], [0], [1], [0, 0, 1, 1], [], []>} : vector<48x16xbf16>, vector<16x8xbf16>, vector<48x8xf32> -> vector<48x8xf32>
    %198 = arith.truncf %197 : vector<48x8xf32> to vector<48x8xbf16>
    %cst_78 = arith.constant dense<0.000000e+00> : vector<24x8xf32>
    %199 = tpu.matmul %190, %198, %cst_78 {dimension_numbers = #tpu.dot_dimension_numbers<[1], [0], [0], [1], [0, 0, 1, 1], [], []>} : vector<24x48xbf16>, vector<48x8xbf16>, vector<24x8xf32> -> vector<24x8xf32>
    %c0_79 = arith.constant 0 : index
    %c0_80 = arith.constant 0 : index
    %200 = vector.load %arg5[%c0_79, %c0_80] : memref<24x24xbf16, #tpu.memory_space<vmem>>, vector<24x24xbf16>
    %c0_81 = arith.constant 0 : index
    %c0_82 = arith.constant 0 : index
    %201 = vector.load %arg10[%c0_81, %c0_82] : memref<8x8xbf16, #tpu.memory_space<vmem>>, vector<8x8xbf16>
    %202 = arith.truncf %195 : vector<24x8xf32> to vector<24x8xbf16>
    %cst_83 = arith.constant dense<0.000000e+00> : vector<24x8xf32>
    %203 = tpu.matmul %202, %201, %cst_83 {dimension_numbers = #tpu.dot_dimension_numbers<[1], [0], [0], [1], [0, 0, 1, 1], [], []>} : vector<24x8xbf16>, vector<8x8xbf16>, vector<24x8xf32> -> vector<24x8xf32>
    %204 = arith.truncf %203 : vector<24x8xf32> to vector<24x8xbf16>
    %cst_84 = arith.constant dense<0.000000e+00> : vector<24x8xf32>
    %205 = tpu.matmul %200, %204, %cst_84 {dimension_numbers = #tpu.dot_dimension_numbers<[1], [0], [0], [1], [0, 0, 1, 1], [], []>} : vector<24x24xbf16>, vector<24x8xbf16>, vector<24x8xf32> -> vector<24x8xf32>
    %206 = arith.truncf %199 : vector<24x8xf32> to vector<24x8xbf16>
    %cst_85 = arith.constant dense<0.000000e+00> : vector<24x8xf32>
    %207 = tpu.matmul %206, %201, %cst_85 {dimension_numbers = #tpu.dot_dimension_numbers<[1], [0], [0], [1], [0, 0, 1, 1], [], []>} : vector<24x8xbf16>, vector<8x8xbf16>, vector<24x8xf32> -> vector<24x8xf32>
    %208 = arith.truncf %207 : vector<24x8xf32> to vector<24x8xbf16>
    %cst_86 = arith.constant dense<0.000000e+00> : vector<24x8xf32>
    %209 = tpu.matmul %200, %208, %cst_86 {dimension_numbers = #tpu.dot_dimension_numbers<[1], [0], [0], [1], [0, 0, 1, 1], [], []>} : vector<24x24xbf16>, vector<24x8xbf16>, vector<24x8xf32> -> vector<24x8xf32>
    %210 = arith.mulf %195, %195 : vector<24x8xf32>
    %211 = arith.truncf %210 : vector<24x8xf32> to vector<24x8xbf16>
    %cst_87 = arith.constant dense<0.000000e+00> : vector<24x8xf32>
    %212 = tpu.matmul %211, %201, %cst_87 {dimension_numbers = #tpu.dot_dimension_numbers<[1], [0], [0], [1], [0, 0, 1, 1], [], []>} : vector<24x8xbf16>, vector<8x8xbf16>, vector<24x8xf32> -> vector<24x8xf32>
    %213 = arith.truncf %212 : vector<24x8xf32> to vector<24x8xbf16>
    %cst_88 = arith.constant dense<0.000000e+00> : vector<24x8xf32>
    %214 = tpu.matmul %200, %213, %cst_88 {dimension_numbers = #tpu.dot_dimension_numbers<[1], [0], [0], [1], [0, 0, 1, 1], [], []>} : vector<24x24xbf16>, vector<24x8xbf16>, vector<24x8xf32> -> vector<24x8xf32>
    %215 = arith.mulf %205, %205 : vector<24x8xf32>
    %216 = arith.subf %214, %215 : vector<24x8xf32>
    %217 = arith.mulf %199, %199 : vector<24x8xf32>
    %218 = arith.truncf %217 : vector<24x8xf32> to vector<24x8xbf16>
    %cst_89 = arith.constant dense<0.000000e+00> : vector<24x8xf32>
    %219 = tpu.matmul %218, %201, %cst_89 {dimension_numbers = #tpu.dot_dimension_numbers<[1], [0], [0], [1], [0, 0, 1, 1], [], []>} : vector<24x8xbf16>, vector<8x8xbf16>, vector<24x8xf32> -> vector<24x8xf32>
    %220 = arith.truncf %219 : vector<24x8xf32> to vector<24x8xbf16>
    %cst_90 = arith.constant dense<0.000000e+00> : vector<24x8xf32>
    %221 = tpu.matmul %200, %220, %cst_90 {dimension_numbers = #tpu.dot_dimension_numbers<[1], [0], [0], [1], [0, 0, 1, 1], [], []>} : vector<24x24xbf16>, vector<24x8xbf16>, vector<24x8xf32> -> vector<24x8xf32>
    %222 = arith.mulf %209, %209 : vector<24x8xf32>
    %223 = arith.subf %221, %222 : vector<24x8xf32>
    %224 = arith.mulf %195, %199 : vector<24x8xf32>
    %225 = arith.truncf %224 : vector<24x8xf32> to vector<24x8xbf16>
    %cst_91 = arith.constant dense<0.000000e+00> : vector<24x8xf32>
    %226 = tpu.matmul %225, %201, %cst_91 {dimension_numbers = #tpu.dot_dimension_numbers<[1], [0], [0], [1], [0, 0, 1, 1], [], []>} : vector<24x8xbf16>, vector<8x8xbf16>, vector<24x8xf32> -> vector<24x8xf32>
    %227 = arith.truncf %226 : vector<24x8xf32> to vector<24x8xbf16>
    %cst_92 = arith.constant dense<0.000000e+00> : vector<24x8xf32>
    %228 = tpu.matmul %200, %227, %cst_92 {dimension_numbers = #tpu.dot_dimension_numbers<[1], [0], [0], [1], [0, 0, 1, 1], [], []>} : vector<24x24xbf16>, vector<24x8xbf16>, vector<24x8xf32> -> vector<24x8xf32>
    %229 = arith.mulf %205, %209 : vector<24x8xf32>
    %230 = arith.subf %228, %229 : vector<24x8xf32>
    %cst_93 = arith.constant 2.000000e+00 : f32
    %231 = vector.broadcast %cst_93 : f32 to vector<24x8xf32>
    %232 = arith.mulf %231, %230 : vector<24x8xf32>
    %cst_94 = arith.constant 8.99999984E-4 : f32
    %233 = vector.broadcast %cst_94 : f32 to vector<24x8xf32>
    %234 = arith.addf %232, %233 : vector<24x8xf32>
    %235 = arith.addf %216, %223 : vector<24x8xf32>
    %cst_95 = arith.constant 8.99999984E-4 : f32
    %236 = vector.broadcast %cst_95 : f32 to vector<24x8xf32>
    %237 = arith.addf %235, %236 : vector<24x8xf32>
    %238 = tpu.reciprocal %237 {approx = true} : vector<24x8xf32> -> vector<24x8xf32>
    %239 = arith.mulf %234, %238 : vector<24x8xf32>
    %cst_96 = arith.constant 2.000000e+00 : f32
    %240 = vector.broadcast %cst_96 : f32 to vector<24x8xf32>
    %241 = arith.mulf %240, %205 : vector<24x8xf32>
    %242 = arith.mulf %241, %209 : vector<24x8xf32>
    %cst_97 = arith.constant 9.99999974E-5 : f32
    %243 = vector.broadcast %cst_97 : f32 to vector<24x8xf32>
    %244 = arith.addf %242, %243 : vector<24x8xf32>
    %245 = arith.mulf %205, %205 : vector<24x8xf32>
    %246 = arith.mulf %209, %209 : vector<24x8xf32>
    %247 = arith.addf %245, %246 : vector<24x8xf32>
    %cst_98 = arith.constant 9.99999974E-5 : f32
    %248 = vector.broadcast %cst_98 : f32 to vector<24x8xf32>
    %249 = arith.addf %247, %248 : vector<24x8xf32>
    %250 = tpu.reciprocal %249 {approx = true} : vector<24x8xf32> -> vector<24x8xf32>
    %251 = arith.mulf %244, %250 : vector<24x8xf32>
    %252 = arith.mulf %251, %239 : vector<24x8xf32>
    %253 = tpu.iota {dimensions = array<i32: 1>} : vector<8x24xi32>
    %254 = tpu.iota {dimensions = array<i32: 0>} : vector<8x24xi32>
    %c8_i32 = arith.constant 8 : i32
    %255 = vector.broadcast %c8_i32 : i32 to vector<8x24xi32>
    %256 = arith.muli %254, %255 : vector<8x24xi32>
    %257 = arith.cmpi sge, %253, %256 : vector<8x24xi32>
    %c1_i32_99 = arith.constant 1 : i32
    %258 = vector.broadcast %c1_i32_99 : i32 to vector<8x24xi32>
    %259 = arith.addi %254, %258 : vector<8x24xi32>
    %c8_i32_100 = arith.constant 8 : i32
    %260 = vector.broadcast %c8_i32_100 : i32 to vector<8x24xi32>
    %261 = arith.muli %259, %260 : vector<8x24xi32>
    %262 = arith.cmpi slt, %253, %261 : vector<8x24xi32>
    %263 = arith.andi %257, %262 : vector<8x24xi1>
    %cst_101 = arith.constant 1.000000e+00 : f32
    %cst_102 = arith.constant 0.000000e+00 : f32
    %264 = vector.broadcast %cst_101 : f32 to vector<8x24xf32>
    %265 = vector.broadcast %cst_102 : f32 to vector<8x24xf32>
    %266 = arith.select %263, %264, %265 : vector<8x24xi1>, vector<8x24xf32>
    %cst_103 = arith.constant dense<0.000000e+00> : vector<8x8xf32>
    %267 = tpu.matmul %266, %252, %cst_103 {dimension_numbers = #tpu.dot_dimension_numbers<[1], [0], [0], [1], [0, 0, 1, 1], [], []>} : vector<8x24xf32>, vector<24x8xf32>, vector<8x8xf32> -> vector<8x8xf32>
    %cst_104 = arith.constant dense<0.000000e+00> : vector<8xf32>
    %268 = vector.multi_reduction <add>, %267, %cst_104 [1] : vector<8x8xf32> to vector<8xf32>
    %269 = vector.shape_cast %268 : vector<8xf32> to vector<8x1xf32>
    %cst_105 = arith.constant 1.562500e-02 : f32
    %270 = vector.broadcast %cst_105 : f32 to vector<8x1xf32>
    %271 = arith.mulf %269, %270 : vector<8x1xf32>
    %cst_106 = arith.constant dense<0.000000e+00> : vector<8x8xf32>
    %272 = tpu.matmul %266, %239, %cst_106 {dimension_numbers = #tpu.dot_dimension_numbers<[1], [0], [0], [1], [0, 0, 1, 1], [], []>} : vector<8x24xf32>, vector<24x8xf32>, vector<8x8xf32> -> vector<8x8xf32>
    %cst_107 = arith.constant dense<0.000000e+00> : vector<8xf32>
    %273 = vector.multi_reduction <add>, %272, %cst_107 [1] : vector<8x8xf32> to vector<8xf32>
    %274 = vector.shape_cast %273 : vector<8xf32> to vector<8x1xf32>
    %cst_108 = arith.constant 1.562500e-02 : f32
    %275 = vector.broadcast %cst_108 : f32 to vector<8x1xf32>
    %276 = arith.mulf %274, %275 : vector<8x1xf32>
    %c2_i32 = arith.constant 2 : i32
    %277 = vector.broadcast %c2_i32 : i32 to vector<8x128xi32>
    %278 = arith.cmpi eq, %4, %277 : vector<8x128xi32>
    %279 = vector.shape_cast %271 : vector<8x1xf32> to vector<8x1xf32>
    %280 = vector.broadcast %279 : vector<8x1xf32> to vector<8x128xf32>
    %281 = arith.select %278, %280, %189 : vector<8x128xi1>, vector<8x128xf32>
    %c7_i32 = arith.constant 7 : i32
    %282 = vector.broadcast %c7_i32 : i32 to vector<8x128xi32>
    %283 = arith.cmpi eq, %4, %282 : vector<8x128xi32>
    %284 = vector.shape_cast %276 : vector<8x1xf32> to vector<8x1xf32>
    %285 = vector.broadcast %284 : vector<8x1xf32> to vector<8x128xf32>
    %286 = arith.select %283, %285, %281 : vector<8x128xi1>, vector<8x128xf32>
    %c0_109 = arith.constant 0 : index
    %c0_110 = arith.constant 0 : index
    %287 = vector.load %arg15[%c0_109, %c0_110] : memref<12x24xbf16, #tpu.memory_space<vmem>>, vector<12x24xbf16>
    %c0_111 = arith.constant 0 : index
    %c0_112 = arith.constant 0 : index
    %288 = vector.load %arg19[%c0_111, %c0_112] : memref<8x4xbf16, #tpu.memory_space<vmem>>, vector<8x4xbf16>
    %289 = arith.truncf %195 : vector<24x8xf32> to vector<24x8xbf16>
    %cst_113 = arith.constant dense<0.000000e+00> : vector<24x4xf32>
    %290 = tpu.matmul %289, %288, %cst_113 {dimension_numbers = #tpu.dot_dimension_numbers<[1], [0], [0], [1], [0, 0, 1, 1], [], []>} : vector<24x8xbf16>, vector<8x4xbf16>, vector<24x4xf32> -> vector<24x4xf32>
    %291 = arith.truncf %290 : vector<24x4xf32> to vector<24x4xbf16>
    %cst_114 = arith.constant dense<0.000000e+00> : vector<12x4xf32>
    %292 = tpu.matmul %287, %291, %cst_114 {dimension_numbers = #tpu.dot_dimension_numbers<[1], [0], [0], [1], [0, 0, 1, 1], [], []>} : vector<12x24xbf16>, vector<24x4xbf16>, vector<12x4xf32> -> vector<12x4xf32>
    %293 = arith.truncf %199 : vector<24x8xf32> to vector<24x8xbf16>
    %cst_115 = arith.constant dense<0.000000e+00> : vector<24x4xf32>
    %294 = tpu.matmul %293, %288, %cst_115 {dimension_numbers = #tpu.dot_dimension_numbers<[1], [0], [0], [1], [0, 0, 1, 1], [], []>} : vector<24x8xbf16>, vector<8x4xbf16>, vector<24x4xf32> -> vector<24x4xf32>
    %295 = arith.truncf %294 : vector<24x4xf32> to vector<24x4xbf16>
    %cst_116 = arith.constant dense<0.000000e+00> : vector<12x4xf32>
    %296 = tpu.matmul %287, %295, %cst_116 {dimension_numbers = #tpu.dot_dimension_numbers<[1], [0], [0], [1], [0, 0, 1, 1], [], []>} : vector<12x24xbf16>, vector<24x4xbf16>, vector<12x4xf32> -> vector<12x4xf32>
    %c0_117 = arith.constant 0 : index
    %c0_118 = arith.constant 0 : index
    %297 = vector.load %arg6[%c0_117, %c0_118] : memref<12x12xbf16, #tpu.memory_space<vmem>>, vector<12x12xbf16>
    %c0_119 = arith.constant 0 : index
    %c0_120 = arith.constant 0 : index
    %298 = vector.load %arg11[%c0_119, %c0_120] : memref<4x4xbf16, #tpu.memory_space<vmem>>, vector<4x4xbf16>
    %299 = arith.truncf %292 : vector<12x4xf32> to vector<12x4xbf16>
    %cst_121 = arith.constant dense<0.000000e+00> : vector<12x4xf32>
    %300 = tpu.matmul %299, %298, %cst_121 {dimension_numbers = #tpu.dot_dimension_numbers<[1], [0], [0], [1], [0, 0, 1, 1], [], []>} : vector<12x4xbf16>, vector<4x4xbf16>, vector<12x4xf32> -> vector<12x4xf32>
    %301 = arith.truncf %300 : vector<12x4xf32> to vector<12x4xbf16>
    %cst_122 = arith.constant dense<0.000000e+00> : vector<12x4xf32>
    %302 = tpu.matmul %297, %301, %cst_122 {dimension_numbers = #tpu.dot_dimension_numbers<[1], [0], [0], [1], [0, 0, 1, 1], [], []>} : vector<12x12xbf16>, vector<12x4xbf16>, vector<12x4xf32> -> vector<12x4xf32>
    %303 = arith.truncf %296 : vector<12x4xf32> to vector<12x4xbf16>
    %cst_123 = arith.constant dense<0.000000e+00> : vector<12x4xf32>
    %304 = tpu.matmul %303, %298, %cst_123 {dimension_numbers = #tpu.dot_dimension_numbers<[1], [0], [0], [1], [0, 0, 1, 1], [], []>} : vector<12x4xbf16>, vector<4x4xbf16>, vector<12x4xf32> -> vector<12x4xf32>
    %305 = arith.truncf %304 : vector<12x4xf32> to vector<12x4xbf16>
    %cst_124 = arith.constant dense<0.000000e+00> : vector<12x4xf32>
    %306 = tpu.matmul %297, %305, %cst_124 {dimension_numbers = #tpu.dot_dimension_numbers<[1], [0], [0], [1], [0, 0, 1, 1], [], []>} : vector<12x12xbf16>, vector<12x4xbf16>, vector<12x4xf32> -> vector<12x4xf32>
    %307 = arith.mulf %292, %292 : vector<12x4xf32>
    %308 = arith.truncf %307 : vector<12x4xf32> to vector<12x4xbf16>
    %cst_125 = arith.constant dense<0.000000e+00> : vector<12x4xf32>
    %309 = tpu.matmul %308, %298, %cst_125 {dimension_numbers = #tpu.dot_dimension_numbers<[1], [0], [0], [1], [0, 0, 1, 1], [], []>} : vector<12x4xbf16>, vector<4x4xbf16>, vector<12x4xf32> -> vector<12x4xf32>
    %310 = arith.truncf %309 : vector<12x4xf32> to vector<12x4xbf16>
    %cst_126 = arith.constant dense<0.000000e+00> : vector<12x4xf32>
    %311 = tpu.matmul %297, %310, %cst_126 {dimension_numbers = #tpu.dot_dimension_numbers<[1], [0], [0], [1], [0, 0, 1, 1], [], []>} : vector<12x12xbf16>, vector<12x4xbf16>, vector<12x4xf32> -> vector<12x4xf32>
    %312 = arith.mulf %302, %302 : vector<12x4xf32>
    %313 = arith.subf %311, %312 : vector<12x4xf32>
    %314 = arith.mulf %296, %296 : vector<12x4xf32>
    %315 = arith.truncf %314 : vector<12x4xf32> to vector<12x4xbf16>
    %cst_127 = arith.constant dense<0.000000e+00> : vector<12x4xf32>
    %316 = tpu.matmul %315, %298, %cst_127 {dimension_numbers = #tpu.dot_dimension_numbers<[1], [0], [0], [1], [0, 0, 1, 1], [], []>} : vector<12x4xbf16>, vector<4x4xbf16>, vector<12x4xf32> -> vector<12x4xf32>
    %317 = arith.truncf %316 : vector<12x4xf32> to vector<12x4xbf16>
    %cst_128 = arith.constant dense<0.000000e+00> : vector<12x4xf32>
    %318 = tpu.matmul %297, %317, %cst_128 {dimension_numbers = #tpu.dot_dimension_numbers<[1], [0], [0], [1], [0, 0, 1, 1], [], []>} : vector<12x12xbf16>, vector<12x4xbf16>, vector<12x4xf32> -> vector<12x4xf32>
    %319 = arith.mulf %306, %306 : vector<12x4xf32>
    %320 = arith.subf %318, %319 : vector<12x4xf32>
    %321 = arith.mulf %292, %296 : vector<12x4xf32>
    %322 = arith.truncf %321 : vector<12x4xf32> to vector<12x4xbf16>
    %cst_129 = arith.constant dense<0.000000e+00> : vector<12x4xf32>
    %323 = tpu.matmul %322, %298, %cst_129 {dimension_numbers = #tpu.dot_dimension_numbers<[1], [0], [0], [1], [0, 0, 1, 1], [], []>} : vector<12x4xbf16>, vector<4x4xbf16>, vector<12x4xf32> -> vector<12x4xf32>
    %324 = arith.truncf %323 : vector<12x4xf32> to vector<12x4xbf16>
    %cst_130 = arith.constant dense<0.000000e+00> : vector<12x4xf32>
    %325 = tpu.matmul %297, %324, %cst_130 {dimension_numbers = #tpu.dot_dimension_numbers<[1], [0], [0], [1], [0, 0, 1, 1], [], []>} : vector<12x12xbf16>, vector<12x4xbf16>, vector<12x4xf32> -> vector<12x4xf32>
    %326 = arith.mulf %302, %306 : vector<12x4xf32>
    %327 = arith.subf %325, %326 : vector<12x4xf32>
    %cst_131 = arith.constant 2.000000e+00 : f32
    %328 = vector.broadcast %cst_131 : f32 to vector<12x4xf32>
    %329 = arith.mulf %328, %327 : vector<12x4xf32>
    %cst_132 = arith.constant 8.99999984E-4 : f32
    %330 = vector.broadcast %cst_132 : f32 to vector<12x4xf32>
    %331 = arith.addf %329, %330 : vector<12x4xf32>
    %332 = arith.addf %313, %320 : vector<12x4xf32>
    %cst_133 = arith.constant 8.99999984E-4 : f32
    %333 = vector.broadcast %cst_133 : f32 to vector<12x4xf32>
    %334 = arith.addf %332, %333 : vector<12x4xf32>
    %335 = tpu.reciprocal %334 {approx = true} : vector<12x4xf32> -> vector<12x4xf32>
    %336 = arith.mulf %331, %335 : vector<12x4xf32>
    %cst_134 = arith.constant 2.000000e+00 : f32
    %337 = vector.broadcast %cst_134 : f32 to vector<12x4xf32>
    %338 = arith.mulf %337, %302 : vector<12x4xf32>
    %339 = arith.mulf %338, %306 : vector<12x4xf32>
    %cst_135 = arith.constant 9.99999974E-5 : f32
    %340 = vector.broadcast %cst_135 : f32 to vector<12x4xf32>
    %341 = arith.addf %339, %340 : vector<12x4xf32>
    %342 = arith.mulf %302, %302 : vector<12x4xf32>
    %343 = arith.mulf %306, %306 : vector<12x4xf32>
    %344 = arith.addf %342, %343 : vector<12x4xf32>
    %cst_136 = arith.constant 9.99999974E-5 : f32
    %345 = vector.broadcast %cst_136 : f32 to vector<12x4xf32>
    %346 = arith.addf %344, %345 : vector<12x4xf32>
    %347 = tpu.reciprocal %346 {approx = true} : vector<12x4xf32> -> vector<12x4xf32>
    %348 = arith.mulf %341, %347 : vector<12x4xf32>
    %349 = arith.mulf %348, %336 : vector<12x4xf32>
    %350 = tpu.iota {dimensions = array<i32: 1>} : vector<8x12xi32>
    %351 = tpu.iota {dimensions = array<i32: 0>} : vector<8x12xi32>
    %c4_i32 = arith.constant 4 : i32
    %352 = vector.broadcast %c4_i32 : i32 to vector<8x12xi32>
    %353 = arith.muli %351, %352 : vector<8x12xi32>
    %354 = arith.cmpi sge, %350, %353 : vector<8x12xi32>
    %c1_i32_137 = arith.constant 1 : i32
    %355 = vector.broadcast %c1_i32_137 : i32 to vector<8x12xi32>
    %356 = arith.addi %351, %355 : vector<8x12xi32>
    %c4_i32_138 = arith.constant 4 : i32
    %357 = vector.broadcast %c4_i32_138 : i32 to vector<8x12xi32>
    %358 = arith.muli %356, %357 : vector<8x12xi32>
    %359 = arith.cmpi slt, %350, %358 : vector<8x12xi32>
    %360 = arith.andi %354, %359 : vector<8x12xi1>
    %cst_139 = arith.constant 1.000000e+00 : f32
    %cst_140 = arith.constant 0.000000e+00 : f32
    %361 = vector.broadcast %cst_139 : f32 to vector<8x12xf32>
    %362 = vector.broadcast %cst_140 : f32 to vector<8x12xf32>
    %363 = arith.select %360, %361, %362 : vector<8x12xi1>, vector<8x12xf32>
    %cst_141 = arith.constant dense<0.000000e+00> : vector<8x4xf32>
    %364 = tpu.matmul %363, %349, %cst_141 {dimension_numbers = #tpu.dot_dimension_numbers<[1], [0], [0], [1], [0, 0, 1, 1], [], []>} : vector<8x12xf32>, vector<12x4xf32>, vector<8x4xf32> -> vector<8x4xf32>
    %cst_142 = arith.constant dense<0.000000e+00> : vector<8xf32>
    %365 = vector.multi_reduction <add>, %364, %cst_142 [1] : vector<8x4xf32> to vector<8xf32>
    %366 = vector.shape_cast %365 : vector<8xf32> to vector<8x1xf32>
    %cst_143 = arith.constant 6.250000e-02 : f32
    %367 = vector.broadcast %cst_143 : f32 to vector<8x1xf32>
    %368 = arith.mulf %366, %367 : vector<8x1xf32>
    %cst_144 = arith.constant dense<0.000000e+00> : vector<8x4xf32>
    %369 = tpu.matmul %363, %336, %cst_144 {dimension_numbers = #tpu.dot_dimension_numbers<[1], [0], [0], [1], [0, 0, 1, 1], [], []>} : vector<8x12xf32>, vector<12x4xf32>, vector<8x4xf32> -> vector<8x4xf32>
    %cst_145 = arith.constant dense<0.000000e+00> : vector<8xf32>
    %370 = vector.multi_reduction <add>, %369, %cst_145 [1] : vector<8x4xf32> to vector<8xf32>
    %371 = vector.shape_cast %370 : vector<8xf32> to vector<8x1xf32>
    %cst_146 = arith.constant 6.250000e-02 : f32
    %372 = vector.broadcast %cst_146 : f32 to vector<8x1xf32>
    %373 = arith.mulf %371, %372 : vector<8x1xf32>
    %c3_i32 = arith.constant 3 : i32
    %374 = vector.broadcast %c3_i32 : i32 to vector<8x128xi32>
    %375 = arith.cmpi eq, %4, %374 : vector<8x128xi32>
    %376 = vector.shape_cast %368 : vector<8x1xf32> to vector<8x1xf32>
    %377 = vector.broadcast %376 : vector<8x1xf32> to vector<8x128xf32>
    %378 = arith.select %375, %377, %286 : vector<8x128xi1>, vector<8x128xf32>
    %c8_i32_147 = arith.constant 8 : i32
    %379 = vector.broadcast %c8_i32_147 : i32 to vector<8x128xi32>
    %380 = arith.cmpi eq, %4, %379 : vector<8x128xi32>
    %381 = vector.shape_cast %373 : vector<8x1xf32> to vector<8x1xf32>
    %382 = vector.broadcast %381 : vector<8x1xf32> to vector<8x128xf32>
    %383 = arith.select %380, %382, %378 : vector<8x128xi1>, vector<8x128xf32>
    %c0_148 = arith.constant 0 : index
    %c0_149 = arith.constant 0 : index
    %384 = vector.load %arg16[%c0_148, %c0_149] : memref<6x12xbf16, #tpu.memory_space<vmem>>, vector<6x12xbf16>
    %c0_150 = arith.constant 0 : index
    %c0_151 = arith.constant 0 : index
    %385 = vector.load %arg20[%c0_150, %c0_151] : memref<4x2xbf16, #tpu.memory_space<vmem>>, vector<4x2xbf16>
    %386 = arith.truncf %292 : vector<12x4xf32> to vector<12x4xbf16>
    %cst_152 = arith.constant dense<0.000000e+00> : vector<12x2xf32>
    %387 = tpu.matmul %386, %385, %cst_152 {dimension_numbers = #tpu.dot_dimension_numbers<[1], [0], [0], [1], [0, 0, 1, 1], [], []>} : vector<12x4xbf16>, vector<4x2xbf16>, vector<12x2xf32> -> vector<12x2xf32>
    %388 = arith.truncf %387 : vector<12x2xf32> to vector<12x2xbf16>
    %cst_153 = arith.constant dense<0.000000e+00> : vector<6x2xf32>
    %389 = tpu.matmul %384, %388, %cst_153 {dimension_numbers = #tpu.dot_dimension_numbers<[1], [0], [0], [1], [0, 0, 1, 1], [], []>} : vector<6x12xbf16>, vector<12x2xbf16>, vector<6x2xf32> -> vector<6x2xf32>
    %390 = arith.truncf %296 : vector<12x4xf32> to vector<12x4xbf16>
    %cst_154 = arith.constant dense<0.000000e+00> : vector<12x2xf32>
    %391 = tpu.matmul %390, %385, %cst_154 {dimension_numbers = #tpu.dot_dimension_numbers<[1], [0], [0], [1], [0, 0, 1, 1], [], []>} : vector<12x4xbf16>, vector<4x2xbf16>, vector<12x2xf32> -> vector<12x2xf32>
    %392 = arith.truncf %391 : vector<12x2xf32> to vector<12x2xbf16>
    %cst_155 = arith.constant dense<0.000000e+00> : vector<6x2xf32>
    %393 = tpu.matmul %384, %392, %cst_155 {dimension_numbers = #tpu.dot_dimension_numbers<[1], [0], [0], [1], [0, 0, 1, 1], [], []>} : vector<6x12xbf16>, vector<12x2xbf16>, vector<6x2xf32> -> vector<6x2xf32>
    %c0_156 = arith.constant 0 : index
    %c0_157 = arith.constant 0 : index
    %394 = vector.load %arg7[%c0_156, %c0_157] : memref<6x6xbf16, #tpu.memory_space<vmem>>, vector<6x6xbf16>
    %c0_158 = arith.constant 0 : index
    %c0_159 = arith.constant 0 : index
    %395 = vector.load %arg12[%c0_158, %c0_159] : memref<2x2xbf16, #tpu.memory_space<vmem>>, vector<2x2xbf16>
    %396 = arith.truncf %389 : vector<6x2xf32> to vector<6x2xbf16>
    %cst_160 = arith.constant dense<0.000000e+00> : vector<6x2xf32>
    %397 = tpu.matmul %396, %395, %cst_160 {dimension_numbers = #tpu.dot_dimension_numbers<[1], [0], [0], [1], [0, 0, 1, 1], [], []>} : vector<6x2xbf16>, vector<2x2xbf16>, vector<6x2xf32> -> vector<6x2xf32>
    %398 = arith.truncf %397 : vector<6x2xf32> to vector<6x2xbf16>
    %cst_161 = arith.constant dense<0.000000e+00> : vector<6x2xf32>
    %399 = tpu.matmul %394, %398, %cst_161 {dimension_numbers = #tpu.dot_dimension_numbers<[1], [0], [0], [1], [0, 0, 1, 1], [], []>} : vector<6x6xbf16>, vector<6x2xbf16>, vector<6x2xf32> -> vector<6x2xf32>
    %400 = arith.truncf %393 : vector<6x2xf32> to vector<6x2xbf16>
    %cst_162 = arith.constant dense<0.000000e+00> : vector<6x2xf32>
    %401 = tpu.matmul %400, %395, %cst_162 {dimension_numbers = #tpu.dot_dimension_numbers<[1], [0], [0], [1], [0, 0, 1, 1], [], []>} : vector<6x2xbf16>, vector<2x2xbf16>, vector<6x2xf32> -> vector<6x2xf32>
    %402 = arith.truncf %401 : vector<6x2xf32> to vector<6x2xbf16>
    %cst_163 = arith.constant dense<0.000000e+00> : vector<6x2xf32>
    %403 = tpu.matmul %394, %402, %cst_163 {dimension_numbers = #tpu.dot_dimension_numbers<[1], [0], [0], [1], [0, 0, 1, 1], [], []>} : vector<6x6xbf16>, vector<6x2xbf16>, vector<6x2xf32> -> vector<6x2xf32>
    %404 = arith.mulf %389, %389 : vector<6x2xf32>
    %405 = arith.truncf %404 : vector<6x2xf32> to vector<6x2xbf16>
    %cst_164 = arith.constant dense<0.000000e+00> : vector<6x2xf32>
    %406 = tpu.matmul %405, %395, %cst_164 {dimension_numbers = #tpu.dot_dimension_numbers<[1], [0], [0], [1], [0, 0, 1, 1], [], []>} : vector<6x2xbf16>, vector<2x2xbf16>, vector<6x2xf32> -> vector<6x2xf32>
    %407 = arith.truncf %406 : vector<6x2xf32> to vector<6x2xbf16>
    %cst_165 = arith.constant dense<0.000000e+00> : vector<6x2xf32>
    %408 = tpu.matmul %394, %407, %cst_165 {dimension_numbers = #tpu.dot_dimension_numbers<[1], [0], [0], [1], [0, 0, 1, 1], [], []>} : vector<6x6xbf16>, vector<6x2xbf16>, vector<6x2xf32> -> vector<6x2xf32>
    %409 = arith.mulf %399, %399 : vector<6x2xf32>
    %410 = arith.subf %408, %409 : vector<6x2xf32>
    %411 = arith.mulf %393, %393 : vector<6x2xf32>
    %412 = arith.truncf %411 : vector<6x2xf32> to vector<6x2xbf16>
    %cst_166 = arith.constant dense<0.000000e+00> : vector<6x2xf32>
    %413 = tpu.matmul %412, %395, %cst_166 {dimension_numbers = #tpu.dot_dimension_numbers<[1], [0], [0], [1], [0, 0, 1, 1], [], []>} : vector<6x2xbf16>, vector<2x2xbf16>, vector<6x2xf32> -> vector<6x2xf32>
    %414 = arith.truncf %413 : vector<6x2xf32> to vector<6x2xbf16>
    %cst_167 = arith.constant dense<0.000000e+00> : vector<6x2xf32>
    %415 = tpu.matmul %394, %414, %cst_167 {dimension_numbers = #tpu.dot_dimension_numbers<[1], [0], [0], [1], [0, 0, 1, 1], [], []>} : vector<6x6xbf16>, vector<6x2xbf16>, vector<6x2xf32> -> vector<6x2xf32>
    %416 = arith.mulf %403, %403 : vector<6x2xf32>
    %417 = arith.subf %415, %416 : vector<6x2xf32>
    %418 = arith.mulf %389, %393 : vector<6x2xf32>
    %419 = arith.truncf %418 : vector<6x2xf32> to vector<6x2xbf16>
    %cst_168 = arith.constant dense<0.000000e+00> : vector<6x2xf32>
    %420 = tpu.matmul %419, %395, %cst_168 {dimension_numbers = #tpu.dot_dimension_numbers<[1], [0], [0], [1], [0, 0, 1, 1], [], []>} : vector<6x2xbf16>, vector<2x2xbf16>, vector<6x2xf32> -> vector<6x2xf32>
    %421 = arith.truncf %420 : vector<6x2xf32> to vector<6x2xbf16>
    %cst_169 = arith.constant dense<0.000000e+00> : vector<6x2xf32>
    %422 = tpu.matmul %394, %421, %cst_169 {dimension_numbers = #tpu.dot_dimension_numbers<[1], [0], [0], [1], [0, 0, 1, 1], [], []>} : vector<6x6xbf16>, vector<6x2xbf16>, vector<6x2xf32> -> vector<6x2xf32>
    %423 = arith.mulf %399, %403 : vector<6x2xf32>
    %424 = arith.subf %422, %423 : vector<6x2xf32>
    %cst_170 = arith.constant 2.000000e+00 : f32
    %425 = vector.broadcast %cst_170 : f32 to vector<6x2xf32>
    %426 = arith.mulf %425, %424 : vector<6x2xf32>
    %cst_171 = arith.constant 8.99999984E-4 : f32
    %427 = vector.broadcast %cst_171 : f32 to vector<6x2xf32>
    %428 = arith.addf %426, %427 : vector<6x2xf32>
    %429 = arith.addf %410, %417 : vector<6x2xf32>
    %cst_172 = arith.constant 8.99999984E-4 : f32
    %430 = vector.broadcast %cst_172 : f32 to vector<6x2xf32>
    %431 = arith.addf %429, %430 : vector<6x2xf32>
    %432 = tpu.reciprocal %431 {approx = true} : vector<6x2xf32> -> vector<6x2xf32>
    %433 = arith.mulf %428, %432 : vector<6x2xf32>
    %cst_173 = arith.constant 2.000000e+00 : f32
    %434 = vector.broadcast %cst_173 : f32 to vector<6x2xf32>
    %435 = arith.mulf %434, %399 : vector<6x2xf32>
    %436 = arith.mulf %435, %403 : vector<6x2xf32>
    %cst_174 = arith.constant 9.99999974E-5 : f32
    %437 = vector.broadcast %cst_174 : f32 to vector<6x2xf32>
    %438 = arith.addf %436, %437 : vector<6x2xf32>
    %439 = arith.mulf %399, %399 : vector<6x2xf32>
    %440 = arith.mulf %403, %403 : vector<6x2xf32>
    %441 = arith.addf %439, %440 : vector<6x2xf32>
    %cst_175 = arith.constant 9.99999974E-5 : f32
    %442 = vector.broadcast %cst_175 : f32 to vector<6x2xf32>
    %443 = arith.addf %441, %442 : vector<6x2xf32>
    %444 = tpu.reciprocal %443 {approx = true} : vector<6x2xf32> -> vector<6x2xf32>
    %445 = arith.mulf %438, %444 : vector<6x2xf32>
    %446 = arith.mulf %445, %433 : vector<6x2xf32>
    %447 = tpu.iota {dimensions = array<i32: 1>} : vector<8x6xi32>
    %448 = tpu.iota {dimensions = array<i32: 0>} : vector<8x6xi32>
    %c2_i32_176 = arith.constant 2 : i32
    %449 = vector.broadcast %c2_i32_176 : i32 to vector<8x6xi32>
    %450 = arith.muli %448, %449 : vector<8x6xi32>
    %451 = arith.cmpi sge, %447, %450 : vector<8x6xi32>
    %c1_i32_177 = arith.constant 1 : i32
    %452 = vector.broadcast %c1_i32_177 : i32 to vector<8x6xi32>
    %453 = arith.addi %448, %452 : vector<8x6xi32>
    %c2_i32_178 = arith.constant 2 : i32
    %454 = vector.broadcast %c2_i32_178 : i32 to vector<8x6xi32>
    %455 = arith.muli %453, %454 : vector<8x6xi32>
    %456 = arith.cmpi slt, %447, %455 : vector<8x6xi32>
    %457 = arith.andi %451, %456 : vector<8x6xi1>
    %cst_179 = arith.constant 1.000000e+00 : f32
    %cst_180 = arith.constant 0.000000e+00 : f32
    %458 = vector.broadcast %cst_179 : f32 to vector<8x6xf32>
    %459 = vector.broadcast %cst_180 : f32 to vector<8x6xf32>
    %460 = arith.select %457, %458, %459 : vector<8x6xi1>, vector<8x6xf32>
    %cst_181 = arith.constant dense<0.000000e+00> : vector<8x2xf32>
    %461 = tpu.matmul %460, %446, %cst_181 {dimension_numbers = #tpu.dot_dimension_numbers<[1], [0], [0], [1], [0, 0, 1, 1], [], []>} : vector<8x6xf32>, vector<6x2xf32>, vector<8x2xf32> -> vector<8x2xf32>
    %cst_182 = arith.constant dense<0.000000e+00> : vector<8xf32>
    %462 = vector.multi_reduction <add>, %461, %cst_182 [1] : vector<8x2xf32> to vector<8xf32>
    %463 = vector.shape_cast %462 : vector<8xf32> to vector<8x1xf32>
    %cst_183 = arith.constant 2.500000e-01 : f32
    %464 = vector.broadcast %cst_183 : f32 to vector<8x1xf32>
    %465 = arith.mulf %463, %464 : vector<8x1xf32>
    %cst_184 = arith.constant dense<0.000000e+00> : vector<8x2xf32>
    %466 = tpu.matmul %460, %433, %cst_184 {dimension_numbers = #tpu.dot_dimension_numbers<[1], [0], [0], [1], [0, 0, 1, 1], [], []>} : vector<8x6xf32>, vector<6x2xf32>, vector<8x2xf32> -> vector<8x2xf32>
    %cst_185 = arith.constant dense<0.000000e+00> : vector<8xf32>
    %467 = vector.multi_reduction <add>, %466, %cst_185 [1] : vector<8x2xf32> to vector<8xf32>
    %468 = vector.shape_cast %467 : vector<8xf32> to vector<8x1xf32>
    %cst_186 = arith.constant 2.500000e-01 : f32
    %469 = vector.broadcast %cst_186 : f32 to vector<8x1xf32>
    %470 = arith.mulf %468, %469 : vector<8x1xf32>
    %c4_i32_187 = arith.constant 4 : i32
    %471 = vector.broadcast %c4_i32_187 : i32 to vector<8x128xi32>
    %472 = arith.cmpi eq, %4, %471 : vector<8x128xi32>
    %473 = vector.shape_cast %465 : vector<8x1xf32> to vector<8x1xf32>
    %474 = vector.broadcast %473 : vector<8x1xf32> to vector<8x128xf32>
    %475 = arith.select %472, %474, %383 : vector<8x128xi1>, vector<8x128xf32>
    %c9_i32 = arith.constant 9 : i32
    %476 = vector.broadcast %c9_i32 : i32 to vector<8x128xi32>
    %477 = arith.cmpi eq, %4, %476 : vector<8x128xi32>
    %478 = vector.shape_cast %470 : vector<8x1xf32> to vector<8x1xf32>
    %479 = vector.broadcast %478 : vector<8x1xf32> to vector<8x128xf32>
    %480 = arith.select %477, %479, %475 : vector<8x128xi1>, vector<8x128xf32>
    %c0_188 = arith.constant 0 : index
    %c0_189 = arith.constant 0 : index
    %c0_190 = arith.constant 0 : index
    %481 = vector.load %arg21[%c0_188, %c0_189, %c0_190] : memref<1x8x128xf32, #tpu.memory_space<vmem>>, vector<1x8x128xf32>
    %482 = vector.shape_cast %481 : vector<1x8x128xf32> to vector<8x128xf32>
    %483 = vector.shape_cast %480 : vector<8x128xf32> to vector<1x8x128xf32>
    tpu.vector_store %arg21[%c0_188, %c0_189, %c0_190], %483 {strides = array<i32>} : memref<1x8x128xf32, #tpu.memory_space<vmem>>, vector<1x8x128xf32>,
    return
  }
  func.func @transform_0(%arg0: i32) -> (i32, i32) {
    %c0_i32 = arith.constant 0 : i32
    %c0_i32_0 = arith.constant 0 : i32
    return %arg0, %c0_i32 : i32, i32
  }
  func.func @transform_1(%arg0: i32) -> (i32, i32) {
    %c0_i32 = arith.constant 0 : i32
    %c0_i32_0 = arith.constant 0 : i32
    return %arg0, %c0_i32 : i32, i32
  }
  func.func @transform_2(%arg0: i32) -> (i32, i32) {
    %c0_i32 = arith.constant 0 : i32
    %c0_i32_0 = arith.constant 0 : i32
    %c0_i32_1 = arith.constant 0 : i32
    return %c0_i32, %c0_i32_0 : i32, i32
  }
  func.func @transform_3(%arg0: i32) -> (i32, i32) {
    %c0_i32 = arith.constant 0 : i32
    %c0_i32_0 = arith.constant 0 : i32
    %c0_i32_1 = arith.constant 0 : i32
    return %c0_i32, %c0_i32_0 : i32, i32
  }
  func.func @transform_4(%arg0: i32) -> (i32, i32) {
    %c0_i32 = arith.constant 0 : i32
    %c0_i32_0 = arith.constant 0 : i32
    %c0_i32_1 = arith.constant 0 : i32
    return %c0_i32, %c0_i32_0 : i32, i32
  }
  func.func @transform_5(%arg0: i32) -> (i32, i32) {
    %c0_i32 = arith.constant 0 : i32
    %c0_i32_0 = arith.constant 0 : i32
    %c0_i32_1 = arith.constant 0 : i32
    return %c0_i32, %c0_i32_0 : i32, i32
  }
  func.func @transform_6(%arg0: i32) -> (i32, i32) {
    %c0_i32 = arith.constant 0 : i32
    %c0_i32_0 = arith.constant 0 : i32
    %c0_i32_1 = arith.constant 0 : i32
    return %c0_i32, %c0_i32_0 : i32, i32
  }
  func.func @transform_7(%arg0: i32) -> (i32, i32) {
    %c0_i32 = arith.constant 0 : i32
    %c0_i32_0 = arith.constant 0 : i32
    %c0_i32_1 = arith.constant 0 : i32
    return %c0_i32, %c0_i32_0 : i32, i32
  }
  func.func @transform_8(%arg0: i32) -> (i32, i32) {
    %c0_i32 = arith.constant 0 : i32
    %c0_i32_0 = arith.constant 0 : i32
    %c0_i32_1 = arith.constant 0 : i32
    return %c0_i32, %c0_i32_0 : i32, i32
  }
  func.func @transform_9(%arg0: i32) -> (i32, i32) {
    %c0_i32 = arith.constant 0 : i32
    %c0_i32_0 = arith.constant 0 : i32
    %c0_i32_1 = arith.constant 0 : i32
    return %c0_i32, %c0_i32_0 : i32, i32
  }
  func.func @transform_10(%arg0: i32) -> (i32, i32) {
    %c0_i32 = arith.constant 0 : i32
    %c0_i32_0 = arith.constant 0 : i32
    %c0_i32_1 = arith.constant 0 : i32
    return %c0_i32, %c0_i32_0 : i32, i32
  }
  func.func @transform_11(%arg0: i32) -> (i32, i32) {
    %c0_i32 = arith.constant 0 : i32
    %c0_i32_0 = arith.constant 0 : i32
    %c0_i32_1 = arith.constant 0 : i32
    return %c0_i32, %c0_i32_0 : i32, i32
  }
  func.func @transform_12(%arg0: i32) -> (i32, i32) {
    %c0_i32 = arith.constant 0 : i32
    %c0_i32_0 = arith.constant 0 : i32
    %c0_i32_1 = arith.constant 0 : i32
    return %c0_i32, %c0_i32_0 : i32, i32
  }
  func.func @transform_13(%arg0: i32) -> (i32, i32) {
    %c0_i32 = arith.constant 0 : i32
    %c0_i32_0 = arith.constant 0 : i32
    %c0_i32_1 = arith.constant 0 : i32
    return %c0_i32, %c0_i32_0 : i32, i32
  }
  func.func @transform_14(%arg0: i32) -> (i32, i32) {
    %c0_i32 = arith.constant 0 : i32
    %c0_i32_0 = arith.constant 0 : i32
    %c0_i32_1 = arith.constant 0 : i32
    return %c0_i32, %c0_i32_0 : i32, i32
  }
  func.func @transform_15(%arg0: i32) -> (i32, i32) {
    %c0_i32 = arith.constant 0 : i32
    %c0_i32_0 = arith.constant 0 : i32
    %c0_i32_1 = arith.constant 0 : i32
    return %c0_i32, %c0_i32_0 : i32, i32
  }
  func.func @transform_16(%arg0: i32) -> (i32, i32) {
    %c0_i32 = arith.constant 0 : i32
    %c0_i32_0 = arith.constant 0 : i32
    %c0_i32_1 = arith.constant 0 : i32
    return %c0_i32, %c0_i32_0 : i32, i32
  }
  func.func @transform_17(%arg0: i32) -> (i32, i32) {
    %c0_i32 = arith.constant 0 : i32
    %c0_i32_0 = arith.constant 0 : i32
    %c0_i32_1 = arith.constant 0 : i32
    return %c0_i32, %c0_i32_0 : i32, i32
  }
  func.func @transform_18(%arg0: i32) -> (i32, i32) {
    %c0_i32 = arith.constant 0 : i32
    %c0_i32_0 = arith.constant 0 : i32
    %c0_i32_1 = arith.constant 0 : i32
    return %c0_i32, %c0_i32_0 : i32, i32
  }
  func.func @transform_19(%arg0: i32) -> (i32, i32) {
    %c0_i32 = arith.constant 0 : i32
    %c0_i32_0 = arith.constant 0 : i32
    %c0_i32_1 = arith.constant 0 : i32
    return %c0_i32, %c0_i32_0 : i32, i32
  }
  func.func @transform_20(%arg0: i32) -> (i32, i32, i32) {
    %c0_i32 = arith.constant 0 : i32
    %c0_i32_0 = arith.constant 0 : i32
    %c0_i32_1 = arith.constant 0 : i32
    return %arg0, %c0_i32, %c0_i32_0 : i32, i32, i32
  }
}

</mosaic_0001>

<llo_original>
// kernel: msssim_loss.1
$region0: #{msssim_loss.1}
  #allocation0 [shape = 'u32[]', space=smem, size = 0x4, offset = 0x4, fixed_abs, tag = 'smem constant byte address 0x4 - core index']
  #allocation1 [shape = 'u32[144,128]{1,0:T(1,128)}', space=vmem, size = 0x12000, scoped, tag = 'internal scratch']
  %s0 = inlined_call_operand.vmem [shape: bf16[192,32], index: 0, kind: input, shape index: {}]
  %s1 = inlined_call_operand.vmem [shape: bf16[192,32], index: 1, kind: input, shape index: {}]
  %s2 = inlined_call_operand.vmem [shape: bf16[96,96], index: 2, kind: input, shape index: {}]
  %s3 = inlined_call_operand.vmem [shape: bf16[48,48], index: 3, kind: input, shape index: {}]
  %s4 = inlined_call_operand.vmem [shape: bf16[24,24], index: 4, kind: input, shape index: {}]
  %s5 = inlined_call_operand.vmem [shape: bf16[12,12], index: 5, kind: input, shape index: {}]
  %s6 = inlined_call_operand.vmem [shape: bf16[6,6], index: 6, kind: input, shape index: {}]
  %s7 = inlined_call_operand.vmem [shape: bf16[32,32], index: 7, kind: input, shape index: {}]
  %s8 = inlined_call_operand.vmem [shape: bf16[16,16], index: 8, kind: input, shape index: {}]
  %s9 = inlined_call_operand.vmem [shape: bf16[8,8], index: 9, kind: input, shape index: {}]
  %s10 = inlined_call_operand.vmem [shape: bf16[4,4], index: 10, kind: input, shape index: {}]
  %s11 = inlined_call_operand.vmem [shape: bf16[2,2], index: 11, kind: input, shape index: {}]
  %s12 = inlined_call_operand.vmem [shape: bf16[48,96], index: 12, kind: input, shape index: {}]
  %s13 = inlined_call_operand.vmem [shape: bf16[24,48], index: 13, kind: input, shape index: {}]
  %s14 = inlined_call_operand.vmem [shape: bf16[12,24], index: 14, kind: input, shape index: {}]
  %s15 = inlined_call_operand.vmem [shape: bf16[6,12], index: 15, kind: input, shape index: {}]
  %s16 = inlined_call_operand.vmem [shape: bf16[32,16], index: 16, kind: input, shape index: {}]
  %s17 = inlined_call_operand.vmem [shape: bf16[16,8], index: 17, kind: input, shape index: {}]
  %s18 = inlined_call_operand.vmem [shape: bf16[8,4], index: 18, kind: input, shape index: {}]
  %s19 = inlined_call_operand.vmem [shape: bf16[4,2], index: 19, kind: input, shape index: {}]
  %s20 = inlined_call_operand.vmem [shape: f32[2,8,128], index: 20, kind: output, shape index: {}]
  %s21 = sld [smem:[#allocation0]]
  $region113: #{msssim_loss.1} parent=0
    _
  %s23 = ssub.s32 1, %s21
  %s24 = scalar_select 0, %s23, %s21
  loop: start=0, step=1, limit=4
  $region2: #{msssim_loss.1} parent=0 // loop_pre_header
    _
  $region3: #{msssim_loss.1} parent=0 // loop_header
    %s26 = sphi 0, %s30
    %p27 = scmp.ge.s32.totalorder %s26, 4
    %s36 = sphi 0, %s38
    %s39 = sphi 0, %s36
    %s40 = sphi 0, %s39
    %s56 = sphi 0, %s40
    %s62 = sphi 0, %s64
    %s65 = sphi 0, %s62
    %s66 = sphi 0, %s65
    %s82 = sphi 0, %s66
    %s86 = sphi 0, %s86
    %s88 = sphi 0, %s86
    %s89 = sphi 0, %s88
    %s103 = sphi 0, %s89
    %s107 = sphi 0, %s107
    %s109 = sphi 0, %s107
    %s110 = sphi 0, %s109
    %s124 = sphi 0, %s110
    %s128 = sphi 0, %s128
    %s130 = sphi 0, %s128
    %s131 = sphi 0, %s130
    %s145 = sphi 0, %s131
    %s149 = sphi 0, %s149
    %s151 = sphi 0, %s149
    %s152 = sphi 0, %s151
    %s166 = sphi 0, %s152
    %s170 = sphi 0, %s170
    %s172 = sphi 0, %s170
    %s173 = sphi 0, %s172
    %s187 = sphi 0, %s173
    %s191 = sphi 0, %s191
    %s193 = sphi 0, %s191
    %s194 = sphi 0, %s193
    %s208 = sphi 0, %s194
    %s212 = sphi 0, %s212
    %s214 = sphi 0, %s212
    %s215 = sphi 0, %s214
    %s229 = sphi 0, %s215
    %s233 = sphi 0, %s233
    %s235 = sphi 0, %s233
    %s236 = sphi 0, %s235
    %s250 = sphi 0, %s236
    %s254 = sphi 0, %s254
    %s256 = sphi 0, %s254
    %s257 = sphi 0, %s256
    %s271 = sphi 0, %s257
    %s275 = sphi 0, %s275
    %s277 = sphi 0, %s275
    %s278 = sphi 0, %s277
    %s292 = sphi 0, %s278
    %s296 = sphi 0, %s296
    %s298 = sphi 0, %s296
    %s299 = sphi 0, %s298
    %s313 = sphi 0, %s299
    %s317 = sphi 0, %s317
    %s319 = sphi 0, %s317
    %s320 = sphi 0, %s319
    %s334 = sphi 0, %s320
    %s338 = sphi 0, %s338
    %s340 = sphi 0, %s338
    %s341 = sphi 0, %s340
    %s355 = sphi 0, %s341
    %s359 = sphi 0, %s359
    %s361 = sphi 0, %s359
    %s362 = sphi 0, %s361
    %s376 = sphi 0, %s362
    %s380 = sphi 0, %s380
    %s382 = sphi 0, %s380
    %s383 = sphi 0, %s382
    %s397 = sphi 0, %s383
    %s401 = sphi 0, %s401
    %s403 = sphi 0, %s401
    %s404 = sphi 0, %s403
    %s418 = sphi 0, %s404
    %s422 = sphi 0, %s422
    %s424 = sphi 0, %s422
    %s425 = sphi 0, %s424
    %s439 = sphi 0, %s425
    %s443 = sphi 0, %s443
    %s445 = sphi 0, %s443
    %s446 = sphi 0, %s445
    %s460 = sphi 0, %s446
    %s466 = sphi 0, %s468
    %s469 = sphi 0, %s466
    %s470 = sphi 0, %s469
    %s486 = sphi 0, %s470
  $region4: #{msssim_loss.1} parent=0 // loop_header_branch
    %29 = sbr.rel (%p27) target = $region8
  $region5: #{msssim_loss.1} parent=0 // loop_body
    %s31 = ssub.s32 %s26, 1
    %s32 = ssub.s32 %s26, 2
    %s33 = sadd.s32 %s26, 1
    %s34 = ssub.s32 %s26, %s33
    %p35 = scmp.eq.s32.totalorder %s34, 0
    %s37 = sadd.s32 %s36, 1
    %s38 = scalar_select %p35, %s36, %s37
    %p41 = pneg %p35
    %p42 = scmp.eq.s32.totalorder %s26, 1
    %p43 = por %p41, %p42
    %p44 = scmp.ne.s32.totalorder %s36, %s39
    %p45 = scmp.eq.s32.totalorder %s26, 0
    %p46 = por %p44, %p45
    %p47 = scmp.ne.s32.totalorder %s36, %s39
    %p48 = scmp.eq.s32.totalorder %s31, 1
    %p49 = por %p47, %p48
    %p50 = scmp.ne.s32.totalorder %s39, %s40
    %p51 = scmp.eq.s32.totalorder %s31, 0
    %p52 = por %p50, %p51
    %p53 = scmp.ne.s32.totalorder %s39, %s40
    %p54 = scmp.eq.s32.totalorder %s32, 1
    %p55 = por %p53, %p54
    %p57 = scmp.ne.s32.totalorder %s40, %s56
    %p58 = scmp.eq.s32.totalorder %s32, 0
    %p59 = por %p57, %p58
    %s60 = ssub.s32 %s26, %s33
    %p61 = scmp.eq.s32.totalorder %s60, 0
    %s63 = sadd.s32 %s62, 1
    %s64 = scalar_select %p61, %s62, %s63
    %p67 = pneg %p61
    %p68 = scmp.eq.s32.totalorder %s26, 1
    %p69 = por %p67, %p68
    %p70 = scmp.ne.s32.totalorder %s62, %s65
    %p71 = scmp.eq.s32.totalorder %s26, 0
    %p72 = por %p70, %p71
    %p73 = scmp.ne.s32.totalorder %s62, %s65
    %p74 = scmp.eq.s32.totalorder %s31, 1
    %p75 = por %p73, %p74
    %p76 = scmp.ne.s32.totalorder %s65, %s66
    %p77 = scmp.eq.s32.totalorder %s31, 0
    %p78 = por %p76, %p77
    %p79 = scmp.ne.s32.totalorder %s65, %s66
    %p80 = scmp.eq.s32.totalorder %s32, 1
    %p81 = por %p79, %p80
    %p83 = scmp.ne.s32.totalorder %s66, %s82
    %p84 = scmp.eq.s32.totalorder %s32, 0
    %p85 = por %p83, %p84
    %s87 = sadd.s32 %s86, 1
    %p90 = scmp.eq.s32.totalorder %s26, 1
    %p91 = scmp.ne.s32.totalorder %s86, %s88
    %p92 = scmp.eq.s32.totalorder %s26, 0
    %p93 = por %p91, %p92
    %p94 = scmp.ne.s32.totalorder %s86, %s88
    %p95 = scmp.eq.s32.totalorder %s31, 1
    %p96 = por %p94, %p95
    %p97 = scmp.ne.s32.totalorder %s88, %s89
    %p98 = scmp.eq.s32.totalorder %s31, 0
    %p99 = por %p97, %p98
    %p100 = scmp.ne.s32.totalorder %s88, %s89
    %p101 = scmp.eq.s32.totalorder %s32, 1
    %p102 = por %p100, %p101
    %p104 = scmp.ne.s32.totalorder %s89, %s103
    %p105 = scmp.eq.s32.totalorder %s32, 0
    %p106 = por %p104, %p105
    %s108 = sadd.s32 %s107, 1
    %p111 = scmp.eq.s32.totalorder %s26, 1
    %p112 = scmp.ne.s32.totalorder %s107, %s109
    %p113 = scmp.eq.s32.totalorder %s26, 0
    %p114 = por %p112, %p113
    %p115 = scmp.ne.s32.totalorder %s107, %s109
    %p116 = scmp.eq.s32.totalorder %s31, 1
    %p117 = por %p115, %p116
    %p118 = scmp.ne.s32.totalorder %s109, %s110
    %p119 = scmp.eq.s32.totalorder %s31, 0
    %p120 = por %p118, %p119
    %p121 = scmp.ne.s32.totalorder %s109, %s110
    %p122 = scmp.eq.s32.totalorder %s32, 1
    %p123 = por %p121, %p122
    %p125 = scmp.ne.s32.totalorder %s110, %s124
    %p126 = scmp.eq.s32.totalorder %s32, 0
    %p127 = por %p125, %p126
    %s129 = sadd.s32 %s128, 1
    %p132 = scmp.eq.s32.totalorder %s26, 1
    %p133 = scmp.ne.s32.totalorder %s128, %s130
    %p134 = scmp.eq.s32.totalorder %s26, 0
    %p135 = por %p133, %p134
    %p136 = scmp.ne.s32.totalorder %s128, %s130
    %p137 = scmp.eq.s32.totalorder %s31, 1
    %p138 = por %p136, %p137
    %p139 = scmp.ne.s32.totalorder %s130, %s131
    %p140 = scmp.eq.s32.totalorder %s31, 0
    %p141 = por %p139, %p140
    %p142 = scmp.ne.s32.totalorder %s130, %s131
    %p143 = scmp.eq.s32.totalorder %s32, 1
    %p144 = por %p142, %p143
    %p146 = scmp.ne.s32.totalorder %s131, %s145
    %p147 = scmp.eq.s32.totalorder %s32, 0
    %p148 = por %p146, %p147
    %s150 = sadd.s32 %s149, 1
    %p153 = scmp.eq.s32.totalorder %s26, 1
    %p154 = scmp.ne.s32.totalorder %s149, %s151
    %p155 = scmp.eq.s32.totalorder %s26, 0
    %p156 = por %p154, %p155
    %p157 = scmp.ne.s32.totalorder %s149, %s151
    %p158 = scmp.eq.s32.totalorder %s31, 1
    %p159 = por %p157, %p158
    %p160 = scmp.ne.s32.totalorder %s151, %s152
    %p161 = scmp.eq.s32.totalorder %s31, 0
    %p162 = por %p160, %p161
    %p163 = scmp.ne.s32.totalorder %s151, %s152
    %p164 = scmp.eq.s32.totalorder %s32, 1
    %p165 = por %p163, %p164
    %p167 = scmp.ne.s32.totalorder %s152, %s166
    %p168 = scmp.eq.s32.totalorder %s32, 0
    %p169 = por %p167, %p168
    %s171 = sadd.s32 %s170, 1
    %p174 = scmp.eq.s32.totalorder %s26, 1
    %p175 = scmp.ne.s32.totalorder %s170, %s172
    %p176 = scmp.eq.s32.totalorder %s26, 0
    %p177 = por %p175, %p176
    %p178 = scmp.ne.s32.totalorder %s170, %s172
    %p179 = scmp.eq.s32.totalorder %s31, 1
    %p180 = por %p178, %p179
    %p181 = scmp.ne.s32.totalorder %s172, %s173
    %p182 = scmp.eq.s32.totalorder %s31, 0
    %p183 = por %p181, %p182
    %p184 = scmp.ne.s32.totalorder %s172, %s173
    %p185 = scmp.eq.s32.totalorder %s32, 1
    %p186 = por %p184, %p185
    %p188 = scmp.ne.s32.totalorder %s173, %s187
    %p189 = scmp.eq.s32.totalorder %s32, 0
    %p190 = por %p188, %p189
    %s192 = sadd.s32 %s191, 1
    %p195 = scmp.eq.s32.totalorder %s26, 1
    %p196 = scmp.ne.s32.totalorder %s191, %s193
    %p197 = scmp.eq.s32.totalorder %s26, 0
    %p198 = por %p196, %p197
    %p199 = scmp.ne.s32.totalorder %s191, %s193
    %p200 = scmp.eq.s32.totalorder %s31, 1
    %p201 = por %p199, %p200
    %p202 = scmp.ne.s32.totalorder %s193, %s194
    %p203 = scmp.eq.s32.totalorder %s31, 0
    %p204 = por %p202, %p203
    %p205 = scmp.ne.s32.totalorder %s193, %s194
    %p206 = scmp.eq.s32.totalorder %s32, 1
    %p207 = por %p205, %p206
    %p209 = scmp.ne.s32.totalorder %s194, %s208
    %p210 = scmp.eq.s32.totalorder %s32, 0
    %p211 = por %p209, %p210
    %s213 = sadd.s32 %s212, 1
    %p216 = scmp.eq.s32.totalorder %s26, 1
    %p217 = scmp.ne.s32.totalorder %s212, %s214
    %p218 = scmp.eq.s32.totalorder %s26, 0
    %p219 = por %p217, %p218
    %p220 = scmp.ne.s32.totalorder %s212, %s214
    %p221 = scmp.eq.s32.totalorder %s31, 1
    %p222 = por %p220, %p221
    %p223 = scmp.ne.s32.totalorder %s214, %s215
    %p224 = scmp.eq.s32.totalorder %s31, 0
    %p225 = por %p223, %p224
    %p226 = scmp.ne.s32.totalorder %s214, %s215
    %p227 = scmp.eq.s32.totalorder %s32, 1
    %p228 = por %p226, %p227
    %p230 = scmp.ne.s32.totalorder %s215, %s229
    %p231 = scmp.eq.s32.totalorder %s32, 0
    %p232 = por %p230, %p231
    %s234 = sadd.s32 %s233, 1
    %p237 = scmp.eq.s32.totalorder %s26, 1
    %p238 = scmp.ne.s32.totalorder %s233, %s235
    %p239 = scmp.eq.s32.totalorder %s26, 0
    %p240 = por %p238, %p239
    %p241 = scmp.ne.s32.totalorder %s233, %s235
    %p242 = scmp.eq.s32.totalorder %s31, 1
    %p243 = por %p241, %p242
    %p244 = scmp.ne.s32.totalorder %s235, %s236
    %p245 = scmp.eq.s32.totalorder %s31, 0
    %p246 = por %p244, %p245
    %p247 = scmp.ne.s32.totalorder %s235, %s236
    %p248 = scmp.eq.s32.totalorder %s32, 1
    %p249 = por %p247, %p248
    %p251 = scmp.ne.s32.totalorder %s236, %s250
    %p252 = scmp.eq.s32.totalorder %s32, 0
    %p253 = por %p251, %p252
    %s255 = sadd.s32 %s254, 1
    %p258 = scmp.eq.s32.totalorder %s26, 1
    %p259 = scmp.ne.s32.totalorder %s254, %s256
    %p260 = scmp.eq.s32.totalorder %s26, 0
    %p261 = por %p259, %p260
    %p262 = scmp.ne.s32.totalorder %s254, %s256
    %p263 = scmp.eq.s32.totalorder %s31, 1
    %p264 = por %p262, %p263
    %p265 = scmp.ne.s32.totalorder %s256, %s257
    %p266 = scmp.eq.s32.totalorder %s31, 0
    %p267 = por %p265, %p266
    %p268 = scmp.ne.s32.totalorder %s256, %s257
    %p269 = scmp.eq.s32.totalorder %s32, 1
    %p270 = por %p268, %p269
    %p272 = scmp.ne.s32.totalorder %s257, %s271
    %p273 = scmp.eq.s32.totalorder %s32, 0
    %p274 = por %p272, %p273
    %s276 = sadd.s32 %s275, 1
    %p279 = scmp.eq.s32.totalorder %s26, 1
    %p280 = scmp.ne.s32.totalorder %s275, %s277
    %p281 = scmp.eq.s32.totalorder %s26, 0
    %p282 = por %p280, %p281
    %p283 = scmp.ne.s32.totalorder %s275, %s277
    %p284 = scmp.eq.s32.totalorder %s31, 1
    %p285 = por %p283, %p284
    %p286 = scmp.ne.s32.totalorder %s277, %s278
    %p287 = scmp.eq.s32.totalorder %s31, 0
    %p288 = por %p286, %p287
    %p289 = scmp.ne.s32.totalorder %s277, %s278
    %p290 = scmp.eq.s32.totalorder %s32, 1
    %p291 = por %p289, %p290
    %p293 = scmp.ne.s32.totalorder %s278, %s292
    %p294 = scmp.eq.s32.totalorder %s32, 0
    %p295 = por %p293, %p294
    %s297 = sadd.s32 %s296, 1
    %p300 = scmp.eq.s32.totalorder %s26, 1
    %p301 = scmp.ne.s32.totalorder %s296, %s298
    %p302 = scmp.eq.s32.totalorder %s26, 0
    %p303 = por %p301, %p302
    %p304 = scmp.ne.s32.totalorder %s296, %s298
    %p305 = scmp.eq.s32.totalorder %s31, 1
    %p306 = por %p304, %p305
    %p307 = scmp.ne.s32.totalorder %s298, %s299
    %p308 = scmp.eq.s32.totalorder %s31, 0
    %p309 = por %p307, %p308
    %p310 = scmp.ne.s32.totalorder %s298, %s299
    %p311 = scmp.eq.s32.totalorder %s32, 1
    %p312 = por %p310, %p311
    %p314 = scmp.ne.s32.totalorder %s299, %s313
    %p315 = scmp.eq.s32.totalorder %s32, 0
    %p316 = por %p314, %p315
    %s318 = sadd.s32 %s317, 1
    %p321 = scmp.eq.s32.totalorder %s26, 1
    %p322 = scmp.ne.s32.totalorder %s317, %s319
    %p323 = scmp.eq.s32.totalorder %s26, 0
    %p324 = por %p322, %p323
    %p325 = scmp.ne.s32.totalorder %s317, %s319
    %p326 = scmp.eq.s32.totalorder %s31, 1
    %p327 = por %p325, %p326
    %p328 = scmp.ne.s32.totalorder %s319, %s320
    %p329 = scmp.eq.s32.totalorder %s31, 0
    %p330 = por %p328, %p329
    %p331 = scmp.ne.s32.totalorder %s319, %s320
    %p332 = scmp.eq.s32.totalorder %s32, 1
    %p333 = por %p331, %p332
    %p335 = scmp.ne.s32.totalorder %s320, %s334
    %p336 = scmp.eq.s32.totalorder %s32, 0
    %p337 = por %p335, %p336
    %s339 = sadd.s32 %s338, 1
    %p342 = scmp.eq.s32.totalorder %s26, 1
    %p343 = scmp.ne.s32.totalorder %s338, %s340
    %p344 = scmp.eq.s32.totalorder %s26, 0
    %p345 = por %p343, %p344
    %p346 = scmp.ne.s32.totalorder %s338, %s340
    %p347 = scmp.eq.s32.totalorder %s31, 1
    %p348 = por %p346, %p347
    %p349 = scmp.ne.s32.totalorder %s340, %s341
    %p350 = scmp.eq.s32.totalorder %s31, 0
    %p351 = por %p349, %p350
    %p352 = scmp.ne.s32.totalorder %s340, %s341
    %p353 = scmp.eq.s32.totalorder %s32, 1
    %p354 = por %p352, %p353
    %p356 = scmp.ne.s32.totalorder %s341, %s355
    %p357 = scmp.eq.s32.totalorder %s32, 0
    %p358 = por %p356, %p357
    %s360 = sadd.s32 %s359, 1
    %p363 = scmp.eq.s32.totalorder %s26, 1
    %p364 = scmp.ne.s32.totalorder %s359, %s361
    %p365 = scmp.eq.s32.totalorder %s26, 0
    %p366 = por %p364, %p365
    %p367 = scmp.ne.s32.totalorder %s359, %s361
    %p368 = scmp.eq.s32.totalorder %s31, 1
    %p369 = por %p367, %p368
    %p370 = scmp.ne.s32.totalorder %s361, %s362
    %p371 = scmp.eq.s32.totalorder %s31, 0
    %p372 = por %p370, %p371
    %p373 = scmp.ne.s32.totalorder %s361, %s362
    %p374 = scmp.eq.s32.totalorder %s32, 1
    %p375 = por %p373, %p374
    %p377 = scmp.ne.s32.totalorder %s362, %s376
    %p378 = scmp.eq.s32.totalorder %s32, 0
    %p379 = por %p377, %p378
    %s381 = sadd.s32 %s380, 1
    %p384 = scmp.eq.s32.totalorder %s26, 1
    %p385 = scmp.ne.s32.totalorder %s380, %s382
    %p386 = scmp.eq.s32.totalorder %s26, 0
    %p387 = por %p385, %p386
    %p388 = scmp.ne.s32.totalorder %s380, %s382
    %p389 = scmp.eq.s32.totalorder %s31, 1
    %p390 = por %p388, %p389
    %p391 = scmp.ne.s32.totalorder %s382, %s383
    %p392 = scmp.eq.s32.totalorder %s31, 0
    %p393 = por %p391, %p392
    %p394 = scmp.ne.s32.totalorder %s382, %s383
    %p395 = scmp.eq.s32.totalorder %s32, 1
    %p396 = por %p394, %p395
    %p398 = scmp.ne.s32.totalorder %s383, %s397
    %p399 = scmp.eq.s32.totalorder %s32, 0
    %p400 = por %p398, %p399
    %s402 = sadd.s32 %s401, 1
    %p405 = scmp.eq.s32.totalorder %s26, 1
    %p406 = scmp.ne.s32.totalorder %s401, %s403
    %p407 = scmp.eq.s32.totalorder %s26, 0
    %p408 = por %p406, %p407
    %p409 = scmp.ne.s32.totalorder %s401, %s403
    %p410 = scmp.eq.s32.totalorder %s31, 1
    %p411 = por %p409, %p410
    %p412 = scmp.ne.s32.totalorder %s403, %s404
    %p413 = scmp.eq.s32.totalorder %s31, 0
    %p414 = por %p412, %p413
    %p415 = scmp.ne.s32.totalorder %s403, %s404
    %p416 = scmp.eq.s32.totalorder %s32, 1
    %p417 = por %p415, %p416
    %p419 = scmp.ne.s32.totalorder %s404, %s418
    %p420 = scmp.eq.s32.totalorder %s32, 0
    %p421 = por %p419, %p420
    %s423 = sadd.s32 %s422, 1
    %p426 = scmp.eq.s32.totalorder %s26, 1
    %p427 = scmp.ne.s32.totalorder %s422, %s424
    %p428 = scmp.eq.s32.totalorder %s26, 0
    %p429 = por %p427, %p428
    %p430 = scmp.ne.s32.totalorder %s422, %s424
    %p431 = scmp.eq.s32.totalorder %s31, 1
    %p432 = por %p430, %p431
    %p433 = scmp.ne.s32.totalorder %s424, %s425
    %p434 = scmp.eq.s32.totalorder %s31, 0
    %p435 = por %p433, %p434
    %p436 = scmp.ne.s32.totalorder %s424, %s425
    %p437 = scmp.eq.s32.totalorder %s32, 1
    %p438 = por %p436, %p437
    %p440 = scmp.ne.s32.totalorder %s425, %s439
    %p441 = scmp.eq.s32.totalorder %s32, 0
    %p442 = por %p440, %p441
    %s444 = sadd.s32 %s443, 1
    %p447 = scmp.eq.s32.totalorder %s26, 1
    %p448 = scmp.ne.s32.totalorder %s443, %s445
    %p449 = scmp.eq.s32.totalorder %s26, 0
    %p450 = por %p448, %p449
    %p451 = scmp.ne.s32.totalorder %s443, %s445
    %p452 = scmp.eq.s32.totalorder %s31, 1
    %p453 = por %p451, %p452
    %p454 = scmp.ne.s32.totalorder %s445, %s446
    %p455 = scmp.eq.s32.totalorder %s31, 0
    %p456 = por %p454, %p455
    %p457 = scmp.ne.s32.totalorder %s445, %s446
    %p458 = scmp.eq.s32.totalorder %s32, 1
    %p459 = por %p457, %p458
    %p461 = scmp.ne.s32.totalorder %s446, %s460
    %p462 = scmp.eq.s32.totalorder %s32, 0
    %p463 = por %p461, %p462
    %s464 = ssub.s32 %s26, %s33
    %p465 = scmp.eq.s32.totalorder %s464, 0
    %s467 = sadd.s32 %s466, 1
    %s468 = scalar_select %p465, %s466, %s467
    %p471 = pneg %p465
    %p472 = scmp.eq.s32.totalorder %s26, 1
    %p473 = por %p471, %p472
    %p474 = scmp.ne.s32.totalorder %s466, %s469
    %p475 = scmp.eq.s32.totalorder %s26, 0
    %p476 = por %p474, %p475
    %p477 = scmp.ne.s32.totalorder %s466, %s469
    %p478 = scmp.eq.s32.totalorder %s31, 1
    %p479 = por %p477, %p478
    %p480 = scmp.ne.s32.totalorder %s469, %s470
    %p481 = scmp.eq.s32.totalorder %s31, 0
    %p482 = por %p480, %p481
    %p483 = scmp.ne.s32.totalorder %s469, %s470
    %p484 = scmp.eq.s32.totalorder %s32, 1
    %p485 = por %p483, %p484
    %p487 = scmp.ne.s32.totalorder %s470, %s486
    %p488 = scmp.eq.s32.totalorder %s32, 0
    %p489 = por %p487, %p488
    %p490 = scmp.le.s32.totalorder 1, %s26
    %p491 = scmp.lt.s32.totalorder %s26, 3
    %p492 = pnand %p490, %p491
    %p493 = pneg %p492
    // Predicated region
    $region9: #{msssim_loss.1} parent=5 // pred_check
      _
    $region10: #{msssim_loss.1} parent=5 // pred_check_branch
      %495 = sbr.rel (%p492) target = $region12
    $region11: #{msssim_loss.1} parent=5 // pred_region
      %s496 = ssub.s32 %s26, 1
      // Predicated region
      $region13: #{msssim_loss.1} parent=11 // pred_check
        %p497 = pneg %p99
      $region14: #{msssim_loss.1} parent=11 // pred_check_branch
        %499 = sbr.rel (%p497) target = $region16
      $region15: #{msssim_loss.1} parent=11 // pred_region
        _
      $region16: #{msssim_loss.1} parent=11 // pred_fallthru
        _
      // Predicated region
      $region17: #{msssim_loss.1} parent=11 // pred_check
        %p500 = pneg %p120
      $region18: #{msssim_loss.1} parent=11 // pred_check_branch
        %502 = sbr.rel (%p500) target = $region20
      $region19: #{msssim_loss.1} parent=11 // pred_region
        _
      $region20: #{msssim_loss.1} parent=11 // pred_fallthru
        _
      // Predicated region
      $region21: #{msssim_loss.1} parent=11 // pred_check
        %p503 = pneg %p141
      $region22: #{msssim_loss.1} parent=11 // pred_check_branch
        %505 = sbr.rel (%p503) target = $region24
      $region23: #{msssim_loss.1} parent=11 // pred_region
        _
      $region24: #{msssim_loss.1} parent=11 // pred_fallthru
        _
      // Predicated region
      $region25: #{msssim_loss.1} parent=11 // pred_check
        %p506 = pneg %p162
      $region26: #{msssim_loss.1} parent=11 // pred_check_branch
        %508 = sbr.rel (%p506) target = $region28
      $region27: #{msssim_loss.1} parent=11 // pred_region
        _
      $region28: #{msssim_loss.1} parent=11 // pred_fallthru
        _
      // Predicated region
      $region29: #{msssim_loss.1} parent=11 // pred_check
        %p509 = pneg %p183
      $region30: #{msssim_loss.1} parent=11 // pred_check_branch
        %511 = sbr.rel (%p509) target = $region32
      $region31: #{msssim_loss.1} parent=11 // pred_region
        _
      $region32: #{msssim_loss.1} parent=11 // pred_fallthru
        _
      // Predicated region
      $region33: #{msssim_loss.1} parent=11 // pred_check
        %p512 = pneg %p204
      $region34: #{msssim_loss.1} parent=11 // pred_check_branch
        %514 = sbr.rel (%p512) target = $region36
      $region35: #{msssim_loss.1} parent=11 // pred_region
        _
      $region36: #{msssim_loss.1} parent=11 // pred_fallthru
        _
      // Predicated region
      $region37: #{msssim_loss.1} parent=11 // pred_check
        %p515 = pneg %p225
      $region38: #{msssim_loss.1} parent=11 // pred_check_branch
        %517 = sbr.rel (%p515) target = $region40
      $region39: #{msssim_loss.1} parent=11 // pred_region
        _
      $region40: #{msssim_loss.1} parent=11 // pred_fallthru
        _
      // Predicated region
      $region41: #{msssim_loss.1} parent=11 // pred_check
        %p518 = pneg %p246
      $region42: #{msssim_loss.1} parent=11 // pred_check_branch
        %520 = sbr.rel (%p518) target = $region44
      $region43: #{msssim_loss.1} parent=11 // pred_region
        _
      $region44: #{msssim_loss.1} parent=11 // pred_fallthru
        _
      // Predicated region
      $region45: #{msssim_loss.1} parent=11 // pred_check
        %p521 = pneg %p267
      $region46: #{msssim_loss.1} parent=11 // pred_check_branch
        %523 = sbr.rel (%p521) target = $region48
      $region47: #{msssim_loss.1} parent=11 // pred_region
        _
      $region48: #{msssim_loss.1} parent=11 // pred_fallthru
        _
      // Predicated region
      $region49: #{msssim_loss.1} parent=11 // pred_check
        %p524 = pneg %p288
      $region50: #{msssim_loss.1} parent=11 // pred_check_branch
        %526 = sbr.rel (%p524) target = $region52
      $region51: #{msssim_loss.1} parent=11 // pred_region
        _
      $region52: #{msssim_loss.1} parent=11 // pred_fallthru
        _
      // Predicated region
      $region53: #{msssim_loss.1} parent=11 // pred_check
        %p527 = pneg %p309
      $region54: #{msssim_loss.1} parent=11 // pred_check_branch
        %529 = sbr.rel (%p527) target = $region56
      $region55: #{msssim_loss.1} parent=11 // pred_region
        _
      $region56: #{msssim_loss.1} parent=11 // pred_fallthru
        _
      // Predicated region
      $region57: #{msssim_loss.1} parent=11 // pred_check
        %p530 = pneg %p330
      $region58: #{msssim_loss.1} parent=11 // pred_check_branch
        %532 = sbr.rel (%p530) target = $region60
      $region59: #{msssim_loss.1} parent=11 // pred_region
        _
      $region60: #{msssim_loss.1} parent=11 // pred_fallthru
        _
      // Predicated region
      $region61: #{msssim_loss.1} parent=11 // pred_check
        %p533 = pneg %p351
      $region62: #{msssim_loss.1} parent=11 // pred_check_branch
        %535 = sbr.rel (%p533) target = $region64
      $region63: #{msssim_loss.1} parent=11 // pred_region
        _
      $region64: #{msssim_loss.1} parent=11 // pred_fallthru
        _
      // Predicated region
      $region65: #{msssim_loss.1} parent=11 // pred_check
        %p536 = pneg %p372
      $region66: #{msssim_loss.1} parent=11 // pred_check_branch
        %538 = sbr.rel (%p536) target = $region68
      $region67: #{msssim_loss.1} parent=11 // pred_region
        _
      $region68: #{msssim_loss.1} parent=11 // pred_fallthru
        _
      // Predicated region
      $region69: #{msssim_loss.1} parent=11 // pred_check
        %p539 = pneg %p393
      $region70: #{msssim_loss.1} parent=11 // pred_check_branch
        %541 = sbr.rel (%p539) target = $region72
      $region71: #{msssim_loss.1} parent=11 // pred_region
        _
      $region72: #{msssim_loss.1} parent=11 // pred_fallthru
        _
      // Predicated region
      $region73: #{msssim_loss.1} parent=11 // pred_check
        %p542 = pneg %p414
      $region74: #{msssim_loss.1} parent=11 // pred_check_branch
        %544 = sbr.rel (%p542) target = $region76
      $region75: #{msssim_loss.1} parent=11 // pred_region
        _
      $region76: #{msssim_loss.1} parent=11 // pred_fallthru
        _
      // Predicated region
      $region77: #{msssim_loss.1} parent=11 // pred_check
        %p545 = pneg %p435
      $region78: #{msssim_loss.1} parent=11 // pred_check_branch
        %547 = sbr.rel (%p545) target = $region80
      $region79: #{msssim_loss.1} parent=11 // pred_region
        _
      $region80: #{msssim_loss.1} parent=11 // pred_fallthru
        _
      // Predicated region
      $region81: #{msssim_loss.1} parent=11 // pred_check
        %p548 = pneg %p456
      $region82: #{msssim_loss.1} parent=11 // pred_check_branch
        %550 = sbr.rel (%p548) target = $region84
      $region83: #{msssim_loss.1} parent=11 // pred_region
        _
      $region84: #{msssim_loss.1} parent=11 // pred_fallthru
        _
    $region12: #{msssim_loss.1} parent=5 // pred_fallthru
      _
    %p551 = scmp.lt.s32.totalorder %s26, 2
    // Predicated region
    $region85: #{msssim_loss.1} parent=5 // pred_check
      %p552 = pneg %p551
    $region86: #{msssim_loss.1} parent=5 // pred_check_branch
      %554 = sbr.rel (%p552) target = $region88
    $region87: #{msssim_loss.1} parent=5 // pred_region
      // Predicated region
      $region89: #{msssim_loss.1} parent=87 // pred_check
        %p555 = pneg %p46
      $region90: #{msssim_loss.1} parent=87 // pred_check_branch
        %557 = sbr.rel (%p555) target = $region92
      $region91: #{msssim_loss.1} parent=87 // pred_region
        %s558 = smul.u32 12, %s26
        %p559 = scmp.lt.s32.totalorder %s558, 23
        %s560 = scalar_select %p559, %s558, 23
        %s561 = smul.addr %s560, 4
        %s562 = scalar_lea.vmem %s0, %s561
        %s563 = smul.u32 12, %s26
      $region92: #{msssim_loss.1} parent=87 // pred_fallthru
        _
      // Predicated region
      $region93: #{msssim_loss.1} parent=87 // pred_check
        %p564 = pneg %p72
      $region94: #{msssim_loss.1} parent=87 // pred_check_branch
        %566 = sbr.rel (%p564) target = $region96
      $region95: #{msssim_loss.1} parent=87 // pred_region
        %s567 = smul.u32 12, %s26
        %p568 = scmp.lt.s32.totalorder %s567, 23
        %s569 = scalar_select %p568, %s567, 23
        %s570 = smul.addr %s569, 4
        %s571 = scalar_lea.vmem %s1, %s570
        %s572 = smul.u32 12, %s26
      $region96: #{msssim_loss.1} parent=87 // pred_fallthru
        _
    $region88: #{msssim_loss.1} parent=5 // pred_fallthru
      _
    %p573 = scmp.le.s32.totalorder 1, %s26
    %p574 = scmp.lt.s32.totalorder %s26, 3
    %p575 = pnand %p573, %p574
    %p576 = pneg %p575
    // Predicated region
    $region97: #{msssim_loss.1} parent=5 // pred_check
      _
    $region98: #{msssim_loss.1} parent=5 // pred_check_branch
      %578 = sbr.rel (%p575) target = $region100
    $region99: #{msssim_loss.1} parent=5 // pred_region
      %s579 = ssub.s32 %s26, 1
      %s580 = smul.u32 12, %s31
      %p581 = scmp.lt.s32.totalorder %s580, 23
      %s582 = scalar_select %p581, %s580, 23
      %s583 = smul.addr %s582, 4
      %s584 = scalar_lea.vmem %s0, %s583
      %p585 = pneg %p52
      %p586 = pneg %p49
      %s587 = smul.u32 12, %s31
      %p588 = scmp.lt.s32.totalorder %s587, 23
      %s589 = scalar_select %p588, %s587, 23
      %s590 = smul.addr %s589, 4
      %s591 = scalar_lea.vmem %s1, %s590
      %p592 = pneg %p78
      %p593 = pneg %p75
      %p594 = pneg %p99
      %p595 = pneg %p96
      %p596 = pneg %p120
      %p597 = pneg %p117
      %p598 = pneg %p141
      %p599 = pneg %p138
      %p600 = pneg %p162
      %p601 = pneg %p159
      %p602 = pneg %p183
      %p603 = pneg %p180
      %p604 = pneg %p204
      %p605 = pneg %p201
      %p606 = pneg %p225
      %p607 = pneg %p222
      %p608 = pneg %p246
      %p609 = pneg %p243
      %p610 = pneg %p267
      %p611 = pneg %p264
      %p612 = pneg %p288
      %p613 = pneg %p285
      %p614 = pneg %p309
      %p615 = pneg %p306
      %p616 = pneg %p330
      %p617 = pneg %p327
      %p618 = pneg %p351
      %p619 = pneg %p348
      %p620 = pneg %p372
      %p621 = pneg %p369
      %p622 = pneg %p393
      %p623 = pneg %p390
      %p624 = pneg %p414
      %p625 = pneg %p411
      %p626 = pneg %p435
      %p627 = pneg %p432
      %p628 = pneg %p456
      %p629 = pneg %p453
      %p630 = pneg %p482
      %p631 = pneg %p479
      %p632 = scmp.lt.s32.totalorder %s31, 1
      %s633 = scalar_select %p632, %s31, 1
      %s634 = smul.addr %s633, 8
      %s635 = scalar_lea.vmem %s20, %s634
      %s636 = smul.u32 12, %s31
      %p637 = scmp.lt.s32.totalorder %s636, 23
      %s638 = scalar_select %p637, %s636, 23
      %s639 = smul.addr %s638, 4
      %s640 = scalar_lea.vmem %s0, %s639
      %s641 = smul.u32 12, %s31
      %s642 = smul.u32 12, %s31
      %p643 = scmp.lt.s32.totalorder %s642, 23
      %s644 = scalar_select %p643, %s642, 23
      %s645 = smul.addr %s644, 4
      %s646 = scalar_lea.vmem %s1, %s645
      %s647 = smul.u32 12, %s31
      %p648 = scmp.lt.s32.totalorder %s31, 1
      %s649 = scalar_select %p648, %s31, 1
      %s650 = smul.addr %s649, 8
      %s651 = scalar_lea.vmem %s20, %s650
      %v653 = vld [vmem:[%s640] sm:$0xf]
      %v654 = vld [vmem:[%s640 + $0x4] sm:$0xf]
      %v655 = vld [vmem:[%s640 + $0x8] sm:$0xf]
      %v656 = vld [vmem:[%s640 + $0xc] sm:$0xf]
      %v657 = vld [vmem:[%s640 + $0x10] sm:$0xf]
      %v658 = vld [vmem:[%s640 + $0x14] sm:$0xf]
      %v659 = vld [vmem:[%s640 + $0x18] sm:$0xf]
      %v660 = vld [vmem:[%s640 + $0x1c] sm:$0xf]
      %v661 = vld [vmem:[%s640 + $0x20] sm:$0xf]
      %v662 = vld [vmem:[%s640 + $0x24] sm:$0xf]
      %v663 = vld [vmem:[%s640 + $0x28] sm:$0xf]
      %v664 = vld [vmem:[%s640 + $0x2c] sm:$0xf]
      %v665 = vunpack.c.l.bf16 %v653
      %v666 = vunpack.c.l.bf16 %v654
      %v667 = vunpack.c.l.bf16 %v655
      %v668 = vunpack.c.l.bf16 %v656
      %v669 = vunpack.c.l.bf16 %v657
      %v670 = vunpack.c.l.bf16 %v658
      %v671 = vunpack.c.l.bf16 %v659
      %v672 = vunpack.c.l.bf16 %v660
      %v673 = vunpack.c.l.bf16 %v661
      %v674 = vunpack.c.l.bf16 %v662
      %v675 = vunpack.c.l.bf16 %v663
      %v676 = vunpack.c.l.bf16 %v664
      %v677 = vld [vmem:[%s646] sm:$0xf]
      %v678 = vld [vmem:[%s646 + $0x4] sm:$0xf]
      %v679 = vld [vmem:[%s646 + $0x8] sm:$0xf]
      %v680 = vld [vmem:[%s646 + $0xc] sm:$0xf]
      %v681 = vld [vmem:[%s646 + $0x10] sm:$0xf]
      %v682 = vld [vmem:[%s646 + $0x14] sm:$0xf]
      %v683 = vld [vmem:[%s646 + $0x18] sm:$0xf]
      %v684 = vld [vmem:[%s646 + $0x1c] sm:$0xf]
      %v685 = vld [vmem:[%s646 + $0x20] sm:$0xf]
      %v686 = vld [vmem:[%s646 + $0x24] sm:$0xf]
      %v687 = vld [vmem:[%s646 + $0x28] sm:$0xf]
      %v688 = vld [vmem:[%s646 + $0x2c] sm:$0xf]
      %v689 = vunpack.c.l.bf16 %v677
      %v690 = vunpack.c.l.bf16 %v678
      %v691 = vunpack.c.l.bf16 %v679
      %v692 = vunpack.c.l.bf16 %v680
      %v693 = vunpack.c.l.bf16 %v681
      %v694 = vunpack.c.l.bf16 %v682
      %v695 = vunpack.c.l.bf16 %v683
      %v696 = vunpack.c.l.bf16 %v684
      %v697 = vunpack.c.l.bf16 %v685
      %v698 = vunpack.c.l.bf16 %v686
      %v699 = vunpack.c.l.bf16 %v687
      %v700 = vunpack.c.l.bf16 %v688
      %v701 = vlaneseq
      %v702 = vand.u32 %v701, 127
      %v703 = vld [vmem:[%s2] sm:$0xf]
      %v704 = vld [vmem:[%s2 + $0x4] sm:$0xf]
      %v705 = vld [vmem:[%s2 + $0x8] sm:$0xf]
      %v706 = vld [vmem:[%s2 + $0xc] sm:$0xf]
      %v707 = vld [vmem:[%s2 + $0x10] sm:$0xf]
      %v708 = vld [vmem:[%s2 + $0x14] sm:$0xf]
      %v709 = vld [vmem:[%s2 + $0x18] sm:$0xf]
      %v710 = vld [vmem:[%s2 + $0x1c] sm:$0xf]
      %v711 = vld [vmem:[%s2 + $0x20] sm:$0xf]
      %v712 = vld [vmem:[%s2 + $0x24] sm:$0xf]
      %v713 = vld [vmem:[%s2 + $0x28] sm:$0xf]
      %v714 = vld [vmem:[%s2 + $0x2c] sm:$0xf]
      %v715 = vld [vmem:[%s7] sm:$0xf]
      %v716 = vld [vmem:[%s7 + $0x4] sm:$0xf]
      %v717 = vld [vmem:[%s7 + $0x8] sm:$0xf]
      %v718 = vld [vmem:[%s7 + $0xc] sm:$0xf]
      %v731 = vunpack.c.l.b16 %v653
      %v732 = vunpack.c.l.b16 %v654
      %v733 = vunpack.c.l.b16 %v655
      %v734 = vunpack.c.l.b16 %v656
      %v735 = vunpack.c.l.b16 %v657
      %v736 = vunpack.c.l.b16 %v658
      %v737 = vunpack.c.l.b16 %v659
      %v738 = vunpack.c.l.b16 %v660
      %v739 = vunpack.c.l.b16 %v661
      %v740 = vunpack.c.l.b16 %v662
      %v741 = vunpack.c.l.b16 %v663
      %v742 = vunpack.c.l.b16 %v664
      %v743 = vpack.c.b16 %v732, %v731
      %v744 = vpack.c.b16 %v734, %v733
      %v745 = vpack.c.b16 %v736, %v735
      %v746 = vpack.c.b16 %v738, %v737
      %v747 = vpack.c.b16 %v740, %v739
      %v748 = vpack.c.b16 %v742, %v741
      %v753 = vunpack.c.l.b16 %v715
      %v754 = vunpack.c.l.b16 %v716
      %v755 = vunpack.c.l.b16 %v717
      %v756 = vunpack.c.l.b16 %v718
      %v757 = vpack.c.b16 %v754, %v753
      %v758 = vpack.c.b16 %v756, %v755
      %vm761 = vcmask 261120
      %v763 = vsel %vm761, %v743, 0
      %v766 = vsel %vm761, %v744, 0
      %v769 = vsel %vm761, %v745, 0
      %v772 = vsel %vm761, %v746, 0
      %v775 = vsel %vm761, %v747, 0
      %v778 = vsel %vm761, %v748, 0
      %780 = vmatprep.subr.bf16.mxu0 0
      %781 = vmatpush1.bf16.msra.mxu0 0
      %782 = vmatprep.subr.bf16.mxu0 0
      %783 = vmatpush1.bf16.msra.mxu0 0
      %784 = vmatprep.subr.bf16.mxu0 0
      %785 = vmatpush1.bf16.msra.mxu0 0
      %786 = vmatprep.subr.bf16.mxu0 0
      %787 = vmatpush1.bf16.msra.mxu0 0
      %788 = vmatprep.subr.bf16.mxu0 0
      %789 = vmatpush1.bf16.msra.mxu0 0
      %790 = vmatprep.subr.bf16.mxu0 0
      %791 = vmatpush1.bf16.msra.mxu0 0
      %792 = vmatprep.subr.bf16.mxu0 0
      %793 = vmatpush1.bf16.msra.mxu0 %v758
      %794 = vmatprep.subr.bf16.mxu0 0
      %795 = vmatpush1.bf16.msra.mxu0 %v757
      %796 = vmatprep.subr.bf16.mxu0 0
      %797 = vmatpush2.bf16.msra.mxu0 0
      %798 = vmatprep.subr.bf16.mxu0 0
      %799 = vmatpush2.bf16.msra.mxu0 0
      %800 = vmatprep.subr.bf16.mxu0 0
      %801 = vmatpush2.bf16.msra.mxu0 0
      %802 = vmatprep.subr.bf16.mxu0 0
      %803 = vmatpush2.bf16.msra.mxu0 0
      %804 = vmatprep.subr.bf16.mxu0 0
      %805 = vmatpush2.bf16.msra.mxu0 0
      %806 = vmatprep.subr.bf16.mxu0 0
      %807 = vmatpush2.bf16.msra.mxu0 0
      %808 = vmatprep.subr.bf16.mxu0 0
      %809 = vmatpush2.bf16.msra.mxu0 0
      %810 = vmatprep.subr.bf16.mxu0 0
      %811 = vmatpush2.bf16.msra.mxu0 0
      %812 = vmatprep.mubr.bf16.mxu0 0
      %813 = vmatmul.mubr.bf16.gmra.mxu0 %v763
      %v814 = vpop.f32.mrf.mxu0
      %v815 = vadd.f32 0.0, %v814
      %v816 = vpop.f32.mrf.mxu0
      %v817 = vpop.f32.mrf.mxu0
      %v818 = vadd.f32 0.0, %v817
      %v819 = vpop.f32.mrf.mxu0
      %820 = vmatprep.mubr.bf16.mxu0 0
      %821 = vmatmul.mubr.bf16.gmra.mxu0 %v766
      %v822 = vpop.f32.mrf.mxu0
      %v823 = vadd.f32 0.0, %v822
      %v824 = vpop.f32.mrf.mxu0
      %v825 = vpop.f32.mrf.mxu0
      %v826 = vadd.f32 0.0, %v825
      %v827 = vpop.f32.mrf.mxu0
      %828 = vmatprep.mubr.bf16.mxu0 0
      %829 = vmatmul.mubr.bf16.gmra.mxu0 %v769
      %v830 = vpop.f32.mrf.mxu0
      %v831 = vadd.f32 0.0, %v830
      %v832 = vpop.f32.mrf.mxu0
      %v833 = vpop.f32.mrf.mxu0
      %v834 = vadd.f32 0.0, %v833
      %v835 = vpop.f32.mrf.mxu0
      %836 = vmatprep.mubr.bf16.mxu0 0
      %837 = vmatmul.mubr.bf16.gmra.mxu0 %v772
      %v838 = vpop.f32.mrf.mxu0
      %v839 = vadd.f32 0.0, %v838
      %v840 = vpop.f32.mrf.mxu0
      %v841 = vpop.f32.mrf.mxu0
      %v842 = vadd.f32 0.0, %v841
      %v843 = vpop.f32.mrf.mxu0
      %844 = vmatprep.mubr.bf16.mxu0 0
      %845 = vmatmul.mubr.bf16.gmra.mxu0 %v775
      %v846 = vpop.f32.mrf.mxu0
      %v847 = vadd.f32 0.0, %v846
      %v848 = vpop.f32.mrf.mxu0
      %v849 = vpop.f32.mrf.mxu0
      %v850 = vadd.f32 0.0, %v849
      %v851 = vpop.f32.mrf.mxu0
      %852 = vmatprep.mubr.bf16.mxu0 0
      %853 = vmatmul.mubr.bf16.gmra.mxu0 %v778
      %v854 = vpop.f32.mrf.mxu0
      %v855 = vadd.f32 0.0, %v854
      %v856 = vpop.f32.mrf.mxu0
      %v857 = vpop.f32.mrf.mxu0
      %v858 = vadd.f32 0.0, %v857
      %v859 = vpop.f32.mrf.mxu0
      %860 = vdwg.mxu0
      %v861 = vpack.c.bf16 %v818, %v815
      %v862 = vpack.c.bf16 %v826, %v823
      %v863 = vpack.c.bf16 %v834, %v831
      %v864 = vpack.c.bf16 %v842, %v839
      %v865 = vpack.c.bf16 %v850, %v847
      %v866 = vpack.c.bf16 %v858, %v855
      %v879 = vunpack.c.l.b16 %v703
      %v880 = vunpack.c.l.b16 %v704
      %v881 = vunpack.c.l.b16 %v705
      %v882 = vunpack.c.l.b16 %v706
      %v883 = vunpack.c.l.b16 %v707
      %v884 = vunpack.c.l.b16 %v708
      %v885 = vunpack.c.l.b16 %v709
      %v886 = vunpack.c.l.b16 %v710
      %v887 = vunpack.c.l.b16 %v711
      %v888 = vunpack.c.l.b16 %v712
      %v889 = vunpack.c.l.b16 %v713
      %v890 = vunpack.c.l.b16 %v714
      %v891 = vpack.c.b16 %v880, %v879
      %v892 = vpack.c.b16 %v882, %v881
      %v893 = vpack.c.b16 %v884, %v883
      %v894 = vpack.c.b16 %v886, %v885
      %v895 = vpack.c.b16 %v888, %v887
      %v896 = vpack.c.b16 %v890, %v889
      %vm897 = vcmask 785408
      %v899 = vsel %vm897, %v891, 0
      %v902 = vsel %vm897, %v892, 0
      %v905 = vsel %vm897, %v893, 0
      %v908 = vsel %vm897, %v894, 0
      %v911 = vsel %vm897, %v895, 0
      %v914 = vsel %vm897, %v896, 0
      %916 = vmatprep.subr.bf16.mxu0 0
      %917 = vmatpush1.bf16.msra.mxu0 0
      %918 = vmatprep.subr.bf16.mxu0 0
      %919 = vmatpush1.bf16.msra.mxu0 0
      %920 = vmatprep.subr.bf16.mxu0 0
      %921 = vmatpush1.bf16.msra.mxu0 %v866
      %922 = vmatprep.subr.bf16.mxu0 0
      %923 = vmatpush1.bf16.msra.mxu0 %v865
      %924 = vmatprep.subr.bf16.mxu0 0
      %925 = vmatpush1.bf16.msra.mxu0 %v864
      %926 = vmatprep.subr.bf16.mxu0 0
      %927 = vmatpush1.bf16.msra.mxu0 %v863
      %928 = vmatprep.subr.bf16.mxu0 0
      %929 = vmatpush1.bf16.msra.mxu0 %v862
      %930 = vmatprep.subr.bf16.mxu0 0
      %931 = vmatpush1.bf16.msra.mxu0 %v861
      %932 = vmatprep.subr.bf16.mxu0 0
      %933 = vmatpush2.bf16.msra.mxu0 0
      %934 = vmatprep.subr.bf16.mxu0 0
      %935 = vmatpush2.bf16.msra.mxu0 0
      %936 = vmatprep.subr.bf16.mxu0 0
      %937 = vmatpush2.bf16.msra.mxu0 0
      %938 = vmatprep.subr.bf16.mxu0 0
      %939 = vmatpush2.bf16.msra.mxu0 0
      %940 = vmatprep.subr.bf16.mxu0 0
      %941 = vmatpush2.bf16.msra.mxu0 0
      %942 = vmatprep.subr.bf16.mxu0 0
      %943 = vmatpush2.bf16.msra.mxu0 0
      %944 = vmatprep.subr.bf16.mxu0 0
      %945 = vmatpush2.bf16.msra.mxu0 0
      %946 = vmatprep.subr.bf16.mxu0 0
      %947 = vmatpush2.bf16.msra.mxu0 0
      %948 = vmatprep.mubr.bf16.mxu0 0
      %949 = vmatmul.mubr.bf16.gmra.mxu0 %v899
      %v950 = vpop.f32.mrf.mxu0
      %v951 = vadd.f32 0.0, %v950
      %v952 = vpop.f32.mrf.mxu0
      %v953 = vpop.f32.mrf.mxu0
      %v954 = vadd.f32 0.0, %v953
      %v955 = vpop.f32.mrf.mxu0
      %956 = vmatprep.mubr.bf16.mxu0 0
      %957 = vmatmul.mubr.bf16.gmra.mxu0 %v902
      %v958 = vpop.f32.mrf.mxu0
      %v959 = vadd.f32 0.0, %v958
      %v960 = vpop.f32.mrf.mxu0
      %v961 = vpop.f32.mrf.mxu0
      %v962 = vadd.f32 0.0, %v961
      %v963 = vpop.f32.mrf.mxu0
      %964 = vmatprep.mubr.bf16.mxu0 0
      %965 = vmatmul.mubr.bf16.gmra.mxu0 %v905
      %v966 = vpop.f32.mrf.mxu0
      %v967 = vadd.f32 0.0, %v966
      %v968 = vpop.f32.mrf.mxu0
      %v969 = vpop.f32.mrf.mxu0
      %v970 = vadd.f32 0.0, %v969
      %v971 = vpop.f32.mrf.mxu0
      %972 = vmatprep.mubr.bf16.mxu0 0
      %973 = vmatmul.mubr.bf16.gmra.mxu0 %v908
      %v974 = vpop.f32.mrf.mxu0
      %v975 = vadd.f32 0.0, %v974
      %v976 = vpop.f32.mrf.mxu0
      %v977 = vpop.f32.mrf.mxu0
      %v978 = vadd.f32 0.0, %v977
      %v979 = vpop.f32.mrf.mxu0
      %980 = vmatprep.mubr.bf16.mxu0 0
      %981 = vmatmul.mubr.bf16.gmra.mxu0 %v911
      %v982 = vpop.f32.mrf.mxu0
      %v983 = vadd.f32 0.0, %v982
      %v984 = vpop.f32.mrf.mxu0
      %v985 = vpop.f32.mrf.mxu0
      %v986 = vadd.f32 0.0, %v985
      %v987 = vpop.f32.mrf.mxu0
      %988 = vmatprep.mubr.bf16.mxu0 0
      %989 = vmatmul.mubr.bf16.gmra.mxu0 %v914
      %v990 = vpop.f32.mrf.mxu0
      %v991 = vadd.f32 0.0, %v990
      %v992 = vpop.f32.mrf.mxu0
      %v993 = vpop.f32.mrf.mxu0
      %v994 = vadd.f32 0.0, %v993
      %v995 = vpop.f32.mrf.mxu0
      %996 = vdwg.mxu0
      %v1009 = vunpack.c.l.b16 %v677
      %v1010 = vunpack.c.l.b16 %v678
      %v1011 = vunpack.c.l.b16 %v679
      %v1012 = vunpack.c.l.b16 %v680
      %v1013 = vunpack.c.l.b16 %v681
      %v1014 = vunpack.c.l.b16 %v682
      %v1015 = vunpack.c.l.b16 %v683
      %v1016 = vunpack.c.l.b16 %v684
      %v1017 = vunpack.c.l.b16 %v685
      %v1018 = vunpack.c.l.b16 %v686
      %v1019 = vunpack.c.l.b16 %v687
      %v1020 = vunpack.c.l.b16 %v688
      %v1021 = vpack.c.b16 %v1010, %v1009
      %v1022 = vpack.c.b16 %v1012, %v1011
      %v1023 = vpack.c.b16 %v1014, %v1013
      %v1024 = vpack.c.b16 %v1016, %v1015
      %v1025 = vpack.c.b16 %v1018, %v1017
      %v1026 = vpack.c.b16 %v1020, %v1019
      %v1028 = vsel %vm761, %v1021, 0
      %v1031 = vsel %vm761, %v1022, 0
      %v1034 = vsel %vm761, %v1023, 0
      %v1037 = vsel %vm761, %v1024, 0
      %v1040 = vsel %vm761, %v1025, 0
      %v1043 = vsel %vm761, %v1026, 0
      %1045 = vmatprep.subr.bf16.mxu0 0
      %1046 = vmatpush1.bf16.msra.mxu0 0
      %1047 = vmatprep.subr.bf16.mxu0 0
      %1048 = vmatpush1.bf16.msra.mxu0 0
      %1049 = vmatprep.subr.bf16.mxu0 0
      %1050 = vmatpush1.bf16.msra.mxu0 0
      %1051 = vmatprep.subr.bf16.mxu0 0
      %1052 = vmatpush1.bf16.msra.mxu0 0
      %1053 = vmatprep.subr.bf16.mxu0 0
      %1054 = vmatpush1.bf16.msra.mxu0 0
      %1055 = vmatprep.subr.bf16.mxu0 0
      %1056 = vmatpush1.bf16.msra.mxu0 0
      %1057 = vmatprep.subr.bf16.mxu0 0
      %1058 = vmatpush1.bf16.msra.mxu0 %v758
      %1059 = vmatprep.subr.bf16.mxu0 0
      %1060 = vmatpush1.bf16.msra.mxu0 %v757
      %1061 = vmatprep.subr.bf16.mxu0 0
      %1062 = vmatpush2.bf16.msra.mxu0 0
      %1063 = vmatprep.subr.bf16.mxu0 0
      %1064 = vmatpush2.bf16.msra.mxu0 0
      %1065 = vmatprep.subr.bf16.mxu0 0
      %1066 = vmatpush2.bf16.msra.mxu0 0
      %1067 = vmatprep.subr.bf16.mxu0 0
      %1068 = vmatpush2.bf16.msra.mxu0 0
      %1069 = vmatprep.subr.bf16.mxu0 0
      %1070 = vmatpush2.bf16.msra.mxu0 0
      %1071 = vmatprep.subr.bf16.mxu0 0
      %1072 = vmatpush2.bf16.msra.mxu0 0
      %1073 = vmatprep.subr.bf16.mxu0 0
      %1074 = vmatpush2.bf16.msra.mxu0 0
      %1075 = vmatprep.subr.bf16.mxu0 0
      %1076 = vmatpush2.bf16.msra.mxu0 0
      %1077 = vmatprep.mubr.bf16.mxu0 0
      %1078 = vmatmul.mubr.bf16.gmra.mxu0 %v1028
      %v1079 = vpop.f32.mrf.mxu0
      %v1080 = vadd.f32 0.0, %v1079
      %v1081 = vpop.f32.mrf.mxu0
      %v1082 = vpop.f32.mrf.mxu0
      %v1083 = vadd.f32 0.0, %v1082
      %v1084 = vpop.f32.mrf.mxu0
      %1085 = vmatprep.mubr.bf16.mxu0 0
      %1086 = vmatmul.mubr.bf16.gmra.mxu0 %v1031
      %v1087 = vpop.f32.mrf.mxu0
      %v1088 = vadd.f32 0.0, %v1087
      %v1089 = vpop.f32.mrf.mxu0
      %v1090 = vpop.f32.mrf.mxu0
      %v1091 = vadd.f32 0.0, %v1090
      %v1092 = vpop.f32.mrf.mxu0
      %1093 = vmatprep.mubr.bf16.mxu0 0
      %1094 = vmatmul.mubr.bf16.gmra.mxu0 %v1034
      %v1095 = vpop.f32.mrf.mxu0
      %v1096 = vadd.f32 0.0, %v1095
      %v1097 = vpop.f32.mrf.mxu0
      %v1098 = vpop.f32.mrf.mxu0
      %v1099 = vadd.f32 0.0, %v1098
      %v1100 = vpop.f32.mrf.mxu0
      %1101 = vmatprep.mubr.bf16.mxu0 0
      %1102 = vmatmul.mubr.bf16.gmra.mxu0 %v1037
      %v1103 = vpop.f32.mrf.mxu0
      %v1104 = vadd.f32 0.0, %v1103
      %v1105 = vpop.f32.mrf.mxu0
      %v1106 = vpop.f32.mrf.mxu0
      %v1107 = vadd.f32 0.0, %v1106
      %v1108 = vpop.f32.mrf.mxu0
      %1109 = vmatprep.mubr.bf16.mxu0 0
      %1110 = vmatmul.mubr.bf16.gmra.mxu0 %v1040
      %v1111 = vpop.f32.mrf.mxu0
      %v1112 = vadd.f32 0.0, %v1111
      %v1113 = vpop.f32.mrf.mxu0
      %v1114 = vpop.f32.mrf.mxu0
      %v1115 = vadd.f32 0.0, %v1114
      %v1116 = vpop.f32.mrf.mxu0
      %1117 = vmatprep.mubr.bf16.mxu0 0
      %1118 = vmatmul.mubr.bf16.gmra.mxu0 %v1043
      %v1119 = vpop.f32.mrf.mxu0
      %v1120 = vadd.f32 0.0, %v1119
      %v1121 = vpop.f32.mrf.mxu0
      %v1122 = vpop.f32.mrf.mxu0
      %v1123 = vadd.f32 0.0, %v1122
      %v1124 = vpop.f32.mrf.mxu0
      %1125 = vdwg.mxu0
      %v1126 = vpack.c.bf16 %v1083, %v1080
      %v1127 = vpack.c.bf16 %v1091, %v1088
      %v1128 = vpack.c.bf16 %v1099, %v1096
      %v1129 = vpack.c.bf16 %v1107, %v1104
      %v1130 = vpack.c.bf16 %v1115, %v1112
      %v1131 = vpack.c.bf16 %v1123, %v1120
      %1132 = vmatprep.subr.bf16.mxu0 0
      %1133 = vmatpush1.bf16.msra.mxu0 0
      %1134 = vmatprep.subr.bf16.mxu0 0
      %1135 = vmatpush1.bf16.msra.mxu0 0
      %1136 = vmatprep.subr.bf16.mxu0 0
      %1137 = vmatpush1.bf16.msra.mxu0 %v1131
      %1138 = vmatprep.subr.bf16.mxu0 0
      %1139 = vmatpush1.bf16.msra.mxu0 %v1130
      %1140 = vmatprep.subr.bf16.mxu0 0
      %1141 = vmatpush1.bf16.msra.mxu0 %v1129
      %1142 = vmatprep.subr.bf16.mxu0 0
      %1143 = vmatpush1.bf16.msra.mxu0 %v1128
      %1144 = vmatprep.subr.bf16.mxu0 0
      %1145 = vmatpush1.bf16.msra.mxu0 %v1127
      %1146 = vmatprep.subr.bf16.mxu0 0
      %1147 = vmatpush1.bf16.msra.mxu0 %v1126
      %1148 = vmatprep.subr.bf16.mxu0 0
      %1149 = vmatpush2.bf16.msra.mxu0 0
      %1150 = vmatprep.subr.bf16.mxu0 0
      %1151 = vmatpush2.bf16.msra.mxu0 0
      %1152 = vmatprep.subr.bf16.mxu0 0
      %1153 = vmatpush2.bf16.msra.mxu0 0
      %1154 = vmatprep.subr.bf16.mxu0 0
      %1155 = vmatpush2.bf16.msra.mxu0 0
      %1156 = vmatprep.subr.bf16.mxu0 0
      %1157 = vmatpush2.bf16.msra.mxu0 0
      %1158 = vmatprep.subr.bf16.mxu0 0
      %1159 = vmatpush2.bf16.msra.mxu0 0
      %1160 = vmatprep.subr.bf16.mxu0 0
      %1161 = vmatpush2.bf16.msra.mxu0 0
      %1162 = vmatprep.subr.bf16.mxu0 0
      %1163 = vmatpush2.bf16.msra.mxu0 0
      %1164 = vmatprep.mubr.bf16.mxu0 0
      %1165 = vmatmul.mubr.bf16.gmra.mxu0 %v899
      %v1166 = vpop.f32.mrf.mxu0
      %v1167 = vadd.f32 0.0, %v1166
      %v1168 = vpop.f32.mrf.mxu0
      %v1169 = vpop.f32.mrf.mxu0
      %v1170 = vadd.f32 0.0, %v1169
      %v1171 = vpop.f32.mrf.mxu0
      %1172 = vmatprep.mubr.bf16.mxu0 0
      %1173 = vmatmul.mubr.bf16.gmra.mxu0 %v902
      %v1174 = vpop.f32.mrf.mxu0
      %v1175 = vadd.f32 0.0, %v1174
      %v1176 = vpop.f32.mrf.mxu0
      %v1177 = vpop.f32.mrf.mxu0
      %v1178 = vadd.f32 0.0, %v1177
      %v1179 = vpop.f32.mrf.mxu0
      %1180 = vmatprep.mubr.bf16.mxu0 0
      %1181 = vmatmul.mubr.bf16.gmra.mxu0 %v905
      %v1182 = vpop.f32.mrf.mxu0
      %v1183 = vadd.f32 0.0, %v1182
      %v1184 = vpop.f32.mrf.mxu0
      %v1185 = vpop.f32.mrf.mxu0
      %v1186 = vadd.f32 0.0, %v1185
      %v1187 = vpop.f32.mrf.mxu0
      %1188 = vmatprep.mubr.bf16.mxu0 0
      %1189 = vmatmul.mubr.bf16.gmra.mxu0 %v908
      %v1190 = vpop.f32.mrf.mxu0
      %v1191 = vadd.f32 0.0, %v1190
      %v1192 = vpop.f32.mrf.mxu0
      %v1193 = vpop.f32.mrf.mxu0
      %v1194 = vadd.f32 0.0, %v1193
      %v1195 = vpop.f32.mrf.mxu0
      %1196 = vmatprep.mubr.bf16.mxu0 0
      %1197 = vmatmul.mubr.bf16.gmra.mxu0 %v911
      %v1198 = vpop.f32.mrf.mxu0
      %v1199 = vadd.f32 0.0, %v1198
      %v1200 = vpop.f32.mrf.mxu0
      %v1201 = vpop.f32.mrf.mxu0
      %v1202 = vadd.f32 0.0, %v1201
      %v1203 = vpop.f32.mrf.mxu0
      %1204 = vmatprep.mubr.bf16.mxu0 0
      %1205 = vmatmul.mubr.bf16.gmra.mxu0 %v914
      %v1206 = vpop.f32.mrf.mxu0
      %v1207 = vadd.f32 0.0, %v1206
      %v1208 = vpop.f32.mrf.mxu0
      %v1209 = vpop.f32.mrf.mxu0
      %v1210 = vadd.f32 0.0, %v1209
      %v1211 = vpop.f32.mrf.mxu0
      %1212 = vdwg.mxu0
      %v1213 = vmul.f32 %v665, %v665
      %v1214 = vmul.f32 %v666, %v666
      %v1215 = vmul.f32 %v667, %v667
      %v1216 = vmul.f32 %v668, %v668
      %v1217 = vmul.f32 %v669, %v669
      %v1218 = vmul.f32 %v670, %v670
      %v1219 = vmul.f32 %v671, %v671
      %v1220 = vmul.f32 %v672, %v672
      %v1221 = vmul.f32 %v673, %v673
      %v1222 = vmul.f32 %v674, %v674
      %v1223 = vmul.f32 %v675, %v675
      %v1224 = vmul.f32 %v676, %v676
      %v1225 = vpack.c.bf16 %v1214, %v1213
      %v1226 = vpack.c.bf16 %v1216, %v1215
      %v1227 = vpack.c.bf16 %v1218, %v1217
      %v1228 = vpack.c.bf16 %v1220, %v1219
      %v1229 = vpack.c.bf16 %v1222, %v1221
      %v1230 = vpack.c.bf16 %v1224, %v1223
      %v1232 = vsel %vm761, %v1225, 0
      %v1235 = vsel %vm761, %v1226, 0
      %v1238 = vsel %vm761, %v1227, 0
      %v1241 = vsel %vm761, %v1228, 0
      %v1244 = vsel %vm761, %v1229, 0
      %v1247 = vsel %vm761, %v1230, 0
      %1249 = vmatprep.subr.bf16.mxu0 0
      %1250 = vmatpush1.bf16.msra.mxu0 0
      %1251 = vmatprep.subr.bf16.mxu0 0
      %1252 = vmatpush1.bf16.msra.mxu0 0
      %1253 = vmatprep.subr.bf16.mxu0 0
      %1254 = vmatpush1.bf16.msra.mxu0 0
      %1255 = vmatprep.subr.bf16.mxu0 0
      %1256 = vmatpush1.bf16.msra.mxu0 0
      %1257 = vmatprep.subr.bf16.mxu0 0
      %1258 = vmatpush1.bf16.msra.mxu0 0
      %1259 = vmatprep.subr.bf16.mxu0 0
      %1260 = vmatpush1.bf16.msra.mxu0 0
      %1261 = vmatprep.subr.bf16.mxu0 0
      %1262 = vmatpush1.bf16.msra.mxu0 %v758
      %1263 = vmatprep.subr.bf16.mxu0 0
      %1264 = vmatpush1.bf16.msra.mxu0 %v757
      %1265 = vmatprep.subr.bf16.mxu0 0
      %1266 = vmatpush2.bf16.msra.mxu0 0
      %1267 = vmatprep.subr.bf16.mxu0 0
      %1268 = vmatpush2.bf16.msra.mxu0 0
      %1269 = vmatprep.subr.bf16.mxu0 0
      %1270 = vmatpush2.bf16.msra.mxu0 0
      %1271 = vmatprep.subr.bf16.mxu0 0
      %1272 = vmatpush2.bf16.msra.mxu0 0
      %1273 = vmatprep.subr.bf16.mxu0 0
      %1274 = vmatpush2.bf16.msra.mxu0 0
      %1275 = vmatprep.subr.bf16.mxu0 0
      %1276 = vmatpush2.bf16.msra.mxu0 0
      %1277 = vmatprep.subr.bf16.mxu0 0
      %1278 = vmatpush2.bf16.msra.mxu0 0
      %1279 = vmatprep.subr.bf16.mxu0 0
      %1280 = vmatpush2.bf16.msra.mxu0 0
      %1281 = vmatprep.mubr.bf16.mxu0 0
      %1282 = vmatmul.mubr.bf16.gmra.mxu0 %v1232
      %v1283 = vpop.f32.mrf.mxu0
      %v1284 = vadd.f32 0.0, %v1283
      %v1285 = vpop.f32.mrf.mxu0
      %v1286 = vpop.f32.mrf.mxu0
      %v1287 = vadd.f32 0.0, %v1286
      %v1288 = vpop.f32.mrf.mxu0
      %1289 = vmatprep.mubr.bf16.mxu0 0
      %1290 = vmatmul.mubr.bf16.gmra.mxu0 %v1235
      %v1291 = vpop.f32.mrf.mxu0
      %v1292 = vadd.f32 0.0, %v1291
      %v1293 = vpop.f32.mrf.mxu0
      %v1294 = vpop.f32.mrf.mxu0
      %v1295 = vadd.f32 0.0, %v1294
      %v1296 = vpop.f32.mrf.mxu0
      %1297 = vmatprep.mubr.bf16.mxu0 0
      %1298 = vmatmul.mubr.bf16.gmra.mxu0 %v1238
      %v1299 = vpop.f32.mrf.mxu0
      %v1300 = vadd.f32 0.0, %v1299
      %v1301 = vpop.f32.mrf.mxu0
      %v1302 = vpop.f32.mrf.mxu0
      %v1303 = vadd.f32 0.0, %v1302
      %v1304 = vpop.f32.mrf.mxu0
      %1305 = vmatprep.mubr.bf16.mxu0 0
      %1306 = vmatmul.mubr.bf16.gmra.mxu0 %v1241
      %v1307 = vpop.f32.mrf.mxu0
      %v1308 = vadd.f32 0.0, %v1307
      %v1309 = vpop.f32.mrf.mxu0
      %v1310 = vpop.f32.mrf.mxu0
      %v1311 = vadd.f32 0.0, %v1310
      %v1312 = vpop.f32.mrf.mxu0
      %1313 = vmatprep.mubr.bf16.mxu0 0
      %1314 = vmatmul.mubr.bf16.gmra.mxu0 %v1244
      %v1315 = vpop.f32.mrf.mxu0
      %v1316 = vadd.f32 0.0, %v1315
      %v1317 = vpop.f32.mrf.mxu0
      %v1318 = vpop.f32.mrf.mxu0
      %v1319 = vadd.f32 0.0, %v1318
      %v1320 = vpop.f32.mrf.mxu0
      %1321 = vmatprep.mubr.bf16.mxu0 0
      %1322 = vmatmul.mubr.bf16.gmra.mxu0 %v1247
      %v1323 = vpop.f32.mrf.mxu0
      %v1324 = vadd.f32 0.0, %v1323
      %v1325 = vpop.f32.mrf.mxu0
      %v1326 = vpop.f32.mrf.mxu0
      %v1327 = vadd.f32 0.0, %v1326
      %v1328 = vpop.f32.mrf.mxu0
      %1329 = vdwg.mxu0
      %v1330 = vpack.c.bf16 %v1287, %v1284
      %v1331 = vpack.c.bf16 %v1295, %v1292
      %v1332 = vpack.c.bf16 %v1303, %v1300
      %v1333 = vpack.c.bf16 %v1311, %v1308
      %v1334 = vpack.c.bf16 %v1319, %v1316
      %v1335 = vpack.c.bf16 %v1327, %v1324
      %1336 = vmatprep.subr.bf16.mxu0 0
      %1337 = vmatpush1.bf16.msra.mxu0 0
      %1338 = vmatprep.subr.bf16.mxu0 0
      %1339 = vmatpush1.bf16.msra.mxu0 0
      %1340 = vmatprep.subr.bf16.mxu0 0
      %1341 = vmatpush1.bf16.msra.mxu0 %v1335
      %1342 = vmatprep.subr.bf16.mxu0 0
      %1343 = vmatpush1.bf16.msra.mxu0 %v1334
      %1344 = vmatprep.subr.bf16.mxu0 0
      %1345 = vmatpush1.bf16.msra.mxu0 %v1333
      %1346 = vmatprep.subr.bf16.mxu0 0
      %1347 = vmatpush1.bf16.msra.mxu0 %v1332
      %1348 = vmatprep.subr.bf16.mxu0 0
      %1349 = vmatpush1.bf16.msra.mxu0 %v1331
      %1350 = vmatprep.subr.bf16.mxu0 0
      %1351 = vmatpush1.bf16.msra.mxu0 %v1330
      %1352 = vmatprep.subr.bf16.mxu0 0
      %1353 = vmatpush2.bf16.msra.mxu0 0
      %1354 = vmatprep.subr.bf16.mxu0 0
      %1355 = vmatpush2.bf16.msra.mxu0 0
      %1356 = vmatprep.subr.bf16.mxu0 0
      %1357 = vmatpush2.bf16.msra.mxu0 0
      %1358 = vmatprep.subr.bf16.mxu0 0
      %1359 = vmatpush2.bf16.msra.mxu0 0
      %1360 = vmatprep.subr.bf16.mxu0 0
      %1361 = vmatpush2.bf16.msra.mxu0 0
      %1362 = vmatprep.subr.bf16.mxu0 0
      %1363 = vmatpush2.bf16.msra.mxu0 0
      %1364 = vmatprep.subr.bf16.mxu0 0
      %1365 = vmatpush2.bf16.msra.mxu0 0
      %1366 = vmatprep.subr.bf16.mxu0 0
      %1367 = vmatpush2.bf16.msra.mxu0 0
      %1368 = vmatprep.mubr.bf16.mxu0 0
      %1369 = vmatmul.mubr.bf16.gmra.mxu0 %v899
      %v1370 = vpop.f32.mrf.mxu0
      %v1371 = vadd.f32 0.0, %v1370
      %v1372 = vpop.f32.mrf.mxu0
      %v1373 = vpop.f32.mrf.mxu0
      %v1374 = vadd.f32 0.0, %v1373
      %v1375 = vpop.f32.mrf.mxu0
      %1376 = vmatprep.mubr.bf16.mxu0 0
      %1377 = vmatmul.mubr.bf16.gmra.mxu0 %v902
      %v1378 = vpop.f32.mrf.mxu0
      %v1379 = vadd.f32 0.0, %v1378
      %v1380 = vpop.f32.mrf.mxu0
      %v1381 = vpop.f32.mrf.mxu0
      %v1382 = vadd.f32 0.0, %v1381
      %v1383 = vpop.f32.mrf.mxu0
      %1384 = vmatprep.mubr.bf16.mxu0 0
      %1385 = vmatmul.mubr.bf16.gmra.mxu0 %v905
      %v1386 = vpop.f32.mrf.mxu0
      %v1387 = vadd.f32 0.0, %v1386
      %v1388 = vpop.f32.mrf.mxu0
      %v1389 = vpop.f32.mrf.mxu0
      %v1390 = vadd.f32 0.0, %v1389
      %v1391 = vpop.f32.mrf.mxu0
      %1392 = vmatprep.mubr.bf16.mxu0 0
      %1393 = vmatmul.mubr.bf16.gmra.mxu0 %v908
      %v1394 = vpop.f32.mrf.mxu0
      %v1395 = vadd.f32 0.0, %v1394
      %v1396 = vpop.f32.mrf.mxu0
      %v1397 = vpop.f32.mrf.mxu0
      %v1398 = vadd.f32 0.0, %v1397
      %v1399 = vpop.f32.mrf.mxu0
      %1400 = vmatprep.mubr.bf16.mxu0 0
      %1401 = vmatmul.mubr.bf16.gmra.mxu0 %v911
      %v1402 = vpop.f32.mrf.mxu0
      %v1403 = vadd.f32 0.0, %v1402
      %v1404 = vpop.f32.mrf.mxu0
      %v1405 = vpop.f32.mrf.mxu0
      %v1406 = vadd.f32 0.0, %v1405
      %v1407 = vpop.f32.mrf.mxu0
      %1408 = vmatprep.mubr.bf16.mxu0 0
      %1409 = vmatmul.mubr.bf16.gmra.mxu0 %v914
      %v1410 = vpop.f32.mrf.mxu0
      %v1411 = vadd.f32 0.0, %v1410
      %v1412 = vpop.f32.mrf.mxu0
      %v1413 = vpop.f32.mrf.mxu0
      %v1414 = vadd.f32 0.0, %v1413
      %v1415 = vpop.f32.mrf.mxu0
      %1416 = vdwg.mxu0
      %v1417 = vmul.f32 %v951, %v951
      %v1418 = vmul.f32 %v954, %v954
      %v1419 = vmul.f32 %v959, %v959
      %v1420 = vmul.f32 %v962, %v962
      %v1421 = vmul.f32 %v967, %v967
      %v1422 = vmul.f32 %v970, %v970
      %v1423 = vmul.f32 %v975, %v975
      %v1424 = vmul.f32 %v978, %v978
      %v1425 = vmul.f32 %v983, %v983
      %v1426 = vmul.f32 %v986, %v986
      %v1427 = vmul.f32 %v991, %v991
      %v1428 = vmul.f32 %v994, %v994
      %v1429 = vsub.f32 %v1371, %v1417
      %v1430 = vsub.f32 %v1374, %v1418
      %v1431 = vsub.f32 %v1379, %v1419
      %v1432 = vsub.f32 %v1382, %v1420
      %v1433 = vsub.f32 %v1387, %v1421
      %v1434 = vsub.f32 %v1390, %v1422
      %v1435 = vsub.f32 %v1395, %v1423
      %v1436 = vsub.f32 %v1398, %v1424
      %v1437 = vsub.f32 %v1403, %v1425
      %v1438 = vsub.f32 %v1406, %v1426
      %v1439 = vsub.f32 %v1411, %v1427
      %v1440 = vsub.f32 %v1414, %v1428
      %v1441 = vmul.f32 %v689, %v689
      %v1442 = vmul.f32 %v690, %v690
      %v1443 = vmul.f32 %v691, %v691
      %v1444 = vmul.f32 %v692, %v692
      %v1445 = vmul.f32 %v693, %v693
      %v1446 = vmul.f32 %v694, %v694
      %v1447 = vmul.f32 %v695, %v695
      %v1448 = vmul.f32 %v696, %v696
      %v1449 = vmul.f32 %v697, %v697
      %v1450 = vmul.f32 %v698, %v698
      %v1451 = vmul.f32 %v699, %v699
      %v1452 = vmul.f32 %v700, %v700
      %v1453 = vpack.c.bf16 %v1442, %v1441
      %v1454 = vpack.c.bf16 %v1444, %v1443
      %v1455 = vpack.c.bf16 %v1446, %v1445
      %v1456 = vpack.c.bf16 %v1448, %v1447
      %v1457 = vpack.c.bf16 %v1450, %v1449
      %v1458 = vpack.c.bf16 %v1452, %v1451
      %v1460 = vsel %vm761, %v1453, 0
      %v1463 = vsel %vm761, %v1454, 0
      %v1466 = vsel %vm761, %v1455, 0
      %v1469 = vsel %vm761, %v1456, 0
      %v1472 = vsel %vm761, %v1457, 0
      %v1475 = vsel %vm761, %v1458, 0
      %1477 = vmatprep.subr.bf16.mxu0 0
      %1478 = vmatpush1.bf16.msra.mxu0 0
      %1479 = vmatprep.subr.bf16.mxu0 0
      %1480 = vmatpush1.bf16.msra.mxu0 0
      %1481 = vmatprep.subr.bf16.mxu0 0
      %1482 = vmatpush1.bf16.msra.mxu0 0
      %1483 = vmatprep.subr.bf16.mxu0 0
      %1484 = vmatpush1.bf16.msra.mxu0 0
      %1485 = vmatprep.subr.bf16.mxu0 0
      %1486 = vmatpush1.bf16.msra.mxu0 0
      %1487 = vmatprep.subr.bf16.mxu0 0
      %1488 = vmatpush1.bf16.msra.mxu0 0
      %1489 = vmatprep.subr.bf16.mxu0 0
      %1490 = vmatpush1.bf16.msra.mxu0 %v758
      %1491 = vmatprep.subr.bf16.mxu0 0
      %1492 = vmatpush1.bf16.msra.mxu0 %v757
      %1493 = vmatprep.subr.bf16.mxu0 0
      %1494 = vmatpush2.bf16.msra.mxu0 0
      %1495 = vmatprep.subr.bf16.mxu0 0
      %1496 = vmatpush2.bf16.msra.mxu0 0
      %1497 = vmatprep.subr.bf16.mxu0 0
      %1498 = vmatpush2.bf16.msra.mxu0 0
      %1499 = vmatprep.subr.bf16.mxu0 0
      %1500 = vmatpush2.bf16.msra.mxu0 0
      %1501 = vmatprep.subr.bf16.mxu0 0
      %1502 = vmatpush2.bf16.msra.mxu0 0
      %1503 = vmatprep.subr.bf16.mxu0 0
      %1504 = vmatpush2.bf16.msra.mxu0 0
      %1505 = vmatprep.subr.bf16.mxu0 0
      %1506 = vmatpush2.bf16.msra.mxu0 0
      %1507 = vmatprep.subr.bf16.mxu0 0
      %1508 = vmatpush2.bf16.msra.mxu0 0
      %1509 = vmatprep.mubr.bf16.mxu0 0
      %1510 = vmatmul.mubr.bf16.gmra.mxu0 %v1460
      %v1511 = vpop.f32.mrf.mxu0
      %v1512 = vadd.f32 0.0, %v1511
      %v1513 = vpop.f32.mrf.mxu0
      %v1514 = vpop.f32.mrf.mxu0
      %v1515 = vadd.f32 0.0, %v1514
      %v1516 = vpop.f32.mrf.mxu0
      %1517 = vmatprep.mubr.bf16.mxu0 0
      %1518 = vmatmul.mubr.bf16.gmra.mxu0 %v1463
      %v1519 = vpop.f32.mrf.mxu0
      %v1520 = vadd.f32 0.0, %v1519
      %v1521 = vpop.f32.mrf.mxu0
      %v1522 = vpop.f32.mrf.mxu0
      %v1523 = vadd.f32 0.0, %v1522
      %v1524 = vpop.f32.mrf.mxu0
      %1525 = vmatprep.mubr.bf16.mxu0 0
      %1526 = vmatmul.mubr.bf16.gmra.mxu0 %v1466
      %v1527 = vpop.f32.mrf.mxu0
      %v1528 = vadd.f32 0.0, %v1527
      %v1529 = vpop.f32.mrf.mxu0
      %v1530 = vpop.f32.mrf.mxu0
      %v1531 = vadd.f32 0.0, %v1530
      %v1532 = vpop.f32.mrf.mxu0
      %1533 = vmatprep.mubr.bf16.mxu0 0
      %1534 = vmatmul.mubr.bf16.gmra.mxu0 %v1469
      %v1535 = vpop.f32.mrf.mxu0
      %v1536 = vadd.f32 0.0, %v1535
      %v1537 = vpop.f32.mrf.mxu0
      %v1538 = vpop.f32.mrf.mxu0
      %v1539 = vadd.f32 0.0, %v1538
      %v1540 = vpop.f32.mrf.mxu0
      %1541 = vmatprep.mubr.bf16.mxu0 0
      %1542 = vmatmul.mubr.bf16.gmra.mxu0 %v1472
      %v1543 = vpop.f32.mrf.mxu0
      %v1544 = vadd.f32 0.0, %v1543
      %v1545 = vpop.f32.mrf.mxu0
      %v1546 = vpop.f32.mrf.mxu0
      %v1547 = vadd.f32 0.0, %v1546
      %v1548 = vpop.f32.mrf.mxu0
      %1549 = vmatprep.mubr.bf16.mxu0 0
      %1550 = vmatmul.mubr.bf16.gmra.mxu0 %v1475
      %v1551 = vpop.f32.mrf.mxu0
      %v1552 = vadd.f32 0.0, %v1551
      %v1553 = vpop.f32.mrf.mxu0
      %v1554 = vpop.f32.mrf.mxu0
      %v1555 = vadd.f32 0.0, %v1554
      %v1556 = vpop.f32.mrf.mxu0
      %1557 = vdwg.mxu0
      %v1558 = vpack.c.bf16 %v1515, %v1512
      %v1559 = vpack.c.bf16 %v1523, %v1520
      %v1560 = vpack.c.bf16 %v1531, %v1528
      %v1561 = vpack.c.bf16 %v1539, %v1536
      %v1562 = vpack.c.bf16 %v1547, %v1544
      %v1563 = vpack.c.bf16 %v1555, %v1552
      %1564 = vmatprep.subr.bf16.mxu0 0
      %1565 = vmatpush1.bf16.msra.mxu0 0
      %1566 = vmatprep.subr.bf16.mxu0 0
      %1567 = vmatpush1.bf16.msra.mxu0 0
      %1568 = vmatprep.subr.bf16.mxu0 0
      %1569 = vmatpush1.bf16.msra.mxu0 %v1563
      %1570 = vmatprep.subr.bf16.mxu0 0
      %1571 = vmatpush1.bf16.msra.mxu0 %v1562
      %1572 = vmatprep.subr.bf16.mxu0 0
      %1573 = vmatpush1.bf16.msra.mxu0 %v1561
      %1574 = vmatprep.subr.bf16.mxu0 0
      %1575 = vmatpush1.bf16.msra.mxu0 %v1560
      %1576 = vmatprep.subr.bf16.mxu0 0
      %1577 = vmatpush1.bf16.msra.mxu0 %v1559
      %1578 = vmatprep.subr.bf16.mxu0 0
      %1579 = vmatpush1.bf16.msra.mxu0 %v1558
      %1580 = vmatprep.subr.bf16.mxu0 0
      %1581 = vmatpush2.bf16.msra.mxu0 0
      %1582 = vmatprep.subr.bf16.mxu0 0
      %1583 = vmatpush2.bf16.msra.mxu0 0
      %1584 = vmatprep.subr.bf16.mxu0 0
      %1585 = vmatpush2.bf16.msra.mxu0 0
      %1586 = vmatprep.subr.bf16.mxu0 0
      %1587 = vmatpush2.bf16.msra.mxu0 0
      %1588 = vmatprep.subr.bf16.mxu0 0
      %1589 = vmatpush2.bf16.msra.mxu0 0
      %1590 = vmatprep.subr.bf16.mxu0 0
      %1591 = vmatpush2.bf16.msra.mxu0 0
      %1592 = vmatprep.subr.bf16.mxu0 0
      %1593 = vmatpush2.bf16.msra.mxu0 0
      %1594 = vmatprep.subr.bf16.mxu0 0
      %1595 = vmatpush2.bf16.msra.mxu0 0
      %1596 = vmatprep.mubr.bf16.mxu0 0
      %1597 = vmatmul.mubr.bf16.gmra.mxu0 %v899
      %v1598 = vpop.f32.mrf.mxu0
      %v1599 = vadd.f32 0.0, %v1598
      %v1600 = vpop.f32.mrf.mxu0
      %v1601 = vpop.f32.mrf.mxu0
      %v1602 = vadd.f32 0.0, %v1601
      %v1603 = vpop.f32.mrf.mxu0
      %1604 = vmatprep.mubr.bf16.mxu0 0
      %1605 = vmatmul.mubr.bf16.gmra.mxu0 %v902
      %v1606 = vpop.f32.mrf.mxu0
      %v1607 = vadd.f32 0.0, %v1606
      %v1608 = vpop.f32.mrf.mxu0
      %v1609 = vpop.f32.mrf.mxu0
      %v1610 = vadd.f32 0.0, %v1609
      %v1611 = vpop.f32.mrf.mxu0
      %1612 = vmatprep.mubr.bf16.mxu0 0
      %1613 = vmatmul.mubr.bf16.gmra.mxu0 %v905
      %v1614 = vpop.f32.mrf.mxu0
      %v1615 = vadd.f32 0.0, %v1614
      %v1616 = vpop.f32.mrf.mxu0
      %v1617 = vpop.f32.mrf.mxu0
      %v1618 = vadd.f32 0.0, %v1617
      %v1619 = vpop.f32.mrf.mxu0
      %1620 = vmatprep.mubr.bf16.mxu0 0
      %1621 = vmatmul.mubr.bf16.gmra.mxu0 %v908
      %v1622 = vpop.f32.mrf.mxu0
      %v1623 = vadd.f32 0.0, %v1622
      %v1624 = vpop.f32.mrf.mxu0
      %v1625 = vpop.f32.mrf.mxu0
      %v1626 = vadd.f32 0.0, %v1625
      %v1627 = vpop.f32.mrf.mxu0
      %1628 = vmatprep.mubr.bf16.mxu0 0
      %1629 = vmatmul.mubr.bf16.gmra.mxu0 %v911
      %v1630 = vpop.f32.mrf.mxu0
      %v1631 = vadd.f32 0.0, %v1630
      %v1632 = vpop.f32.mrf.mxu0
      %v1633 = vpop.f32.mrf.mxu0
      %v1634 = vadd.f32 0.0, %v1633
      %v1635 = vpop.f32.mrf.mxu0
      %1636 = vmatprep.mubr.bf16.mxu0 0
      %1637 = vmatmul.mubr.bf16.gmra.mxu0 %v914
      %v1638 = vpop.f32.mrf.mxu0
      %v1639 = vadd.f32 0.0, %v1638
      %v1640 = vpop.f32.mrf.mxu0
      %v1641 = vpop.f32.mrf.mxu0
      %v1642 = vadd.f32 0.0, %v1641
      %v1643 = vpop.f32.mrf.mxu0
      %1644 = vdwg.mxu0
      %v1645 = vmul.f32 %v1167, %v1167
      %v1646 = vmul.f32 %v1170, %v1170
      %v1647 = vmul.f32 %v1175, %v1175
      %v1648 = vmul.f32 %v1178, %v1178
      %v1649 = vmul.f32 %v1183, %v1183
      %v1650 = vmul.f32 %v1186, %v1186
      %v1651 = vmul.f32 %v1191, %v1191
      %v1652 = vmul.f32 %v1194, %v1194
      %v1653 = vmul.f32 %v1199, %v1199
      %v1654 = vmul.f32 %v1202, %v1202
      %v1655 = vmul.f32 %v1207, %v1207
      %v1656 = vmul.f32 %v1210, %v1210
      %v1657 = vsub.f32 %v1599, %v1645
      %v1658 = vsub.f32 %v1602, %v1646
      %v1659 = vsub.f32 %v1607, %v1647
      %v1660 = vsub.f32 %v1610, %v1648
      %v1661 = vsub.f32 %v1615, %v1649
      %v1662 = vsub.f32 %v1618, %v1650
      %v1663 = vsub.f32 %v1623, %v1651
      %v1664 = vsub.f32 %v1626, %v1652
      %v1665 = vsub.f32 %v1631, %v1653
      %v1666 = vsub.f32 %v1634, %v1654
      %v1667 = vsub.f32 %v1639, %v1655
      %v1668 = vsub.f32 %v1642, %v1656
      %v1669 = vmul.f32 %v665, %v689
      %v1670 = vmul.f32 %v666, %v690
      %v1671 = vmul.f32 %v667, %v691
      %v1672 = vmul.f32 %v668, %v692
      %v1673 = vmul.f32 %v669, %v693
      %v1674 = vmul.f32 %v670, %v694
      %v1675 = vmul.f32 %v671, %v695
      %v1676 = vmul.f32 %v672, %v696
      %v1677 = vmul.f32 %v673, %v697
      %v1678 = vmul.f32 %v674, %v698
      %v1679 = vmul.f32 %v675, %v699
      %v1680 = vmul.f32 %v676, %v700
      %v1681 = vpack.c.bf16 %v1670, %v1669
      %v1682 = vpack.c.bf16 %v1672, %v1671
      %v1683 = vpack.c.bf16 %v1674, %v1673
      %v1684 = vpack.c.bf16 %v1676, %v1675
      %v1685 = vpack.c.bf16 %v1678, %v1677
      %v1686 = vpack.c.bf16 %v1680, %v1679
      %v1688 = vsel %vm761, %v1681, 0
      %v1691 = vsel %vm761, %v1682, 0
      %v1694 = vsel %vm761, %v1683, 0
      %v1697 = vsel %vm761, %v1684, 0
      %v1700 = vsel %vm761, %v1685, 0
      %v1703 = vsel %vm761, %v1686, 0
      %1705 = vmatprep.subr.bf16.mxu0 0
      %1706 = vmatpush1.bf16.msra.mxu0 0
      %1707 = vmatprep.subr.bf16.mxu0 0
      %1708 = vmatpush1.bf16.msra.mxu0 0
      %1709 = vmatprep.subr.bf16.mxu0 0
      %1710 = vmatpush1.bf16.msra.mxu0 0
      %1711 = vmatprep.subr.bf16.mxu0 0
      %1712 = vmatpush1.bf16.msra.mxu0 0
      %1713 = vmatprep.subr.bf16.mxu0 0
      %1714 = vmatpush1.bf16.msra.mxu0 0
      %1715 = vmatprep.subr.bf16.mxu0 0
      %1716 = vmatpush1.bf16.msra.mxu0 0
      %1717 = vmatprep.subr.bf16.mxu0 0
      %1718 = vmatpush1.bf16.msra.mxu0 %v758
      %1719 = vmatprep.subr.bf16.mxu0 0
      %1720 = vmatpush1.bf16.msra.mxu0 %v757
      %1721 = vmatprep.subr.bf16.mxu0 0
      %1722 = vmatpush2.bf16.msra.mxu0 0
      %1723 = vmatprep.subr.bf16.mxu0 0
      %1724 = vmatpush2.bf16.msra.mxu0 0
      %1725 = vmatprep.subr.bf16.mxu0 0
      %1726 = vmatpush2.bf16.msra.mxu0 0
      %1727 = vmatprep.subr.bf16.mxu0 0
      %1728 = vmatpush2.bf16.msra.mxu0 0
      %1729 = vmatprep.subr.bf16.mxu0 0
      %1730 = vmatpush2.bf16.msra.mxu0 0
      %1731 = vmatprep.subr.bf16.mxu0 0
      %1732 = vmatpush2.bf16.msra.mxu0 0
      %1733 = vmatprep.subr.bf16.mxu0 0
      %1734 = vmatpush2.bf16.msra.mxu0 0
      %1735 = vmatprep.subr.bf16.mxu0 0
      %1736 = vmatpush2.bf16.msra.mxu0 0
      %1737 = vmatprep.mubr.bf16.mxu0 0
      %1738 = vmatmul.mubr.bf16.gmra.mxu0 %v1688
      %v1739 = vpop.f32.mrf.mxu0
      %v1740 = vadd.f32 0.0, %v1739
      %v1741 = vpop.f32.mrf.mxu0
      %v1742 = vpop.f32.mrf.mxu0
      %v1743 = vadd.f32 0.0, %v1742
      %v1744 = vpop.f32.mrf.mxu0
      %1745 = vmatprep.mubr.bf16.mxu0 0
      %1746 = vmatmul.mubr.bf16.gmra.mxu0 %v1691
      %v1747 = vpop.f32.mrf.mxu0
      %v1748 = vadd.f32 0.0, %v1747
      %v1749 = vpop.f32.mrf.mxu0
      %v1750 = vpop.f32.mrf.mxu0
      %v1751 = vadd.f32 0.0, %v1750
      %v1752 = vpop.f32.mrf.mxu0
      %1753 = vmatprep.mubr.bf16.mxu0 0
      %1754 = vmatmul.mubr.bf16.gmra.mxu0 %v1694
      %v1755 = vpop.f32.mrf.mxu0
      %v1756 = vadd.f32 0.0, %v1755
      %v1757 = vpop.f32.mrf.mxu0
      %v1758 = vpop.f32.mrf.mxu0
      %v1759 = vadd.f32 0.0, %v1758
      %v1760 = vpop.f32.mrf.mxu0
      %1761 = vmatprep.mubr.bf16.mxu0 0
      %1762 = vmatmul.mubr.bf16.gmra.mxu0 %v1697
      %v1763 = vpop.f32.mrf.mxu0
      %v1764 = vadd.f32 0.0, %v1763
      %v1765 = vpop.f32.mrf.mxu0
      %v1766 = vpop.f32.mrf.mxu0
      %v1767 = vadd.f32 0.0, %v1766
      %v1768 = vpop.f32.mrf.mxu0
      %1769 = vmatprep.mubr.bf16.mxu0 0
      %1770 = vmatmul.mubr.bf16.gmra.mxu0 %v1700
      %v1771 = vpop.f32.mrf.mxu0
      %v1772 = vadd.f32 0.0, %v1771
      %v1773 = vpop.f32.mrf.mxu0
      %v1774 = vpop.f32.mrf.mxu0
      %v1775 = vadd.f32 0.0, %v1774
      %v1776 = vpop.f32.mrf.mxu0
      %1777 = vmatprep.mubr.bf16.mxu0 0
      %1778 = vmatmul.mubr.bf16.gmra.mxu0 %v1703
      %v1779 = vpop.f32.mrf.mxu0
      %v1780 = vadd.f32 0.0, %v1779
      %v1781 = vpop.f32.mrf.mxu0
      %v1782 = vpop.f32.mrf.mxu0
      %v1783 = vadd.f32 0.0, %v1782
      %v1784 = vpop.f32.mrf.mxu0
      %1785 = vdwg.mxu0
      %v1786 = vpack.c.bf16 %v1743, %v1740
      %v1787 = vpack.c.bf16 %v1751, %v1748
      %v1788 = vpack.c.bf16 %v1759, %v1756
      %v1789 = vpack.c.bf16 %v1767, %v1764
      %v1790 = vpack.c.bf16 %v1775, %v1772
      %v1791 = vpack.c.bf16 %v1783, %v1780
      %1792 = vmatprep.subr.bf16.mxu0 0
      %1793 = vmatpush1.bf16.msra.mxu0 0
      %1794 = vmatprep.subr.bf16.mxu0 0
      %1795 = vmatpush1.bf16.msra.mxu0 0
      %1796 = vmatprep.subr.bf16.mxu0 0
      %1797 = vmatpush1.bf16.msra.mxu0 %v1791
      %1798 = vmatprep.subr.bf16.mxu0 0
      %1799 = vmatpush1.bf16.msra.mxu0 %v1790
      %1800 = vmatprep.subr.bf16.mxu0 0
      %1801 = vmatpush1.bf16.msra.mxu0 %v1789
      %1802 = vmatprep.subr.bf16.mxu0 0
      %1803 = vmatpush1.bf16.msra.mxu0 %v1788
      %1804 = vmatprep.subr.bf16.mxu0 0
      %1805 = vmatpush1.bf16.msra.mxu0 %v1787
      %1806 = vmatprep.subr.bf16.mxu0 0
      %1807 = vmatpush1.bf16.msra.mxu0 %v1786
      %1808 = vmatprep.subr.bf16.mxu0 0
      %1809 = vmatpush2.bf16.msra.mxu0 0
      %1810 = vmatprep.subr.bf16.mxu0 0
      %1811 = vmatpush2.bf16.msra.mxu0 0
      %1812 = vmatprep.subr.bf16.mxu0 0
      %1813 = vmatpush2.bf16.msra.mxu0 0
      %1814 = vmatprep.subr.bf16.mxu0 0
      %1815 = vmatpush2.bf16.msra.mxu0 0
      %1816 = vmatprep.subr.bf16.mxu0 0
      %1817 = vmatpush2.bf16.msra.mxu0 0
      %1818 = vmatprep.subr.bf16.mxu0 0
      %1819 = vmatpush2.bf16.msra.mxu0 0
      %1820 = vmatprep.subr.bf16.mxu0 0
      %1821 = vmatpush2.bf16.msra.mxu0 0
      %1822 = vmatprep.subr.bf16.mxu0 0
      %1823 = vmatpush2.bf16.msra.mxu0 0
      %1824 = vmatprep.mubr.bf16.mxu0 0
      %1825 = vmatmul.mubr.bf16.gmra.mxu0 %v899
      %v1826 = vpop.f32.mrf.mxu0
      %v1827 = vadd.f32 0.0, %v1826
      %v1828 = vpop.f32.mrf.mxu0
      %v1829 = vpop.f32.mrf.mxu0
      %v1830 = vadd.f32 0.0, %v1829
      %v1831 = vpop.f32.mrf.mxu0
      %1832 = vmatprep.mubr.bf16.mxu0 0
      %1833 = vmatmul.mubr.bf16.gmra.mxu0 %v902
      %v1834 = vpop.f32.mrf.mxu0
      %v1835 = vadd.f32 0.0, %v1834
      %v1836 = vpop.f32.mrf.mxu0
      %v1837 = vpop.f32.mrf.mxu0
      %v1838 = vadd.f32 0.0, %v1837
      %v1839 = vpop.f32.mrf.mxu0
      %1840 = vmatprep.mubr.bf16.mxu0 0
      %1841 = vmatmul.mubr.bf16.gmra.mxu0 %v905
      %v1842 = vpop.f32.mrf.mxu0
      %v1843 = vadd.f32 0.0, %v1842
      %v1844 = vpop.f32.mrf.mxu0
      %v1845 = vpop.f32.mrf.mxu0
      %v1846 = vadd.f32 0.0, %v1845
      %v1847 = vpop.f32.mrf.mxu0
      %1848 = vmatprep.mubr.bf16.mxu0 0
      %1849 = vmatmul.mubr.bf16.gmra.mxu0 %v908
      %v1850 = vpop.f32.mrf.mxu0
      %v1851 = vadd.f32 0.0, %v1850
      %v1852 = vpop.f32.mrf.mxu0
      %v1853 = vpop.f32.mrf.mxu0
      %v1854 = vadd.f32 0.0, %v1853
      %v1855 = vpop.f32.mrf.mxu0
      %1856 = vmatprep.mubr.bf16.mxu0 0
      %1857 = vmatmul.mubr.bf16.gmra.mxu0 %v911
      %v1858 = vpop.f32.mrf.mxu0
      %v1859 = vadd.f32 0.0, %v1858
      %v1860 = vpop.f32.mrf.mxu0
      %v1861 = vpop.f32.mrf.mxu0
      %v1862 = vadd.f32 0.0, %v1861
      %v1863 = vpop.f32.mrf.mxu0
      %1864 = vmatprep.mubr.bf16.mxu0 0
      %1865 = vmatmul.mubr.bf16.gmra.mxu0 %v914
      %v1866 = vpop.f32.mrf.mxu0
      %v1867 = vadd.f32 0.0, %v1866
      %v1868 = vpop.f32.mrf.mxu0
      %v1869 = vpop.f32.mrf.mxu0
      %v1870 = vadd.f32 0.0, %v1869
      %v1871 = vpop.f32.mrf.mxu0
      %1872 = vdwg.mxu0
      %v1873 = vmul.f32 %v951, %v1167
      %v1874 = vmul.f32 %v954, %v1170
      %v1875 = vmul.f32 %v959, %v1175
      %v1876 = vmul.f32 %v962, %v1178
      %v1877 = vmul.f32 %v967, %v1183
      %v1878 = vmul.f32 %v970, %v1186
      %v1879 = vmul.f32 %v975, %v1191
      %v1880 = vmul.f32 %v978, %v1194
      %v1881 = vmul.f32 %v983, %v1199
      %v1882 = vmul.f32 %v986, %v1202
      %v1883 = vmul.f32 %v991, %v1207
      %v1884 = vmul.f32 %v994, %v1210
      %v1885 = vsub.f32 %v1827, %v1873
      %v1886 = vsub.f32 %v1830, %v1874
      %v1887 = vsub.f32 %v1835, %v1875
      %v1888 = vsub.f32 %v1838, %v1876
      %v1889 = vsub.f32 %v1843, %v1877
      %v1890 = vsub.f32 %v1846, %v1878
      %v1891 = vsub.f32 %v1851, %v1879
      %v1892 = vsub.f32 %v1854, %v1880
      %v1893 = vsub.f32 %v1859, %v1881
      %v1894 = vsub.f32 %v1862, %v1882
      %v1895 = vsub.f32 %v1867, %v1883
      %v1896 = vsub.f32 %v1870, %v1884
      %v1897 = vmul.f32 %v1885, 2.0
      %v1898 = vmul.f32 %v1886, 2.0
      %v1899 = vmul.f32 %v1887, 2.0
      %v1900 = vmul.f32 %v1888, 2.0
      %v1901 = vmul.f32 %v1889, 2.0
      %v1902 = vmul.f32 %v1890, 2.0
      %v1903 = vmul.f32 %v1891, 2.0
      %v1904 = vmul.f32 %v1892, 2.0
      %v1905 = vmul.f32 %v1893, 2.0
      %v1906 = vmul.f32 %v1894, 2.0
      %v1907 = vmul.f32 %v1895, 2.0
      %v1908 = vmul.f32 %v1896, 2.0
      %v1909 = vadd.f32 %v1897, 0.0009
      %v1910 = vadd.f32 %v1898, 0.0009
      %v1911 = vadd.f32 %v1899, 0.0009
      %v1912 = vadd.f32 %v1900, 0.0009
      %v1913 = vadd.f32 %v1901, 0.0009
      %v1914 = vadd.f32 %v1902, 0.0009
      %v1915 = vadd.f32 %v1903, 0.0009
      %v1916 = vadd.f32 %v1904, 0.0009
      %v1917 = vadd.f32 %v1905, 0.0009
      %v1918 = vadd.f32 %v1906, 0.0009
      %v1919 = vadd.f32 %v1907, 0.0009
      %v1920 = vadd.f32 %v1908, 0.0009
      %v1921 = vadd.f32 %v1429, %v1657
      %v1922 = vadd.f32 %v1430, %v1658
      %v1923 = vadd.f32 %v1431, %v1659
      %v1924 = vadd.f32 %v1432, %v1660
      %v1925 = vadd.f32 %v1433, %v1661
      %v1926 = vadd.f32 %v1434, %v1662
      %v1927 = vadd.f32 %v1435, %v1663
      %v1928 = vadd.f32 %v1436, %v1664
      %v1929 = vadd.f32 %v1437, %v1665
      %v1930 = vadd.f32 %v1438, %v1666
      %v1931 = vadd.f32 %v1439, %v1667
      %v1932 = vadd.f32 %v1440, %v1668
      %v1933 = vadd.f32 %v1921, 0.0009
      %v1934 = vadd.f32 %v1922, 0.0009
      %v1935 = vadd.f32 %v1923, 0.0009
      %v1936 = vadd.f32 %v1924, 0.0009
      %v1937 = vadd.f32 %v1925, 0.0009
      %v1938 = vadd.f32 %v1926, 0.0009
      %v1939 = vadd.f32 %v1927, 0.0009
      %v1940 = vadd.f32 %v1928, 0.0009
      %v1941 = vadd.f32 %v1929, 0.0009
      %v1942 = vadd.f32 %v1930, 0.0009
      %v1943 = vadd.f32 %v1931, 0.0009
      %v1944 = vadd.f32 %v1932, 0.0009
      %v1945 = vrcp.pop %v1933
      %v1946 = vrcp.pop %v1934
      %v1947 = vrcp.pop %v1935
      %v1948 = vrcp.pop %v1936
      %v1949 = vrcp.pop %v1937
      %v1950 = vrcp.pop %v1938
      %v1951 = vrcp.pop %v1939
      %v1952 = vrcp.pop %v1940
      %v1953 = vrcp.pop %v1941
      %v1954 = vrcp.pop %v1942
      %v1955 = vrcp.pop %v1943
      %v1956 = vrcp.pop %v1944
      %v1957 = vmul.f32 %v1909, %v1945
      %v1958 = vmul.f32 %v1910, %v1946
      %v1959 = vmul.f32 %v1911, %v1947
      %v1960 = vmul.f32 %v1912, %v1948
      %v1961 = vmul.f32 %v1913, %v1949
      %v1962 = vmul.f32 %v1914, %v1950
      %v1963 = vmul.f32 %v1915, %v1951
      %v1964 = vmul.f32 %v1916, %v1952
      %v1965 = vmul.f32 %v1917, %v1953
      %v1966 = vmul.f32 %v1918, %v1954
      %v1967 = vmul.f32 %v1919, %v1955
      %v1968 = vmul.f32 %v1920, %v1956
      %v1969 = vmul.f32 %v951, 2.0
      %v1970 = vmul.f32 %v954, 2.0
      %v1971 = vmul.f32 %v959, 2.0
      %v1972 = vmul.f32 %v962, 2.0
      %v1973 = vmul.f32 %v967, 2.0
      %v1974 = vmul.f32 %v970, 2.0
      %v1975 = vmul.f32 %v975, 2.0
      %v1976 = vmul.f32 %v978, 2.0
      %v1977 = vmul.f32 %v983, 2.0
      %v1978 = vmul.f32 %v986, 2.0
      %v1979 = vmul.f32 %v991, 2.0
      %v1980 = vmul.f32 %v994, 2.0
      %v1981 = vmul.f32 %v1969, %v1167
      %v1982 = vmul.f32 %v1970, %v1170
      %v1983 = vmul.f32 %v1971, %v1175
      %v1984 = vmul.f32 %v1972, %v1178
      %v1985 = vmul.f32 %v1973, %v1183
      %v1986 = vmul.f32 %v1974, %v1186
      %v1987 = vmul.f32 %v1975, %v1191
      %v1988 = vmul.f32 %v1976, %v1194
      %v1989 = vmul.f32 %v1977, %v1199
      %v1990 = vmul.f32 %v1978, %v1202
      %v1991 = vmul.f32 %v1979, %v1207
      %v1992 = vmul.f32 %v1980, %v1210
      %v1993 = vadd.f32 %v1981, 0.0001
      %v1994 = vadd.f32 %v1982, 0.0001
      %v1995 = vadd.f32 %v1983, 0.0001
      %v1996 = vadd.f32 %v1984, 0.0001
      %v1997 = vadd.f32 %v1985, 0.0001
      %v1998 = vadd.f32 %v1986, 0.0001
      %v1999 = vadd.f32 %v1987, 0.0001
      %v2000 = vadd.f32 %v1988, 0.0001
      %v2001 = vadd.f32 %v1989, 0.0001
      %v2002 = vadd.f32 %v1990, 0.0001
      %v2003 = vadd.f32 %v1991, 0.0001
      %v2004 = vadd.f32 %v1992, 0.0001
      %v2005 = vadd.f32 %v1417, %v1645
      %v2006 = vadd.f32 %v1418, %v1646
      %v2007 = vadd.f32 %v1419, %v1647
      %v2008 = vadd.f32 %v1420, %v1648
      %v2009 = vadd.f32 %v1421, %v1649
      %v2010 = vadd.f32 %v1422, %v1650
      %v2011 = vadd.f32 %v1423, %v1651
      %v2012 = vadd.f32 %v1424, %v1652
      %v2013 = vadd.f32 %v1425, %v1653
      %v2014 = vadd.f32 %v1426, %v1654
      %v2015 = vadd.f32 %v1427, %v1655
      %v2016 = vadd.f32 %v1428, %v1656
      %v2017 = vadd.f32 %v2005, 0.0001
      %v2018 = vadd.f32 %v2006, 0.0001
      %v2019 = vadd.f32 %v2007, 0.0001
      %v2020 = vadd.f32 %v2008, 0.0001
      %v2021 = vadd.f32 %v2009, 0.0001
      %v2022 = vadd.f32 %v2010, 0.0001
      %v2023 = vadd.f32 %v2011, 0.0001
      %v2024 = vadd.f32 %v2012, 0.0001
      %v2025 = vadd.f32 %v2013, 0.0001
      %v2026 = vadd.f32 %v2014, 0.0001
      %v2027 = vadd.f32 %v2015, 0.0001
      %v2028 = vadd.f32 %v2016, 0.0001
      %v2029 = vrcp.pop %v2017
      %v2030 = vrcp.pop %v2018
      %v2031 = vrcp.pop %v2019
      %v2032 = vrcp.pop %v2020
      %v2033 = vrcp.pop %v2021
      %v2034 = vrcp.pop %v2022
      %v2035 = vrcp.pop %v2023
      %v2036 = vrcp.pop %v2024
      %v2037 = vrcp.pop %v2025
      %v2038 = vrcp.pop %v2026
      %v2039 = vrcp.pop %v2027
      %v2040 = vrcp.pop %v2028
      %v2041 = vmul.f32 %v1993, %v2029
      %v2042 = vmul.f32 %v1994, %v2030
      %v2043 = vmul.f32 %v1995, %v2031
      %v2044 = vmul.f32 %v1996, %v2032
      %v2045 = vmul.f32 %v1997, %v2033
      %v2046 = vmul.f32 %v1998, %v2034
      %v2047 = vmul.f32 %v1999, %v2035
      %v2048 = vmul.f32 %v2000, %v2036
      %v2049 = vmul.f32 %v2001, %v2037
      %v2050 = vmul.f32 %v2002, %v2038
      %v2051 = vmul.f32 %v2003, %v2039
      %v2052 = vmul.f32 %v2004, %v2040
      %v2053 = vmul.f32 %v2041, %v1957
      %v2054 = vmul.f32 %v2042, %v1958
      %v2055 = vmul.f32 %v2043, %v1959
      %v2056 = vmul.f32 %v2044, %v1960
      %v2057 = vmul.f32 %v2045, %v1961
      %v2058 = vmul.f32 %v2046, %v1962
      %v2059 = vmul.f32 %v2047, %v1963
      %v2060 = vmul.f32 %v2048, %v1964
      %v2061 = vmul.f32 %v2049, %v1965
      %v2062 = vmul.f32 %v2050, %v1966
      %v2063 = vmul.f32 %v2051, %v1967
      %v2064 = vmul.f32 %v2052, %v1968
      %v2065 = vlaneseq
      %v2066 = vshrl.u32 %v2065, 7
      %v2067 = vmul.u32 %v2066, 32
      %vm2068 = vcmp.ge.s32.totalorder %v702, %v2067
      %v2069 = vadd.s32 %v2066, 1
      %v2070 = vmul.u32 %v2069, 32
      %vm2071 = vcmp.lt.s32.totalorder %v702, %v2070
      %vm2072 = vmand %vm2068, %vm2071
      %v2073 = vsel %vm2072, 1.0, 0.0
      %v2075 = vsel %vm897, %v2073, 0
      %2077 = vmatprep.subr.mxu0 0.0
      %2078 = vmatpush1.msra.mxu0 0.0
      %2079 = vmatprep.subr.mxu0 0.0
      %2080 = vmatpush1.msra.mxu0 0.0
      %2081 = vmatprep.subr.mxu0 0.0
      %2082 = vmatpush1.msra.mxu0 0.0
      %2083 = vmatprep.subr.mxu0 0.0
      %2084 = vmatpush1.msra.mxu0 0.0
      %2085 = vmatprep.subr.mxu0 0.0
      %2086 = vmatpush1.msra.mxu0 %v2064
      %2087 = vmatprep.subr.mxu0 0.0
      %2088 = vmatpush1.msra.mxu0 %v2063
      %2089 = vmatprep.subr.mxu0 0.0
      %2090 = vmatpush1.msra.mxu0 %v2062
      %2091 = vmatprep.subr.mxu0 0.0
      %2092 = vmatpush1.msra.mxu0 %v2061
      %2093 = vmatprep.subr.mxu0 0.0
      %2094 = vmatpush1.msra.mxu0 %v2060
      %2095 = vmatprep.subr.mxu0 0.0
      %2096 = vmatpush1.msra.mxu0 %v2059
      %2097 = vmatprep.subr.mxu0 0.0
      %2098 = vmatpush1.msra.mxu0 %v2058
      %2099 = vmatprep.subr.mxu0 0.0
      %2100 = vmatpush1.msra.mxu0 %v2057
      %2101 = vmatprep.subr.mxu0 0.0
      %2102 = vmatpush1.msra.mxu0 %v2056
      %2103 = vmatprep.subr.mxu0 0.0
      %2104 = vmatpush1.msra.mxu0 %v2055
      %2105 = vmatprep.subr.mxu0 0.0
      %2106 = vmatpush1.msra.mxu0 %v2054
      %2107 = vmatprep.subr.mxu0 0.0
      %2108 = vmatpush1.msra.mxu0 %v2053
      %2109 = vmatprep.subr.mxu0 0.0
      %2110 = vmatpush2.msra.mxu0 0.0
      %2111 = vmatprep.subr.mxu0 0.0
      %2112 = vmatpush2.msra.mxu0 0.0
      %2113 = vmatprep.subr.mxu0 0.0
      %2114 = vmatpush2.msra.mxu0 0.0
      %2115 = vmatprep.subr.mxu0 0.0
      %2116 = vmatpush2.msra.mxu0 0.0
      %2117 = vmatprep.subr.mxu0 0.0
      %2118 = vmatpush2.msra.mxu0 0.0
      %2119 = vmatprep.subr.mxu0 0.0
      %2120 = vmatpush2.msra.mxu0 0.0
      %2121 = vmatprep.subr.mxu0 0.0
      %2122 = vmatpush2.msra.mxu0 0.0
      %2123 = vmatprep.subr.mxu0 0.0
      %2124 = vmatpush2.msra.mxu0 0.0
      %2125 = vmatprep.subr.mxu0 0.0
      %2126 = vmatpush2.msra.mxu0 0.0
      %2127 = vmatprep.subr.mxu0 0.0
      %2128 = vmatpush2.msra.mxu0 0.0
      %2129 = vmatprep.subr.mxu0 0.0
      %2130 = vmatpush2.msra.mxu0 0.0
      %2131 = vmatprep.subr.mxu0 0.0
      %2132 = vmatpush2.msra.mxu0 0.0
      %2133 = vmatprep.subr.mxu0 0.0
      %2134 = vmatpush2.msra.mxu0 0.0
      %2135 = vmatprep.subr.mxu0 0.0
      %2136 = vmatpush2.msra.mxu0 0.0
      %2137 = vmatprep.subr.mxu0 0.0
      %2138 = vmatpush2.msra.mxu0 0.0
      %2139 = vmatprep.subr.mxu0 0.0
      %2140 = vmatpush2.msra.mxu0 0.0
      %2141 = vmatprep.mubr.f32.mxu0 0.0
      %2142 = vmatmul.mubr.f32.gmra.mxu0 %v2075
      %v2143 = vpop.f32.mrf.mxu0
      %v2144 = vadd.f32 0.0, %v2143
      %v2145 = vpop.f32.mrf.mxu0
      %2146 = vdwg.mxu0
      %v2147 = vsel %vm761, %v2144, 0.0
      %2148 = vadd.xlane.f32.xlu0 %v2147
      %v2149 = vpop.xlane.xlu0 %2148
      %v2150 = vmul.f32 %v2149, 0.0009765625
      %2151 = vmatprep.subr.mxu0 0.0
      %2152 = vmatpush1.msra.mxu0 0.0
      %2153 = vmatprep.subr.mxu0 0.0
      %2154 = vmatpush1.msra.mxu0 0.0
      %2155 = vmatprep.subr.mxu0 0.0
      %2156 = vmatpush1.msra.mxu0 0.0
      %2157 = vmatprep.subr.mxu0 0.0
      %2158 = vmatpush1.msra.mxu0 0.0
      %2159 = vmatprep.subr.mxu0 0.0
      %2160 = vmatpush1.msra.mxu0 %v1968
      %2161 = vmatprep.subr.mxu0 0.0
      %2162 = vmatpush1.msra.mxu0 %v1967
      %2163 = vmatprep.subr.mxu0 0.0
      %2164 = vmatpush1.msra.mxu0 %v1966
      %2165 = vmatprep.subr.mxu0 0.0
      %2166 = vmatpush1.msra.mxu0 %v1965
      %2167 = vmatprep.subr.mxu0 0.0
      %2168 = vmatpush1.msra.mxu0 %v1964
      %2169 = vmatprep.subr.mxu0 0.0
      %2170 = vmatpush1.msra.mxu0 %v1963
      %2171 = vmatprep.subr.mxu0 0.0
      %2172 = vmatpush1.msra.mxu0 %v1962
      %2173 = vmatprep.subr.mxu0 0.0
      %2174 = vmatpush1.msra.mxu0 %v1961
      %2175 = vmatprep.subr.mxu0 0.0
      %2176 = vmatpush1.msra.mxu0 %v1960
      %2177 = vmatprep.subr.mxu0 0.0
      %2178 = vmatpush1.msra.mxu0 %v1959
      %2179 = vmatprep.subr.mxu0 0.0
      %2180 = vmatpush1.msra.mxu0 %v1958
      %2181 = vmatprep.subr.mxu0 0.0
      %2182 = vmatpush1.msra.mxu0 %v1957
      %2183 = vmatprep.subr.mxu0 0.0
      %2184 = vmatpush2.msra.mxu0 0.0
      %2185 = vmatprep.subr.mxu0 0.0
      %2186 = vmatpush2.msra.mxu0 0.0
      %2187 = vmatprep.subr.mxu0 0.0
      %2188 = vmatpush2.msra.mxu0 0.0
      %2189 = vmatprep.subr.mxu0 0.0
      %2190 = vmatpush2.msra.mxu0 0.0
      %2191 = vmatprep.subr.mxu0 0.0
      %2192 = vmatpush2.msra.mxu0 0.0
      %2193 = vmatprep.subr.mxu0 0.0
      %2194 = vmatpush2.msra.mxu0 0.0
      %2195 = vmatprep.subr.mxu0 0.0
      %2196 = vmatpush2.msra.mxu0 0.0
      %2197 = vmatprep.subr.mxu0 0.0
      %2198 = vmatpush2.msra.mxu0 0.0
      %2199 = vmatprep.subr.mxu0 0.0
      %2200 = vmatpush2.msra.mxu0 0.0
      %2201 = vmatprep.subr.mxu0 0.0
      %2202 = vmatpush2.msra.mxu0 0.0
      %2203 = vmatprep.subr.mxu0 0.0
      %2204 = vmatpush2.msra.mxu0 0.0
      %2205 = vmatprep.subr.mxu0 0.0
      %2206 = vmatpush2.msra.mxu0 0.0
      %2207 = vmatprep.subr.mxu0 0.0
      %2208 = vmatpush2.msra.mxu0 0.0
      %2209 = vmatprep.subr.mxu0 0.0
      %2210 = vmatpush2.msra.mxu0 0.0
      %2211 = vmatprep.subr.mxu0 0.0
      %2212 = vmatpush2.msra.mxu0 0.0
      %2213 = vmatprep.subr.mxu0 0.0
      %2214 = vmatpush2.msra.mxu0 0.0
      %2215 = vmatprep.mubr.f32.mxu0 0.0
      %2216 = vmatmul.mubr.f32.gmra.mxu0 %v2075
      %v2217 = vpop.f32.mrf.mxu0
      %v2218 = vadd.f32 0.0, %v2217
      %v2219 = vpop.f32.mrf.mxu0
      %2220 = vdwg.mxu0
      %v2221 = vsel %vm761, %v2218, 0.0
      %2222 = vadd.xlane.f32.xlu0 %v2221
      %v2223 = vpop.xlane.xlu0 %2222
      %v2224 = vmul.f32 %v2223, 0.0009765625
      %vm2225 = vcmp.eq.s32.totalorder %v702, 0
      %v2226 = vsel %vm2225, %v2150, 0.0
      %vm2227 = vcmp.eq.s32.totalorder %v702, 5
      %v2228 = vsel %vm2227, %v2224, %v2226
      %v2229 = vld [vmem:[%s12] sm:$0xf]
      %v2230 = vld [vmem:[%s12 + $0x4] sm:$0xf]
      %v2231 = vld [vmem:[%s12 + $0x8] sm:$0xf]
      %v2232 = vld [vmem:[%s12 + $0xc] sm:$0xf]
      %v2233 = vld [vmem:[%s12 + $0x10] sm:$0xf]
      %v2234 = vld [vmem:[%s12 + $0x14] sm:$0xf]
      %v2235 = vld [vmem:[%s16] sm:$0xf]
      %v2236 = vld [vmem:[%s16 + $0x4] sm:$0xf]
      %v2237 = vld [vmem:[%s16 + $0x8] sm:$0xf]
      %v2238 = vld [vmem:[%s16 + $0xc] sm:$0xf]
      %v2243 = vunpack.c.l.b16 %v2235
      %v2244 = vunpack.c.l.b16 %v2236
      %v2245 = vunpack.c.l.b16 %v2237
      %v2246 = vunpack.c.l.b16 %v2238
      %v2247 = vpack.c.b16 %v2244, %v2243
      %v2248 = vpack.c.b16 %v2246, %v2245
      %2251 = vmatprep.subr.bf16.mxu0 0
      %2252 = vmatpush1.bf16.msra.mxu0 0
      %2253 = vmatprep.subr.bf16.mxu0 0
      %2254 = vmatpush1.bf16.msra.mxu0 0
      %2255 = vmatprep.subr.bf16.mxu0 0
      %2256 = vmatpush1.bf16.msra.mxu0 0
      %2257 = vmatprep.subr.bf16.mxu0 0
      %2258 = vmatpush1.bf16.msra.mxu0 0
      %2259 = vmatprep.subr.bf16.mxu0 0
      %2260 = vmatpush1.bf16.msra.mxu0 0
      %2261 = vmatprep.subr.bf16.mxu0 0
      %2262 = vmatpush1.bf16.msra.mxu0 0
      %2263 = vmatprep.subr.bf16.mxu0 0
      %2264 = vmatpush1.bf16.msra.mxu0 %v2248
      %2265 = vmatprep.subr.bf16.mxu0 0
      %2266 = vmatpush1.bf16.msra.mxu0 %v2247
      %2267 = vmatprep.subr.bf16.mxu0 0
      %2268 = vmatpush2.bf16.msra.mxu0 0
      %2269 = vmatprep.subr.bf16.mxu0 0
      %2270 = vmatpush2.bf16.msra.mxu0 0
      %2271 = vmatprep.subr.bf16.mxu0 0
      %2272 = vmatpush2.bf16.msra.mxu0 0
      %2273 = vmatprep.subr.bf16.mxu0 0
      %2274 = vmatpush2.bf16.msra.mxu0 0
      %2275 = vmatprep.subr.bf16.mxu0 0
      %2276 = vmatpush2.bf16.msra.mxu0 0
      %2277 = vmatprep.subr.bf16.mxu0 0
      %2278 = vmatpush2.bf16.msra.mxu0 0
      %2279 = vmatprep.subr.bf16.mxu0 0
      %2280 = vmatpush2.bf16.msra.mxu0 0
      %2281 = vmatprep.subr.bf16.mxu0 0
      %2282 = vmatpush2.bf16.msra.mxu0 0
      %2283 = vmatprep.mubr.bf16.mxu0 0
      %2284 = vmatmul.mubr.bf16.gmra.mxu0 %v763
      %v2285 = vpop.f32.mrf.mxu0
      %v2286 = vadd.f32 0.0, %v2285
      %v2287 = vpop.f32.mrf.mxu0
      %v2288 = vpop.f32.mrf.mxu0
      %v2289 = vadd.f32 0.0, %v2288
      %v2290 = vpop.f32.mrf.mxu0
      %2291 = vmatprep.mubr.bf16.mxu0 0
      %2292 = vmatmul.mubr.bf16.gmra.mxu0 %v766
      %v2293 = vpop.f32.mrf.mxu0
      %v2294 = vadd.f32 0.0, %v2293
      %v2295 = vpop.f32.mrf.mxu0
      %v2296 = vpop.f32.mrf.mxu0
      %v2297 = vadd.f32 0.0, %v2296
      %v2298 = vpop.f32.mrf.mxu0
      %2299 = vmatprep.mubr.bf16.mxu0 0
      %2300 = vmatmul.mubr.bf16.gmra.mxu0 %v769
      %v2301 = vpop.f32.mrf.mxu0
      %v2302 = vadd.f32 0.0, %v2301
      %v2303 = vpop.f32.mrf.mxu0
      %v2304 = vpop.f32.mrf.mxu0
      %v2305 = vadd.f32 0.0, %v2304
      %v2306 = vpop.f32.mrf.mxu0
      %2307 = vmatprep.mubr.bf16.mxu0 0
      %2308 = vmatmul.mubr.bf16.gmra.mxu0 %v772
      %v2309 = vpop.f32.mrf.mxu0
      %v2310 = vadd.f32 0.0, %v2309
      %v2311 = vpop.f32.mrf.mxu0
      %v2312 = vpop.f32.mrf.mxu0
      %v2313 = vadd.f32 0.0, %v2312
      %v2314 = vpop.f32.mrf.mxu0
      %2315 = vmatprep.mubr.bf16.mxu0 0
      %2316 = vmatmul.mubr.bf16.gmra.mxu0 %v775
      %v2317 = vpop.f32.mrf.mxu0
      %v2318 = vadd.f32 0.0, %v2317
      %v2319 = vpop.f32.mrf.mxu0
      %v2320 = vpop.f32.mrf.mxu0
      %v2321 = vadd.f32 0.0, %v2320
      %v2322 = vpop.f32.mrf.mxu0
      %2323 = vmatprep.mubr.bf16.mxu0 0
      %2324 = vmatmul.mubr.bf16.gmra.mxu0 %v778
      %v2325 = vpop.f32.mrf.mxu0
      %v2326 = vadd.f32 0.0, %v2325
      %v2327 = vpop.f32.mrf.mxu0
      %v2328 = vpop.f32.mrf.mxu0
      %v2329 = vadd.f32 0.0, %v2328
      %v2330 = vpop.f32.mrf.mxu0
      %2331 = vdwg.mxu0
      %v2332 = vpack.c.bf16 %v2289, %v2286
      %v2333 = vpack.c.bf16 %v2297, %v2294
      %v2334 = vpack.c.bf16 %v2305, %v2302
      %v2335 = vpack.c.bf16 %v2313, %v2310
      %v2336 = vpack.c.bf16 %v2321, %v2318
      %v2337 = vpack.c.bf16 %v2329, %v2326
      %v2344 = vunpack.c.l.b16 %v2229
      %v2345 = vunpack.c.l.b16 %v2230
      %v2346 = vunpack.c.l.b16 %v2231
      %v2347 = vunpack.c.l.b16 %v2232
      %v2348 = vunpack.c.l.b16 %v2233
      %v2349 = vunpack.c.l.b16 %v2234
      %v2350 = vpack.c.b16 %v2345, %v2344
      %v2351 = vpack.c.b16 %v2347, %v2346
      %v2352 = vpack.c.b16 %v2349, %v2348
      %v2354 = vsel %vm897, %v2350, 0
      %v2357 = vsel %vm897, %v2351, 0
      %v2360 = vsel %vm897, %v2352, 0
      %2362 = vmatprep.subr.bf16.mxu0 0
      %2363 = vmatpush1.bf16.msra.mxu0 0
      %2364 = vmatprep.subr.bf16.mxu0 0
      %2365 = vmatpush1.bf16.msra.mxu0 0
      %2366 = vmatprep.subr.bf16.mxu0 0
      %2367 = vmatpush1.bf16.msra.mxu0 %v2337
      %2368 = vmatprep.subr.bf16.mxu0 0
      %2369 = vmatpush1.bf16.msra.mxu0 %v2336
      %2370 = vmatprep.subr.bf16.mxu0 0
      %2371 = vmatpush1.bf16.msra.mxu0 %v2335
      %2372 = vmatprep.subr.bf16.mxu0 0
      %2373 = vmatpush1.bf16.msra.mxu0 %v2334
      %2374 = vmatprep.subr.bf16.mxu0 0
      %2375 = vmatpush1.bf16.msra.mxu0 %v2333
      %2376 = vmatprep.subr.bf16.mxu0 0
      %2377 = vmatpush1.bf16.msra.mxu0 %v2332
      %2378 = vmatprep.subr.bf16.mxu0 0
      %2379 = vmatpush2.bf16.msra.mxu0 0
      %2380 = vmatprep.subr.bf16.mxu0 0
      %2381 = vmatpush2.bf16.msra.mxu0 0
      %2382 = vmatprep.subr.bf16.mxu0 0
      %2383 = vmatpush2.bf16.msra.mxu0 0
      %2384 = vmatprep.subr.bf16.mxu0 0
      %2385 = vmatpush2.bf16.msra.mxu0 0
      %2386 = vmatprep.subr.bf16.mxu0 0
      %2387 = vmatpush2.bf16.msra.mxu0 0
      %2388 = vmatprep.subr.bf16.mxu0 0
      %2389 = vmatpush2.bf16.msra.mxu0 0
      %2390 = vmatprep.subr.bf16.mxu0 0
      %2391 = vmatpush2.bf16.msra.mxu0 0
      %2392 = vmatprep.subr.bf16.mxu0 0
      %2393 = vmatpush2.bf16.msra.mxu0 0
      %2394 = vmatprep.mubr.bf16.mxu0 0
      %2395 = vmatmul.mubr.bf16.gmra.mxu0 %v2354
      %v2396 = vpop.f32.mrf.mxu0
      %v2397 = vadd.f32 0.0, %v2396
      %v2398 = vpop.f32.mrf.mxu0
      %v2399 = vpop.f32.mrf.mxu0
      %v2400 = vadd.f32 0.0, %v2399
      %v2401 = vpop.f32.mrf.mxu0
      %2402 = vmatprep.mubr.bf16.mxu0 0
      %2403 = vmatmul.mubr.bf16.gmra.mxu0 %v2357
      %v2404 = vpop.f32.mrf.mxu0
      %v2405 = vadd.f32 0.0, %v2404
      %v2406 = vpop.f32.mrf.mxu0
      %v2407 = vpop.f32.mrf.mxu0
      %v2408 = vadd.f32 0.0, %v2407
      %v2409 = vpop.f32.mrf.mxu0
      %2410 = vmatprep.mubr.bf16.mxu0 0
      %2411 = vmatmul.mubr.bf16.gmra.mxu0 %v2360
      %v2412 = vpop.f32.mrf.mxu0
      %v2413 = vadd.f32 0.0, %v2412
      %v2414 = vpop.f32.mrf.mxu0
      %v2415 = vpop.f32.mrf.mxu0
      %v2416 = vadd.f32 0.0, %v2415
      %v2417 = vpop.f32.mrf.mxu0
      %2418 = vdwg.mxu0
      %2419 = vmatprep.subr.bf16.mxu0 0
      %2420 = vmatpush1.bf16.msra.mxu0 0
      %2421 = vmatprep.subr.bf16.mxu0 0
      %2422 = vmatpush1.bf16.msra.mxu0 0
      %2423 = vmatprep.subr.bf16.mxu0 0
      %2424 = vmatpush1.bf16.msra.mxu0 0
      %2425 = vmatprep.subr.bf16.mxu0 0
      %2426 = vmatpush1.bf16.msra.mxu0 0
      %2427 = vmatprep.subr.bf16.mxu0 0
      %2428 = vmatpush1.bf16.msra.mxu0 0
      %2429 = vmatprep.subr.bf16.mxu0 0
      %2430 = vmatpush1.bf16.msra.mxu0 0
      %2431 = vmatprep.subr.bf16.mxu0 0
      %2432 = vmatpush1.bf16.msra.mxu0 %v2248
      %2433 = vmatprep.subr.bf16.mxu0 0
      %2434 = vmatpush1.bf16.msra.mxu0 %v2247
      %2435 = vmatprep.subr.bf16.mxu0 0
      %2436 = vmatpush2.bf16.msra.mxu0 0
      %2437 = vmatprep.subr.bf16.mxu0 0
      %2438 = vmatpush2.bf16.msra.mxu0 0
      %2439 = vmatprep.subr.bf16.mxu0 0
      %2440 = vmatpush2.bf16.msra.mxu0 0
      %2441 = vmatprep.subr.bf16.mxu0 0
      %2442 = vmatpush2.bf16.msra.mxu0 0
      %2443 = vmatprep.subr.bf16.mxu0 0
      %2444 = vmatpush2.bf16.msra.mxu0 0
      %2445 = vmatprep.subr.bf16.mxu0 0
      %2446 = vmatpush2.bf16.msra.mxu0 0
      %2447 = vmatprep.subr.bf16.mxu0 0
      %2448 = vmatpush2.bf16.msra.mxu0 0
      %2449 = vmatprep.subr.bf16.mxu0 0
      %2450 = vmatpush2.bf16.msra.mxu0 0
      %2451 = vmatprep.mubr.bf16.mxu0 0
      %2452 = vmatmul.mubr.bf16.gmra.mxu0 %v1028
      %v2453 = vpop.f32.mrf.mxu0
      %v2454 = vadd.f32 0.0, %v2453
      %v2455 = vpop.f32.mrf.mxu0
      %v2456 = vpop.f32.mrf.mxu0
      %v2457 = vadd.f32 0.0, %v2456
      %v2458 = vpop.f32.mrf.mxu0
      %2459 = vmatprep.mubr.bf16.mxu0 0
      %2460 = vmatmul.mubr.bf16.gmra.mxu0 %v1031
      %v2461 = vpop.f32.mrf.mxu0
      %v2462 = vadd.f32 0.0, %v2461
      %v2463 = vpop.f32.mrf.mxu0
      %v2464 = vpop.f32.mrf.mxu0
      %v2465 = vadd.f32 0.0, %v2464
      %v2466 = vpop.f32.mrf.mxu0
      %2467 = vmatprep.mubr.bf16.mxu0 0
      %2468 = vmatmul.mubr.bf16.gmra.mxu0 %v1034
      %v2469 = vpop.f32.mrf.mxu0
      %v2470 = vadd.f32 0.0, %v2469
      %v2471 = vpop.f32.mrf.mxu0
      %v2472 = vpop.f32.mrf.mxu0
      %v2473 = vadd.f32 0.0, %v2472
      %v2474 = vpop.f32.mrf.mxu0
      %2475 = vmatprep.mubr.bf16.mxu0 0
      %2476 = vmatmul.mubr.bf16.gmra.mxu0 %v1037
      %v2477 = vpop.f32.mrf.mxu0
      %v2478 = vadd.f32 0.0, %v2477
      %v2479 = vpop.f32.mrf.mxu0
      %v2480 = vpop.f32.mrf.mxu0
      %v2481 = vadd.f32 0.0, %v2480
      %v2482 = vpop.f32.mrf.mxu0
      %2483 = vmatprep.mubr.bf16.mxu0 0
      %2484 = vmatmul.mubr.bf16.gmra.mxu0 %v1040
      %v2485 = vpop.f32.mrf.mxu0
      %v2486 = vadd.f32 0.0, %v2485
      %v2487 = vpop.f32.mrf.mxu0
      %v2488 = vpop.f32.mrf.mxu0
      %v2489 = vadd.f32 0.0, %v2488
      %v2490 = vpop.f32.mrf.mxu0
      %2491 = vmatprep.mubr.bf16.mxu0 0
      %2492 = vmatmul.mubr.bf16.gmra.mxu0 %v1043
      %v2493 = vpop.f32.mrf.mxu0
      %v2494 = vadd.f32 0.0, %v2493
      %v2495 = vpop.f32.mrf.mxu0
      %v2496 = vpop.f32.mrf.mxu0
      %v2497 = vadd.f32 0.0, %v2496
      %v2498 = vpop.f32.mrf.mxu0
      %2499 = vdwg.mxu0
      %v2500 = vpack.c.bf16 %v2457, %v2454
      %v2501 = vpack.c.bf16 %v2465, %v2462
      %v2502 = vpack.c.bf16 %v2473, %v2470
      %v2503 = vpack.c.bf16 %v2481, %v2478
      %v2504 = vpack.c.bf16 %v2489, %v2486
      %v2505 = vpack.c.bf16 %v2497, %v2494
      %2506 = vmatprep.subr.bf16.mxu0 0
      %2507 = vmatpush1.bf16.msra.mxu0 0
      %2508 = vmatprep.subr.bf16.mxu0 0
      %2509 = vmatpush1.bf16.msra.mxu0 0
      %2510 = vmatprep.subr.bf16.mxu0 0
      %2511 = vmatpush1.bf16.msra.mxu0 %v2505
      %2512 = vmatprep.subr.bf16.mxu0 0
      %2513 = vmatpush1.bf16.msra.mxu0 %v2504
      %2514 = vmatprep.subr.bf16.mxu0 0
      %2515 = vmatpush1.bf16.msra.mxu0 %v2503
      %2516 = vmatprep.subr.bf16.mxu0 0
      %2517 = vmatpush1.bf16.msra.mxu0 %v2502
      %2518 = vmatprep.subr.bf16.mxu0 0
      %2519 = vmatpush1.bf16.msra.mxu0 %v2501
      %2520 = vmatprep.subr.bf16.mxu0 0
      %2521 = vmatpush1.bf16.msra.mxu0 %v2500
      %2522 = vmatprep.subr.bf16.mxu0 0
      %2523 = vmatpush2.bf16.msra.mxu0 0
      %2524 = vmatprep.subr.bf16.mxu0 0
      %2525 = vmatpush2.bf16.msra.mxu0 0
      %2526 = vmatprep.subr.bf16.mxu0 0
      %2527 = vmatpush2.bf16.msra.mxu0 0
      %2528 = vmatprep.subr.bf16.mxu0 0
      %2529 = vmatpush2.bf16.msra.mxu0 0
      %2530 = vmatprep.subr.bf16.mxu0 0
      %2531 = vmatpush2.bf16.msra.mxu0 0
      %2532 = vmatprep.subr.bf16.mxu0 0
      %2533 = vmatpush2.bf16.msra.mxu0 0
      %2534 = vmatprep.subr.bf16.mxu0 0
      %2535 = vmatpush2.bf16.msra.mxu0 0
      %2536 = vmatprep.subr.bf16.mxu0 0
      %2537 = vmatpush2.bf16.msra.mxu0 0
      %2538 = vmatprep.mubr.bf16.mxu0 0
      %2539 = vmatmul.mubr.bf16.gmra.mxu0 %v2354
      %v2540 = vpop.f32.mrf.mxu0
      %v2541 = vadd.f32 0.0, %v2540
      %v2542 = vpop.f32.mrf.mxu0
      %v2543 = vpop.f32.mrf.mxu0
      %v2544 = vadd.f32 0.0, %v2543
      %v2545 = vpop.f32.mrf.mxu0
      %2546 = vmatprep.mubr.bf16.mxu0 0
      %2547 = vmatmul.mubr.bf16.gmra.mxu0 %v2357
      %v2548 = vpop.f32.mrf.mxu0
      %v2549 = vadd.f32 0.0, %v2548
      %v2550 = vpop.f32.mrf.mxu0
      %v2551 = vpop.f32.mrf.mxu0
      %v2552 = vadd.f32 0.0, %v2551
      %v2553 = vpop.f32.mrf.mxu0
      %2554 = vmatprep.mubr.bf16.mxu0 0
      %2555 = vmatmul.mubr.bf16.gmra.mxu0 %v2360
      %v2556 = vpop.f32.mrf.mxu0
      %v2557 = vadd.f32 0.0, %v2556
      %v2558 = vpop.f32.mrf.mxu0
      %v2559 = vpop.f32.mrf.mxu0
      %v2560 = vadd.f32 0.0, %v2559
      %v2561 = vpop.f32.mrf.mxu0
      %2562 = vdwg.mxu0
      %v2563 = vld [vmem:[%s3] sm:$0xf]
      %v2564 = vld [vmem:[%s3 + $0x4] sm:$0xf]
      %v2565 = vld [vmem:[%s3 + $0x8] sm:$0xf]
      %v2566 = vld [vmem:[%s3 + $0xc] sm:$0xf]
      %v2567 = vld [vmem:[%s3 + $0x10] sm:$0xf]
      %v2568 = vld [vmem:[%s3 + $0x14] sm:$0xf]
      %v2569 = vld [vmem:[%s8] sm:$0xf]
      %v2570 = vld [vmem:[%s8 + $0x4] sm:$0xf]
      %v2571 = vpack.c.bf16 %v2400, %v2397
      %v2572 = vpack.c.bf16 %v2408, %v2405
      %v2573 = vpack.c.bf16 %v2416, %v2413
      %v2576 = vunpack.c.l.b16 %v2569
      %v2577 = vunpack.c.l.b16 %v2570
      %v2578 = vpack.c.b16 %v2577, %v2576
      %vm2580 = vcmask 130048
      %v2582 = vsel %vm2580, %v2571, 0
      %v2585 = vsel %vm2580, %v2572, 0
      %v2588 = vsel %vm2580, %v2573, 0
      %2590 = vmatprep.subr.bf16.mxu0 0
      %2591 = vmatpush1.bf16.msra.mxu0 0
      %2592 = vmatprep.subr.bf16.mxu0 0
      %2593 = vmatpush1.bf16.msra.mxu0 0
      %2594 = vmatprep.subr.bf16.mxu0 0
      %2595 = vmatpush1.bf16.msra.mxu0 0
      %2596 = vmatprep.subr.bf16.mxu0 0
      %2597 = vmatpush1.bf16.msra.mxu0 0
      %2598 = vmatprep.subr.bf16.mxu0 0
      %2599 = vmatpush1.bf16.msra.mxu0 0
      %2600 = vmatprep.subr.bf16.mxu0 0
      %2601 = vmatpush1.bf16.msra.mxu0 0
      %2602 = vmatprep.subr.bf16.mxu0 0
      %2603 = vmatpush1.bf16.msra.mxu0 0
      %2604 = vmatprep.subr.bf16.mxu0 0
      %2605 = vmatpush1.bf16.msra.mxu0 %v2578
      %2606 = vmatprep.subr.bf16.mxu0 0
      %2607 = vmatpush2.bf16.msra.mxu0 0
      %2608 = vmatprep.subr.bf16.mxu0 0
      %2609 = vmatpush2.bf16.msra.mxu0 0
      %2610 = vmatprep.subr.bf16.mxu0 0
      %2611 = vmatpush2.bf16.msra.mxu0 0
      %2612 = vmatprep.subr.bf16.mxu0 0
      %2613 = vmatpush2.bf16.msra.mxu0 0
      %2614 = vmatprep.subr.bf16.mxu0 0
      %2615 = vmatpush2.bf16.msra.mxu0 0
      %2616 = vmatprep.subr.bf16.mxu0 0
      %2617 = vmatpush2.bf16.msra.mxu0 0
      %2618 = vmatprep.subr.bf16.mxu0 0
      %2619 = vmatpush2.bf16.msra.mxu0 0
      %2620 = vmatprep.subr.bf16.mxu0 0
      %2621 = vmatpush2.bf16.msra.mxu0 0
      %2622 = vmatprep.mubr.bf16.mxu0 0
      %2623 = vmatmul.mubr.bf16.gmra.mxu0 %v2582
      %v2624 = vpop.f32.mrf.mxu0
      %v2625 = vadd.f32 0.0, %v2624
      %v2626 = vpop.f32.mrf.mxu0
      %v2627 = vpop.f32.mrf.mxu0
      %v2628 = vadd.f32 0.0, %v2627
      %v2629 = vpop.f32.mrf.mxu0
      %2630 = vmatprep.mubr.bf16.mxu0 0
      %2631 = vmatmul.mubr.bf16.gmra.mxu0 %v2585
      %v2632 = vpop.f32.mrf.mxu0
      %v2633 = vadd.f32 0.0, %v2632
      %v2634 = vpop.f32.mrf.mxu0
      %v2635 = vpop.f32.mrf.mxu0
      %v2636 = vadd.f32 0.0, %v2635
      %v2637 = vpop.f32.mrf.mxu0
      %2638 = vmatprep.mubr.bf16.mxu0 0
      %2639 = vmatmul.mubr.bf16.gmra.mxu0 %v2588
      %v2640 = vpop.f32.mrf.mxu0
      %v2641 = vadd.f32 0.0, %v2640
      %v2642 = vpop.f32.mrf.mxu0
      %v2643 = vpop.f32.mrf.mxu0
      %v2644 = vadd.f32 0.0, %v2643
      %v2645 = vpop.f32.mrf.mxu0
      %2646 = vdwg.mxu0
      %v2647 = vpack.c.bf16 %v2628, %v2625
      %v2648 = vpack.c.bf16 %v2636, %v2633
      %v2649 = vpack.c.bf16 %v2644, %v2641
      %v2656 = vunpack.c.l.b16 %v2563
      %v2657 = vunpack.c.l.b16 %v2564
      %v2658 = vunpack.c.l.b16 %v2565
      %v2659 = vunpack.c.l.b16 %v2566
      %v2660 = vunpack.c.l.b16 %v2567
      %v2661 = vunpack.c.l.b16 %v2568
      %v2662 = vpack.c.b16 %v2657, %v2656
      %v2663 = vpack.c.b16 %v2659, %v2658
      %v2664 = vpack.c.b16 %v2661, %v2660
      %vm2665 = vcmask 392192
      %v2667 = vsel %vm2665, %v2662, 0
      %v2670 = vsel %vm2665, %v2663, 0
      %v2673 = vsel %vm2665, %v2664, 0
      %2675 = vmatprep.subr.bf16.mxu0 0
      %2676 = vmatpush1.bf16.msra.mxu0 0
      %2677 = vmatprep.subr.bf16.mxu0 0
      %2678 = vmatpush1.bf16.msra.mxu0 0
      %2679 = vmatprep.subr.bf16.mxu0 0
      %2680 = vmatpush1.bf16.msra.mxu0 0
      %2681 = vmatprep.subr.bf16.mxu0 0
      %2682 = vmatpush1.bf16.msra.mxu0 0
      %2683 = vmatprep.subr.bf16.mxu0 0
      %2684 = vmatpush1.bf16.msra.mxu0 0
      %2685 = vmatprep.subr.bf16.mxu0 0
      %2686 = vmatpush1.bf16.msra.mxu0 %v2649
      %2687 = vmatprep.subr.bf16.mxu0 0
      %2688 = vmatpush1.bf16.msra.mxu0 %v2648
      %2689 = vmatprep.subr.bf16.mxu0 0
      %2690 = vmatpush1.bf16.msra.mxu0 %v2647
      %2691 = vmatprep.subr.bf16.mxu0 0
      %2692 = vmatpush2.bf16.msra.mxu0 0
      %2693 = vmatprep.subr.bf16.mxu0 0
      %2694 = vmatpush2.bf16.msra.mxu0 0
      %2695 = vmatprep.subr.bf16.mxu0 0
      %2696 = vmatpush2.bf16.msra.mxu0 0
      %2697 = vmatprep.subr.bf16.mxu0 0
      %2698 = vmatpush2.bf16.msra.mxu0 0
      %2699 = vmatprep.subr.bf16.mxu0 0
      %2700 = vmatpush2.bf16.msra.mxu0 0
      %2701 = vmatprep.subr.bf16.mxu0 0
      %2702 = vmatpush2.bf16.msra.mxu0 0
      %2703 = vmatprep.subr.bf16.mxu0 0
      %2704 = vmatpush2.bf16.msra.mxu0 0
      %2705 = vmatprep.subr.bf16.mxu0 0
      %2706 = vmatpush2.bf16.msra.mxu0 0
      %2707 = vmatprep.mubr.bf16.mxu0 0
      %2708 = vmatmul.mubr.bf16.gmra.mxu0 %v2667
      %v2709 = vpop.f32.mrf.mxu0
      %v2710 = vadd.f32 0.0, %v2709
      %v2711 = vpop.f32.mrf.mxu0
      %v2712 = vpop.f32.mrf.mxu0
      %v2713 = vadd.f32 0.0, %v2712
      %v2714 = vpop.f32.mrf.mxu0
      %2715 = vmatprep.mubr.bf16.mxu0 0
      %2716 = vmatmul.mubr.bf16.gmra.mxu0 %v2670
      %v2717 = vpop.f32.mrf.mxu0
      %v2718 = vadd.f32 0.0, %v2717
      %v2719 = vpop.f32.mrf.mxu0
      %v2720 = vpop.f32.mrf.mxu0
      %v2721 = vadd.f32 0.0, %v2720
      %v2722 = vpop.f32.mrf.mxu0
      %2723 = vmatprep.mubr.bf16.mxu0 0
      %2724 = vmatmul.mubr.bf16.gmra.mxu0 %v2673
      %v2725 = vpop.f32.mrf.mxu0
      %v2726 = vadd.f32 0.0, %v2725
      %v2727 = vpop.f32.mrf.mxu0
      %v2728 = vpop.f32.mrf.mxu0
      %v2729 = vadd.f32 0.0, %v2728
      %v2730 = vpop.f32.mrf.mxu0
      %2731 = vdwg.mxu0
      %v2732 = vpack.c.bf16 %v2544, %v2541
      %v2733 = vpack.c.bf16 %v2552, %v2549
      %v2734 = vpack.c.bf16 %v2560, %v2557
      %v2736 = vsel %vm2580, %v2732, 0
      %v2739 = vsel %vm2580, %v2733, 0
      %v2742 = vsel %vm2580, %v2734, 0
      %2744 = vmatprep.subr.bf16.mxu0 0
      %2745 = vmatpush1.bf16.msra.mxu0 0
      %2746 = vmatprep.subr.bf16.mxu0 0
      %2747 = vmatpush1.bf16.msra.mxu0 0
      %2748 = vmatprep.subr.bf16.mxu0 0
      %2749 = vmatpush1.bf16.msra.mxu0 0
      %2750 = vmatprep.subr.bf16.mxu0 0
      %2751 = vmatpush1.bf16.msra.mxu0 0
      %2752 = vmatprep.subr.bf16.mxu0 0
      %2753 = vmatpush1.bf16.msra.mxu0 0
      %2754 = vmatprep.subr.bf16.mxu0 0
      %2755 = vmatpush1.bf16.msra.mxu0 0
      %2756 = vmatprep.subr.bf16.mxu0 0
      %2757 = vmatpush1.bf16.msra.mxu0 0
      %2758 = vmatprep.subr.bf16.mxu0 0
      %2759 = vmatpush1.bf16.msra.mxu0 %v2578
      %2760 = vmatprep.subr.bf16.mxu0 0
      %2761 = vmatpush2.bf16.msra.mxu0 0
      %2762 = vmatprep.subr.bf16.mxu0 0
      %2763 = vmatpush2.bf16.msra.mxu0 0
      %2764 = vmatprep.subr.bf16.mxu0 0
      %2765 = vmatpush2.bf16.msra.mxu0 0
      %2766 = vmatprep.subr.bf16.mxu0 0
      %2767 = vmatpush2.bf16.msra.mxu0 0
      %2768 = vmatprep.subr.bf16.mxu0 0
      %2769 = vmatpush2.bf16.msra.mxu0 0
      %2770 = vmatprep.subr.bf16.mxu0 0
      %2771 = vmatpush2.bf16.msra.mxu0 0
      %2772 = vmatprep.subr.bf16.mxu0 0
      %2773 = vmatpush2.bf16.msra.mxu0 0
      %2774 = vmatprep.subr.bf16.mxu0 0
      %2775 = vmatpush2.bf16.msra.mxu0 0
      %2776 = vmatprep.mubr.bf16.mxu0 0
      %2777 = vmatmul.mubr.bf16.gmra.mxu0 %v2736
      %v2778 = vpop.f32.mrf.mxu0
      %v2779 = vadd.f32 0.0, %v2778
      %v2780 = vpop.f32.mrf.mxu0
      %v2781 = vpop.f32.mrf.mxu0
      %v2782 = vadd.f32 0.0, %v2781
      %v2783 = vpop.f32.mrf.mxu0
      %2784 = vmatprep.mubr.bf16.mxu0 0
      %2785 = vmatmul.mubr.bf16.gmra.mxu0 %v2739
      %v2786 = vpop.f32.mrf.mxu0
      %v2787 = vadd.f32 0.0, %v2786
      %v2788 = vpop.f32.mrf.mxu0
      %v2789 = vpop.f32.mrf.mxu0
      %v2790 = vadd.f32 0.0, %v2789
      %v2791 = vpop.f32.mrf.mxu0
      %2792 = vmatprep.mubr.bf16.mxu0 0
      %2793 = vmatmul.mubr.bf16.gmra.mxu0 %v2742
      %v2794 = vpop.f32.mrf.mxu0
      %v2795 = vadd.f32 0.0, %v2794
      %v2796 = vpop.f32.mrf.mxu0
      %v2797 = vpop.f32.mrf.mxu0
      %v2798 = vadd.f32 0.0, %v2797
      %v2799 = vpop.f32.mrf.mxu0
      %2800 = vdwg.mxu0
      %v2801 = vpack.c.bf16 %v2782, %v2779
      %v2802 = vpack.c.bf16 %v2790, %v2787
      %v2803 = vpack.c.bf16 %v2798, %v2795
      %2804 = vmatprep.subr.bf16.mxu0 0
      %2805 = vmatpush1.bf16.msra.mxu0 0
      %2806 = vmatprep.subr.bf16.mxu0 0
      %2807 = vmatpush1.bf16.msra.mxu0 0
      %2808 = vmatprep.subr.bf16.mxu0 0
      %2809 = vmatpush1.bf16.msra.mxu0 0
      %2810 = vmatprep.subr.bf16.mxu0 0
      %2811 = vmatpush1.bf16.msra.mxu0 0
      %2812 = vmatprep.subr.bf16.mxu0 0
      %2813 = vmatpush1.bf16.msra.mxu0 0
      %2814 = vmatprep.subr.bf16.mxu0 0
      %2815 = vmatpush1.bf16.msra.mxu0 %v2803
      %2816 = vmatprep.subr.bf16.mxu0 0
      %2817 = vmatpush1.bf16.msra.mxu0 %v2802
      %2818 = vmatprep.subr.bf16.mxu0 0
      %2819 = vmatpush1.bf16.msra.mxu0 %v2801
      %2820 = vmatprep.subr.bf16.mxu0 0
      %2821 = vmatpush2.bf16.msra.mxu0 0
      %2822 = vmatprep.subr.bf16.mxu0 0
      %2823 = vmatpush2.bf16.msra.mxu0 0
      %2824 = vmatprep.subr.bf16.mxu0 0
      %2825 = vmatpush2.bf16.msra.mxu0 0
      %2826 = vmatprep.subr.bf16.mxu0 0
      %2827 = vmatpush2.bf16.msra.mxu0 0
      %2828 = vmatprep.subr.bf16.mxu0 0
      %2829 = vmatpush2.bf16.msra.mxu0 0
      %2830 = vmatprep.subr.bf16.mxu0 0
      %2831 = vmatpush2.bf16.msra.mxu0 0
      %2832 = vmatprep.subr.bf16.mxu0 0
      %2833 = vmatpush2.bf16.msra.mxu0 0
      %2834 = vmatprep.subr.bf16.mxu0 0
      %2835 = vmatpush2.bf16.msra.mxu0 0
      %2836 = vmatprep.mubr.bf16.mxu0 0
      %2837 = vmatmul.mubr.bf16.gmra.mxu0 %v2667
      %v2838 = vpop.f32.mrf.mxu0
      %v2839 = vadd.f32 0.0, %v2838
      %v2840 = vpop.f32.mrf.mxu0
      %v2841 = vpop.f32.mrf.mxu0
      %v2842 = vadd.f32 0.0, %v2841
      %v2843 = vpop.f32.mrf.mxu0
      %2844 = vmatprep.mubr.bf16.mxu0 0
      %2845 = vmatmul.mubr.bf16.gmra.mxu0 %v2670
      %v2846 = vpop.f32.mrf.mxu0
      %v2847 = vadd.f32 0.0, %v2846
      %v2848 = vpop.f32.mrf.mxu0
      %v2849 = vpop.f32.mrf.mxu0
      %v2850 = vadd.f32 0.0, %v2849
      %v2851 = vpop.f32.mrf.mxu0
      %2852 = vmatprep.mubr.bf16.mxu0 0
      %2853 = vmatmul.mubr.bf16.gmra.mxu0 %v2673
      %v2854 = vpop.f32.mrf.mxu0
      %v2855 = vadd.f32 0.0, %v2854
      %v2856 = vpop.f32.mrf.mxu0
      %v2857 = vpop.f32.mrf.mxu0
      %v2858 = vadd.f32 0.0, %v2857
      %v2859 = vpop.f32.mrf.mxu0
      %2860 = vdwg.mxu0
      %v2861 = vmul.f32 %v2397, %v2397
      %v2862 = vmul.f32 %v2400, %v2400
      %v2863 = vmul.f32 %v2405, %v2405
      %v2864 = vmul.f32 %v2408, %v2408
      %v2865 = vmul.f32 %v2413, %v2413
      %v2866 = vmul.f32 %v2416, %v2416
      %v2867 = vpack.c.bf16 %v2862, %v2861
      %v2868 = vpack.c.bf16 %v2864, %v2863
      %v2869 = vpack.c.bf16 %v2866, %v2865
      %v2871 = vsel %vm2580, %v2867, 0
      %v2874 = vsel %vm2580, %v2868, 0
      %v2877 = vsel %vm2580, %v2869, 0
      %2879 = vmatprep.subr.bf16.mxu0 0
      %2880 = vmatpush1.bf16.msra.mxu0 0
      %2881 = vmatprep.subr.bf16.mxu0 0
      %2882 = vmatpush1.bf16.msra.mxu0 0
      %2883 = vmatprep.subr.bf16.mxu0 0
      %2884 = vmatpush1.bf16.msra.mxu0 0
      %2885 = vmatprep.subr.bf16.mxu0 0
      %2886 = vmatpush1.bf16.msra.mxu0 0
      %2887 = vmatprep.subr.bf16.mxu0 0
      %2888 = vmatpush1.bf16.msra.mxu0 0
      %2889 = vmatprep.subr.bf16.mxu0 0
      %2890 = vmatpush1.bf16.msra.mxu0 0
      %2891 = vmatprep.subr.bf16.mxu0 0
      %2892 = vmatpush1.bf16.msra.mxu0 0
      %2893 = vmatprep.subr.bf16.mxu0 0
      %2894 = vmatpush1.bf16.msra.mxu0 %v2578
      %2895 = vmatprep.subr.bf16.mxu0 0
      %2896 = vmatpush2.bf16.msra.mxu0 0
      %2897 = vmatprep.subr.bf16.mxu0 0
      %2898 = vmatpush2.bf16.msra.mxu0 0
      %2899 = vmatprep.subr.bf16.mxu0 0
      %2900 = vmatpush2.bf16.msra.mxu0 0
      %2901 = vmatprep.subr.bf16.mxu0 0
      %2902 = vmatpush2.bf16.msra.mxu0 0
      %2903 = vmatprep.subr.bf16.mxu0 0
      %2904 = vmatpush2.bf16.msra.mxu0 0
      %2905 = vmatprep.subr.bf16.mxu0 0
      %2906 = vmatpush2.bf16.msra.mxu0 0
      %2907 = vmatprep.subr.bf16.mxu0 0
      %2908 = vmatpush2.bf16.msra.mxu0 0
      %2909 = vmatprep.subr.bf16.mxu0 0
      %2910 = vmatpush2.bf16.msra.mxu0 0
      %2911 = vmatprep.mubr.bf16.mxu0 0
      %2912 = vmatmul.mubr.bf16.gmra.mxu0 %v2871
      %v2913 = vpop.f32.mrf.mxu0
      %v2914 = vadd.f32 0.0, %v2913
      %v2915 = vpop.f32.mrf.mxu0
      %v2916 = vpop.f32.mrf.mxu0
      %v2917 = vadd.f32 0.0, %v2916
      %v2918 = vpop.f32.mrf.mxu0
      %2919 = vmatprep.mubr.bf16.mxu0 0
      %2920 = vmatmul.mubr.bf16.gmra.mxu0 %v2874
      %v2921 = vpop.f32.mrf.mxu0
      %v2922 = vadd.f32 0.0, %v2921
      %v2923 = vpop.f32.mrf.mxu0
      %v2924 = vpop.f32.mrf.mxu0
      %v2925 = vadd.f32 0.0, %v2924
      %v2926 = vpop.f32.mrf.mxu0
      %2927 = vmatprep.mubr.bf16.mxu0 0
      %2928 = vmatmul.mubr.bf16.gmra.mxu0 %v2877
      %v2929 = vpop.f32.mrf.mxu0
      %v2930 = vadd.f32 0.0, %v2929
      %v2931 = vpop.f32.mrf.mxu0
      %v2932 = vpop.f32.mrf.mxu0
      %v2933 = vadd.f32 0.0, %v2932
      %v2934 = vpop.f32.mrf.mxu0
      %2935 = vdwg.mxu0
      %v2936 = vpack.c.bf16 %v2917, %v2914
      %v2937 = vpack.c.bf16 %v2925, %v2922
      %v2938 = vpack.c.bf16 %v2933, %v2930
      %2939 = vmatprep.subr.bf16.mxu0 0
      %2940 = vmatpush1.bf16.msra.mxu0 0
      %2941 = vmatprep.subr.bf16.mxu0 0
      %2942 = vmatpush1.bf16.msra.mxu0 0
      %2943 = vmatprep.subr.bf16.mxu0 0
      %2944 = vmatpush1.bf16.msra.mxu0 0
      %2945 = vmatprep.subr.bf16.mxu0 0
      %2946 = vmatpush1.bf16.msra.mxu0 0
      %2947 = vmatprep.subr.bf16.mxu0 0
      %2948 = vmatpush1.bf16.msra.mxu0 0
      %2949 = vmatprep.subr.bf16.mxu0 0
      %2950 = vmatpush1.bf16.msra.mxu0 %v2938
      %2951 = vmatprep.subr.bf16.mxu0 0
      %2952 = vmatpush1.bf16.msra.mxu0 %v2937
      %2953 = vmatprep.subr.bf16.mxu0 0
      %2954 = vmatpush1.bf16.msra.mxu0 %v2936
      %2955 = vmatprep.subr.bf16.mxu0 0
      %2956 = vmatpush2.bf16.msra.mxu0 0
      %2957 = vmatprep.subr.bf16.mxu0 0
      %2958 = vmatpush2.bf16.msra.mxu0 0
      %2959 = vmatprep.subr.bf16.mxu0 0
      %2960 = vmatpush2.bf16.msra.mxu0 0
      %2961 = vmatprep.subr.bf16.mxu0 0
      %2962 = vmatpush2.bf16.msra.mxu0 0
      %2963 = vmatprep.subr.bf16.mxu0 0
      %2964 = vmatpush2.bf16.msra.mxu0 0
      %2965 = vmatprep.subr.bf16.mxu0 0
      %2966 = vmatpush2.bf16.msra.mxu0 0
      %2967 = vmatprep.subr.bf16.mxu0 0
      %2968 = vmatpush2.bf16.msra.mxu0 0
      %2969 = vmatprep.subr.bf16.mxu0 0
      %2970 = vmatpush2.bf16.msra.mxu0 0
      %2971 = vmatprep.mubr.bf16.mxu0 0
      %2972 = vmatmul.mubr.bf16.gmra.mxu0 %v2667
      %v2973 = vpop.f32.mrf.mxu0
      %v2974 = vadd.f32 0.0, %v2973
      %v2975 = vpop.f32.mrf.mxu0
      %v2976 = vpop.f32.mrf.mxu0
      %v2977 = vadd.f32 0.0, %v2976
      %v2978 = vpop.f32.mrf.mxu0
      %2979 = vmatprep.mubr.bf16.mxu0 0
      %2980 = vmatmul.mubr.bf16.gmra.mxu0 %v2670
      %v2981 = vpop.f32.mrf.mxu0
      %v2982 = vadd.f32 0.0, %v2981
      %v2983 = vpop.f32.mrf.mxu0
      %v2984 = vpop.f32.mrf.mxu0
      %v2985 = vadd.f32 0.0, %v2984
      %v2986 = vpop.f32.mrf.mxu0
      %2987 = vmatprep.mubr.bf16.mxu0 0
      %2988 = vmatmul.mubr.bf16.gmra.mxu0 %v2673
      %v2989 = vpop.f32.mrf.mxu0
      %v2990 = vadd.f32 0.0, %v2989
      %v2991 = vpop.f32.mrf.mxu0
      %v2992 = vpop.f32.mrf.mxu0
      %v2993 = vadd.f32 0.0, %v2992
      %v2994 = vpop.f32.mrf.mxu0
      %2995 = vdwg.mxu0
      %v2996 = vmul.f32 %v2710, %v2710
      %v2997 = vmul.f32 %v2713, %v2713
      %v2998 = vmul.f32 %v2718, %v2718
      %v2999 = vmul.f32 %v2721, %v2721
      %v3000 = vmul.f32 %v2726, %v2726
      %v3001 = vmul.f32 %v2729, %v2729
      %v3002 = vsub.f32 %v2974, %v2996
      %v3003 = vsub.f32 %v2977, %v2997
      %v3004 = vsub.f32 %v2982, %v2998
      %v3005 = vsub.f32 %v2985, %v2999
      %v3006 = vsub.f32 %v2990, %v3000
      %v3007 = vsub.f32 %v2993, %v3001
      %v3008 = vmul.f32 %v2541, %v2541
      %v3009 = vmul.f32 %v2544, %v2544
      %v3010 = vmul.f32 %v2549, %v2549
      %v3011 = vmul.f32 %v2552, %v2552
      %v3012 = vmul.f32 %v2557, %v2557
      %v3013 = vmul.f32 %v2560, %v2560
      %v3014 = vpack.c.bf16 %v3009, %v3008
      %v3015 = vpack.c.bf16 %v3011, %v3010
      %v3016 = vpack.c.bf16 %v3013, %v3012
      %v3018 = vsel %vm2580, %v3014, 0
      %v3021 = vsel %vm2580, %v3015, 0
      %v3024 = vsel %vm2580, %v3016, 0
      %3026 = vmatprep.subr.bf16.mxu0 0
      %3027 = vmatpush1.bf16.msra.mxu0 0
      %3028 = vmatprep.subr.bf16.mxu0 0
      %3029 = vmatpush1.bf16.msra.mxu0 0
      %3030 = vmatprep.subr.bf16.mxu0 0
      %3031 = vmatpush1.bf16.msra.mxu0 0
      %3032 = vmatprep.subr.bf16.mxu0 0
      %3033 = vmatpush1.bf16.msra.mxu0 0
      %3034 = vmatprep.subr.bf16.mxu0 0
      %3035 = vmatpush1.bf16.msra.mxu0 0
      %3036 = vmatprep.subr.bf16.mxu0 0
      %3037 = vmatpush1.bf16.msra.mxu0 0
      %3038 = vmatprep.subr.bf16.mxu0 0
      %3039 = vmatpush1.bf16.msra.mxu0 0
      %3040 = vmatprep.subr.bf16.mxu0 0
      %3041 = vmatpush1.bf16.msra.mxu0 %v2578
      %3042 = vmatprep.subr.bf16.mxu0 0
      %3043 = vmatpush2.bf16.msra.mxu0 0
      %3044 = vmatprep.subr.bf16.mxu0 0
      %3045 = vmatpush2.bf16.msra.mxu0 0
      %3046 = vmatprep.subr.bf16.mxu0 0
      %3047 = vmatpush2.bf16.msra.mxu0 0
      %3048 = vmatprep.subr.bf16.mxu0 0
      %3049 = vmatpush2.bf16.msra.mxu0 0
      %3050 = vmatprep.subr.bf16.mxu0 0
      %3051 = vmatpush2.bf16.msra.mxu0 0
      %3052 = vmatprep.subr.bf16.mxu0 0
      %3053 = vmatpush2.bf16.msra.mxu0 0
      %3054 = vmatprep.subr.bf16.mxu0 0
      %3055 = vmatpush2.bf16.msra.mxu0 0
      %3056 = vmatprep.subr.bf16.mxu0 0
      %3057 = vmatpush2.bf16.msra.mxu0 0
      %3058 = vmatprep.mubr.bf16.mxu0 0
      %3059 = vmatmul.mubr.bf16.gmra.mxu0 %v3018
      %v3060 = vpop.f32.mrf.mxu0
      %v3061 = vadd.f32 0.0, %v3060
      %v3062 = vpop.f32.mrf.mxu0
      %v3063 = vpop.f32.mrf.mxu0
      %v3064 = vadd.f32 0.0, %v3063
      %v3065 = vpop.f32.mrf.mxu0
      %3066 = vmatprep.mubr.bf16.mxu0 0
      %3067 = vmatmul.mubr.bf16.gmra.mxu0 %v3021
      %v3068 = vpop.f32.mrf.mxu0
      %v3069 = vadd.f32 0.0, %v3068
      %v3070 = vpop.f32.mrf.mxu0
      %v3071 = vpop.f32.mrf.mxu0
      %v3072 = vadd.f32 0.0, %v3071
      %v3073 = vpop.f32.mrf.mxu0
      %3074 = vmatprep.mubr.bf16.mxu0 0
      %3075 = vmatmul.mubr.bf16.gmra.mxu0 %v3024
      %v3076 = vpop.f32.mrf.mxu0
      %v3077 = vadd.f32 0.0, %v3076
      %v3078 = vpop.f32.mrf.mxu0
      %v3079 = vpop.f32.mrf.mxu0
      %v3080 = vadd.f32 0.0, %v3079
      %v3081 = vpop.f32.mrf.mxu0
      %3082 = vdwg.mxu0
      %v3083 = vpack.c.bf16 %v3064, %v3061
      %v3084 = vpack.c.bf16 %v3072, %v3069
      %v3085 = vpack.c.bf16 %v3080, %v3077
      %3086 = vmatprep.subr.bf16.mxu0 0
      %3087 = vmatpush1.bf16.msra.mxu0 0
      %3088 = vmatprep.subr.bf16.mxu0 0
      %3089 = vmatpush1.bf16.msra.mxu0 0
      %3090 = vmatprep.subr.bf16.mxu0 0
      %3091 = vmatpush1.bf16.msra.mxu0 0
      %3092 = vmatprep.subr.bf16.mxu0 0
      %3093 = vmatpush1.bf16.msra.mxu0 0
      %3094 = vmatprep.subr.bf16.mxu0 0
      %3095 = vmatpush1.bf16.msra.mxu0 0
      %3096 = vmatprep.subr.bf16.mxu0 0
      %3097 = vmatpush1.bf16.msra.mxu0 %v3085
      %3098 = vmatprep.subr.bf16.mxu0 0
      %3099 = vmatpush1.bf16.msra.mxu0 %v3084
      %3100 = vmatprep.subr.bf16.mxu0 0
      %3101 = vmatpush1.bf16.msra.mxu0 %v3083
      %3102 = vmatprep.subr.bf16.mxu0 0
      %3103 = vmatpush2.bf16.msra.mxu0 0
      %3104 = vmatprep.subr.bf16.mxu0 0
      %3105 = vmatpush2.bf16.msra.mxu0 0
      %3106 = vmatprep.subr.bf16.mxu0 0
      %3107 = vmatpush2.bf16.msra.mxu0 0
      %3108 = vmatprep.subr.bf16.mxu0 0
      %3109 = vmatpush2.bf16.msra.mxu0 0
      %3110 = vmatprep.subr.bf16.mxu0 0
      %3111 = vmatpush2.bf16.msra.mxu0 0
      %3112 = vmatprep.subr.bf16.mxu0 0
      %3113 = vmatpush2.bf16.msra.mxu0 0
      %3114 = vmatprep.subr.bf16.mxu0 0
      %3115 = vmatpush2.bf16.msra.mxu0 0
      %3116 = vmatprep.subr.bf16.mxu0 0
      %3117 = vmatpush2.bf16.msra.mxu0 0
      %3118 = vmatprep.mubr.bf16.mxu0 0
      %3119 = vmatmul.mubr.bf16.gmra.mxu0 %v2667
      %v3120 = vpop.f32.mrf.mxu0
      %v3121 = vadd.f32 0.0, %v3120
      %v3122 = vpop.f32.mrf.mxu0
      %v3123 = vpop.f32.mrf.mxu0
      %v3124 = vadd.f32 0.0, %v3123
      %v3125 = vpop.f32.mrf.mxu0
      %3126 = vmatprep.mubr.bf16.mxu0 0
      %3127 = vmatmul.mubr.bf16.gmra.mxu0 %v2670
      %v3128 = vpop.f32.mrf.mxu0
      %v3129 = vadd.f32 0.0, %v3128
      %v3130 = vpop.f32.mrf.mxu0
      %v3131 = vpop.f32.mrf.mxu0
      %v3132 = vadd.f32 0.0, %v3131
      %v3133 = vpop.f32.mrf.mxu0
      %3134 = vmatprep.mubr.bf16.mxu0 0
      %3135 = vmatmul.mubr.bf16.gmra.mxu0 %v2673
      %v3136 = vpop.f32.mrf.mxu0
      %v3137 = vadd.f32 0.0, %v3136
      %v3138 = vpop.f32.mrf.mxu0
      %v3139 = vpop.f32.mrf.mxu0
      %v3140 = vadd.f32 0.0, %v3139
      %v3141 = vpop.f32.mrf.mxu0
      %3142 = vdwg.mxu0
      %v3143 = vmul.f32 %v2839, %v2839
      %v3144 = vmul.f32 %v2842, %v2842
      %v3145 = vmul.f32 %v2847, %v2847
      %v3146 = vmul.f32 %v2850, %v2850
      %v3147 = vmul.f32 %v2855, %v2855
      %v3148 = vmul.f32 %v2858, %v2858
      %v3149 = vsub.f32 %v3121, %v3143
      %v3150 = vsub.f32 %v3124, %v3144
      %v3151 = vsub.f32 %v3129, %v3145
      %v3152 = vsub.f32 %v3132, %v3146
      %v3153 = vsub.f32 %v3137, %v3147
      %v3154 = vsub.f32 %v3140, %v3148
      %v3155 = vmul.f32 %v2397, %v2541
      %v3156 = vmul.f32 %v2400, %v2544
      %v3157 = vmul.f32 %v2405, %v2549
      %v3158 = vmul.f32 %v2408, %v2552
      %v3159 = vmul.f32 %v2413, %v2557
      %v3160 = vmul.f32 %v2416, %v2560
      %v3161 = vpack.c.bf16 %v3156, %v3155
      %v3162 = vpack.c.bf16 %v3158, %v3157
      %v3163 = vpack.c.bf16 %v3160, %v3159
      %v3165 = vsel %vm2580, %v3161, 0
      %v3168 = vsel %vm2580, %v3162, 0
      %v3171 = vsel %vm2580, %v3163, 0
      %3173 = vmatprep.subr.bf16.mxu0 0
      %3174 = vmatpush1.bf16.msra.mxu0 0
      %3175 = vmatprep.subr.bf16.mxu0 0
      %3176 = vmatpush1.bf16.msra.mxu0 0
      %3177 = vmatprep.subr.bf16.mxu0 0
      %3178 = vmatpush1.bf16.msra.mxu0 0
      %3179 = vmatprep.subr.bf16.mxu0 0
      %3180 = vmatpush1.bf16.msra.mxu0 0
      %3181 = vmatprep.subr.bf16.mxu0 0
      %3182 = vmatpush1.bf16.msra.mxu0 0
      %3183 = vmatprep.subr.bf16.mxu0 0
      %3184 = vmatpush1.bf16.msra.mxu0 0
      %3185 = vmatprep.subr.bf16.mxu0 0
      %3186 = vmatpush1.bf16.msra.mxu0 0
      %3187 = vmatprep.subr.bf16.mxu0 0
      %3188 = vmatpush1.bf16.msra.mxu0 %v2578
      %3189 = vmatprep.subr.bf16.mxu0 0
      %3190 = vmatpush2.bf16.msra.mxu0 0
      %3191 = vmatprep.subr.bf16.mxu0 0
      %3192 = vmatpush2.bf16.msra.mxu0 0
      %3193 = vmatprep.subr.bf16.mxu0 0
      %3194 = vmatpush2.bf16.msra.mxu0 0
      %3195 = vmatprep.subr.bf16.mxu0 0
      %3196 = vmatpush2.bf16.msra.mxu0 0
      %3197 = vmatprep.subr.bf16.mxu0 0
      %3198 = vmatpush2.bf16.msra.mxu0 0
      %3199 = vmatprep.subr.bf16.mxu0 0
      %3200 = vmatpush2.bf16.msra.mxu0 0
      %3201 = vmatprep.subr.bf16.mxu0 0
      %3202 = vmatpush2.bf16.msra.mxu0 0
      %3203 = vmatprep.subr.bf16.mxu0 0
      %3204 = vmatpush2.bf16.msra.mxu0 0
      %3205 = vmatprep.mubr.bf16.mxu0 0
      %3206 = vmatmul.mubr.bf16.gmra.mxu0 %v3165
      %v3207 = vpop.f32.mrf.mxu0
      %v3208 = vadd.f32 0.0, %v3207
      %v3209 = vpop.f32.mrf.mxu0
      %v3210 = vpop.f32.mrf.mxu0
      %v3211 = vadd.f32 0.0, %v3210
      %v3212 = vpop.f32.mrf.mxu0
      %3213 = vmatprep.mubr.bf16.mxu0 0
      %3214 = vmatmul.mubr.bf16.gmra.mxu0 %v3168
      %v3215 = vpop.f32.mrf.mxu0
      %v3216 = vadd.f32 0.0, %v3215
      %v3217 = vpop.f32.mrf.mxu0
      %v3218 = vpop.f32.mrf.mxu0
      %v3219 = vadd.f32 0.0, %v3218
      %v3220 = vpop.f32.mrf.mxu0
      %3221 = vmatprep.mubr.bf16.mxu0 0
      %3222 = vmatmul.mubr.bf16.gmra.mxu0 %v3171
      %v3223 = vpop.f32.mrf.mxu0
      %v3224 = vadd.f32 0.0, %v3223
      %v3225 = vpop.f32.mrf.mxu0
      %v3226 = vpop.f32.mrf.mxu0
      %v3227 = vadd.f32 0.0, %v3226
      %v3228 = vpop.f32.mrf.mxu0
      %3229 = vdwg.mxu0
      %v3230 = vpack.c.bf16 %v3211, %v3208
      %v3231 = vpack.c.bf16 %v3219, %v3216
      %v3232 = vpack.c.bf16 %v3227, %v3224
      %3233 = vmatprep.subr.bf16.mxu0 0
      %3234 = vmatpush1.bf16.msra.mxu0 0
      %3235 = vmatprep.subr.bf16.mxu0 0
      %3236 = vmatpush1.bf16.msra.mxu0 0
      %3237 = vmatprep.subr.bf16.mxu0 0
      %3238 = vmatpush1.bf16.msra.mxu0 0
      %3239 = vmatprep.subr.bf16.mxu0 0
      %3240 = vmatpush1.bf16.msra.mxu0 0
      %3241 = vmatprep.subr.bf16.mxu0 0
      %3242 = vmatpush1.bf16.msra.mxu0 0
      %3243 = vmatprep.subr.bf16.mxu0 0
      %3244 = vmatpush1.bf16.msra.mxu0 %v3232
      %3245 = vmatprep.subr.bf16.mxu0 0
      %3246 = vmatpush1.bf16.msra.mxu0 %v3231
      %3247 = vmatprep.subr.bf16.mxu0 0
      %3248 = vmatpush1.bf16.msra.mxu0 %v3230
      %3249 = vmatprep.subr.bf16.mxu0 0
      %3250 = vmatpush2.bf16.msra.mxu0 0
      %3251 = vmatprep.subr.bf16.mxu0 0
      %3252 = vmatpush2.bf16.msra.mxu0 0
      %3253 = vmatprep.subr.bf16.mxu0 0
      %3254 = vmatpush2.bf16.msra.mxu0 0
      %3255 = vmatprep.subr.bf16.mxu0 0
      %3256 = vmatpush2.bf16.msra.mxu0 0
      %3257 = vmatprep.subr.bf16.mxu0 0
      %3258 = vmatpush2.bf16.msra.mxu0 0
      %3259 = vmatprep.subr.bf16.mxu0 0
      %3260 = vmatpush2.bf16.msra.mxu0 0
      %3261 = vmatprep.subr.bf16.mxu0 0
      %3262 = vmatpush2.bf16.msra.mxu0 0
      %3263 = vmatprep.subr.bf16.mxu0 0
      %3264 = vmatpush2.bf16.msra.mxu0 0
      %3265 = vmatprep.mubr.bf16.mxu0 0
      %3266 = vmatmul.mubr.bf16.gmra.mxu0 %v2667
      %v3267 = vpop.f32.mrf.mxu0
      %v3268 = vadd.f32 0.0, %v3267
      %v3269 = vpop.f32.mrf.mxu0
      %v3270 = vpop.f32.mrf.mxu0
      %v3271 = vadd.f32 0.0, %v3270
      %v3272 = vpop.f32.mrf.mxu0
      %3273 = vmatprep.mubr.bf16.mxu0 0
      %3274 = vmatmul.mubr.bf16.gmra.mxu0 %v2670
      %v3275 = vpop.f32.mrf.mxu0
      %v3276 = vadd.f32 0.0, %v3275
      %v3277 = vpop.f32.mrf.mxu0
      %v3278 = vpop.f32.mrf.mxu0
      %v3279 = vadd.f32 0.0, %v3278
      %v3280 = vpop.f32.mrf.mxu0
      %3281 = vmatprep.mubr.bf16.mxu0 0
      %3282 = vmatmul.mubr.bf16.gmra.mxu0 %v2673
      %v3283 = vpop.f32.mrf.mxu0
      %v3284 = vadd.f32 0.0, %v3283
      %v3285 = vpop.f32.mrf.mxu0
      %v3286 = vpop.f32.mrf.mxu0
      %v3287 = vadd.f32 0.0, %v3286
      %v3288 = vpop.f32.mrf.mxu0
      %3289 = vdwg.mxu0
      %v3290 = vmul.f32 %v2710, %v2839
      %v3291 = vmul.f32 %v2713, %v2842
      %v3292 = vmul.f32 %v2718, %v2847
      %v3293 = vmul.f32 %v2721, %v2850
      %v3294 = vmul.f32 %v2726, %v2855
      %v3295 = vmul.f32 %v2729, %v2858
      %v3296 = vsub.f32 %v3268, %v3290
      %v3297 = vsub.f32 %v3271, %v3291
      %v3298 = vsub.f32 %v3276, %v3292
      %v3299 = vsub.f32 %v3279, %v3293
      %v3300 = vsub.f32 %v3284, %v3294
      %v3301 = vsub.f32 %v3287, %v3295
      %v3302 = vmul.f32 %v3296, 2.0
      %v3303 = vmul.f32 %v3297, 2.0
      %v3304 = vmul.f32 %v3298, 2.0
      %v3305 = vmul.f32 %v3299, 2.0
      %v3306 = vmul.f32 %v3300, 2.0
      %v3307 = vmul.f32 %v3301, 2.0
      %v3308 = vadd.f32 %v3302, 0.0009
      %v3309 = vadd.f32 %v3303, 0.0009
      %v3310 = vadd.f32 %v3304, 0.0009
      %v3311 = vadd.f32 %v3305, 0.0009
      %v3312 = vadd.f32 %v3306, 0.0009
      %v3313 = vadd.f32 %v3307, 0.0009
      %v3314 = vadd.f32 %v3002, %v3149
      %v3315 = vadd.f32 %v3003, %v3150
      %v3316 = vadd.f32 %v3004, %v3151
      %v3317 = vadd.f32 %v3005, %v3152
      %v3318 = vadd.f32 %v3006, %v3153
      %v3319 = vadd.f32 %v3007, %v3154
      %v3320 = vadd.f32 %v3314, 0.0009
      %v3321 = vadd.f32 %v3315, 0.0009
      %v3322 = vadd.f32 %v3316, 0.0009
      %v3323 = vadd.f32 %v3317, 0.0009
      %v3324 = vadd.f32 %v3318, 0.0009
      %v3325 = vadd.f32 %v3319, 0.0009
      %v3326 = vrcp.pop %v3320
      %v3327 = vrcp.pop %v3321
      %v3328 = vrcp.pop %v3322
      %v3329 = vrcp.pop %v3323
      %v3330 = vrcp.pop %v3324
      %v3331 = vrcp.pop %v3325
      %v3332 = vmul.f32 %v3308, %v3326
      %v3333 = vmul.f32 %v3309, %v3327
      %v3334 = vmul.f32 %v3310, %v3328
      %v3335 = vmul.f32 %v3311, %v3329
      %v3336 = vmul.f32 %v3312, %v3330
      %v3337 = vmul.f32 %v3313, %v3331
      %v3338 = vmul.f32 %v2710, 2.0
      %v3339 = vmul.f32 %v2713, 2.0
      %v3340 = vmul.f32 %v2718, 2.0
      %v3341 = vmul.f32 %v2721, 2.0
      %v3342 = vmul.f32 %v2726, 2.0
      %v3343 = vmul.f32 %v2729, 2.0
      %v3344 = vmul.f32 %v3338, %v2839
      %v3345 = vmul.f32 %v3339, %v2842
      %v3346 = vmul.f32 %v3340, %v2847
      %v3347 = vmul.f32 %v3341, %v2850
      %v3348 = vmul.f32 %v3342, %v2855
      %v3349 = vmul.f32 %v3343, %v2858
      %v3350 = vadd.f32 %v3344, 0.0001
      %v3351 = vadd.f32 %v3345, 0.0001
      %v3352 = vadd.f32 %v3346, 0.0001
      %v3353 = vadd.f32 %v3347, 0.0001
      %v3354 = vadd.f32 %v3348, 0.0001
      %v3355 = vadd.f32 %v3349, 0.0001
      %v3356 = vadd.f32 %v2996, %v3143
      %v3357 = vadd.f32 %v2997, %v3144
      %v3358 = vadd.f32 %v2998, %v3145
      %v3359 = vadd.f32 %v2999, %v3146
      %v3360 = vadd.f32 %v3000, %v3147
      %v3361 = vadd.f32 %v3001, %v3148
      %v3362 = vadd.f32 %v3356, 0.0001
      %v3363 = vadd.f32 %v3357, 0.0001
      %v3364 = vadd.f32 %v3358, 0.0001
      %v3365 = vadd.f32 %v3359, 0.0001
      %v3366 = vadd.f32 %v3360, 0.0001
      %v3367 = vadd.f32 %v3361, 0.0001
      %v3368 = vrcp.pop %v3362
      %v3369 = vrcp.pop %v3363
      %v3370 = vrcp.pop %v3364
      %v3371 = vrcp.pop %v3365
      %v3372 = vrcp.pop %v3366
      %v3373 = vrcp.pop %v3367
      %v3374 = vmul.f32 %v3350, %v3368
      %v3375 = vmul.f32 %v3351, %v3369
      %v3376 = vmul.f32 %v3352, %v3370
      %v3377 = vmul.f32 %v3353, %v3371
      %v3378 = vmul.f32 %v3354, %v3372
      %v3379 = vmul.f32 %v3355, %v3373
      %v3380 = vmul.f32 %v3374, %v3332
      %v3381 = vmul.f32 %v3375, %v3333
      %v3382 = vmul.f32 %v3376, %v3334
      %v3383 = vmul.f32 %v3377, %v3335
      %v3384 = vmul.f32 %v3378, %v3336
      %v3385 = vmul.f32 %v3379, %v3337
      %v3386 = vmul.u32 %v2066, 16
      %vm3387 = vcmp.ge.s32.totalorder %v702, %v3386
      %v3388 = vmul.u32 %v2069, 16
      %vm3389 = vcmp.lt.s32.totalorder %v702, %v3388
      %vm3390 = vmand %vm3387, %vm3389
      %v3391 = vsel %vm3390, 1.0, 0.0
      %v3393 = vsel %vm2665, %v3391, 0
      %3395 = vmatprep.subr.mxu0 0.0
      %3396 = vmatpush1.msra.mxu0 0.0
      %3397 = vmatprep.subr.mxu0 0.0
      %3398 = vmatpush1.msra.mxu0 0.0
      %3399 = vmatprep.subr.mxu0 0.0
      %3400 = vmatpush1.msra.mxu0 0.0
      %3401 = vmatprep.subr.mxu0 0.0
      %3402 = vmatpush1.msra.mxu0 0.0
      %3403 = vmatprep.subr.mxu0 0.0
      %3404 = vmatpush1.msra.mxu0 0.0
      %3405 = vmatprep.subr.mxu0 0.0
      %3406 = vmatpush1.msra.mxu0 0.0
      %3407 = vmatprep.subr.mxu0 0.0
      %3408 = vmatpush1.msra.mxu0 0.0
      %3409 = vmatprep.subr.mxu0 0.0
      %3410 = vmatpush1.msra.mxu0 0.0
      %3411 = vmatprep.subr.mxu0 0.0
      %3412 = vmatpush1.msra.mxu0 0.0
      %3413 = vmatprep.subr.mxu0 0.0
      %3414 = vmatpush1.msra.mxu0 0.0
      %3415 = vmatprep.subr.mxu0 0.0
      %3416 = vmatpush1.msra.mxu0 %v3385
      %3417 = vmatprep.subr.mxu0 0.0
      %3418 = vmatpush1.msra.mxu0 %v3384
      %3419 = vmatprep.subr.mxu0 0.0
      %3420 = vmatpush1.msra.mxu0 %v3383
      %3421 = vmatprep.subr.mxu0 0.0
      %3422 = vmatpush1.msra.mxu0 %v3382
      %3423 = vmatprep.subr.mxu0 0.0
      %3424 = vmatpush1.msra.mxu0 %v3381
      %3425 = vmatprep.subr.mxu0 0.0
      %3426 = vmatpush1.msra.mxu0 %v3380
      %3427 = vmatprep.subr.mxu0 0.0
      %3428 = vmatpush2.msra.mxu0 0.0
      %3429 = vmatprep.subr.mxu0 0.0
      %3430 = vmatpush2.msra.mxu0 0.0
      %3431 = vmatprep.subr.mxu0 0.0
      %3432 = vmatpush2.msra.mxu0 0.0
      %3433 = vmatprep.subr.mxu0 0.0
      %3434 = vmatpush2.msra.mxu0 0.0
      %3435 = vmatprep.subr.mxu0 0.0
      %3436 = vmatpush2.msra.mxu0 0.0
      %3437 = vmatprep.subr.mxu0 0.0
      %3438 = vmatpush2.msra.mxu0 0.0
      %3439 = vmatprep.subr.mxu0 0.0
      %3440 = vmatpush2.msra.mxu0 0.0
      %3441 = vmatprep.subr.mxu0 0.0
      %3442 = vmatpush2.msra.mxu0 0.0
      %3443 = vmatprep.subr.mxu0 0.0
      %3444 = vmatpush2.msra.mxu0 0.0
      %3445 = vmatprep.subr.mxu0 0.0
      %3446 = vmatpush2.msra.mxu0 0.0
      %3447 = vmatprep.subr.mxu0 0.0
      %3448 = vmatpush2.msra.mxu0 0.0
      %3449 = vmatprep.subr.mxu0 0.0
      %3450 = vmatpush2.msra.mxu0 0.0
      %3451 = vmatprep.subr.mxu0 0.0
      %3452 = vmatpush2.msra.mxu0 0.0
      %3453 = vmatprep.subr.mxu0 0.0
      %3454 = vmatpush2.msra.mxu0 0.0
      %3455 = vmatprep.subr.mxu0 0.0
      %3456 = vmatpush2.msra.mxu0 0.0
      %3457 = vmatprep.subr.mxu0 0.0
      %3458 = vmatpush2.msra.mxu0 0.0
      %3459 = vmatprep.mubr.f32.mxu0 0.0
      %3460 = vmatmul.mubr.f32.gmra.mxu0 %v3393
      %v3461 = vpop.f32.mrf.mxu0
      %v3462 = vadd.f32 0.0, %v3461
      %v3463 = vpop.f32.mrf.mxu0
      %3464 = vdwg.mxu0
      %v3465 = vsel %vm2580, %v3462, 0.0
      %3466 = vadd.xlane.f32.xlu0 %v3465
      %v3467 = vpop.xlane.xlu0 %3466
      %v3468 = vmul.f32 %v3467, 0.00390625
      %3469 = vmatprep.subr.mxu0 0.0
      %3470 = vmatpush1.msra.mxu0 0.0
      %3471 = vmatprep.subr.mxu0 0.0
      %3472 = vmatpush1.msra.mxu0 0.0
      %3473 = vmatprep.subr.mxu0 0.0
      %3474 = vmatpush1.msra.mxu0 0.0
      %3475 = vmatprep.subr.mxu0 0.0
      %3476 = vmatpush1.msra.mxu0 0.0
      %3477 = vmatprep.subr.mxu0 0.0
      %3478 = vmatpush1.msra.mxu0 0.0
      %3479 = vmatprep.subr.mxu0 0.0
      %3480 = vmatpush1.msra.mxu0 0.0
      %3481 = vmatprep.subr.mxu0 0.0
      %3482 = vmatpush1.msra.mxu0 0.0
      %3483 = vmatprep.subr.mxu0 0.0
      %3484 = vmatpush1.msra.mxu0 0.0
      %3485 = vmatprep.subr.mxu0 0.0
      %3486 = vmatpush1.msra.mxu0 0.0
      %3487 = vmatprep.subr.mxu0 0.0
      %3488 = vmatpush1.msra.mxu0 0.0
      %3489 = vmatprep.subr.mxu0 0.0
      %3490 = vmatpush1.msra.mxu0 %v3337
      %3491 = vmatprep.subr.mxu0 0.0
      %3492 = vmatpush1.msra.mxu0 %v3336
      %3493 = vmatprep.subr.mxu0 0.0
      %3494 = vmatpush1.msra.mxu0 %v3335
      %3495 = vmatprep.subr.mxu0 0.0
      %3496 = vmatpush1.msra.mxu0 %v3334
      %3497 = vmatprep.subr.mxu0 0.0
      %3498 = vmatpush1.msra.mxu0 %v3333
      %3499 = vmatprep.subr.mxu0 0.0
      %3500 = vmatpush1.msra.mxu0 %v3332
      %3501 = vmatprep.subr.mxu0 0.0
      %3502 = vmatpush2.msra.mxu0 0.0
      %3503 = vmatprep.subr.mxu0 0.0
      %3504 = vmatpush2.msra.mxu0 0.0
      %3505 = vmatprep.subr.mxu0 0.0
      %3506 = vmatpush2.msra.mxu0 0.0
      %3507 = vmatprep.subr.mxu0 0.0
      %3508 = vmatpush2.msra.mxu0 0.0
      %3509 = vmatprep.subr.mxu0 0.0
      %3510 = vmatpush2.msra.mxu0 0.0
      %3511 = vmatprep.subr.mxu0 0.0
      %3512 = vmatpush2.msra.mxu0 0.0
      %3513 = vmatprep.subr.mxu0 0.0
      %3514 = vmatpush2.msra.mxu0 0.0
      %3515 = vmatprep.subr.mxu0 0.0
      %3516 = vmatpush2.msra.mxu0 0.0
      %3517 = vmatprep.subr.mxu0 0.0
      %3518 = vmatpush2.msra.mxu0 0.0
      %3519 = vmatprep.subr.mxu0 0.0
      %3520 = vmatpush2.msra.mxu0 0.0
      %3521 = vmatprep.subr.mxu0 0.0
      %3522 = vmatpush2.msra.mxu0 0.0
      %3523 = vmatprep.subr.mxu0 0.0
      %3524 = vmatpush2.msra.mxu0 0.0
      %3525 = vmatprep.subr.mxu0 0.0
      %3526 = vmatpush2.msra.mxu0 0.0
      %3527 = vmatprep.subr.mxu0 0.0
      %3528 = vmatpush2.msra.mxu0 0.0
      %3529 = vmatprep.subr.mxu0 0.0
      %3530 = vmatpush2.msra.mxu0 0.0
      %3531 = vmatprep.subr.mxu0 0.0
      %3532 = vmatpush2.msra.mxu0 0.0
      %3533 = vmatprep.mubr.f32.mxu0 0.0
      %3534 = vmatmul.mubr.f32.gmra.mxu0 %v3393
      %v3535 = vpop.f32.mrf.mxu0
      %v3536 = vadd.f32 0.0, %v3535
      %v3537 = vpop.f32.mrf.mxu0
      %3538 = vdwg.mxu0
      %v3539 = vsel %vm2580, %v3536, 0.0
      %3540 = vadd.xlane.f32.xlu0 %v3539
      %v3541 = vpop.xlane.xlu0 %3540
      %v3542 = vmul.f32 %v3541, 0.00390625
      %vm3543 = vcmp.eq.s32.totalorder %v702, 1
      %v3544 = vsel %vm3543, %v3468, %v2228
      %vm3545 = vcmp.eq.s32.totalorder %v702, 6
      %v3546 = vsel %vm3545, %v3542, %v3544
      %v3547 = vld [vmem:[%s13] sm:$0xf]
      %v3548 = vld [vmem:[%s13 + $0x4] sm:$0xf]
      %v3549 = vld [vmem:[%s13 + $0x8] sm:$0xf]
      %v3550 = vld [vmem:[%s17] sm:$0xf]
      %v3551 = vld [vmem:[%s17 + $0x4] sm:$0xf]
      %v3554 = vunpack.c.l.b16 %v3550
      %v3555 = vunpack.c.l.b16 %v3551
      %v3556 = vpack.c.b16 %v3555, %v3554
      %3558 = vmatprep.subr.bf16.mxu0 0
      %3559 = vmatpush1.bf16.msra.mxu0 0
      %3560 = vmatprep.subr.bf16.mxu0 0
      %3561 = vmatpush1.bf16.msra.mxu0 0
      %3562 = vmatprep.subr.bf16.mxu0 0
      %3563 = vmatpush1.bf16.msra.mxu0 0
      %3564 = vmatprep.subr.bf16.mxu0 0
      %3565 = vmatpush1.bf16.msra.mxu0 0
      %3566 = vmatprep.subr.bf16.mxu0 0
      %3567 = vmatpush1.bf16.msra.mxu0 0
      %3568 = vmatprep.subr.bf16.mxu0 0
      %3569 = vmatpush1.bf16.msra.mxu0 0
      %3570 = vmatprep.subr.bf16.mxu0 0
      %3571 = vmatpush1.bf16.msra.mxu0 0
      %3572 = vmatprep.subr.bf16.mxu0 0
      %3573 = vmatpush1.bf16.msra.mxu0 %v3556
      %3574 = vmatprep.subr.bf16.mxu0 0
      %3575 = vmatpush2.bf16.msra.mxu0 0
      %3576 = vmatprep.subr.bf16.mxu0 0
      %3577 = vmatpush2.bf16.msra.mxu0 0
      %3578 = vmatprep.subr.bf16.mxu0 0
      %3579 = vmatpush2.bf16.msra.mxu0 0
      %3580 = vmatprep.subr.bf16.mxu0 0
      %3581 = vmatpush2.bf16.msra.mxu0 0
      %3582 = vmatprep.subr.bf16.mxu0 0
      %3583 = vmatpush2.bf16.msra.mxu0 0
      %3584 = vmatprep.subr.bf16.mxu0 0
      %3585 = vmatpush2.bf16.msra.mxu0 0
      %3586 = vmatprep.subr.bf16.mxu0 0
      %3587 = vmatpush2.bf16.msra.mxu0 0
      %3588 = vmatprep.subr.bf16.mxu0 0
      %3589 = vmatpush2.bf16.msra.mxu0 0
      %3590 = vmatprep.mubr.bf16.mxu0 0
      %3591 = vmatmul.mubr.bf16.gmra.mxu0 %v2582
      %v3592 = vpop.f32.mrf.mxu0
      %v3593 = vadd.f32 0.0, %v3592
      %v3594 = vpop.f32.mrf.mxu0
      %v3595 = vpop.f32.mrf.mxu0
      %v3596 = vadd.f32 0.0, %v3595
      %v3597 = vpop.f32.mrf.mxu0
      %3598 = vmatprep.mubr.bf16.mxu0 0
      %3599 = vmatmul.mubr.bf16.gmra.mxu0 %v2585
      %v3600 = vpop.f32.mrf.mxu0
      %v3601 = vadd.f32 0.0, %v3600
      %v3602 = vpop.f32.mrf.mxu0
      %v3603 = vpop.f32.mrf.mxu0
      %v3604 = vadd.f32 0.0, %v3603
      %v3605 = vpop.f32.mrf.mxu0
      %3606 = vmatprep.mubr.bf16.mxu0 0
      %3607 = vmatmul.mubr.bf16.gmra.mxu0 %v2588
      %v3608 = vpop.f32.mrf.mxu0
      %v3609 = vadd.f32 0.0, %v3608
      %v3610 = vpop.f32.mrf.mxu0
      %v3611 = vpop.f32.mrf.mxu0
      %v3612 = vadd.f32 0.0, %v3611
      %v3613 = vpop.f32.mrf.mxu0
      %3614 = vdwg.mxu0
      %v3615 = vpack.c.bf16 %v3596, %v3593
      %v3616 = vpack.c.bf16 %v3604, %v3601
      %v3617 = vpack.c.bf16 %v3612, %v3609
      %v3621 = vunpack.c.l.b16 %v3547
      %v3622 = vunpack.c.l.b16 %v3548
      %v3623 = vunpack.c.l.b16 %v3549
      %v3624 = vpack.c.b16 %v3622, %v3621
      %v3625 = vpack.c.b16 %v3623, %v3623
      %v3627 = vsel %vm2665, %v3624, 0
      %v3630 = vsel %vm2665, %v3625, 0
      %3632 = vmatprep.subr.bf16.mxu0 0
      %3633 = vmatpush1.bf16.msra.mxu0 0
      %3634 = vmatprep.subr.bf16.mxu0 0
      %3635 = vmatpush1.bf16.msra.mxu0 0
      %3636 = vmatprep.subr.bf16.mxu0 0
      %3637 = vmatpush1.bf16.msra.mxu0 0
      %3638 = vmatprep.subr.bf16.mxu0 0
      %3639 = vmatpush1.bf16.msra.mxu0 0
      %3640 = vmatprep.subr.bf16.mxu0 0
      %3641 = vmatpush1.bf16.msra.mxu0 0
      %3642 = vmatprep.subr.bf16.mxu0 0
      %3643 = vmatpush1.bf16.msra.mxu0 %v3617
      %3644 = vmatprep.subr.bf16.mxu0 0
      %3645 = vmatpush1.bf16.msra.mxu0 %v3616
      %3646 = vmatprep.subr.bf16.mxu0 0
      %3647 = vmatpush1.bf16.msra.mxu0 %v3615
      %3648 = vmatprep.subr.bf16.mxu0 0
      %3649 = vmatpush2.bf16.msra.mxu0 0
      %3650 = vmatprep.subr.bf16.mxu0 0
      %3651 = vmatpush2.bf16.msra.mxu0 0
      %3652 = vmatprep.subr.bf16.mxu0 0
      %3653 = vmatpush2.bf16.msra.mxu0 0
      %3654 = vmatprep.subr.bf16.mxu0 0
      %3655 = vmatpush2.bf16.msra.mxu0 0
      %3656 = vmatprep.subr.bf16.mxu0 0
      %3657 = vmatpush2.bf16.msra.mxu0 0
      %3658 = vmatprep.subr.bf16.mxu0 0
      %3659 = vmatpush2.bf16.msra.mxu0 0
      %3660 = vmatprep.subr.bf16.mxu0 0
      %3661 = vmatpush2.bf16.msra.mxu0 0
      %3662 = vmatprep.subr.bf16.mxu0 0
      %3663 = vmatpush2.bf16.msra.mxu0 0
      %3664 = vmatprep.mubr.bf16.mxu0 0
      %3665 = vmatmul.mubr.bf16.gmra.mxu0 %v3627
      %v3666 = vpop.f32.mrf.mxu0
      %v3667 = vadd.f32 0.0, %v3666
      %v3668 = vpop.f32.mrf.mxu0
      %v3669 = vpop.f32.mrf.mxu0
      %v3670 = vadd.f32 0.0, %v3669
      %v3671 = vpop.f32.mrf.mxu0
      %3672 = vmatprep.mubr.bf16.mxu0 0
      %3673 = vmatmul.mubr.bf16.gmra.mxu0 %v3630
      %v3674 = vpop.f32.mrf.mxu0
      %v3675 = vadd.f32 0.0, %v3674
      %v3676 = vpop.f32.mrf.mxu0
      %v3677 = vpop.f32.mrf.mxu0
      %v3678 = vpop.f32.mrf.mxu0
      %3679 = vdwg.mxu0
      %3680 = vmatprep.subr.bf16.mxu0 0
      %3681 = vmatpush1.bf16.msra.mxu0 0
      %3682 = vmatprep.subr.bf16.mxu0 0
      %3683 = vmatpush1.bf16.msra.mxu0 0
      %3684 = vmatprep.subr.bf16.mxu0 0
      %3685 = vmatpush1.bf16.msra.mxu0 0
      %3686 = vmatprep.subr.bf16.mxu0 0
      %3687 = vmatpush1.bf16.msra.mxu0 0
      %3688 = vmatprep.subr.bf16.mxu0 0
      %3689 = vmatpush1.bf16.msra.mxu0 0
      %3690 = vmatprep.subr.bf16.mxu0 0
      %3691 = vmatpush1.bf16.msra.mxu0 0
      %3692 = vmatprep.subr.bf16.mxu0 0
      %3693 = vmatpush1.bf16.msra.mxu0 0
      %3694 = vmatprep.subr.bf16.mxu0 0
      %3695 = vmatpush1.bf16.msra.mxu0 %v3556
      %3696 = vmatprep.subr.bf16.mxu0 0
      %3697 = vmatpush2.bf16.msra.mxu0 0
      %3698 = vmatprep.subr.bf16.mxu0 0
      %3699 = vmatpush2.bf16.msra.mxu0 0
      %3700 = vmatprep.subr.bf16.mxu0 0
      %3701 = vmatpush2.bf16.msra.mxu0 0
      %3702 = vmatprep.subr.bf16.mxu0 0
      %3703 = vmatpush2.bf16.msra.mxu0 0
      %3704 = vmatprep.subr.bf16.mxu0 0
      %3705 = vmatpush2.bf16.msra.mxu0 0
      %3706 = vmatprep.subr.bf16.mxu0 0
      %3707 = vmatpush2.bf16.msra.mxu0 0
      %3708 = vmatprep.subr.bf16.mxu0 0
      %3709 = vmatpush2.bf16.msra.mxu0 0
      %3710 = vmatprep.subr.bf16.mxu0 0
      %3711 = vmatpush2.bf16.msra.mxu0 0
      %3712 = vmatprep.mubr.bf16.mxu0 0
      %3713 = vmatmul.mubr.bf16.gmra.mxu0 %v2736
      %v3714 = vpop.f32.mrf.mxu0
      %v3715 = vadd.f32 0.0, %v3714
      %v3716 = vpop.f32.mrf.mxu0
      %v3717 = vpop.f32.mrf.mxu0
      %v3718 = vadd.f32 0.0, %v3717
      %v3719 = vpop.f32.mrf.mxu0
      %3720 = vmatprep.mubr.bf16.mxu0 0
      %3721 = vmatmul.mubr.bf16.gmra.mxu0 %v2739
      %v3722 = vpop.f32.mrf.mxu0
      %v3723 = vadd.f32 0.0, %v3722
      %v3724 = vpop.f32.mrf.mxu0
      %v3725 = vpop.f32.mrf.mxu0
      %v3726 = vadd.f32 0.0, %v3725
      %v3727 = vpop.f32.mrf.mxu0
      %3728 = vmatprep.mubr.bf16.mxu0 0
      %3729 = vmatmul.mubr.bf16.gmra.mxu0 %v2742
      %v3730 = vpop.f32.mrf.mxu0
      %v3731 = vadd.f32 0.0, %v3730
      %v3732 = vpop.f32.mrf.mxu0
      %v3733 = vpop.f32.mrf.mxu0
      %v3734 = vadd.f32 0.0, %v3733
      %v3735 = vpop.f32.mrf.mxu0
      %3736 = vdwg.mxu0
      %v3737 = vpack.c.bf16 %v3718, %v3715
      %v3738 = vpack.c.bf16 %v3726, %v3723
      %v3739 = vpack.c.bf16 %v3734, %v3731
      %3740 = vmatprep.subr.bf16.mxu0 0
      %3741 = vmatpush1.bf16.msra.mxu0 0
      %3742 = vmatprep.subr.bf16.mxu0 0
      %3743 = vmatpush1.bf16.msra.mxu0 0
      %3744 = vmatprep.subr.bf16.mxu0 0
      %3745 = vmatpush1.bf16.msra.mxu0 0
      %3746 = vmatprep.subr.bf16.mxu0 0
      %3747 = vmatpush1.bf16.msra.mxu0 0
      %3748 = vmatprep.subr.bf16.mxu0 0
      %3749 = vmatpush1.bf16.msra.mxu0 0
      %3750 = vmatprep.subr.bf16.mxu0 0
      %3751 = vmatpush1.bf16.msra.mxu0 %v3739
      %3752 = vmatprep.subr.bf16.mxu0 0
      %3753 = vmatpush1.bf16.msra.mxu0 %v3738
      %3754 = vmatprep.subr.bf16.mxu0 0
      %3755 = vmatpush1.bf16.msra.mxu0 %v3737
      %3756 = vmatprep.subr.bf16.mxu0 0
      %3757 = vmatpush2.bf16.msra.mxu0 0
      %3758 = vmatprep.subr.bf16.mxu0 0
      %3759 = vmatpush2.bf16.msra.mxu0 0
      %3760 = vmatprep.subr.bf16.mxu0 0
      %3761 = vmatpush2.bf16.msra.mxu0 0
      %3762 = vmatprep.subr.bf16.mxu0 0
      %3763 = vmatpush2.bf16.msra.mxu0 0
      %3764 = vmatprep.subr.bf16.mxu0 0
      %3765 = vmatpush2.bf16.msra.mxu0 0
      %3766 = vmatprep.subr.bf16.mxu0 0
      %3767 = vmatpush2.bf16.msra.mxu0 0
      %3768 = vmatprep.subr.bf16.mxu0 0
      %3769 = vmatpush2.bf16.msra.mxu0 0
      %3770 = vmatprep.subr.bf16.mxu0 0
      %3771 = vmatpush2.bf16.msra.mxu0 0
      %3772 = vmatprep.mubr.bf16.mxu0 0
      %3773 = vmatmul.mubr.bf16.gmra.mxu0 %v3627
      %v3774 = vpop.f32.mrf.mxu0
      %v3775 = vadd.f32 0.0, %v3774
      %v3776 = vpop.f32.mrf.mxu0
      %v3777 = vpop.f32.mrf.mxu0
      %v3778 = vadd.f32 0.0, %v3777
      %v3779 = vpop.f32.mrf.mxu0
      %3780 = vmatprep.mubr.bf16.mxu0 0
      %3781 = vmatmul.mubr.bf16.gmra.mxu0 %v3630
      %v3782 = vpop.f32.mrf.mxu0
      %v3783 = vadd.f32 0.0, %v3782
      %v3784 = vpop.f32.mrf.mxu0
      %v3785 = vpop.f32.mrf.mxu0
      %v3786 = vpop.f32.mrf.mxu0
      %3787 = vdwg.mxu0
      %v3788 = vld [vmem:[%s4] sm:$0xf]
      %v3789 = vld [vmem:[%s4 + $0x4] sm:$0xf]
      %v3790 = vld [vmem:[%s4 + $0x8] sm:$0xf]
      %v3791 = vld [vmem:[%s9] sm:$0xf]
      %v3792 = vpack.c.bf16 %v3670, %v3667
      %v3793 = vpack.c.bf16 %v3675, %v3675
      %vm3794 = vcmask 64512
      %v3796 = vsel %vm3794, %v3792, 0
      %v3799 = vsel %vm3794, %v3793, 0
      %vm3801 = vcmask 1043456
      %v3803 = vsel %vm3801, %v3791, 0
      %3805 = vmatprep.subr.bf16.mxu0 0
      %3806 = vmatpush1.bf16.msra.mxu0 0
      %3807 = vmatprep.subr.bf16.mxu0 0
      %3808 = vmatpush1.bf16.msra.mxu0 0
      %3809 = vmatprep.subr.bf16.mxu0 0
      %3810 = vmatpush1.bf16.msra.mxu0 0
      %3811 = vmatprep.subr.bf16.mxu0 0
      %3812 = vmatpush1.bf16.msra.mxu0 0
      %3813 = vmatprep.subr.bf16.mxu0 0
      %3814 = vmatpush1.bf16.msra.mxu0 0
      %3815 = vmatprep.subr.bf16.mxu0 0
      %3816 = vmatpush1.bf16.msra.mxu0 0
      %3817 = vmatprep.subr.bf16.mxu0 0
      %3818 = vmatpush1.bf16.msra.mxu0 0
      %3819 = vmatprep.subr.bf16.mxu0 0
      %3820 = vmatpush1.bf16.msra.mxu0 %v3803
      %3821 = vmatprep.subr.bf16.mxu0 0
      %3822 = vmatpush2.bf16.msra.mxu0 0
      %3823 = vmatprep.subr.bf16.mxu0 0
      %3824 = vmatpush2.bf16.msra.mxu0 0
      %3825 = vmatprep.subr.bf16.mxu0 0
      %3826 = vmatpush2.bf16.msra.mxu0 0
      %3827 = vmatprep.subr.bf16.mxu0 0
      %3828 = vmatpush2.bf16.msra.mxu0 0
      %3829 = vmatprep.subr.bf16.mxu0 0
      %3830 = vmatpush2.bf16.msra.mxu0 0
      %3831 = vmatprep.subr.bf16.mxu0 0
      %3832 = vmatpush2.bf16.msra.mxu0 0
      %3833 = vmatprep.subr.bf16.mxu0 0
      %3834 = vmatpush2.bf16.msra.mxu0 0
      %3835 = vmatprep.subr.bf16.mxu0 0
      %3836 = vmatpush2.bf16.msra.mxu0 0
      %3837 = vmatprep.mubr.bf16.mxu0 0
      %3838 = vmatmul.mubr.bf16.gmra.mxu0 %v3796
      %v3839 = vpop.f32.mrf.mxu0
      %v3840 = vadd.f32 0.0, %v3839
      %v3841 = vpop.f32.mrf.mxu0
      %v3842 = vpop.f32.mrf.mxu0
      %v3843 = vadd.f32 0.0, %v3842
      %v3844 = vpop.f32.mrf.mxu0
      %3845 = vmatprep.mubr.bf16.mxu0 0
      %3846 = vmatmul.mubr.bf16.gmra.mxu0 %v3799
      %v3847 = vpop.f32.mrf.mxu0
      %v3848 = vadd.f32 0.0, %v3847
      %v3849 = vpop.f32.mrf.mxu0
      %v3850 = vpop.f32.mrf.mxu0
      %v3851 = vpop.f32.mrf.mxu0
      %3852 = vdwg.mxu0
      %v3853 = vpack.c.bf16 %v3843, %v3840
      %v3854 = vpack.c.bf16 %v3848, %v3848
      %v3858 = vunpack.c.l.b16 %v3788
      %v3859 = vunpack.c.l.b16 %v3789
      %v3860 = vunpack.c.l.b16 %v3790
      %v3861 = vpack.c.b16 %v3859, %v3858
      %v3862 = vpack.c.b16 %v3860, %v3860
      %vm3863 = vcmask 195584
      %v3865 = vsel %vm3863, %v3861, 0
      %v3868 = vsel %vm3863, %v3862, 0
      %v3871 = vsel %vm3801, %v3854, 0
      %3873 = vmatprep.subr.bf16.mxu0 0
      %3874 = vmatpush1.bf16.msra.mxu0 0
      %3875 = vmatprep.subr.bf16.mxu0 0
      %3876 = vmatpush1.bf16.msra.mxu0 0
      %3877 = vmatprep.subr.bf16.mxu0 0
      %3878 = vmatpush1.bf16.msra.mxu0 0
      %3879 = vmatprep.subr.bf16.mxu0 0
      %3880 = vmatpush1.bf16.msra.mxu0 0
      %3881 = vmatprep.subr.bf16.mxu0 0
      %3882 = vmatpush1.bf16.msra.mxu0 0
      %3883 = vmatprep.subr.bf16.mxu0 0
      %3884 = vmatpush1.bf16.msra.mxu0 0
      %3885 = vmatprep.subr.bf16.mxu0 0
      %3886 = vmatpush1.bf16.msra.mxu0 %v3871
      %3887 = vmatprep.subr.bf16.mxu0 0
      %3888 = vmatpush1.bf16.msra.mxu0 %v3853
      %3889 = vmatprep.subr.bf16.mxu0 0
      %3890 = vmatpush2.bf16.msra.mxu0 0
      %3891 = vmatprep.subr.bf16.mxu0 0
      %3892 = vmatpush2.bf16.msra.mxu0 0
      %3893 = vmatprep.subr.bf16.mxu0 0
      %3894 = vmatpush2.bf16.msra.mxu0 0
      %3895 = vmatprep.subr.bf16.mxu0 0
      %3896 = vmatpush2.bf16.msra.mxu0 0
      %3897 = vmatprep.subr.bf16.mxu0 0
      %3898 = vmatpush2.bf16.msra.mxu0 0
      %3899 = vmatprep.subr.bf16.mxu0 0
      %3900 = vmatpush2.bf16.msra.mxu0 0
      %3901 = vmatprep.subr.bf16.mxu0 0
      %3902 = vmatpush2.bf16.msra.mxu0 0
      %3903 = vmatprep.subr.bf16.mxu0 0
      %3904 = vmatpush2.bf16.msra.mxu0 0
      %3905 = vmatprep.mubr.bf16.mxu0 0
      %3906 = vmatmul.mubr.bf16.gmra.mxu0 %v3865
      %v3907 = vpop.f32.mrf.mxu0
      %v3908 = vadd.f32 0.0, %v3907
      %v3909 = vpop.f32.mrf.mxu0
      %v3910 = vpop.f32.mrf.mxu0
      %v3911 = vadd.f32 0.0, %v3910
      %v3912 = vpop.f32.mrf.mxu0
      %3913 = vmatprep.mubr.bf16.mxu0 0
      %3914 = vmatmul.mubr.bf16.gmra.mxu0 %v3868
      %v3915 = vpop.f32.mrf.mxu0
      %v3916 = vadd.f32 0.0, %v3915
      %v3917 = vpop.f32.mrf.mxu0
      %v3918 = vpop.f32.mrf.mxu0
      %v3919 = vpop.f32.mrf.mxu0
      %3920 = vdwg.mxu0
      %v3921 = vpack.c.bf16 %v3778, %v3775
      %v3922 = vpack.c.bf16 %v3783, %v3783
      %v3924 = vsel %vm3794, %v3921, 0
      %v3927 = vsel %vm3794, %v3922, 0
      %3929 = vmatprep.subr.bf16.mxu0 0
      %3930 = vmatpush1.bf16.msra.mxu0 0
      %3931 = vmatprep.subr.bf16.mxu0 0
      %3932 = vmatpush1.bf16.msra.mxu0 0
      %3933 = vmatprep.subr.bf16.mxu0 0
      %3934 = vmatpush1.bf16.msra.mxu0 0
      %3935 = vmatprep.subr.bf16.mxu0 0
      %3936 = vmatpush1.bf16.msra.mxu0 0
      %3937 = vmatprep.subr.bf16.mxu0 0
      %3938 = vmatpush1.bf16.msra.mxu0 0
      %3939 = vmatprep.subr.bf16.mxu0 0
      %3940 = vmatpush1.bf16.msra.mxu0 0
      %3941 = vmatprep.subr.bf16.mxu0 0
      %3942 = vmatpush1.bf16.msra.mxu0 0
      %3943 = vmatprep.subr.bf16.mxu0 0
      %3944 = vmatpush1.bf16.msra.mxu0 %v3803
      %3945 = vmatprep.subr.bf16.mxu0 0
      %3946 = vmatpush2.bf16.msra.mxu0 0
      %3947 = vmatprep.subr.bf16.mxu0 0
      %3948 = vmatpush2.bf16.msra.mxu0 0
      %3949 = vmatprep.subr.bf16.mxu0 0
      %3950 = vmatpush2.bf16.msra.mxu0 0
      %3951 = vmatprep.subr.bf16.mxu0 0
      %3952 = vmatpush2.bf16.msra.mxu0 0
      %3953 = vmatprep.subr.bf16.mxu0 0
      %3954 = vmatpush2.bf16.msra.mxu0 0
      %3955 = vmatprep.subr.bf16.mxu0 0
      %3956 = vmatpush2.bf16.msra.mxu0 0
      %3957 = vmatprep.subr.bf16.mxu0 0
      %3958 = vmatpush2.bf16.msra.mxu0 0
      %3959 = vmatprep.subr.bf16.mxu0 0
      %3960 = vmatpush2.bf16.msra.mxu0 0
      %3961 = vmatprep.mubr.bf16.mxu0 0
      %3962 = vmatmul.mubr.bf16.gmra.mxu0 %v3924
      %v3963 = vpop.f32.mrf.mxu0
      %v3964 = vadd.f32 0.0, %v3963
      %v3965 = vpop.f32.mrf.mxu0
      %v3966 = vpop.f32.mrf.mxu0
      %v3967 = vadd.f32 0.0, %v3966
      %v3968 = vpop.f32.mrf.mxu0
      %3969 = vmatprep.mubr.bf16.mxu0 0
      %3970 = vmatmul.mubr.bf16.gmra.mxu0 %v3927
      %v3971 = vpop.f32.mrf.mxu0
      %v3972 = vadd.f32 0.0, %v3971
      %v3973 = vpop.f32.mrf.mxu0
      %v3974 = vpop.f32.mrf.mxu0
      %v3975 = vpop.f32.mrf.mxu0
      %3976 = vdwg.mxu0
      %v3977 = vpack.c.bf16 %v3967, %v3964
      %v3978 = vpack.c.bf16 %v3972, %v3972
      %v3980 = vsel %vm3801, %v3978, 0
      %3982 = vmatprep.subr.bf16.mxu0 0
      %3983 = vmatpush1.bf16.msra.mxu0 0
      %3984 = vmatprep.subr.bf16.mxu0 0
      %3985 = vmatpush1.bf16.msra.mxu0 0
      %3986 = vmatprep.subr.bf16.mxu0 0
      %3987 = vmatpush1.bf16.msra.mxu0 0
      %3988 = vmatprep.subr.bf16.mxu0 0
      %3989 = vmatpush1.bf16.msra.mxu0 0
      %3990 = vmatprep.subr.bf16.mxu0 0
      %3991 = vmatpush1.bf16.msra.mxu0 0
      %3992 = vmatprep.subr.bf16.mxu0 0
      %3993 = vmatpush1.bf16.msra.mxu0 0
      %3994 = vmatprep.subr.bf16.mxu0 0
      %3995 = vmatpush1.bf16.msra.mxu0 %v3980
      %3996 = vmatprep.subr.bf16.mxu0 0
      %3997 = vmatpush1.bf16.msra.mxu0 %v3977
      %3998 = vmatprep.subr.bf16.mxu0 0
      %3999 = vmatpush2.bf16.msra.mxu0 0
      %4000 = vmatprep.subr.bf16.mxu0 0
      %4001 = vmatpush2.bf16.msra.mxu0 0
      %4002 = vmatprep.subr.bf16.mxu0 0
      %4003 = vmatpush2.bf16.msra.mxu0 0
      %4004 = vmatprep.subr.bf16.mxu0 0
      %4005 = vmatpush2.bf16.msra.mxu0 0
      %4006 = vmatprep.subr.bf16.mxu0 0
      %4007 = vmatpush2.bf16.msra.mxu0 0
      %4008 = vmatprep.subr.bf16.mxu0 0
      %4009 = vmatpush2.bf16.msra.mxu0 0
      %4010 = vmatprep.subr.bf16.mxu0 0
      %4011 = vmatpush2.bf16.msra.mxu0 0
      %4012 = vmatprep.subr.bf16.mxu0 0
      %4013 = vmatpush2.bf16.msra.mxu0 0
      %4014 = vmatprep.mubr.bf16.mxu0 0
      %4015 = vmatmul.mubr.bf16.gmra.mxu0 %v3865
      %v4016 = vpop.f32.mrf.mxu0
      %v4017 = vadd.f32 0.0, %v4016
      %v4018 = vpop.f32.mrf.mxu0
      %v4019 = vpop.f32.mrf.mxu0
      %v4020 = vadd.f32 0.0, %v4019
      %v4021 = vpop.f32.mrf.mxu0
      %4022 = vmatprep.mubr.bf16.mxu0 0
      %4023 = vmatmul.mubr.bf16.gmra.mxu0 %v3868
      %v4024 = vpop.f32.mrf.mxu0
      %v4025 = vadd.f32 0.0, %v4024
      %v4026 = vpop.f32.mrf.mxu0
      %v4027 = vpop.f32.mrf.mxu0
      %v4028 = vpop.f32.mrf.mxu0
      %4029 = vdwg.mxu0
      %v4030 = vmul.f32 %v3667, %v3667
      %v4031 = vmul.f32 %v3670, %v3670
      %v4032 = vmul.f32 %v3675, %v3675
      %v4033 = vpack.c.bf16 %v4031, %v4030
      %v4034 = vpack.c.bf16 %v4032, %v4032
      %v4036 = vsel %vm3794, %v4033, 0
      %v4039 = vsel %vm3794, %v4034, 0
      %4041 = vmatprep.subr.bf16.mxu0 0
      %4042 = vmatpush1.bf16.msra.mxu0 0
      %4043 = vmatprep.subr.bf16.mxu0 0
      %4044 = vmatpush1.bf16.msra.mxu0 0
      %4045 = vmatprep.subr.bf16.mxu0 0
      %4046 = vmatpush1.bf16.msra.mxu0 0
      %4047 = vmatprep.subr.bf16.mxu0 0
      %4048 = vmatpush1.bf16.msra.mxu0 0
      %4049 = vmatprep.subr.bf16.mxu0 0
      %4050 = vmatpush1.bf16.msra.mxu0 0
      %4051 = vmatprep.subr.bf16.mxu0 0
      %4052 = vmatpush1.bf16.msra.mxu0 0
      %4053 = vmatprep.subr.bf16.mxu0 0
      %4054 = vmatpush1.bf16.msra.mxu0 0
      %4055 = vmatprep.subr.bf16.mxu0 0
      %4056 = vmatpush1.bf16.msra.mxu0 %v3803
      %4057 = vmatprep.subr.bf16.mxu0 0
      %4058 = vmatpush2.bf16.msra.mxu0 0
      %4059 = vmatprep.subr.bf16.mxu0 0
      %4060 = vmatpush2.bf16.msra.mxu0 0
      %4061 = vmatprep.subr.bf16.mxu0 0
      %4062 = vmatpush2.bf16.msra.mxu0 0
      %4063 = vmatprep.subr.bf16.mxu0 0
      %4064 = vmatpush2.bf16.msra.mxu0 0
      %4065 = vmatprep.subr.bf16.mxu0 0
      %4066 = vmatpush2.bf16.msra.mxu0 0
      %4067 = vmatprep.subr.bf16.mxu0 0
      %4068 = vmatpush2.bf16.msra.mxu0 0
      %4069 = vmatprep.subr.bf16.mxu0 0
      %4070 = vmatpush2.bf16.msra.mxu0 0
      %4071 = vmatprep.subr.bf16.mxu0 0
      %4072 = vmatpush2.bf16.msra.mxu0 0
      %4073 = vmatprep.mubr.bf16.mxu0 0
      %4074 = vmatmul.mubr.bf16.gmra.mxu0 %v4036
      %v4075 = vpop.f32.mrf.mxu0
      %v4076 = vadd.f32 0.0, %v4075
      %v4077 = vpop.f32.mrf.mxu0
      %v4078 = vpop.f32.mrf.mxu0
      %v4079 = vadd.f32 0.0, %v4078
      %v4080 = vpop.f32.mrf.mxu0
      %4081 = vmatprep.mubr.bf16.mxu0 0
      %4082 = vmatmul.mubr.bf16.gmra.mxu0 %v4039
      %v4083 = vpop.f32.mrf.mxu0
      %v4084 = vadd.f32 0.0, %v4083
      %v4085 = vpop.f32.mrf.mxu0
      %v4086 = vpop.f32.mrf.mxu0
      %v4087 = vpop.f32.mrf.mxu0
      %4088 = vdwg.mxu0
      %v4089 = vpack.c.bf16 %v4079, %v4076
      %v4090 = vpack.c.bf16 %v4084, %v4084
      %v4092 = vsel %vm3801, %v4090, 0
      %4094 = vmatprep.subr.bf16.mxu0 0
      %4095 = vmatpush1.bf16.msra.mxu0 0
      %4096 = vmatprep.subr.bf16.mxu0 0
      %4097 = vmatpush1.bf16.msra.mxu0 0
      %4098 = vmatprep.subr.bf16.mxu0 0
      %4099 = vmatpush1.bf16.msra.mxu0 0
      %4100 = vmatprep.subr.bf16.mxu0 0
      %4101 = vmatpush1.bf16.msra.mxu0 0
      %4102 = vmatprep.subr.bf16.mxu0 0
      %4103 = vmatpush1.bf16.msra.mxu0 0
      %4104 = vmatprep.subr.bf16.mxu0 0
      %4105 = vmatpush1.bf16.msra.mxu0 0
      %4106 = vmatprep.subr.bf16.mxu0 0
      %4107 = vmatpush1.bf16.msra.mxu0 %v4092
      %4108 = vmatprep.subr.bf16.mxu0 0
      %4109 = vmatpush1.bf16.msra.mxu0 %v4089
      %4110 = vmatprep.subr.bf16.mxu0 0
      %4111 = vmatpush2.bf16.msra.mxu0 0
      %4112 = vmatprep.subr.bf16.mxu0 0
      %4113 = vmatpush2.bf16.msra.mxu0 0
      %4114 = vmatprep.subr.bf16.mxu0 0
      %4115 = vmatpush2.bf16.msra.mxu0 0
      %4116 = vmatprep.subr.bf16.mxu0 0
      %4117 = vmatpush2.bf16.msra.mxu0 0
      %4118 = vmatprep.subr.bf16.mxu0 0
      %4119 = vmatpush2.bf16.msra.mxu0 0
      %4120 = vmatprep.subr.bf16.mxu0 0
      %4121 = vmatpush2.bf16.msra.mxu0 0
      %4122 = vmatprep.subr.bf16.mxu0 0
      %4123 = vmatpush2.bf16.msra.mxu0 0
      %4124 = vmatprep.subr.bf16.mxu0 0
      %4125 = vmatpush2.bf16.msra.mxu0 0
      %4126 = vmatprep.mubr.bf16.mxu0 0
      %4127 = vmatmul.mubr.bf16.gmra.mxu0 %v3865
      %v4128 = vpop.f32.mrf.mxu0
      %v4129 = vadd.f32 0.0, %v4128
      %v4130 = vpop.f32.mrf.mxu0
      %v4131 = vpop.f32.mrf.mxu0
      %v4132 = vadd.f32 0.0, %v4131
      %v4133 = vpop.f32.mrf.mxu0
      %4134 = vmatprep.mubr.bf16.mxu0 0
      %4135 = vmatmul.mubr.bf16.gmra.mxu0 %v3868
      %v4136 = vpop.f32.mrf.mxu0
      %v4137 = vadd.f32 0.0, %v4136
      %v4138 = vpop.f32.mrf.mxu0
      %v4139 = vpop.f32.mrf.mxu0
      %v4140 = vpop.f32.mrf.mxu0
      %4141 = vdwg.mxu0
      %v4142 = vmul.f32 %v3908, %v3908
      %v4143 = vmul.f32 %v3911, %v3911
      %v4144 = vmul.f32 %v3916, %v3916
      %v4145 = vsub.f32 %v4129, %v4142
      %v4146 = vsub.f32 %v4132, %v4143
      %v4147 = vsub.f32 %v4137, %v4144
      %v4148 = vmul.f32 %v3775, %v3775
      %v4149 = vmul.f32 %v3778, %v3778
      %v4150 = vmul.f32 %v3783, %v3783
      %v4151 = vpack.c.bf16 %v4149, %v4148
      %v4152 = vpack.c.bf16 %v4150, %v4150
      %v4154 = vsel %vm3794, %v4151, 0
      %v4157 = vsel %vm3794, %v4152, 0
      %4159 = vmatprep.subr.bf16.mxu0 0
      %4160 = vmatpush1.bf16.msra.mxu0 0
      %4161 = vmatprep.subr.bf16.mxu0 0
      %4162 = vmatpush1.bf16.msra.mxu0 0
      %4163 = vmatprep.subr.bf16.mxu0 0
      %4164 = vmatpush1.bf16.msra.mxu0 0
      %4165 = vmatprep.subr.bf16.mxu0 0
      %4166 = vmatpush1.bf16.msra.mxu0 0
      %4167 = vmatprep.subr.bf16.mxu0 0
      %4168 = vmatpush1.bf16.msra.mxu0 0
      %4169 = vmatprep.subr.bf16.mxu0 0
      %4170 = vmatpush1.bf16.msra.mxu0 0
      %4171 = vmatprep.subr.bf16.mxu0 0
      %4172 = vmatpush1.bf16.msra.mxu0 0
      %4173 = vmatprep.subr.bf16.mxu0 0
      %4174 = vmatpush1.bf16.msra.mxu0 %v3803
      %4175 = vmatprep.subr.bf16.mxu0 0
      %4176 = vmatpush2.bf16.msra.mxu0 0
      %4177 = vmatprep.subr.bf16.mxu0 0
      %4178 = vmatpush2.bf16.msra.mxu0 0
      %4179 = vmatprep.subr.bf16.mxu0 0
      %4180 = vmatpush2.bf16.msra.mxu0 0
      %4181 = vmatprep.subr.bf16.mxu0 0
      %4182 = vmatpush2.bf16.msra.mxu0 0
      %4183 = vmatprep.subr.bf16.mxu0 0
      %4184 = vmatpush2.bf16.msra.mxu0 0
      %4185 = vmatprep.subr.bf16.mxu0 0
      %4186 = vmatpush2.bf16.msra.mxu0 0
      %4187 = vmatprep.subr.bf16.mxu0 0
      %4188 = vmatpush2.bf16.msra.mxu0 0
      %4189 = vmatprep.subr.bf16.mxu0 0
      %4190 = vmatpush2.bf16.msra.mxu0 0
      %4191 = vmatprep.mubr.bf16.mxu0 0
      %4192 = vmatmul.mubr.bf16.gmra.mxu0 %v4154
      %v4193 = vpop.f32.mrf.mxu0
      %v4194 = vadd.f32 0.0, %v4193
      %v4195 = vpop.f32.mrf.mxu0
      %v4196 = vpop.f32.mrf.mxu0
      %v4197 = vadd.f32 0.0, %v4196
      %v4198 = vpop.f32.mrf.mxu0
      %4199 = vmatprep.mubr.bf16.mxu0 0
      %4200 = vmatmul.mubr.bf16.gmra.mxu0 %v4157
      %v4201 = vpop.f32.mrf.mxu0
      %v4202 = vadd.f32 0.0, %v4201
      %v4203 = vpop.f32.mrf.mxu0
      %v4204 = vpop.f32.mrf.mxu0
      %v4205 = vpop.f32.mrf.mxu0
      %4206 = vdwg.mxu0
      %v4207 = vpack.c.bf16 %v4197, %v4194
      %v4208 = vpack.c.bf16 %v4202, %v4202
      %v4210 = vsel %vm3801, %v4208, 0
      %4212 = vmatprep.subr.bf16.mxu0 0
      %4213 = vmatpush1.bf16.msra.mxu0 0
      %4214 = vmatprep.subr.bf16.mxu0 0
      %4215 = vmatpush1.bf16.msra.mxu0 0
      %4216 = vmatprep.subr.bf16.mxu0 0
      %4217 = vmatpush1.bf16.msra.mxu0 0
      %4218 = vmatprep.subr.bf16.mxu0 0
      %4219 = vmatpush1.bf16.msra.mxu0 0
      %4220 = vmatprep.subr.bf16.mxu0 0
      %4221 = vmatpush1.bf16.msra.mxu0 0
      %4222 = vmatprep.subr.bf16.mxu0 0
      %4223 = vmatpush1.bf16.msra.mxu0 0
      %4224 = vmatprep.subr.bf16.mxu0 0
      %4225 = vmatpush1.bf16.msra.mxu0 %v4210
      %4226 = vmatprep.subr.bf16.mxu0 0
      %4227 = vmatpush1.bf16.msra.mxu0 %v4207
      %4228 = vmatprep.subr.bf16.mxu0 0
      %4229 = vmatpush2.bf16.msra.mxu0 0
      %4230 = vmatprep.subr.bf16.mxu0 0
      %4231 = vmatpush2.bf16.msra.mxu0 0
      %4232 = vmatprep.subr.bf16.mxu0 0
      %4233 = vmatpush2.bf16.msra.mxu0 0
      %4234 = vmatprep.subr.bf16.mxu0 0
      %4235 = vmatpush2.bf16.msra.mxu0 0
      %4236 = vmatprep.subr.bf16.mxu0 0
      %4237 = vmatpush2.bf16.msra.mxu0 0
      %4238 = vmatprep.subr.bf16.mxu0 0
      %4239 = vmatpush2.bf16.msra.mxu0 0
      %4240 = vmatprep.subr.bf16.mxu0 0
      %4241 = vmatpush2.bf16.msra.mxu0 0
      %4242 = vmatprep.subr.bf16.mxu0 0
      %4243 = vmatpush2.bf16.msra.mxu0 0
      %4244 = vmatprep.mubr.bf16.mxu0 0
      %4245 = vmatmul.mubr.bf16.gmra.mxu0 %v3865
      %v4246 = vpop.f32.mrf.mxu0
      %v4247 = vadd.f32 0.0, %v4246
      %v4248 = vpop.f32.mrf.mxu0
      %v4249 = vpop.f32.mrf.mxu0
      %v4250 = vadd.f32 0.0, %v4249
      %v4251 = vpop.f32.mrf.mxu0
      %4252 = vmatprep.mubr.bf16.mxu0 0
      %4253 = vmatmul.mubr.bf16.gmra.mxu0 %v3868
      %v4254 = vpop.f32.mrf.mxu0
      %v4255 = vadd.f32 0.0, %v4254
      %v4256 = vpop.f32.mrf.mxu0
      %v4257 = vpop.f32.mrf.mxu0
      %v4258 = vpop.f32.mrf.mxu0
      %4259 = vdwg.mxu0
      %v4260 = vmul.f32 %v4017, %v4017
      %v4261 = vmul.f32 %v4020, %v4020
      %v4262 = vmul.f32 %v4025, %v4025
      %v4263 = vsub.f32 %v4247, %v4260
      %v4264 = vsub.f32 %v4250, %v4261
      %v4265 = vsub.f32 %v4255, %v4262
      %v4266 = vmul.f32 %v3667, %v3775
      %v4267 = vmul.f32 %v3670, %v3778
      %v4268 = vmul.f32 %v3675, %v3783
      %v4269 = vpack.c.bf16 %v4267, %v4266
      %v4270 = vpack.c.bf16 %v4268, %v4268
      %v4272 = vsel %vm3794, %v4269, 0
      %v4275 = vsel %vm3794, %v4270, 0
      %4277 = vmatprep.subr.bf16.mxu0 0
      %4278 = vmatpush1.bf16.msra.mxu0 0
      %4279 = vmatprep.subr.bf16.mxu0 0
      %4280 = vmatpush1.bf16.msra.mxu0 0
      %4281 = vmatprep.subr.bf16.mxu0 0
      %4282 = vmatpush1.bf16.msra.mxu0 0
      %4283 = vmatprep.subr.bf16.mxu0 0
      %4284 = vmatpush1.bf16.msra.mxu0 0
      %4285 = vmatprep.subr.bf16.mxu0 0
      %4286 = vmatpush1.bf16.msra.mxu0 0
      %4287 = vmatprep.subr.bf16.mxu0 0
      %4288 = vmatpush1.bf16.msra.mxu0 0
      %4289 = vmatprep.subr.bf16.mxu0 0
      %4290 = vmatpush1.bf16.msra.mxu0 0
      %4291 = vmatprep.subr.bf16.mxu0 0
      %4292 = vmatpush1.bf16.msra.mxu0 %v3803
      %4293 = vmatprep.subr.bf16.mxu0 0
      %4294 = vmatpush2.bf16.msra.mxu0 0
      %4295 = vmatprep.subr.bf16.mxu0 0
      %4296 = vmatpush2.bf16.msra.mxu0 0
      %4297 = vmatprep.subr.bf16.mxu0 0
      %4298 = vmatpush2.bf16.msra.mxu0 0
      %4299 = vmatprep.subr.bf16.mxu0 0
      %4300 = vmatpush2.bf16.msra.mxu0 0
      %4301 = vmatprep.subr.bf16.mxu0 0
      %4302 = vmatpush2.bf16.msra.mxu0 0
      %4303 = vmatprep.subr.bf16.mxu0 0
      %4304 = vmatpush2.bf16.msra.mxu0 0
      %4305 = vmatprep.subr.bf16.mxu0 0
      %4306 = vmatpush2.bf16.msra.mxu0 0
      %4307 = vmatprep.subr.bf16.mxu0 0
      %4308 = vmatpush2.bf16.msra.mxu0 0
      %4309 = vmatprep.mubr.bf16.mxu0 0
      %4310 = vmatmul.mubr.bf16.gmra.mxu0 %v4272
      %v4311 = vpop.f32.mrf.mxu0
      %v4312 = vadd.f32 0.0, %v4311
      %v4313 = vpop.f32.mrf.mxu0
      %v4314 = vpop.f32.mrf.mxu0
      %v4315 = vadd.f32 0.0, %v4314
      %v4316 = vpop.f32.mrf.mxu0
      %4317 = vmatprep.mubr.bf16.mxu0 0
      %4318 = vmatmul.mubr.bf16.gmra.mxu0 %v4275
      %v4319 = vpop.f32.mrf.mxu0
      %v4320 = vadd.f32 0.0, %v4319
      %v4321 = vpop.f32.mrf.mxu0
      %v4322 = vpop.f32.mrf.mxu0
      %v4323 = vpop.f32.mrf.mxu0
      %4324 = vdwg.mxu0
      %v4325 = vpack.c.bf16 %v4315, %v4312
      %v4326 = vpack.c.bf16 %v4320, %v4320
      %v4328 = vsel %vm3801, %v4326, 0
      %4330 = vmatprep.subr.bf16.mxu0 0
      %4331 = vmatpush1.bf16.msra.mxu0 0
      %4332 = vmatprep.subr.bf16.mxu0 0
      %4333 = vmatpush1.bf16.msra.mxu0 0
      %4334 = vmatprep.subr.bf16.mxu0 0
      %4335 = vmatpush1.bf16.msra.mxu0 0
      %4336 = vmatprep.subr.bf16.mxu0 0
      %4337 = vmatpush1.bf16.msra.mxu0 0
      %4338 = vmatprep.subr.bf16.mxu0 0
      %4339 = vmatpush1.bf16.msra.mxu0 0
      %4340 = vmatprep.subr.bf16.mxu0 0
      %4341 = vmatpush1.bf16.msra.mxu0 0
      %4342 = vmatprep.subr.bf16.mxu0 0
      %4343 = vmatpush1.bf16.msra.mxu0 %v4328
      %4344 = vmatprep.subr.bf16.mxu0 0
      %4345 = vmatpush1.bf16.msra.mxu0 %v4325
      %4346 = vmatprep.subr.bf16.mxu0 0
      %4347 = vmatpush2.bf16.msra.mxu0 0
      %4348 = vmatprep.subr.bf16.mxu0 0
      %4349 = vmatpush2.bf16.msra.mxu0 0
      %4350 = vmatprep.subr.bf16.mxu0 0
      %4351 = vmatpush2.bf16.msra.mxu0 0
      %4352 = vmatprep.subr.bf16.mxu0 0
      %4353 = vmatpush2.bf16.msra.mxu0 0
      %4354 = vmatprep.subr.bf16.mxu0 0
      %4355 = vmatpush2.bf16.msra.mxu0 0
      %4356 = vmatprep.subr.bf16.mxu0 0
      %4357 = vmatpush2.bf16.msra.mxu0 0
      %4358 = vmatprep.subr.bf16.mxu0 0
      %4359 = vmatpush2.bf16.msra.mxu0 0
      %4360 = vmatprep.subr.bf16.mxu0 0
      %4361 = vmatpush2.bf16.msra.mxu0 0
      %4362 = vmatprep.mubr.bf16.mxu0 0
      %4363 = vmatmul.mubr.bf16.gmra.mxu0 %v3865
      %v4364 = vpop.f32.mrf.mxu0
      %v4365 = vadd.f32 0.0, %v4364
      %v4366 = vpop.f32.mrf.mxu0
      %v4367 = vpop.f32.mrf.mxu0
      %v4368 = vadd.f32 0.0, %v4367
      %v4369 = vpop.f32.mrf.mxu0
      %4370 = vmatprep.mubr.bf16.mxu0 0
      %4371 = vmatmul.mubr.bf16.gmra.mxu0 %v3868
      %v4372 = vpop.f32.mrf.mxu0
      %v4373 = vadd.f32 0.0, %v4372
      %v4374 = vpop.f32.mrf.mxu0
      %v4375 = vpop.f32.mrf.mxu0
      %v4376 = vpop.f32.mrf.mxu0
      %4377 = vdwg.mxu0
      %v4378 = vmul.f32 %v3908, %v4017
      %v4379 = vmul.f32 %v3911, %v4020
      %v4380 = vmul.f32 %v3916, %v4025
      %v4381 = vsub.f32 %v4365, %v4378
      %v4382 = vsub.f32 %v4368, %v4379
      %v4383 = vsub.f32 %v4373, %v4380
      %v4384 = vmul.f32 %v4381, 2.0
      %v4385 = vmul.f32 %v4382, 2.0
      %v4386 = vmul.f32 %v4383, 2.0
      %v4387 = vadd.f32 %v4384, 0.0009
      %v4388 = vadd.f32 %v4385, 0.0009
      %v4389 = vadd.f32 %v4386, 0.0009
      %v4390 = vadd.f32 %v4145, %v4263
      %v4391 = vadd.f32 %v4146, %v4264
      %v4392 = vadd.f32 %v4147, %v4265
      %v4393 = vadd.f32 %v4390, 0.0009
      %v4394 = vadd.f32 %v4391, 0.0009
      %v4395 = vadd.f32 %v4392, 0.0009
      %v4396 = vrcp.pop %v4393
      %v4397 = vrcp.pop %v4394
      %v4398 = vrcp.pop %v4395
      %v4399 = vmul.f32 %v4387, %v4396
      %v4400 = vmul.f32 %v4388, %v4397
      %v4401 = vmul.f32 %v4389, %v4398
      %v4402 = vmul.f32 %v3908, 2.0
      %v4403 = vmul.f32 %v3911, 2.0
      %v4404 = vmul.f32 %v3916, 2.0
      %v4405 = vmul.f32 %v4402, %v4017
      %v4406 = vmul.f32 %v4403, %v4020
      %v4407 = vmul.f32 %v4404, %v4025
      %v4408 = vadd.f32 %v4405, 0.0001
      %v4409 = vadd.f32 %v4406, 0.0001
      %v4410 = vadd.f32 %v4407, 0.0001
      %v4411 = vadd.f32 %v4142, %v4260
      %v4412 = vadd.f32 %v4143, %v4261
      %v4413 = vadd.f32 %v4144, %v4262
      %v4414 = vadd.f32 %v4411, 0.0001
      %v4415 = vadd.f32 %v4412, 0.0001
      %v4416 = vadd.f32 %v4413, 0.0001
      %v4417 = vrcp.pop %v4414
      %v4418 = vrcp.pop %v4415
      %v4419 = vrcp.pop %v4416
      %v4420 = vmul.f32 %v4408, %v4417
      %v4421 = vmul.f32 %v4409, %v4418
      %v4422 = vmul.f32 %v4410, %v4419
      %v4423 = vmul.f32 %v4420, %v4399
      %v4424 = vmul.f32 %v4421, %v4400
      %v4425 = vmul.f32 %v4422, %v4401
      %v4426 = vmul.u32 %v2066, 8
      %vm4427 = vcmp.ge.s32.totalorder %v702, %v4426
      %v4428 = vmul.u32 %v2069, 8
      %vm4429 = vcmp.lt.s32.totalorder %v702, %v4428
      %vm4430 = vmand %vm4427, %vm4429
      %v4431 = vsel %vm4430, 1.0, 0.0
      %v4433 = vsel %vm3863, %v4431, 0
      %4435 = vmatprep.subr.mxu0 0.0
      %4436 = vmatpush1.msra.mxu0 0.0
      %4437 = vmatprep.subr.mxu0 0.0
      %4438 = vmatpush1.msra.mxu0 0.0
      %4439 = vmatprep.subr.mxu0 0.0
      %4440 = vmatpush1.msra.mxu0 0.0
      %4441 = vmatprep.subr.mxu0 0.0
      %4442 = vmatpush1.msra.mxu0 0.0
      %4443 = vmatprep.subr.mxu0 0.0
      %4444 = vmatpush1.msra.mxu0 0.0
      %4445 = vmatprep.subr.mxu0 0.0
      %4446 = vmatpush1.msra.mxu0 0.0
      %4447 = vmatprep.subr.mxu0 0.0
      %4448 = vmatpush1.msra.mxu0 0.0
      %4449 = vmatprep.subr.mxu0 0.0
      %4450 = vmatpush1.msra.mxu0 0.0
      %4451 = vmatprep.subr.mxu0 0.0
      %4452 = vmatpush1.msra.mxu0 0.0
      %4453 = vmatprep.subr.mxu0 0.0
      %4454 = vmatpush1.msra.mxu0 0.0
      %4455 = vmatprep.subr.mxu0 0.0
      %4456 = vmatpush1.msra.mxu0 0.0
      %4457 = vmatprep.subr.mxu0 0.0
      %4458 = vmatpush1.msra.mxu0 0.0
      %4459 = vmatprep.subr.mxu0 0.0
      %4460 = vmatpush1.msra.mxu0 0.0
      %4461 = vmatprep.subr.mxu0 0.0
      %4462 = vmatpush1.msra.mxu0 %v4425
      %4463 = vmatprep.subr.mxu0 0.0
      %4464 = vmatpush1.msra.mxu0 %v4424
      %4465 = vmatprep.subr.mxu0 0.0
      %4466 = vmatpush1.msra.mxu0 %v4423
      %4467 = vmatprep.subr.mxu0 0.0
      %4468 = vmatpush2.msra.mxu0 0.0
      %4469 = vmatprep.subr.mxu0 0.0
      %4470 = vmatpush2.msra.mxu0 0.0
      %4471 = vmatprep.subr.mxu0 0.0
      %4472 = vmatpush2.msra.mxu0 0.0
      %4473 = vmatprep.subr.mxu0 0.0
      %4474 = vmatpush2.msra.mxu0 0.0
      %4475 = vmatprep.subr.mxu0 0.0
      %4476 = vmatpush2.msra.mxu0 0.0
      %4477 = vmatprep.subr.mxu0 0.0
      %4478 = vmatpush2.msra.mxu0 0.0
      %4479 = vmatprep.subr.mxu0 0.0
      %4480 = vmatpush2.msra.mxu0 0.0
      %4481 = vmatprep.subr.mxu0 0.0
      %4482 = vmatpush2.msra.mxu0 0.0
      %4483 = vmatprep.subr.mxu0 0.0
      %4484 = vmatpush2.msra.mxu0 0.0
      %4485 = vmatprep.subr.mxu0 0.0
      %4486 = vmatpush2.msra.mxu0 0.0
      %4487 = vmatprep.subr.mxu0 0.0
      %4488 = vmatpush2.msra.mxu0 0.0
      %4489 = vmatprep.subr.mxu0 0.0
      %4490 = vmatpush2.msra.mxu0 0.0
      %4491 = vmatprep.subr.mxu0 0.0
      %4492 = vmatpush2.msra.mxu0 0.0
      %4493 = vmatprep.subr.mxu0 0.0
      %4494 = vmatpush2.msra.mxu0 0.0
      %4495 = vmatprep.subr.mxu0 0.0
      %4496 = vmatpush2.msra.mxu0 0.0
      %4497 = vmatprep.subr.mxu0 0.0
      %4498 = vmatpush2.msra.mxu0 0.0
      %4499 = vmatprep.mubr.f32.mxu0 0.0
      %4500 = vmatmul.mubr.f32.gmra.mxu0 %v4433
      %v4501 = vpop.f32.mrf.mxu0
      %v4502 = vadd.f32 0.0, %v4501
      %v4503 = vpop.f32.mrf.mxu0
      %4504 = vdwg.mxu0
      %v4505 = vsel %vm3794, %v4502, 0.0
      %4506 = vadd.xlane.f32.xlu0 %v4505
      %v4507 = vpop.xlane.xlu0 %4506
      %v4508 = vmul.f32 %v4507, 0.015625
      %4509 = vmatprep.subr.mxu0 0.0
      %4510 = vmatpush1.msra.mxu0 0.0
      %4511 = vmatprep.subr.mxu0 0.0
      %4512 = vmatpush1.msra.mxu0 0.0
      %4513 = vmatprep.subr.mxu0 0.0
      %4514 = vmatpush1.msra.mxu0 0.0
      %4515 = vmatprep.subr.mxu0 0.0
      %4516 = vmatpush1.msra.mxu0 0.0
      %4517 = vmatprep.subr.mxu0 0.0
      %4518 = vmatpush1.msra.mxu0 0.0
      %4519 = vmatprep.subr.mxu0 0.0
      %4520 = vmatpush1.msra.mxu0 0.0
      %4521 = vmatprep.subr.mxu0 0.0
      %4522 = vmatpush1.msra.mxu0 0.0
      %4523 = vmatprep.subr.mxu0 0.0
      %4524 = vmatpush1.msra.mxu0 0.0
      %4525 = vmatprep.subr.mxu0 0.0
      %4526 = vmatpush1.msra.mxu0 0.0
      %4527 = vmatprep.subr.mxu0 0.0
      %4528 = vmatpush1.msra.mxu0 0.0
      %4529 = vmatprep.subr.mxu0 0.0
      %4530 = vmatpush1.msra.mxu0 0.0
      %4531 = vmatprep.subr.mxu0 0.0
      %4532 = vmatpush1.msra.mxu0 0.0
      %4533 = vmatprep.subr.mxu0 0.0
      %4534 = vmatpush1.msra.mxu0 0.0
      %4535 = vmatprep.subr.mxu0 0.0
      %4536 = vmatpush1.msra.mxu0 %v4401
      %4537 = vmatprep.subr.mxu0 0.0
      %4538 = vmatpush1.msra.mxu0 %v4400
      %4539 = vmatprep.subr.mxu0 0.0
      %4540 = vmatpush1.msra.mxu0 %v4399
      %4541 = vmatprep.subr.mxu0 0.0
      %4542 = vmatpush2.msra.mxu0 0.0
      %4543 = vmatprep.subr.mxu0 0.0
      %4544 = vmatpush2.msra.mxu0 0.0
      %4545 = vmatprep.subr.mxu0 0.0
      %4546 = vmatpush2.msra.mxu0 0.0
      %4547 = vmatprep.subr.mxu0 0.0
      %4548 = vmatpush2.msra.mxu0 0.0
      %4549 = vmatprep.subr.mxu0 0.0
      %4550 = vmatpush2.msra.mxu0 0.0
      %4551 = vmatprep.subr.mxu0 0.0
      %4552 = vmatpush2.msra.mxu0 0.0
      %4553 = vmatprep.subr.mxu0 0.0
      %4554 = vmatpush2.msra.mxu0 0.0
      %4555 = vmatprep.subr.mxu0 0.0
      %4556 = vmatpush2.msra.mxu0 0.0
      %4557 = vmatprep.subr.mxu0 0.0
      %4558 = vmatpush2.msra.mxu0 0.0
      %4559 = vmatprep.subr.mxu0 0.0
      %4560 = vmatpush2.msra.mxu0 0.0
      %4561 = vmatprep.subr.mxu0 0.0
      %4562 = vmatpush2.msra.mxu0 0.0
      %4563 = vmatprep.subr.mxu0 0.0
      %4564 = vmatpush2.msra.mxu0 0.0
      %4565 = vmatprep.subr.mxu0 0.0
      %4566 = vmatpush2.msra.mxu0 0.0
      %4567 = vmatprep.subr.mxu0 0.0
      %4568 = vmatpush2.msra.mxu0 0.0
      %4569 = vmatprep.subr.mxu0 0.0
      %4570 = vmatpush2.msra.mxu0 0.0
      %4571 = vmatprep.subr.mxu0 0.0
      %4572 = vmatpush2.msra.mxu0 0.0
      %4573 = vmatprep.mubr.f32.mxu0 0.0
      %4574 = vmatmul.mubr.f32.gmra.mxu0 %v4433
      %v4575 = vpop.f32.mrf.mxu0
      %v4576 = vadd.f32 0.0, %v4575
      %v4577 = vpop.f32.mrf.mxu0
      %4578 = vdwg.mxu0
      %v4579 = vsel %vm3794, %v4576, 0.0
      %4580 = vadd.xlane.f32.xlu0 %v4579
      %v4581 = vpop.xlane.xlu0 %4580
      %v4582 = vmul.f32 %v4581, 0.015625
      %vm4583 = vcmp.eq.s32.totalorder %v702, 2
      %v4584 = vsel %vm4583, %v4508, %v3546
      %vm4585 = vcmp.eq.s32.totalorder %v702, 7
      %v4586 = vsel %vm4585, %v4582, %v4584
      %v4587 = vld [vmem:[%s14] sm:$0xf]
      %v4588 = vld [vmem:[%s14 + $0x4] sm:$0x3]
      %v4589 = vld [vmem:[%s18] sm:$0xf]
      %v4591 = vsel %vm3801, %v4589, 0
      %4593 = vmatprep.subr.bf16.mxu0 0
      %4594 = vmatpush1.bf16.msra.mxu0 0
      %4595 = vmatprep.subr.bf16.mxu0 0
      %4596 = vmatpush1.bf16.msra.mxu0 0
      %4597 = vmatprep.subr.bf16.mxu0 0
      %4598 = vmatpush1.bf16.msra.mxu0 0
      %4599 = vmatprep.subr.bf16.mxu0 0
      %4600 = vmatpush1.bf16.msra.mxu0 0
      %4601 = vmatprep.subr.bf16.mxu0 0
      %4602 = vmatpush1.bf16.msra.mxu0 0
      %4603 = vmatprep.subr.bf16.mxu0 0
      %4604 = vmatpush1.bf16.msra.mxu0 0
      %4605 = vmatprep.subr.bf16.mxu0 0
      %4606 = vmatpush1.bf16.msra.mxu0 0
      %4607 = vmatprep.subr.bf16.mxu0 0
      %4608 = vmatpush1.bf16.msra.mxu0 %v4591
      %4609 = vmatprep.subr.bf16.mxu0 0
      %4610 = vmatpush2.bf16.msra.mxu0 0
      %4611 = vmatprep.subr.bf16.mxu0 0
      %4612 = vmatpush2.bf16.msra.mxu0 0
      %4613 = vmatprep.subr.bf16.mxu0 0
      %4614 = vmatpush2.bf16.msra.mxu0 0
      %4615 = vmatprep.subr.bf16.mxu0 0
      %4616 = vmatpush2.bf16.msra.mxu0 0
      %4617 = vmatprep.subr.bf16.mxu0 0
      %4618 = vmatpush2.bf16.msra.mxu0 0
      %4619 = vmatprep.subr.bf16.mxu0 0
      %4620 = vmatpush2.bf16.msra.mxu0 0
      %4621 = vmatprep.subr.bf16.mxu0 0
      %4622 = vmatpush2.bf16.msra.mxu0 0
      %4623 = vmatprep.subr.bf16.mxu0 0
      %4624 = vmatpush2.bf16.msra.mxu0 0
      %4625 = vmatprep.mubr.bf16.mxu0 0
      %4626 = vmatmul.mubr.bf16.gmra.mxu0 %v3796
      %v4627 = vpop.f32.mrf.mxu0
      %v4628 = vadd.f32 0.0, %v4627
      %v4629 = vpop.f32.mrf.mxu0
      %v4630 = vpop.f32.mrf.mxu0
      %v4631 = vadd.f32 0.0, %v4630
      %v4632 = vpop.f32.mrf.mxu0
      %4633 = vmatprep.mubr.bf16.mxu0 0
      %4634 = vmatmul.mubr.bf16.gmra.mxu0 %v3799
      %v4635 = vpop.f32.mrf.mxu0
      %v4636 = vadd.f32 0.0, %v4635
      %v4637 = vpop.f32.mrf.mxu0
      %v4638 = vpop.f32.mrf.mxu0
      %v4639 = vpop.f32.mrf.mxu0
      %4640 = vdwg.mxu0
      %v4641 = vpack.c.bf16 %v4631, %v4628
      %v4642 = vpack.c.bf16 %v4636, %v4636
      %v4645 = vunpack.c.l.b16 %v4587
      %v4646 = vunpack.c.l.b16 %v4588
      %v4647 = vpack.c.b16 %v4646, %v4645
      %v4649 = vsel %vm3863, %v4647, 0
      %v4652 = vsel %vm3801, %v4642, 0
      %4654 = vmatprep.subr.bf16.mxu0 0
      %4655 = vmatpush1.bf16.msra.mxu0 0
      %4656 = vmatprep.subr.bf16.mxu0 0
      %4657 = vmatpush1.bf16.msra.mxu0 0
      %4658 = vmatprep.subr.bf16.mxu0 0
      %4659 = vmatpush1.bf16.msra.mxu0 0
      %4660 = vmatprep.subr.bf16.mxu0 0
      %4661 = vmatpush1.bf16.msra.mxu0 0
      %4662 = vmatprep.subr.bf16.mxu0 0
      %4663 = vmatpush1.bf16.msra.mxu0 0
      %4664 = vmatprep.subr.bf16.mxu0 0
      %4665 = vmatpush1.bf16.msra.mxu0 0
      %4666 = vmatprep.subr.bf16.mxu0 0
      %4667 = vmatpush1.bf16.msra.mxu0 %v4652
      %4668 = vmatprep.subr.bf16.mxu0 0
      %4669 = vmatpush1.bf16.msra.mxu0 %v4641
      %4670 = vmatprep.subr.bf16.mxu0 0
      %4671 = vmatpush2.bf16.msra.mxu0 0
      %4672 = vmatprep.subr.bf16.mxu0 0
      %4673 = vmatpush2.bf16.msra.mxu0 0
      %4674 = vmatprep.subr.bf16.mxu0 0
      %4675 = vmatpush2.bf16.msra.mxu0 0
      %4676 = vmatprep.subr.bf16.mxu0 0
      %4677 = vmatpush2.bf16.msra.mxu0 0
      %4678 = vmatprep.subr.bf16.mxu0 0
      %4679 = vmatpush2.bf16.msra.mxu0 0
      %4680 = vmatprep.subr.bf16.mxu0 0
      %4681 = vmatpush2.bf16.msra.mxu0 0
      %4682 = vmatprep.subr.bf16.mxu0 0
      %4683 = vmatpush2.bf16.msra.mxu0 0
      %4684 = vmatprep.subr.bf16.mxu0 0
      %4685 = vmatpush2.bf16.msra.mxu0 0
      %4686 = vmatprep.mubr.bf16.mxu0 0
      %4687 = vmatmul.mubr.bf16.gmra.mxu0 %v4649
      %v4688 = vpop.f32.mrf.mxu0
      %v4689 = vadd.f32 0.0, %v4688
      %v4690 = vpop.f32.mrf.mxu0
      %v4691 = vpop.f32.mrf.mxu0
      %v4692 = vadd.f32 0.0, %v4691
      %v4693 = vpop.f32.mrf.mxu0
      %4694 = vdwg.mxu0
      %4695 = vmatprep.subr.bf16.mxu0 0
      %4696 = vmatpush1.bf16.msra.mxu0 0
      %4697 = vmatprep.subr.bf16.mxu0 0
      %4698 = vmatpush1.bf16.msra.mxu0 0
      %4699 = vmatprep.subr.bf16.mxu0 0
      %4700 = vmatpush1.bf16.msra.mxu0 0
      %4701 = vmatprep.subr.bf16.mxu0 0
      %4702 = vmatpush1.bf16.msra.mxu0 0
      %4703 = vmatprep.subr.bf16.mxu0 0
      %4704 = vmatpush1.bf16.msra.mxu0 0
      %4705 = vmatprep.subr.bf16.mxu0 0
      %4706 = vmatpush1.bf16.msra.mxu0 0
      %4707 = vmatprep.subr.bf16.mxu0 0
      %4708 = vmatpush1.bf16.msra.mxu0 0
      %4709 = vmatprep.subr.bf16.mxu0 0
      %4710 = vmatpush1.bf16.msra.mxu0 %v4591
      %4711 = vmatprep.subr.bf16.mxu0 0
      %4712 = vmatpush2.bf16.msra.mxu0 0
      %4713 = vmatprep.subr.bf16.mxu0 0
      %4714 = vmatpush2.bf16.msra.mxu0 0
      %4715 = vmatprep.subr.bf16.mxu0 0
      %4716 = vmatpush2.bf16.msra.mxu0 0
      %4717 = vmatprep.subr.bf16.mxu0 0
      %4718 = vmatpush2.bf16.msra.mxu0 0
      %4719 = vmatprep.subr.bf16.mxu0 0
      %4720 = vmatpush2.bf16.msra.mxu0 0
      %4721 = vmatprep.subr.bf16.mxu0 0
      %4722 = vmatpush2.bf16.msra.mxu0 0
      %4723 = vmatprep.subr.bf16.mxu0 0
      %4724 = vmatpush2.bf16.msra.mxu0 0
      %4725 = vmatprep.subr.bf16.mxu0 0
      %4726 = vmatpush2.bf16.msra.mxu0 0
      %4727 = vmatprep.mubr.bf16.mxu0 0
      %4728 = vmatmul.mubr.bf16.gmra.mxu0 %v3924
      %v4729 = vpop.f32.mrf.mxu0
      %v4730 = vadd.f32 0.0, %v4729
      %v4731 = vpop.f32.mrf.mxu0
      %v4732 = vpop.f32.mrf.mxu0
      %v4733 = vadd.f32 0.0, %v4732
      %v4734 = vpop.f32.mrf.mxu0
      %4735 = vmatprep.mubr.bf16.mxu0 0
      %4736 = vmatmul.mubr.bf16.gmra.mxu0 %v3927
      %v4737 = vpop.f32.mrf.mxu0
      %v4738 = vadd.f32 0.0, %v4737
      %v4739 = vpop.f32.mrf.mxu0
      %v4740 = vpop.f32.mrf.mxu0
      %v4741 = vpop.f32.mrf.mxu0
      %4742 = vdwg.mxu0
      %v4743 = vpack.c.bf16 %v4733, %v4730
      %v4744 = vpack.c.bf16 %v4738, %v4738
      %v4746 = vsel %vm3801, %v4744, 0
      %4748 = vmatprep.subr.bf16.mxu0 0
      %4749 = vmatpush1.bf16.msra.mxu0 0
      %4750 = vmatprep.subr.bf16.mxu0 0
      %4751 = vmatpush1.bf16.msra.mxu0 0
      %4752 = vmatprep.subr.bf16.mxu0 0
      %4753 = vmatpush1.bf16.msra.mxu0 0
      %4754 = vmatprep.subr.bf16.mxu0 0
      %4755 = vmatpush1.bf16.msra.mxu0 0
      %4756 = vmatprep.subr.bf16.mxu0 0
      %4757 = vmatpush1.bf16.msra.mxu0 0
      %4758 = vmatprep.subr.bf16.mxu0 0
      %4759 = vmatpush1.bf16.msra.mxu0 0
      %4760 = vmatprep.subr.bf16.mxu0 0
      %4761 = vmatpush1.bf16.msra.mxu0 %v4746
      %4762 = vmatprep.subr.bf16.mxu0 0
      %4763 = vmatpush1.bf16.msra.mxu0 %v4743
      %4764 = vmatprep.subr.bf16.mxu0 0
      %4765 = vmatpush2.bf16.msra.mxu0 0
      %4766 = vmatprep.subr.bf16.mxu0 0
      %4767 = vmatpush2.bf16.msra.mxu0 0
      %4768 = vmatprep.subr.bf16.mxu0 0
      %4769 = vmatpush2.bf16.msra.mxu0 0
      %4770 = vmatprep.subr.bf16.mxu0 0
      %4771 = vmatpush2.bf16.msra.mxu0 0
      %4772 = vmatprep.subr.bf16.mxu0 0
      %4773 = vmatpush2.bf16.msra.mxu0 0
      %4774 = vmatprep.subr.bf16.mxu0 0
      %4775 = vmatpush2.bf16.msra.mxu0 0
      %4776 = vmatprep.subr.bf16.mxu0 0
      %4777 = vmatpush2.bf16.msra.mxu0 0
      %4778 = vmatprep.subr.bf16.mxu0 0
      %4779 = vmatpush2.bf16.msra.mxu0 0
      %4780 = vmatprep.mubr.bf16.mxu0 0
      %4781 = vmatmul.mubr.bf16.gmra.mxu0 %v4649
      %v4782 = vpop.f32.mrf.mxu0
      %v4783 = vadd.f32 0.0, %v4782
      %v4784 = vpop.f32.mrf.mxu0
      %v4785 = vpop.f32.mrf.mxu0
      %v4786 = vadd.f32 0.0, %v4785
      %v4787 = vpop.f32.mrf.mxu0
      %4788 = vdwg.mxu0
      %v4789 = vld [vmem:[%s5] sm:$0xf]
      %v4790 = vld [vmem:[%s5 + $0x4] sm:$0x3]
      %v4791 = vld [vmem:[%s10] sm:$0x3]
      %v4792 = vpack.c.bf16 %v4692, %v4689
      %vm4793 = vcmask 31744
      %v4795 = vsel %vm4793, %v4792, 0
      %vm4797 = vcmask 1041408
      %v4799 = vsel %vm4797, %v4791, 0
      %4801 = vmatprep.subr.bf16.mxu0 0
      %4802 = vmatpush1.bf16.msra.mxu0 0
      %4803 = vmatprep.subr.bf16.mxu0 0
      %4804 = vmatpush1.bf16.msra.mxu0 0
      %4805 = vmatprep.subr.bf16.mxu0 0
      %4806 = vmatpush1.bf16.msra.mxu0 0
      %4807 = vmatprep.subr.bf16.mxu0 0
      %4808 = vmatpush1.bf16.msra.mxu0 0
      %4809 = vmatprep.subr.bf16.mxu0 0
      %4810 = vmatpush1.bf16.msra.mxu0 0
      %4811 = vmatprep.subr.bf16.mxu0 0
      %4812 = vmatpush1.bf16.msra.mxu0 0
      %4813 = vmatprep.subr.bf16.mxu0 0
      %4814 = vmatpush1.bf16.msra.mxu0 0
      %4815 = vmatprep.subr.bf16.mxu0 0
      %4816 = vmatpush1.bf16.msra.mxu0 %v4799
      %4817 = vmatprep.subr.bf16.mxu0 0
      %4818 = vmatpush2.bf16.msra.mxu0 0
      %4819 = vmatprep.subr.bf16.mxu0 0
      %4820 = vmatpush2.bf16.msra.mxu0 0
      %4821 = vmatprep.subr.bf16.mxu0 0
      %4822 = vmatpush2.bf16.msra.mxu0 0
      %4823 = vmatprep.subr.bf16.mxu0 0
      %4824 = vmatpush2.bf16.msra.mxu0 0
      %4825 = vmatprep.subr.bf16.mxu0 0
      %4826 = vmatpush2.bf16.msra.mxu0 0
      %4827 = vmatprep.subr.bf16.mxu0 0
      %4828 = vmatpush2.bf16.msra.mxu0 0
      %4829 = vmatprep.subr.bf16.mxu0 0
      %4830 = vmatpush2.bf16.msra.mxu0 0
      %4831 = vmatprep.subr.bf16.mxu0 0
      %4832 = vmatpush2.bf16.msra.mxu0 0
      %4833 = vmatprep.mubr.bf16.mxu0 0
      %4834 = vmatmul.mubr.bf16.gmra.mxu0 %v4795
      %v4835 = vpop.f32.mrf.mxu0
      %v4836 = vadd.f32 0.0, %v4835
      %v4837 = vpop.f32.mrf.mxu0
      %v4838 = vpop.f32.mrf.mxu0
      %v4839 = vadd.f32 0.0, %v4838
      %v4840 = vpop.f32.mrf.mxu0
      %4841 = vdwg.mxu0
      %v4842 = vpack.c.bf16 %v4839, %v4836
      %v4845 = vunpack.c.l.b16 %v4789
      %v4846 = vunpack.c.l.b16 %v4790
      %v4847 = vpack.c.b16 %v4846, %v4845
      %vm4848 = vcmask 97280
      %v4850 = vsel %vm4848, %v4847, 0
      %vm4852 = vcmask 1045504
      %v4854 = vsel %vm4852, %v4842, 0
      %4856 = vmatprep.subr.bf16.mxu0 0
      %4857 = vmatpush1.bf16.msra.mxu0 0
      %4858 = vmatprep.subr.bf16.mxu0 0
      %4859 = vmatpush1.bf16.msra.mxu0 0
      %4860 = vmatprep.subr.bf16.mxu0 0
      %4861 = vmatpush1.bf16.msra.mxu0 0
      %4862 = vmatprep.subr.bf16.mxu0 0
      %4863 = vmatpush1.bf16.msra.mxu0 0
      %4864 = vmatprep.subr.bf16.mxu0 0
      %4865 = vmatpush1.bf16.msra.mxu0 0
      %4866 = vmatprep.subr.bf16.mxu0 0
      %4867 = vmatpush1.bf16.msra.mxu0 0
      %4868 = vmatprep.subr.bf16.mxu0 0
      %4869 = vmatpush1.bf16.msra.mxu0 0
      %4870 = vmatprep.subr.bf16.mxu0 0
      %4871 = vmatpush1.bf16.msra.mxu0 %v4854
      %4872 = vmatprep.subr.bf16.mxu0 0
      %4873 = vmatpush2.bf16.msra.mxu0 0
      %4874 = vmatprep.subr.bf16.mxu0 0
      %4875 = vmatpush2.bf16.msra.mxu0 0
      %4876 = vmatprep.subr.bf16.mxu0 0
      %4877 = vmatpush2.bf16.msra.mxu0 0
      %4878 = vmatprep.subr.bf16.mxu0 0
      %4879 = vmatpush2.bf16.msra.mxu0 0
      %4880 = vmatprep.subr.bf16.mxu0 0
      %4881 = vmatpush2.bf16.msra.mxu0 0
      %4882 = vmatprep.subr.bf16.mxu0 0
      %4883 = vmatpush2.bf16.msra.mxu0 0
      %4884 = vmatprep.subr.bf16.mxu0 0
      %4885 = vmatpush2.bf16.msra.mxu0 0
      %4886 = vmatprep.subr.bf16.mxu0 0
      %4887 = vmatpush2.bf16.msra.mxu0 0
      %4888 = vmatprep.mubr.bf16.mxu0 0
      %4889 = vmatmul.mubr.bf16.gmra.mxu0 %v4850
      %v4890 = vpop.f32.mrf.mxu0
      %v4891 = vadd.f32 0.0, %v4890
      %v4892 = vpop.f32.mrf.mxu0
      %v4893 = vpop.f32.mrf.mxu0
      %v4894 = vadd.f32 0.0, %v4893
      %v4895 = vpop.f32.mrf.mxu0
      %4896 = vdwg.mxu0
      %v4897 = vpack.c.bf16 %v4786, %v4783
      %v4899 = vsel %vm4793, %v4897, 0
      %4901 = vmatprep.subr.bf16.mxu0 0
      %4902 = vmatpush1.bf16.msra.mxu0 0
      %4903 = vmatprep.subr.bf16.mxu0 0
      %4904 = vmatpush1.bf16.msra.mxu0 0
      %4905 = vmatprep.subr.bf16.mxu0 0
      %4906 = vmatpush1.bf16.msra.mxu0 0
      %4907 = vmatprep.subr.bf16.mxu0 0
      %4908 = vmatpush1.bf16.msra.mxu0 0
      %4909 = vmatprep.subr.bf16.mxu0 0
      %4910 = vmatpush1.bf16.msra.mxu0 0
      %4911 = vmatprep.subr.bf16.mxu0 0
      %4912 = vmatpush1.bf16.msra.mxu0 0
      %4913 = vmatprep.subr.bf16.mxu0 0
      %4914 = vmatpush1.bf16.msra.mxu0 0
      %4915 = vmatprep.subr.bf16.mxu0 0
      %4916 = vmatpush1.bf16.msra.mxu0 %v4799
      %4917 = vmatprep.subr.bf16.mxu0 0
      %4918 = vmatpush2.bf16.msra.mxu0 0
      %4919 = vmatprep.subr.bf16.mxu0 0
      %4920 = vmatpush2.bf16.msra.mxu0 0
      %4921 = vmatprep.subr.bf16.mxu0 0
      %4922 = vmatpush2.bf16.msra.mxu0 0
      %4923 = vmatprep.subr.bf16.mxu0 0
      %4924 = vmatpush2.bf16.msra.mxu0 0
      %4925 = vmatprep.subr.bf16.mxu0 0
      %4926 = vmatpush2.bf16.msra.mxu0 0
      %4927 = vmatprep.subr.bf16.mxu0 0
      %4928 = vmatpush2.bf16.msra.mxu0 0
      %4929 = vmatprep.subr.bf16.mxu0 0
      %4930 = vmatpush2.bf16.msra.mxu0 0
      %4931 = vmatprep.subr.bf16.mxu0 0
      %4932 = vmatpush2.bf16.msra.mxu0 0
      %4933 = vmatprep.mubr.bf16.mxu0 0
      %4934 = vmatmul.mubr.bf16.gmra.mxu0 %v4899
      %v4935 = vpop.f32.mrf.mxu0
      %v4936 = vadd.f32 0.0, %v4935
      %v4937 = vpop.f32.mrf.mxu0
      %v4938 = vpop.f32.mrf.mxu0
      %v4939 = vadd.f32 0.0, %v4938
      %v4940 = vpop.f32.mrf.mxu0
      %4941 = vdwg.mxu0
      %v4942 = vpack.c.bf16 %v4939, %v4936
      %v4944 = vsel %vm4852, %v4942, 0
      %4946 = vmatprep.subr.bf16.mxu0 0
      %4947 = vmatpush1.bf16.msra.mxu0 0
      %4948 = vmatprep.subr.bf16.mxu0 0
      %4949 = vmatpush1.bf16.msra.mxu0 0
      %4950 = vmatprep.subr.bf16.mxu0 0
      %4951 = vmatpush1.bf16.msra.mxu0 0
      %4952 = vmatprep.subr.bf16.mxu0 0
      %4953 = vmatpush1.bf16.msra.mxu0 0
      %4954 = vmatprep.subr.bf16.mxu0 0
      %4955 = vmatpush1.bf16.msra.mxu0 0
      %4956 = vmatprep.subr.bf16.mxu0 0
      %4957 = vmatpush1.bf16.msra.mxu0 0
      %4958 = vmatprep.subr.bf16.mxu0 0
      %4959 = vmatpush1.bf16.msra.mxu0 0
      %4960 = vmatprep.subr.bf16.mxu0 0
      %4961 = vmatpush1.bf16.msra.mxu0 %v4944
      %4962 = vmatprep.subr.bf16.mxu0 0
      %4963 = vmatpush2.bf16.msra.mxu0 0
      %4964 = vmatprep.subr.bf16.mxu0 0
      %4965 = vmatpush2.bf16.msra.mxu0 0
      %4966 = vmatprep.subr.bf16.mxu0 0
      %4967 = vmatpush2.bf16.msra.mxu0 0
      %4968 = vmatprep.subr.bf16.mxu0 0
      %4969 = vmatpush2.bf16.msra.mxu0 0
      %4970 = vmatprep.subr.bf16.mxu0 0
      %4971 = vmatpush2.bf16.msra.mxu0 0
      %4972 = vmatprep.subr.bf16.mxu0 0
      %4973 = vmatpush2.bf16.msra.mxu0 0
      %4974 = vmatprep.subr.bf16.mxu0 0
      %4975 = vmatpush2.bf16.msra.mxu0 0
      %4976 = vmatprep.subr.bf16.mxu0 0
      %4977 = vmatpush2.bf16.msra.mxu0 0
      %4978 = vmatprep.mubr.bf16.mxu0 0
      %4979 = vmatmul.mubr.bf16.gmra.mxu0 %v4850
      %v4980 = vpop.f32.mrf.mxu0
      %v4981 = vadd.f32 0.0, %v4980
      %v4982 = vpop.f32.mrf.mxu0
      %v4983 = vpop.f32.mrf.mxu0
      %v4984 = vadd.f32 0.0, %v4983
      %v4985 = vpop.f32.mrf.mxu0
      %4986 = vdwg.mxu0
      %v4987 = vmul.f32 %v4689, %v4689
      %v4988 = vmul.f32 %v4692, %v4692
      %v4989 = vpack.c.bf16 %v4988, %v4987
      %v4991 = vsel %vm4793, %v4989, 0
      %4993 = vmatprep.subr.bf16.mxu0 0
      %4994 = vmatpush1.bf16.msra.mxu0 0
      %4995 = vmatprep.subr.bf16.mxu0 0
      %4996 = vmatpush1.bf16.msra.mxu0 0
      %4997 = vmatprep.subr.bf16.mxu0 0
      %4998 = vmatpush1.bf16.msra.mxu0 0
      %4999 = vmatprep.subr.bf16.mxu0 0
      %5000 = vmatpush1.bf16.msra.mxu0 0
      %5001 = vmatprep.subr.bf16.mxu0 0
      %5002 = vmatpush1.bf16.msra.mxu0 0
      %5003 = vmatprep.subr.bf16.mxu0 0
      %5004 = vmatpush1.bf16.msra.mxu0 0
      %5005 = vmatprep.subr.bf16.mxu0 0
      %5006 = vmatpush1.bf16.msra.mxu0 0
      %5007 = vmatprep.subr.bf16.mxu0 0
      %5008 = vmatpush1.bf16.msra.mxu0 %v4799
      %5009 = vmatprep.subr.bf16.mxu0 0
      %5010 = vmatpush2.bf16.msra.mxu0 0
      %5011 = vmatprep.subr.bf16.mxu0 0
      %5012 = vmatpush2.bf16.msra.mxu0 0
      %5013 = vmatprep.subr.bf16.mxu0 0
      %5014 = vmatpush2.bf16.msra.mxu0 0
      %5015 = vmatprep.subr.bf16.mxu0 0
      %5016 = vmatpush2.bf16.msra.mxu0 0
      %5017 = vmatprep.subr.bf16.mxu0 0
      %5018 = vmatpush2.bf16.msra.mxu0 0
      %5019 = vmatprep.subr.bf16.mxu0 0
      %5020 = vmatpush2.bf16.msra.mxu0 0
      %5021 = vmatprep.subr.bf16.mxu0 0
      %5022 = vmatpush2.bf16.msra.mxu0 0
      %5023 = vmatprep.subr.bf16.mxu0 0
      %5024 = vmatpush2.bf16.msra.mxu0 0
      %5025 = vmatprep.mubr.bf16.mxu0 0
      %5026 = vmatmul.mubr.bf16.gmra.mxu0 %v4991
      %v5027 = vpop.f32.mrf.mxu0
      %v5028 = vadd.f32 0.0, %v5027
      %v5029 = vpop.f32.mrf.mxu0
      %v5030 = vpop.f32.mrf.mxu0
      %v5031 = vadd.f32 0.0, %v5030
      %v5032 = vpop.f32.mrf.mxu0
      %5033 = vdwg.mxu0
      %v5034 = vpack.c.bf16 %v5031, %v5028
      %v5036 = vsel %vm4852, %v5034, 0
      %5038 = vmatprep.subr.bf16.mxu0 0
      %5039 = vmatpush1.bf16.msra.mxu0 0
      %5040 = vmatprep.subr.bf16.mxu0 0
      %5041 = vmatpush1.bf16.msra.mxu0 0
      %5042 = vmatprep.subr.bf16.mxu0 0
      %5043 = vmatpush1.bf16.msra.mxu0 0
      %5044 = vmatprep.subr.bf16.mxu0 0
      %5045 = vmatpush1.bf16.msra.mxu0 0
      %5046 = vmatprep.subr.bf16.mxu0 0
      %5047 = vmatpush1.bf16.msra.mxu0 0
      %5048 = vmatprep.subr.bf16.mxu0 0
      %5049 = vmatpush1.bf16.msra.mxu0 0
      %5050 = vmatprep.subr.bf16.mxu0 0
      %5051 = vmatpush1.bf16.msra.mxu0 0
      %5052 = vmatprep.subr.bf16.mxu0 0
      %5053 = vmatpush1.bf16.msra.mxu0 %v5036
      %5054 = vmatprep.subr.bf16.mxu0 0
      %5055 = vmatpush2.bf16.msra.mxu0 0
      %5056 = vmatprep.subr.bf16.mxu0 0
      %5057 = vmatpush2.bf16.msra.mxu0 0
      %5058 = vmatprep.subr.bf16.mxu0 0
      %5059 = vmatpush2.bf16.msra.mxu0 0
      %5060 = vmatprep.subr.bf16.mxu0 0
      %5061 = vmatpush2.bf16.msra.mxu0 0
      %5062 = vmatprep.subr.bf16.mxu0 0
      %5063 = vmatpush2.bf16.msra.mxu0 0
      %5064 = vmatprep.subr.bf16.mxu0 0
      %5065 = vmatpush2.bf16.msra.mxu0 0
      %5066 = vmatprep.subr.bf16.mxu0 0
      %5067 = vmatpush2.bf16.msra.mxu0 0
      %5068 = vmatprep.subr.bf16.mxu0 0
      %5069 = vmatpush2.bf16.msra.mxu0 0
      %5070 = vmatprep.mubr.bf16.mxu0 0
      %5071 = vmatmul.mubr.bf16.gmra.mxu0 %v4850
      %v5072 = vpop.f32.mrf.mxu0
      %v5073 = vadd.f32 0.0, %v5072
      %v5074 = vpop.f32.mrf.mxu0
      %v5075 = vpop.f32.mrf.mxu0
      %v5076 = vadd.f32 0.0, %v5075
      %v5077 = vpop.f32.mrf.mxu0
      %5078 = vdwg.mxu0
      %v5079 = vmul.f32 %v4891, %v4891
      %v5080 = vmul.f32 %v4894, %v4894
      %v5081 = vsub.f32 %v5073, %v5079
      %v5082 = vsub.f32 %v5076, %v5080
      %v5083 = vmul.f32 %v4783, %v4783
      %v5084 = vmul.f32 %v4786, %v4786
      %v5085 = vpack.c.bf16 %v5084, %v5083
      %v5087 = vsel %vm4793, %v5085, 0
      %5089 = vmatprep.subr.bf16.mxu0 0
      %5090 = vmatpush1.bf16.msra.mxu0 0
      %5091 = vmatprep.subr.bf16.mxu0 0
      %5092 = vmatpush1.bf16.msra.mxu0 0
      %5093 = vmatprep.subr.bf16.mxu0 0
      %5094 = vmatpush1.bf16.msra.mxu0 0
      %5095 = vmatprep.subr.bf16.mxu0 0
      %5096 = vmatpush1.bf16.msra.mxu0 0
      %5097 = vmatprep.subr.bf16.mxu0 0
      %5098 = vmatpush1.bf16.msra.mxu0 0
      %5099 = vmatprep.subr.bf16.mxu0 0
      %5100 = vmatpush1.bf16.msra.mxu0 0
      %5101 = vmatprep.subr.bf16.mxu0 0
      %5102 = vmatpush1.bf16.msra.mxu0 0
      %5103 = vmatprep.subr.bf16.mxu0 0
      %5104 = vmatpush1.bf16.msra.mxu0 %v4799
      %5105 = vmatprep.subr.bf16.mxu0 0
      %5106 = vmatpush2.bf16.msra.mxu0 0
      %5107 = vmatprep.subr.bf16.mxu0 0
      %5108 = vmatpush2.bf16.msra.mxu0 0
      %5109 = vmatprep.subr.bf16.mxu0 0
      %5110 = vmatpush2.bf16.msra.mxu0 0
      %5111 = vmatprep.subr.bf16.mxu0 0
      %5112 = vmatpush2.bf16.msra.mxu0 0
      %5113 = vmatprep.subr.bf16.mxu0 0
      %5114 = vmatpush2.bf16.msra.mxu0 0
      %5115 = vmatprep.subr.bf16.mxu0 0
      %5116 = vmatpush2.bf16.msra.mxu0 0
      %5117 = vmatprep.subr.bf16.mxu0 0
      %5118 = vmatpush2.bf16.msra.mxu0 0
      %5119 = vmatprep.subr.bf16.mxu0 0
      %5120 = vmatpush2.bf16.msra.mxu0 0
      %5121 = vmatprep.mubr.bf16.mxu0 0
      %5122 = vmatmul.mubr.bf16.gmra.mxu0 %v5087
      %v5123 = vpop.f32.mrf.mxu0
      %v5124 = vadd.f32 0.0, %v5123
      %v5125 = vpop.f32.mrf.mxu0
      %v5126 = vpop.f32.mrf.mxu0
      %v5127 = vadd.f32 0.0, %v5126
      %v5128 = vpop.f32.mrf.mxu0
      %5129 = vdwg.mxu0
      %v5130 = vpack.c.bf16 %v5127, %v5124
      %v5132 = vsel %vm4852, %v5130, 0
      %5134 = vmatprep.subr.bf16.mxu0 0
      %5135 = vmatpush1.bf16.msra.mxu0 0
      %5136 = vmatprep.subr.bf16.mxu0 0
      %5137 = vmatpush1.bf16.msra.mxu0 0
      %5138 = vmatprep.subr.bf16.mxu0 0
      %5139 = vmatpush1.bf16.msra.mxu0 0
      %5140 = vmatprep.subr.bf16.mxu0 0
      %5141 = vmatpush1.bf16.msra.mxu0 0
      %5142 = vmatprep.subr.bf16.mxu0 0
      %5143 = vmatpush1.bf16.msra.mxu0 0
      %5144 = vmatprep.subr.bf16.mxu0 0
      %5145 = vmatpush1.bf16.msra.mxu0 0
      %5146 = vmatprep.subr.bf16.mxu0 0
      %5147 = vmatpush1.bf16.msra.mxu0 0
      %5148 = vmatprep.subr.bf16.mxu0 0
      %5149 = vmatpush1.bf16.msra.mxu0 %v5132
      %5150 = vmatprep.subr.bf16.mxu0 0
      %5151 = vmatpush2.bf16.msra.mxu0 0
      %5152 = vmatprep.subr.bf16.mxu0 0
      %5153 = vmatpush2.bf16.msra.mxu0 0
      %5154 = vmatprep.subr.bf16.mxu0 0
      %5155 = vmatpush2.bf16.msra.mxu0 0
      %5156 = vmatprep.subr.bf16.mxu0 0
      %5157 = vmatpush2.bf16.msra.mxu0 0
      %5158 = vmatprep.subr.bf16.mxu0 0
      %5159 = vmatpush2.bf16.msra.mxu0 0
      %5160 = vmatprep.subr.bf16.mxu0 0
      %5161 = vmatpush2.bf16.msra.mxu0 0
      %5162 = vmatprep.subr.bf16.mxu0 0
      %5163 = vmatpush2.bf16.msra.mxu0 0
      %5164 = vmatprep.subr.bf16.mxu0 0
      %5165 = vmatpush2.bf16.msra.mxu0 0
      %5166 = vmatprep.mubr.bf16.mxu0 0
      %5167 = vmatmul.mubr.bf16.gmra.mxu0 %v4850
      %v5168 = vpop.f32.mrf.mxu0
      %v5169 = vadd.f32 0.0, %v5168
      %v5170 = vpop.f32.mrf.mxu0
      %v5171 = vpop.f32.mrf.mxu0
      %v5172 = vadd.f32 0.0, %v5171
      %v5173 = vpop.f32.mrf.mxu0
      %5174 = vdwg.mxu0
      %v5175 = vmul.f32 %v4981, %v4981
      %v5176 = vmul.f32 %v4984, %v4984
      %v5177 = vsub.f32 %v5169, %v5175
      %v5178 = vsub.f32 %v5172, %v5176
      %v5179 = vmul.f32 %v4689, %v4783
      %v5180 = vmul.f32 %v4692, %v4786
      %v5181 = vpack.c.bf16 %v5180, %v5179
      %v5183 = vsel %vm4793, %v5181, 0
      %5185 = vmatprep.subr.bf16.mxu0 0
      %5186 = vmatpush1.bf16.msra.mxu0 0
      %5187 = vmatprep.subr.bf16.mxu0 0
      %5188 = vmatpush1.bf16.msra.mxu0 0
      %5189 = vmatprep.subr.bf16.mxu0 0
      %5190 = vmatpush1.bf16.msra.mxu0 0
      %5191 = vmatprep.subr.bf16.mxu0 0
      %5192 = vmatpush1.bf16.msra.mxu0 0
      %5193 = vmatprep.subr.bf16.mxu0 0
      %5194 = vmatpush1.bf16.msra.mxu0 0
      %5195 = vmatprep.subr.bf16.mxu0 0
      %5196 = vmatpush1.bf16.msra.mxu0 0
      %5197 = vmatprep.subr.bf16.mxu0 0
      %5198 = vmatpush1.bf16.msra.mxu0 0
      %5199 = vmatprep.subr.bf16.mxu0 0
      %5200 = vmatpush1.bf16.msra.mxu0 %v4799
      %5201 = vmatprep.subr.bf16.mxu0 0
      %5202 = vmatpush2.bf16.msra.mxu0 0
      %5203 = vmatprep.subr.bf16.mxu0 0
      %5204 = vmatpush2.bf16.msra.mxu0 0
      %5205 = vmatprep.subr.bf16.mxu0 0
      %5206 = vmatpush2.bf16.msra.mxu0 0
      %5207 = vmatprep.subr.bf16.mxu0 0
      %5208 = vmatpush2.bf16.msra.mxu0 0
      %5209 = vmatprep.subr.bf16.mxu0 0
      %5210 = vmatpush2.bf16.msra.mxu0 0
      %5211 = vmatprep.subr.bf16.mxu0 0
      %5212 = vmatpush2.bf16.msra.mxu0 0
      %5213 = vmatprep.subr.bf16.mxu0 0
      %5214 = vmatpush2.bf16.msra.mxu0 0
      %5215 = vmatprep.subr.bf16.mxu0 0
      %5216 = vmatpush2.bf16.msra.mxu0 0
      %5217 = vmatprep.mubr.bf16.mxu0 0
      %5218 = vmatmul.mubr.bf16.gmra.mxu0 %v5183
      %v5219 = vpop.f32.mrf.mxu0
      %v5220 = vadd.f32 0.0, %v5219
      %v5221 = vpop.f32.mrf.mxu0
      %v5222 = vpop.f32.mrf.mxu0
      %v5223 = vadd.f32 0.0, %v5222
      %v5224 = vpop.f32.mrf.mxu0
      %5225 = vdwg.mxu0
      %v5226 = vpack.c.bf16 %v5223, %v5220
      %v5228 = vsel %vm4852, %v5226, 0
      %5230 = vmatprep.subr.bf16.mxu0 0
      %5231 = vmatpush1.bf16.msra.mxu0 0
      %5232 = vmatprep.subr.bf16.mxu0 0
      %5233 = vmatpush1.bf16.msra.mxu0 0
      %5234 = vmatprep.subr.bf16.mxu0 0
      %5235 = vmatpush1.bf16.msra.mxu0 0
      %5236 = vmatprep.subr.bf16.mxu0 0
      %5237 = vmatpush1.bf16.msra.mxu0 0
      %5238 = vmatprep.subr.bf16.mxu0 0
      %5239 = vmatpush1.bf16.msra.mxu0 0
      %5240 = vmatprep.subr.bf16.mxu0 0
      %5241 = vmatpush1.bf16.msra.mxu0 0
      %5242 = vmatprep.subr.bf16.mxu0 0
      %5243 = vmatpush1.bf16.msra.mxu0 0
      %5244 = vmatprep.subr.bf16.mxu0 0
      %5245 = vmatpush1.bf16.msra.mxu0 %v5228
      %5246 = vmatprep.subr.bf16.mxu0 0
      %5247 = vmatpush2.bf16.msra.mxu0 0
      %5248 = vmatprep.subr.bf16.mxu0 0
      %5249 = vmatpush2.bf16.msra.mxu0 0
      %5250 = vmatprep.subr.bf16.mxu0 0
      %5251 = vmatpush2.bf16.msra.mxu0 0
      %5252 = vmatprep.subr.bf16.mxu0 0
      %5253 = vmatpush2.bf16.msra.mxu0 0
      %5254 = vmatprep.subr.bf16.mxu0 0
      %5255 = vmatpush2.bf16.msra.mxu0 0
      %5256 = vmatprep.subr.bf16.mxu0 0
      %5257 = vmatpush2.bf16.msra.mxu0 0
      %5258 = vmatprep.subr.bf16.mxu0 0
      %5259 = vmatpush2.bf16.msra.mxu0 0
      %5260 = vmatprep.subr.bf16.mxu0 0
      %5261 = vmatpush2.bf16.msra.mxu0 0
      %5262 = vmatprep.mubr.bf16.mxu0 0
      %5263 = vmatmul.mubr.bf16.gmra.mxu0 %v4850
      %v5264 = vpop.f32.mrf.mxu0
      %v5265 = vadd.f32 0.0, %v5264
      %v5266 = vpop.f32.mrf.mxu0
      %v5267 = vpop.f32.mrf.mxu0
      %v5268 = vadd.f32 0.0, %v5267
      %v5269 = vpop.f32.mrf.mxu0
      %5270 = vdwg.mxu0
      %v5271 = vmul.f32 %v4891, %v4981
      %v5272 = vmul.f32 %v4894, %v4984
      %v5273 = vsub.f32 %v5265, %v5271
      %v5274 = vsub.f32 %v5268, %v5272
      %v5275 = vmul.f32 %v5273, 2.0
      %v5276 = vmul.f32 %v5274, 2.0
      %v5277 = vadd.f32 %v5275, 0.0009
      %v5278 = vadd.f32 %v5276, 0.0009
      %v5279 = vadd.f32 %v5081, %v5177
      %v5280 = vadd.f32 %v5082, %v5178
      %v5281 = vadd.f32 %v5279, 0.0009
      %v5282 = vadd.f32 %v5280, 0.0009
      %v5283 = vrcp.pop %v5281
      %v5284 = vrcp.pop %v5282
      %v5285 = vmul.f32 %v5277, %v5283
      %v5286 = vmul.f32 %v5278, %v5284
      %v5287 = vmul.f32 %v4891, 2.0
      %v5288 = vmul.f32 %v4894, 2.0
      %v5289 = vmul.f32 %v5287, %v4981
      %v5290 = vmul.f32 %v5288, %v4984
      %v5291 = vadd.f32 %v5289, 0.0001
      %v5292 = vadd.f32 %v5290, 0.0001
      %v5293 = vadd.f32 %v5079, %v5175
      %v5294 = vadd.f32 %v5080, %v5176
      %v5295 = vadd.f32 %v5293, 0.0001
      %v5296 = vadd.f32 %v5294, 0.0001
      %v5297 = vrcp.pop %v5295
      %v5298 = vrcp.pop %v5296
      %v5299 = vmul.f32 %v5291, %v5297
      %v5300 = vmul.f32 %v5292, %v5298
      %v5301 = vmul.f32 %v5299, %v5285
      %v5302 = vmul.f32 %v5300, %v5286
      %v5303 = vmul.u32 %v2066, 4
      %vm5304 = vcmp.ge.s32.totalorder %v702, %v5303
      %v5305 = vmul.u32 %v2069, 4
      %vm5306 = vcmp.lt.s32.totalorder %v702, %v5305
      %vm5307 = vmand %vm5304, %vm5306
      %v5308 = vsel %vm5307, 1.0, 0.0
      %v5310 = vsel %vm4848, %v5308, 0
      %v5313 = vsel %vm3801, %v5302, 0
      %5315 = vmatprep.subr.mxu0 0.0
      %5316 = vmatpush1.msra.mxu0 0.0
      %5317 = vmatprep.subr.mxu0 0.0
      %5318 = vmatpush1.msra.mxu0 0.0
      %5319 = vmatprep.subr.mxu0 0.0
      %5320 = vmatpush1.msra.mxu0 0.0
      %5321 = vmatprep.subr.mxu0 0.0
      %5322 = vmatpush1.msra.mxu0 0.0
      %5323 = vmatprep.subr.mxu0 0.0
      %5324 = vmatpush1.msra.mxu0 0.0
      %5325 = vmatprep.subr.mxu0 0.0
      %5326 = vmatpush1.msra.mxu0 0.0
      %5327 = vmatprep.subr.mxu0 0.0
      %5328 = vmatpush1.msra.mxu0 0.0
      %5329 = vmatprep.subr.mxu0 0.0
      %5330 = vmatpush1.msra.mxu0 0.0
      %5331 = vmatprep.subr.mxu0 0.0
      %5332 = vmatpush1.msra.mxu0 0.0
      %5333 = vmatprep.subr.mxu0 0.0
      %5334 = vmatpush1.msra.mxu0 0.0
      %5335 = vmatprep.subr.mxu0 0.0
      %5336 = vmatpush1.msra.mxu0 0.0
      %5337 = vmatprep.subr.mxu0 0.0
      %5338 = vmatpush1.msra.mxu0 0.0
      %5339 = vmatprep.subr.mxu0 0.0
      %5340 = vmatpush1.msra.mxu0 0.0
      %5341 = vmatprep.subr.mxu0 0.0
      %5342 = vmatpush1.msra.mxu0 0.0
      %5343 = vmatprep.subr.mxu0 0.0
      %5344 = vmatpush1.msra.mxu0 %v5313
      %5345 = vmatprep.subr.mxu0 0.0
      %5346 = vmatpush1.msra.mxu0 %v5301
      %5347 = vmatprep.subr.mxu0 0.0
      %5348 = vmatpush2.msra.mxu0 0.0
      %5349 = vmatprep.subr.mxu0 0.0
      %5350 = vmatpush2.msra.mxu0 0.0
      %5351 = vmatprep.subr.mxu0 0.0
      %5352 = vmatpush2.msra.mxu0 0.0
      %5353 = vmatprep.subr.mxu0 0.0
      %5354 = vmatpush2.msra.mxu0 0.0
      %5355 = vmatprep.subr.mxu0 0.0
      %5356 = vmatpush2.msra.mxu0 0.0
      %5357 = vmatprep.subr.mxu0 0.0
      %5358 = vmatpush2.msra.mxu0 0.0
      %5359 = vmatprep.subr.mxu0 0.0
      %5360 = vmatpush2.msra.mxu0 0.0
      %5361 = vmatprep.subr.mxu0 0.0
      %5362 = vmatpush2.msra.mxu0 0.0
      %5363 = vmatprep.subr.mxu0 0.0
      %5364 = vmatpush2.msra.mxu0 0.0
      %5365 = vmatprep.subr.mxu0 0.0
      %5366 = vmatpush2.msra.mxu0 0.0
      %5367 = vmatprep.subr.mxu0 0.0
      %5368 = vmatpush2.msra.mxu0 0.0
      %5369 = vmatprep.subr.mxu0 0.0
      %5370 = vmatpush2.msra.mxu0 0.0
      %5371 = vmatprep.subr.mxu0 0.0
      %5372 = vmatpush2.msra.mxu0 0.0
      %5373 = vmatprep.subr.mxu0 0.0
      %5374 = vmatpush2.msra.mxu0 0.0
      %5375 = vmatprep.subr.mxu0 0.0
      %5376 = vmatpush2.msra.mxu0 0.0
      %5377 = vmatprep.subr.mxu0 0.0
      %5378 = vmatpush2.msra.mxu0 0.0
      %5379 = vmatprep.mubr.f32.mxu0 0.0
      %5380 = vmatmul.mubr.f32.gmra.mxu0 %v5310
      %v5381 = vpop.f32.mrf.mxu0
      %v5382 = vadd.f32 0.0, %v5381
      %v5383 = vpop.f32.mrf.mxu0
      %5384 = vdwg.mxu0
      %v5385 = vsel %vm4793, %v5382, 0.0
      %5386 = vadd.xlane.f32.xlu0 %v5385
      %v5387 = vpop.xlane.xlu0 %5386
      %v5388 = vmul.f32 %v5387, 0.0625
      %v5390 = vsel %vm3801, %v5286, 0
      %5392 = vmatprep.subr.mxu0 0.0
      %5393 = vmatpush1.msra.mxu0 0.0
      %5394 = vmatprep.subr.mxu0 0.0
      %5395 = vmatpush1.msra.mxu0 0.0
      %5396 = vmatprep.subr.mxu0 0.0
      %5397 = vmatpush1.msra.mxu0 0.0
      %5398 = vmatprep.subr.mxu0 0.0
      %5399 = vmatpush1.msra.mxu0 0.0
      %5400 = vmatprep.subr.mxu0 0.0
      %5401 = vmatpush1.msra.mxu0 0.0
      %5402 = vmatprep.subr.mxu0 0.0
      %5403 = vmatpush1.msra.mxu0 0.0
      %5404 = vmatprep.subr.mxu0 0.0
      %5405 = vmatpush1.msra.mxu0 0.0
      %5406 = vmatprep.subr.mxu0 0.0
      %5407 = vmatpush1.msra.mxu0 0.0
      %5408 = vmatprep.subr.mxu0 0.0
      %5409 = vmatpush1.msra.mxu0 0.0
      %5410 = vmatprep.subr.mxu0 0.0
      %5411 = vmatpush1.msra.mxu0 0.0
      %5412 = vmatprep.subr.mxu0 0.0
      %5413 = vmatpush1.msra.mxu0 0.0
      %5414 = vmatprep.subr.mxu0 0.0
      %5415 = vmatpush1.msra.mxu0 0.0
      %5416 = vmatprep.subr.mxu0 0.0
      %5417 = vmatpush1.msra.mxu0 0.0
      %5418 = vmatprep.subr.mxu0 0.0
      %5419 = vmatpush1.msra.mxu0 0.0
      %5420 = vmatprep.subr.mxu0 0.0
      %5421 = vmatpush1.msra.mxu0 %v5390
      %5422 = vmatprep.subr.mxu0 0.0
      %5423 = vmatpush1.msra.mxu0 %v5285
      %5424 = vmatprep.subr.mxu0 0.0
      %5425 = vmatpush2.msra.mxu0 0.0
      %5426 = vmatprep.subr.mxu0 0.0
      %5427 = vmatpush2.msra.mxu0 0.0
      %5428 = vmatprep.subr.mxu0 0.0
      %5429 = vmatpush2.msra.mxu0 0.0
      %5430 = vmatprep.subr.mxu0 0.0
      %5431 = vmatpush2.msra.mxu0 0.0
      %5432 = vmatprep.subr.mxu0 0.0
      %5433 = vmatpush2.msra.mxu0 0.0
      %5434 = vmatprep.subr.mxu0 0.0
      %5435 = vmatpush2.msra.mxu0 0.0
      %5436 = vmatprep.subr.mxu0 0.0
      %5437 = vmatpush2.msra.mxu0 0.0
      %5438 = vmatprep.subr.mxu0 0.0
      %5439 = vmatpush2.msra.mxu0 0.0
      %5440 = vmatprep.subr.mxu0 0.0
      %5441 = vmatpush2.msra.mxu0 0.0
      %5442 = vmatprep.subr.mxu0 0.0
      %5443 = vmatpush2.msra.mxu0 0.0
      %5444 = vmatprep.subr.mxu0 0.0
      %5445 = vmatpush2.msra.mxu0 0.0
      %5446 = vmatprep.subr.mxu0 0.0
      %5447 = vmatpush2.msra.mxu0 0.0
      %5448 = vmatprep.subr.mxu0 0.0
      %5449 = vmatpush2.msra.mxu0 0.0
      %5450 = vmatprep.subr.mxu0 0.0
      %5451 = vmatpush2.msra.mxu0 0.0
      %5452 = vmatprep.subr.mxu0 0.0
      %5453 = vmatpush2.msra.mxu0 0.0
      %5454 = vmatprep.subr.mxu0 0.0
      %5455 = vmatpush2.msra.mxu0 0.0
      %5456 = vmatprep.mubr.f32.mxu0 0.0
      %5457 = vmatmul.mubr.f32.gmra.mxu0 %v5310
      %v5458 = vpop.f32.mrf.mxu0
      %v5459 = vadd.f32 0.0, %v5458
      %v5460 = vpop.f32.mrf.mxu0
      %5461 = vdwg.mxu0
      %v5462 = vsel %vm4793, %v5459, 0.0
      %5463 = vadd.xlane.f32.xlu0 %v5462
      %v5464 = vpop.xlane.xlu0 %5463
      %v5465 = vmul.f32 %v5464, 0.0625
      %vm5466 = vcmp.eq.s32.totalorder %v702, 3
      %v5467 = vsel %vm5466, %v5388, %v4586
      %vm5468 = vcmp.eq.s32.totalorder %v702, 8
      %v5469 = vsel %vm5468, %v5465, %v5467
      %v5470 = vld [vmem:[%s15] sm:$0x7]
      %v5471 = vld [vmem:[%s19] sm:$0x3]
      %v5473 = vsel %vm4797, %v5471, 0
      %5475 = vmatprep.subr.bf16.mxu0 0
      %5476 = vmatpush1.bf16.msra.mxu0 0
      %5477 = vmatprep.subr.bf16.mxu0 0
      %5478 = vmatpush1.bf16.msra.mxu0 0
      %5479 = vmatprep.subr.bf16.mxu0 0
      %5480 = vmatpush1.bf16.msra.mxu0 0
      %5481 = vmatprep.subr.bf16.mxu0 0
      %5482 = vmatpush1.bf16.msra.mxu0 0
      %5483 = vmatprep.subr.bf16.mxu0 0
      %5484 = vmatpush1.bf16.msra.mxu0 0
      %5485 = vmatprep.subr.bf16.mxu0 0
      %5486 = vmatpush1.bf16.msra.mxu0 0
      %5487 = vmatprep.subr.bf16.mxu0 0
      %5488 = vmatpush1.bf16.msra.mxu0 0
      %5489 = vmatprep.subr.bf16.mxu0 0
      %5490 = vmatpush1.bf16.msra.mxu0 %v5473
      %5491 = vmatprep.subr.bf16.mxu0 0
      %5492 = vmatpush2.bf16.msra.mxu0 0
      %5493 = vmatprep.subr.bf16.mxu0 0
      %5494 = vmatpush2.bf16.msra.mxu0 0
      %5495 = vmatprep.subr.bf16.mxu0 0
      %5496 = vmatpush2.bf16.msra.mxu0 0
      %5497 = vmatprep.subr.bf16.mxu0 0
      %5498 = vmatpush2.bf16.msra.mxu0 0
      %5499 = vmatprep.subr.bf16.mxu0 0
      %5500 = vmatpush2.bf16.msra.mxu0 0
      %5501 = vmatprep.subr.bf16.mxu0 0
      %5502 = vmatpush2.bf16.msra.mxu0 0
      %5503 = vmatprep.subr.bf16.mxu0 0
      %5504 = vmatpush2.bf16.msra.mxu0 0
      %5505 = vmatprep.subr.bf16.mxu0 0
      %5506 = vmatpush2.bf16.msra.mxu0 0
      %5507 = vmatprep.mubr.bf16.mxu0 0
      %5508 = vmatmul.mubr.bf16.gmra.mxu0 %v4795
      %v5509 = vpop.f32.mrf.mxu0
      %v5510 = vadd.f32 0.0, %v5509
      %v5511 = vpop.f32.mrf.mxu0
      %v5512 = vpop.f32.mrf.mxu0
      %v5513 = vadd.f32 0.0, %v5512
      %v5514 = vpop.f32.mrf.mxu0
      %5515 = vdwg.mxu0
      %v5516 = vpack.c.bf16 %v5513, %v5510
      %v5518 = vsel %vm4848, %v5470, 0
      %v5521 = vsel %vm4852, %v5516, 0
      %5523 = vmatprep.subr.bf16.mxu0 0
      %5524 = vmatpush1.bf16.msra.mxu0 0
      %5525 = vmatprep.subr.bf16.mxu0 0
      %5526 = vmatpush1.bf16.msra.mxu0 0
      %5527 = vmatprep.subr.bf16.mxu0 0
      %5528 = vmatpush1.bf16.msra.mxu0 0
      %5529 = vmatprep.subr.bf16.mxu0 0
      %5530 = vmatpush1.bf16.msra.mxu0 0
      %5531 = vmatprep.subr.bf16.mxu0 0
      %5532 = vmatpush1.bf16.msra.mxu0 0
      %5533 = vmatprep.subr.bf16.mxu0 0
      %5534 = vmatpush1.bf16.msra.mxu0 0
      %5535 = vmatprep.subr.bf16.mxu0 0
      %5536 = vmatpush1.bf16.msra.mxu0 0
      %5537 = vmatprep.subr.bf16.mxu0 0
      %5538 = vmatpush1.bf16.msra.mxu0 %v5521
      %5539 = vmatprep.subr.bf16.mxu0 0
      %5540 = vmatpush2.bf16.msra.mxu0 0
      %5541 = vmatprep.subr.bf16.mxu0 0
      %5542 = vmatpush2.bf16.msra.mxu0 0
      %5543 = vmatprep.subr.bf16.mxu0 0
      %5544 = vmatpush2.bf16.msra.mxu0 0
      %5545 = vmatprep.subr.bf16.mxu0 0
      %5546 = vmatpush2.bf16.msra.mxu0 0
      %5547 = vmatprep.subr.bf16.mxu0 0
      %5548 = vmatpush2.bf16.msra.mxu0 0
      %5549 = vmatprep.subr.bf16.mxu0 0
      %5550 = vmatpush2.bf16.msra.mxu0 0
      %5551 = vmatprep.subr.bf16.mxu0 0
      %5552 = vmatpush2.bf16.msra.mxu0 0
      %5553 = vmatprep.subr.bf16.mxu0 0
      %5554 = vmatpush2.bf16.msra.mxu0 0
      %5555 = vmatprep.mubr.bf16.mxu0 0
      %5556 = vmatmul.mubr.bf16.gmra.mxu0 %v5518
      %v5557 = vpop.f32.mrf.mxu0
      %v5558 = vadd.f32 0.0, %v5557
      %v5559 = vpop.f32.mrf.mxu0
      %v5560 = vpop.f32.mrf.mxu0
      %v5561 = vpop.f32.mrf.mxu0
      %5562 = vdwg.mxu0
      %5563 = vmatprep.subr.bf16.mxu0 0
      %5564 = vmatpush1.bf16.msra.mxu0 0
      %5565 = vmatprep.subr.bf16.mxu0 0
      %5566 = vmatpush1.bf16.msra.mxu0 0
      %5567 = vmatprep.subr.bf16.mxu0 0
      %5568 = vmatpush1.bf16.msra.mxu0 0
      %5569 = vmatprep.subr.bf16.mxu0 0
      %5570 = vmatpush1.bf16.msra.mxu0 0
      %5571 = vmatprep.subr.bf16.mxu0 0
      %5572 = vmatpush1.bf16.msra.mxu0 0
      %5573 = vmatprep.subr.bf16.mxu0 0
      %5574 = vmatpush1.bf16.msra.mxu0 0
      %5575 = vmatprep.subr.bf16.mxu0 0
      %5576 = vmatpush1.bf16.msra.mxu0 0
      %5577 = vmatprep.subr.bf16.mxu0 0
      %5578 = vmatpush1.bf16.msra.mxu0 %v5473
      %5579 = vmatprep.subr.bf16.mxu0 0
      %5580 = vmatpush2.bf16.msra.mxu0 0
      %5581 = vmatprep.subr.bf16.mxu0 0
      %5582 = vmatpush2.bf16.msra.mxu0 0
      %5583 = vmatprep.subr.bf16.mxu0 0
      %5584 = vmatpush2.bf16.msra.mxu0 0
      %5585 = vmatprep.subr.bf16.mxu0 0
      %5586 = vmatpush2.bf16.msra.mxu0 0
      %5587 = vmatprep.subr.bf16.mxu0 0
      %5588 = vmatpush2.bf16.msra.mxu0 0
      %5589 = vmatprep.subr.bf16.mxu0 0
      %5590 = vmatpush2.bf16.msra.mxu0 0
      %5591 = vmatprep.subr.bf16.mxu0 0
      %5592 = vmatpush2.bf16.msra.mxu0 0
      %5593 = vmatprep.subr.bf16.mxu0 0
      %5594 = vmatpush2.bf16.msra.mxu0 0
      %5595 = vmatprep.mubr.bf16.mxu0 0
      %5596 = vmatmul.mubr.bf16.gmra.mxu0 %v4899
      %v5597 = vpop.f32.mrf.mxu0
      %v5598 = vadd.f32 0.0, %v5597
      %v5599 = vpop.f32.mrf.mxu0
      %v5600 = vpop.f32.mrf.mxu0
      %v5601 = vadd.f32 0.0, %v5600
      %v5602 = vpop.f32.mrf.mxu0
      %5603 = vdwg.mxu0
      %v5604 = vpack.c.bf16 %v5601, %v5598
      %v5606 = vsel %vm4852, %v5604, 0
      %5608 = vmatprep.subr.bf16.mxu0 0
      %5609 = vmatpush1.bf16.msra.mxu0 0
      %5610 = vmatprep.subr.bf16.mxu0 0
      %5611 = vmatpush1.bf16.msra.mxu0 0
      %5612 = vmatprep.subr.bf16.mxu0 0
      %5613 = vmatpush1.bf16.msra.mxu0 0
      %5614 = vmatprep.subr.bf16.mxu0 0
      %5615 = vmatpush1.bf16.msra.mxu0 0
      %5616 = vmatprep.subr.bf16.mxu0 0
      %5617 = vmatpush1.bf16.msra.mxu0 0
      %5618 = vmatprep.subr.bf16.mxu0 0
      %5619 = vmatpush1.bf16.msra.mxu0 0
      %5620 = vmatprep.subr.bf16.mxu0 0
      %5621 = vmatpush1.bf16.msra.mxu0 0
      %5622 = vmatprep.subr.bf16.mxu0 0
      %5623 = vmatpush1.bf16.msra.mxu0 %v5606
      %5624 = vmatprep.subr.bf16.mxu0 0
      %5625 = vmatpush2.bf16.msra.mxu0 0
      %5626 = vmatprep.subr.bf16.mxu0 0
      %5627 = vmatpush2.bf16.msra.mxu0 0
      %5628 = vmatprep.subr.bf16.mxu0 0
      %5629 = vmatpush2.bf16.msra.mxu0 0
      %5630 = vmatprep.subr.bf16.mxu0 0
      %5631 = vmatpush2.bf16.msra.mxu0 0
      %5632 = vmatprep.subr.bf16.mxu0 0
      %5633 = vmatpush2.bf16.msra.mxu0 0
      %5634 = vmatprep.subr.bf16.mxu0 0
      %5635 = vmatpush2.bf16.msra.mxu0 0
      %5636 = vmatprep.subr.bf16.mxu0 0
      %5637 = vmatpush2.bf16.msra.mxu0 0
      %5638 = vmatprep.subr.bf16.mxu0 0
      %5639 = vmatpush2.bf16.msra.mxu0 0
      %5640 = vmatprep.mubr.bf16.mxu0 0
      %5641 = vmatmul.mubr.bf16.gmra.mxu0 %v5518
      %v5642 = vpop.f32.mrf.mxu0
      %v5643 = vadd.f32 0.0, %v5642
      %v5644 = vpop.f32.mrf.mxu0
      %v5645 = vpop.f32.mrf.mxu0
      %v5646 = vpop.f32.mrf.mxu0
      %5647 = vdwg.mxu0
      %v5648 = vld [vmem:[%s6] sm:$0x7]
      %v5649 = vld [vmem:[%s11] sm:$0x1]
      %v5650 = vpack.c.bf16 %v5558, %v5558
      %vm5651 = vcmask 15360
      %v5653 = vsel %vm5651, %v5650, 0
      %vm5655 = vcmask 1040384
      %v5657 = vsel %vm5655, %v5649, 0
      %5659 = vmatprep.subr.bf16.mxu0 0
      %5660 = vmatpush1.bf16.msra.mxu0 0
      %5661 = vmatprep.subr.bf16.mxu0 0
      %5662 = vmatpush1.bf16.msra.mxu0 0
      %5663 = vmatprep.subr.bf16.mxu0 0
      %5664 = vmatpush1.bf16.msra.mxu0 0
      %5665 = vmatprep.subr.bf16.mxu0 0
      %5666 = vmatpush1.bf16.msra.mxu0 0
      %5667 = vmatprep.subr.bf16.mxu0 0
      %5668 = vmatpush1.bf16.msra.mxu0 0
      %5669 = vmatprep.subr.bf16.mxu0 0
      %5670 = vmatpush1.bf16.msra.mxu0 0
      %5671 = vmatprep.subr.bf16.mxu0 0
      %5672 = vmatpush1.bf16.msra.mxu0 0
      %5673 = vmatprep.subr.bf16.mxu0 0
      %5674 = vmatpush1.bf16.msra.mxu0 %v5657
      %5675 = vmatprep.subr.bf16.mxu0 0
      %5676 = vmatpush2.bf16.msra.mxu0 0
      %5677 = vmatprep.subr.bf16.mxu0 0
      %5678 = vmatpush2.bf16.msra.mxu0 0
      %5679 = vmatprep.subr.bf16.mxu0 0
      %5680 = vmatpush2.bf16.msra.mxu0 0
      %5681 = vmatprep.subr.bf16.mxu0 0
      %5682 = vmatpush2.bf16.msra.mxu0 0
      %5683 = vmatprep.subr.bf16.mxu0 0
      %5684 = vmatpush2.bf16.msra.mxu0 0
      %5685 = vmatprep.subr.bf16.mxu0 0
      %5686 = vmatpush2.bf16.msra.mxu0 0
      %5687 = vmatprep.subr.bf16.mxu0 0
      %5688 = vmatpush2.bf16.msra.mxu0 0
      %5689 = vmatprep.subr.bf16.mxu0 0
      %5690 = vmatpush2.bf16.msra.mxu0 0
      %5691 = vmatprep.mubr.bf16.mxu0 0
      %5692 = vmatmul.mubr.bf16.gmra.mxu0 %v5653
      %v5693 = vpop.f32.mrf.mxu0
      %v5694 = vadd.f32 0.0, %v5693
      %v5695 = vpop.f32.mrf.mxu0
      %v5696 = vpop.f32.mrf.mxu0
      %v5697 = vpop.f32.mrf.mxu0
      %5698 = vdwg.mxu0
      %v5699 = vpack.c.bf16 %v5694, %v5694
      %vm5700 = vcmask 48128
      %v5702 = vsel %vm5700, %v5648, 0
      %vm5704 = vcmask 1042432
      %v5706 = vsel %vm5704, %v5699, 0
      %5708 = vmatprep.subr.bf16.mxu0 0
      %5709 = vmatpush1.bf16.msra.mxu0 0
      %5710 = vmatprep.subr.bf16.mxu0 0
      %5711 = vmatpush1.bf16.msra.mxu0 0
      %5712 = vmatprep.subr.bf16.mxu0 0
      %5713 = vmatpush1.bf16.msra.mxu0 0
      %5714 = vmatprep.subr.bf16.mxu0 0
      %5715 = vmatpush1.bf16.msra.mxu0 0
      %5716 = vmatprep.subr.bf16.mxu0 0
      %5717 = vmatpush1.bf16.msra.mxu0 0
      %5718 = vmatprep.subr.bf16.mxu0 0
      %5719 = vmatpush1.bf16.msra.mxu0 0
      %5720 = vmatprep.subr.bf16.mxu0 0
      %5721 = vmatpush1.bf16.msra.mxu0 0
      %5722 = vmatprep.subr.bf16.mxu0 0
      %5723 = vmatpush1.bf16.msra.mxu0 %v5706
      %5724 = vmatprep.subr.bf16.mxu0 0
      %5725 = vmatpush2.bf16.msra.mxu0 0
      %5726 = vmatprep.subr.bf16.mxu0 0
      %5727 = vmatpush2.bf16.msra.mxu0 0
      %5728 = vmatprep.subr.bf16.mxu0 0
      %5729 = vmatpush2.bf16.msra.mxu0 0
      %5730 = vmatprep.subr.bf16.mxu0 0
      %5731 = vmatpush2.bf16.msra.mxu0 0
      %5732 = vmatprep.subr.bf16.mxu0 0
      %5733 = vmatpush2.bf16.msra.mxu0 0
      %5734 = vmatprep.subr.bf16.mxu0 0
      %5735 = vmatpush2.bf16.msra.mxu0 0
      %5736 = vmatprep.subr.bf16.mxu0 0
      %5737 = vmatpush2.bf16.msra.mxu0 0
      %5738 = vmatprep.subr.bf16.mxu0 0
      %5739 = vmatpush2.bf16.msra.mxu0 0
      %5740 = vmatprep.mubr.bf16.mxu0 0
      %5741 = vmatmul.mubr.bf16.gmra.mxu0 %v5702
      %v5742 = vpop.f32.mrf.mxu0
      %v5743 = vadd.f32 0.0, %v5742
      %v5744 = vpop.f32.mrf.mxu0
      %v5745 = vpop.f32.mrf.mxu0
      %v5746 = vpop.f32.mrf.mxu0
      %5747 = vdwg.mxu0
      %v5748 = vpack.c.bf16 %v5643, %v5643
      %v5750 = vsel %vm5651, %v5748, 0
      %5752 = vmatprep.subr.bf16.mxu0 0
      %5753 = vmatpush1.bf16.msra.mxu0 0
      %5754 = vmatprep.subr.bf16.mxu0 0
      %5755 = vmatpush1.bf16.msra.mxu0 0
      %5756 = vmatprep.subr.bf16.mxu0 0
      %5757 = vmatpush1.bf16.msra.mxu0 0
      %5758 = vmatprep.subr.bf16.mxu0 0
      %5759 = vmatpush1.bf16.msra.mxu0 0
      %5760 = vmatprep.subr.bf16.mxu0 0
      %5761 = vmatpush1.bf16.msra.mxu0 0
      %5762 = vmatprep.subr.bf16.mxu0 0
      %5763 = vmatpush1.bf16.msra.mxu0 0
      %5764 = vmatprep.subr.bf16.mxu0 0
      %5765 = vmatpush1.bf16.msra.mxu0 0
      %5766 = vmatprep.subr.bf16.mxu0 0
      %5767 = vmatpush1.bf16.msra.mxu0 %v5657
      %5768 = vmatprep.subr.bf16.mxu0 0
      %5769 = vmatpush2.bf16.msra.mxu0 0
      %5770 = vmatprep.subr.bf16.mxu0 0
      %5771 = vmatpush2.bf16.msra.mxu0 0
      %5772 = vmatprep.subr.bf16.mxu0 0
      %5773 = vmatpush2.bf16.msra.mxu0 0
      %5774 = vmatprep.subr.bf16.mxu0 0
      %5775 = vmatpush2.bf16.msra.mxu0 0
      %5776 = vmatprep.subr.bf16.mxu0 0
      %5777 = vmatpush2.bf16.msra.mxu0 0
      %5778 = vmatprep.subr.bf16.mxu0 0
      %5779 = vmatpush2.bf16.msra.mxu0 0
      %5780 = vmatprep.subr.bf16.mxu0 0
      %5781 = vmatpush2.bf16.msra.mxu0 0
      %5782 = vmatprep.subr.bf16.mxu0 0
      %5783 = vmatpush2.bf16.msra.mxu0 0
      %5784 = vmatprep.mubr.bf16.mxu0 0
      %5785 = vmatmul.mubr.bf16.gmra.mxu0 %v5750
      %v5786 = vpop.f32.mrf.mxu0
      %v5787 = vadd.f32 0.0, %v5786
      %v5788 = vpop.f32.mrf.mxu0
      %v5789 = vpop.f32.mrf.mxu0
      %v5790 = vpop.f32.mrf.mxu0
      %5791 = vdwg.mxu0
      %v5792 = vpack.c.bf16 %v5787, %v5787
      %v5794 = vsel %vm5704, %v5792, 0
      %5796 = vmatprep.subr.bf16.mxu0 0
      %5797 = vmatpush1.bf16.msra.mxu0 0
      %5798 = vmatprep.subr.bf16.mxu0 0
      %5799 = vmatpush1.bf16.msra.mxu0 0
      %5800 = vmatprep.subr.bf16.mxu0 0
      %5801 = vmatpush1.bf16.msra.mxu0 0
      %5802 = vmatprep.subr.bf16.mxu0 0
      %5803 = vmatpush1.bf16.msra.mxu0 0
      %5804 = vmatprep.subr.bf16.mxu0 0
      %5805 = vmatpush1.bf16.msra.mxu0 0
      %5806 = vmatprep.subr.bf16.mxu0 0
      %5807 = vmatpush1.bf16.msra.mxu0 0
      %5808 = vmatprep.subr.bf16.mxu0 0
      %5809 = vmatpush1.bf16.msra.mxu0 0
      %5810 = vmatprep.subr.bf16.mxu0 0
      %5811 = vmatpush1.bf16.msra.mxu0 %v5794
      %5812 = vmatprep.subr.bf16.mxu0 0
      %5813 = vmatpush2.bf16.msra.mxu0 0
      %5814 = vmatprep.subr.bf16.mxu0 0
      %5815 = vmatpush2.bf16.msra.mxu0 0
      %5816 = vmatprep.subr.bf16.mxu0 0
      %5817 = vmatpush2.bf16.msra.mxu0 0
      %5818 = vmatprep.subr.bf16.mxu0 0
      %5819 = vmatpush2.bf16.msra.mxu0 0
      %5820 = vmatprep.subr.bf16.mxu0 0
      %5821 = vmatpush2.bf16.msra.mxu0 0
      %5822 = vmatprep.subr.bf16.mxu0 0
      %5823 = vmatpush2.bf16.msra.mxu0 0
      %5824 = vmatprep.subr.bf16.mxu0 0
      %5825 = vmatpush2.bf16.msra.mxu0 0
      %5826 = vmatprep.subr.bf16.mxu0 0
      %5827 = vmatpush2.bf16.msra.mxu0 0
      %5828 = vmatprep.mubr.bf16.mxu0 0
      %5829 = vmatmul.mubr.bf16.gmra.mxu0 %v5702
      %v5830 = vpop.f32.mrf.mxu0
      %v5831 = vadd.f32 0.0, %v5830
      %v5832 = vpop.f32.mrf.mxu0
      %v5833 = vpop.f32.mrf.mxu0
      %v5834 = vpop.f32.mrf.mxu0
      %5835 = vdwg.mxu0
      %v5836 = vmul.f32 %v5558, %v5558
      %v5837 = vpack.c.bf16 %v5836, %v5836
      %v5839 = vsel %vm5651, %v5837, 0
      %5841 = vmatprep.subr.bf16.mxu0 0
      %5842 = vmatpush1.bf16.msra.mxu0 0
      %5843 = vmatprep.subr.bf16.mxu0 0
      %5844 = vmatpush1.bf16.msra.mxu0 0
      %5845 = vmatprep.subr.bf16.mxu0 0
      %5846 = vmatpush1.bf16.msra.mxu0 0
      %5847 = vmatprep.subr.bf16.mxu0 0
      %5848 = vmatpush1.bf16.msra.mxu0 0
      %5849 = vmatprep.subr.bf16.mxu0 0
      %5850 = vmatpush1.bf16.msra.mxu0 0
      %5851 = vmatprep.subr.bf16.mxu0 0
      %5852 = vmatpush1.bf16.msra.mxu0 0
      %5853 = vmatprep.subr.bf16.mxu0 0
      %5854 = vmatpush1.bf16.msra.mxu0 0
      %5855 = vmatprep.subr.bf16.mxu0 0
      %5856 = vmatpush1.bf16.msra.mxu0 %v5657
      %5857 = vmatprep.subr.bf16.mxu0 0
      %5858 = vmatpush2.bf16.msra.mxu0 0
      %5859 = vmatprep.subr.bf16.mxu0 0
      %5860 = vmatpush2.bf16.msra.mxu0 0
      %5861 = vmatprep.subr.bf16.mxu0 0
      %5862 = vmatpush2.bf16.msra.mxu0 0
      %5863 = vmatprep.subr.bf16.mxu0 0
      %5864 = vmatpush2.bf16.msra.mxu0 0
      %5865 = vmatprep.subr.bf16.mxu0 0
      %5866 = vmatpush2.bf16.msra.mxu0 0
      %5867 = vmatprep.subr.bf16.mxu0 0
      %5868 = vmatpush2.bf16.msra.mxu0 0
      %5869 = vmatprep.subr.bf16.mxu0 0
      %5870 = vmatpush2.bf16.msra.mxu0 0
      %5871 = vmatprep.subr.bf16.mxu0 0
      %5872 = vmatpush2.bf16.msra.mxu0 0
      %5873 = vmatprep.mubr.bf16.mxu0 0
      %5874 = vmatmul.mubr.bf16.gmra.mxu0 %v5839
      %v5875 = vpop.f32.mrf.mxu0
      %v5876 = vadd.f32 0.0, %v5875
      %v5877 = vpop.f32.mrf.mxu0
      %v5878 = vpop.f32.mrf.mxu0
      %v5879 = vpop.f32.mrf.mxu0
      %5880 = vdwg.mxu0
      %v5881 = vpack.c.bf16 %v5876, %v5876
      %v5883 = vsel %vm5704, %v5881, 0
      %5885 = vmatprep.subr.bf16.mxu0 0
      %5886 = vmatpush1.bf16.msra.mxu0 0
      %5887 = vmatprep.subr.bf16.mxu0 0
      %5888 = vmatpush1.bf16.msra.mxu0 0
      %5889 = vmatprep.subr.bf16.mxu0 0
      %5890 = vmatpush1.bf16.msra.mxu0 0
      %5891 = vmatprep.subr.bf16.mxu0 0
      %5892 = vmatpush1.bf16.msra.mxu0 0
      %5893 = vmatprep.subr.bf16.mxu0 0
      %5894 = vmatpush1.bf16.msra.mxu0 0
      %5895 = vmatprep.subr.bf16.mxu0 0
      %5896 = vmatpush1.bf16.msra.mxu0 0
      %5897 = vmatprep.subr.bf16.mxu0 0
      %5898 = vmatpush1.bf16.msra.mxu0 0
      %5899 = vmatprep.subr.bf16.mxu0 0
      %5900 = vmatpush1.bf16.msra.mxu0 %v5883
      %5901 = vmatprep.subr.bf16.mxu0 0
      %5902 = vmatpush2.bf16.msra.mxu0 0
      %5903 = vmatprep.subr.bf16.mxu0 0
      %5904 = vmatpush2.bf16.msra.mxu0 0
      %5905 = vmatprep.subr.bf16.mxu0 0
      %5906 = vmatpush2.bf16.msra.mxu0 0
      %5907 = vmatprep.subr.bf16.mxu0 0
      %5908 = vmatpush2.bf16.msra.mxu0 0
      %5909 = vmatprep.subr.bf16.mxu0 0
      %5910 = vmatpush2.bf16.msra.mxu0 0
      %5911 = vmatprep.subr.bf16.mxu0 0
      %5912 = vmatpush2.bf16.msra.mxu0 0
      %5913 = vmatprep.subr.bf16.mxu0 0
      %5914 = vmatpush2.bf16.msra.mxu0 0
      %5915 = vmatprep.subr.bf16.mxu0 0
      %5916 = vmatpush2.bf16.msra.mxu0 0
      %5917 = vmatprep.mubr.bf16.mxu0 0
      %5918 = vmatmul.mubr.bf16.gmra.mxu0 %v5702
      %v5919 = vpop.f32.mrf.mxu0
      %v5920 = vadd.f32 0.0, %v5919
      %v5921 = vpop.f32.mrf.mxu0
      %v5922 = vpop.f32.mrf.mxu0
      %v5923 = vpop.f32.mrf.mxu0
      %5924 = vdwg.mxu0
      %v5925 = vmul.f32 %v5743, %v5743
      %v5926 = vsub.f32 %v5920, %v5925
      %v5927 = vmul.f32 %v5643, %v5643
      %v5928 = vpack.c.bf16 %v5927, %v5927
      %v5930 = vsel %vm5651, %v5928, 0
      %5932 = vmatprep.subr.bf16.mxu0 0
      %5933 = vmatpush1.bf16.msra.mxu0 0
      %5934 = vmatprep.subr.bf16.mxu0 0
      %5935 = vmatpush1.bf16.msra.mxu0 0
      %5936 = vmatprep.subr.bf16.mxu0 0
      %5937 = vmatpush1.bf16.msra.mxu0 0
      %5938 = vmatprep.subr.bf16.mxu0 0
      %5939 = vmatpush1.bf16.msra.mxu0 0
      %5940 = vmatprep.subr.bf16.mxu0 0
      %5941 = vmatpush1.bf16.msra.mxu0 0
      %5942 = vmatprep.subr.bf16.mxu0 0
      %5943 = vmatpush1.bf16.msra.mxu0 0
      %5944 = vmatprep.subr.bf16.mxu0 0
      %5945 = vmatpush1.bf16.msra.mxu0 0
      %5946 = vmatprep.subr.bf16.mxu0 0
      %5947 = vmatpush1.bf16.msra.mxu0 %v5657
      %5948 = vmatprep.subr.bf16.mxu0 0
      %5949 = vmatpush2.bf16.msra.mxu0 0
      %5950 = vmatprep.subr.bf16.mxu0 0
      %5951 = vmatpush2.bf16.msra.mxu0 0
      %5952 = vmatprep.subr.bf16.mxu0 0
      %5953 = vmatpush2.bf16.msra.mxu0 0
      %5954 = vmatprep.subr.bf16.mxu0 0
      %5955 = vmatpush2.bf16.msra.mxu0 0
      %5956 = vmatprep.subr.bf16.mxu0 0
      %5957 = vmatpush2.bf16.msra.mxu0 0
      %5958 = vmatprep.subr.bf16.mxu0 0
      %5959 = vmatpush2.bf16.msra.mxu0 0
      %5960 = vmatprep.subr.bf16.mxu0 0
      %5961 = vmatpush2.bf16.msra.mxu0 0
      %5962 = vmatprep.subr.bf16.mxu0 0
      %5963 = vmatpush2.bf16.msra.mxu0 0
      %5964 = vmatprep.mubr.bf16.mxu0 0
      %5965 = vmatmul.mubr.bf16.gmra.mxu0 %v5930
      %v5966 = vpop.f32.mrf.mxu0
      %v5967 = vadd.f32 0.0, %v5966
      %v5968 = vpop.f32.mrf.mxu0
      %v5969 = vpop.f32.mrf.mxu0
      %v5970 = vpop.f32.mrf.mxu0
      %5971 = vdwg.mxu0
      %v5972 = vpack.c.bf16 %v5967, %v5967
      %v5974 = vsel %vm5704, %v5972, 0
      %5976 = vmatprep.subr.bf16.mxu0 0
      %5977 = vmatpush1.bf16.msra.mxu0 0
      %5978 = vmatprep.subr.bf16.mxu0 0
      %5979 = vmatpush1.bf16.msra.mxu0 0
      %5980 = vmatprep.subr.bf16.mxu0 0
      %5981 = vmatpush1.bf16.msra.mxu0 0
      %5982 = vmatprep.subr.bf16.mxu0 0
      %5983 = vmatpush1.bf16.msra.mxu0 0
      %5984 = vmatprep.subr.bf16.mxu0 0
      %5985 = vmatpush1.bf16.msra.mxu0 0
      %5986 = vmatprep.subr.bf16.mxu0 0
      %5987 = vmatpush1.bf16.msra.mxu0 0
      %5988 = vmatprep.subr.bf16.mxu0 0
      %5989 = vmatpush1.bf16.msra.mxu0 0
      %5990 = vmatprep.subr.bf16.mxu0 0
      %5991 = vmatpush1.bf16.msra.mxu0 %v5974
      %5992 = vmatprep.subr.bf16.mxu0 0
      %5993 = vmatpush2.bf16.msra.mxu0 0
      %5994 = vmatprep.subr.bf16.mxu0 0
      %5995 = vmatpush2.bf16.msra.mxu0 0
      %5996 = vmatprep.subr.bf16.mxu0 0
      %5997 = vmatpush2.bf16.msra.mxu0 0
      %5998 = vmatprep.subr.bf16.mxu0 0
      %5999 = vmatpush2.bf16.msra.mxu0 0
      %6000 = vmatprep.subr.bf16.mxu0 0
      %6001 = vmatpush2.bf16.msra.mxu0 0
      %6002 = vmatprep.subr.bf16.mxu0 0
      %6003 = vmatpush2.bf16.msra.mxu0 0
      %6004 = vmatprep.subr.bf16.mxu0 0
      %6005 = vmatpush2.bf16.msra.mxu0 0
      %6006 = vmatprep.subr.bf16.mxu0 0
      %6007 = vmatpush2.bf16.msra.mxu0 0
      %6008 = vmatprep.mubr.bf16.mxu0 0
      %6009 = vmatmul.mubr.bf16.gmra.mxu0 %v5702
      %v6010 = vpop.f32.mrf.mxu0
      %v6011 = vadd.f32 0.0, %v6010
      %v6012 = vpop.f32.mrf.mxu0
      %v6013 = vpop.f32.mrf.mxu0
      %v6014 = vpop.f32.mrf.mxu0
      %6015 = vdwg.mxu0
      %v6016 = vmul.f32 %v5831, %v5831
      %v6017 = vsub.f32 %v6011, %v6016
      %v6018 = vmul.f32 %v5558, %v5643
      %v6019 = vpack.c.bf16 %v6018, %v6018
      %v6021 = vsel %vm5651, %v6019, 0
      %6023 = vmatprep.subr.bf16.mxu0 0
      %6024 = vmatpush1.bf16.msra.mxu0 0
      %6025 = vmatprep.subr.bf16.mxu0 0
      %6026 = vmatpush1.bf16.msra.mxu0 0
      %6027 = vmatprep.subr.bf16.mxu0 0
      %6028 = vmatpush1.bf16.msra.mxu0 0
      %6029 = vmatprep.subr.bf16.mxu0 0
      %6030 = vmatpush1.bf16.msra.mxu0 0
      %6031 = vmatprep.subr.bf16.mxu0 0
      %6032 = vmatpush1.bf16.msra.mxu0 0
      %6033 = vmatprep.subr.bf16.mxu0 0
      %6034 = vmatpush1.bf16.msra.mxu0 0
      %6035 = vmatprep.subr.bf16.mxu0 0
      %6036 = vmatpush1.bf16.msra.mxu0 0
      %6037 = vmatprep.subr.bf16.mxu0 0
      %6038 = vmatpush1.bf16.msra.mxu0 %v5657
      %6039 = vmatprep.subr.bf16.mxu0 0
      %6040 = vmatpush2.bf16.msra.mxu0 0
      %6041 = vmatprep.subr.bf16.mxu0 0
      %6042 = vmatpush2.bf16.msra.mxu0 0
      %6043 = vmatprep.subr.bf16.mxu0 0
      %6044 = vmatpush2.bf16.msra.mxu0 0
      %6045 = vmatprep.subr.bf16.mxu0 0
      %6046 = vmatpush2.bf16.msra.mxu0 0
      %6047 = vmatprep.subr.bf16.mxu0 0
      %6048 = vmatpush2.bf16.msra.mxu0 0
      %6049 = vmatprep.subr.bf16.mxu0 0
      %6050 = vmatpush2.bf16.msra.mxu0 0
      %6051 = vmatprep.subr.bf16.mxu0 0
      %6052 = vmatpush2.bf16.msra.mxu0 0
      %6053 = vmatprep.subr.bf16.mxu0 0
      %6054 = vmatpush2.bf16.msra.mxu0 0
      %6055 = vmatprep.mubr.bf16.mxu0 0
      %6056 = vmatmul.mubr.bf16.gmra.mxu0 %v6021
      %v6057 = vpop.f32.mrf.mxu0
      %v6058 = vadd.f32 0.0, %v6057
      %v6059 = vpop.f32.mrf.mxu0
      %v6060 = vpop.f32.mrf.mxu0
      %v6061 = vpop.f32.mrf.mxu0
      %6062 = vdwg.mxu0
      %v6063 = vpack.c.bf16 %v6058, %v6058
      %v6065 = vsel %vm5704, %v6063, 0
      %6067 = vmatprep.subr.bf16.mxu0 0
      %6068 = vmatpush1.bf16.msra.mxu0 0
      %6069 = vmatprep.subr.bf16.mxu0 0
      %6070 = vmatpush1.bf16.msra.mxu0 0
      %6071 = vmatprep.subr.bf16.mxu0 0
      %6072 = vmatpush1.bf16.msra.mxu0 0
      %6073 = vmatprep.subr.bf16.mxu0 0
      %6074 = vmatpush1.bf16.msra.mxu0 0
      %6075 = vmatprep.subr.bf16.mxu0 0
      %6076 = vmatpush1.bf16.msra.mxu0 0
      %6077 = vmatprep.subr.bf16.mxu0 0
      %6078 = vmatpush1.bf16.msra.mxu0 0
      %6079 = vmatprep.subr.bf16.mxu0 0
      %6080 = vmatpush1.bf16.msra.mxu0 0
      %6081 = vmatprep.subr.bf16.mxu0 0
      %6082 = vmatpush1.bf16.msra.mxu0 %v6065
      %6083 = vmatprep.subr.bf16.mxu0 0
      %6084 = vmatpush2.bf16.msra.mxu0 0
      %6085 = vmatprep.subr.bf16.mxu0 0
      %6086 = vmatpush2.bf16.msra.mxu0 0
      %6087 = vmatprep.subr.bf16.mxu0 0
      %6088 = vmatpush2.bf16.msra.mxu0 0
      %6089 = vmatprep.subr.bf16.mxu0 0
      %6090 = vmatpush2.bf16.msra.mxu0 0
      %6091 = vmatprep.subr.bf16.mxu0 0
      %6092 = vmatpush2.bf16.msra.mxu0 0
      %6093 = vmatprep.subr.bf16.mxu0 0
      %6094 = vmatpush2.bf16.msra.mxu0 0
      %6095 = vmatprep.subr.bf16.mxu0 0
      %6096 = vmatpush2.bf16.msra.mxu0 0
      %6097 = vmatprep.subr.bf16.mxu0 0
      %6098 = vmatpush2.bf16.msra.mxu0 0
      %6099 = vmatprep.mubr.bf16.mxu0 0
      %6100 = vmatmul.mubr.bf16.gmra.mxu0 %v5702
      %v6101 = vpop.f32.mrf.mxu0
      %v6102 = vadd.f32 0.0, %v6101
      %v6103 = vpop.f32.mrf.mxu0
      %v6104 = vpop.f32.mrf.mxu0
      %v6105 = vpop.f32.mrf.mxu0
      %6106 = vdwg.mxu0
      %v6107 = vmul.f32 %v5743, %v5831
      %v6108 = vsub.f32 %v6102, %v6107
      %v6109 = vmul.f32 %v6108, 2.0
      %v6110 = vadd.f32 %v6109, 0.0009
      %v6111 = vadd.f32 %v5926, %v6017
      %v6112 = vadd.f32 %v6111, 0.0009
      %v6113 = vrcp.pop %v6112
      %v6114 = vmul.f32 %v6110, %v6113
      %v6115 = vmul.f32 %v5743, 2.0
      %v6116 = vmul.f32 %v6115, %v5831
      %v6117 = vadd.f32 %v6116, 0.0001
      %v6118 = vadd.f32 %v5925, %v6016
      %v6119 = vadd.f32 %v6118, 0.0001
      %v6120 = vrcp.pop %v6119
      %v6121 = vmul.f32 %v6117, %v6120
      %v6122 = vmul.f32 %v6121, %v6114
      %v6123 = vmul.u32 %v2066, 2
      %vm6124 = vcmp.ge.s32.totalorder %v702, %v6123
      %v6125 = vmul.u32 %v2069, 2
      %vm6126 = vcmp.lt.s32.totalorder %v702, %v6125
      %vm6127 = vmand %vm6124, %vm6126
      %v6128 = vsel %vm6127, 1.0, 0.0
      %v6130 = vsel %vm5700, %v6128, 0
      %v6133 = vsel %vm4852, %v6122, 0
      %6135 = vmatprep.subr.mxu0 0.0
      %6136 = vmatpush1.msra.mxu0 0.0
      %6137 = vmatprep.subr.mxu0 0.0
      %6138 = vmatpush1.msra.mxu0 0.0
      %6139 = vmatprep.subr.mxu0 0.0
      %6140 = vmatpush1.msra.mxu0 0.0
      %6141 = vmatprep.subr.mxu0 0.0
      %6142 = vmatpush1.msra.mxu0 0.0
      %6143 = vmatprep.subr.mxu0 0.0
      %6144 = vmatpush1.msra.mxu0 0.0
      %6145 = vmatprep.subr.mxu0 0.0
      %6146 = vmatpush1.msra.mxu0 0.0
      %6147 = vmatprep.subr.mxu0 0.0
      %6148 = vmatpush1.msra.mxu0 0.0
      %6149 = vmatprep.subr.mxu0 0.0
      %6150 = vmatpush1.msra.mxu0 0.0
      %6151 = vmatprep.subr.mxu0 0.0
      %6152 = vmatpush1.msra.mxu0 0.0
      %6153 = vmatprep.subr.mxu0 0.0
      %6154 = vmatpush1.msra.mxu0 0.0
      %6155 = vmatprep.subr.mxu0 0.0
      %6156 = vmatpush1.msra.mxu0 0.0
      %6157 = vmatprep.subr.mxu0 0.0
      %6158 = vmatpush1.msra.mxu0 0.0
      %6159 = vmatprep.subr.mxu0 0.0
      %6160 = vmatpush1.msra.mxu0 0.0
      %6161 = vmatprep.subr.mxu0 0.0
      %6162 = vmatpush1.msra.mxu0 0.0
      %6163 = vmatprep.subr.mxu0 0.0
      %6164 = vmatpush1.msra.mxu0 0.0
      %6165 = vmatprep.subr.mxu0 0.0
      %6166 = vmatpush1.msra.mxu0 %v6133
      %6167 = vmatprep.subr.mxu0 0.0
      %6168 = vmatpush2.msra.mxu0 0.0
      %6169 = vmatprep.subr.mxu0 0.0
      %6170 = vmatpush2.msra.mxu0 0.0
      %6171 = vmatprep.subr.mxu0 0.0
      %6172 = vmatpush2.msra.mxu0 0.0
      %6173 = vmatprep.subr.mxu0 0.0
      %6174 = vmatpush2.msra.mxu0 0.0
      %6175 = vmatprep.subr.mxu0 0.0
      %6176 = vmatpush2.msra.mxu0 0.0
      %6177 = vmatprep.subr.mxu0 0.0
      %6178 = vmatpush2.msra.mxu0 0.0
      %6179 = vmatprep.subr.mxu0 0.0
      %6180 = vmatpush2.msra.mxu0 0.0
      %6181 = vmatprep.subr.mxu0 0.0
      %6182 = vmatpush2.msra.mxu0 0.0
      %6183 = vmatprep.subr.mxu0 0.0
      %6184 = vmatpush2.msra.mxu0 0.0
      %6185 = vmatprep.subr.mxu0 0.0
      %6186 = vmatpush2.msra.mxu0 0.0
      %6187 = vmatprep.subr.mxu0 0.0
      %6188 = vmatpush2.msra.mxu0 0.0
      %6189 = vmatprep.subr.mxu0 0.0
      %6190 = vmatpush2.msra.mxu0 0.0
      %6191 = vmatprep.subr.mxu0 0.0
      %6192 = vmatpush2.msra.mxu0 0.0
      %6193 = vmatprep.subr.mxu0 0.0
      %6194 = vmatpush2.msra.mxu0 0.0
      %6195 = vmatprep.subr.mxu0 0.0
      %6196 = vmatpush2.msra.mxu0 0.0
      %6197 = vmatprep.subr.mxu0 0.0
      %6198 = vmatpush2.msra.mxu0 0.0
      %6199 = vmatprep.mubr.f32.mxu0 0.0
      %6200 = vmatmul.mubr.f32.gmra.mxu0 %v6130
      %v6201 = vpop.f32.mrf.mxu0
      %v6202 = vadd.f32 0.0, %v6201
      %v6203 = vpop.f32.mrf.mxu0
      %6204 = vdwg.mxu0
      %v6205 = vsel %vm5651, %v6202, 0.0
      %6206 = vadd.xlane.f32.xlu0 %v6205
      %v6207 = vpop.xlane.xlu0 %6206
      %v6208 = vmul.f32 %v6207, 0.25
      %v6210 = vsel %vm4852, %v6114, 0
      %6212 = vmatprep.subr.mxu0 0.0
      %6213 = vmatpush1.msra.mxu0 0.0
      %6214 = vmatprep.subr.mxu0 0.0
      %6215 = vmatpush1.msra.mxu0 0.0
      %6216 = vmatprep.subr.mxu0 0.0
      %6217 = vmatpush1.msra.mxu0 0.0
      %6218 = vmatprep.subr.mxu0 0.0
      %6219 = vmatpush1.msra.mxu0 0.0
      %6220 = vmatprep.subr.mxu0 0.0
      %6221 = vmatpush1.msra.mxu0 0.0
      %6222 = vmatprep.subr.mxu0 0.0
      %6223 = vmatpush1.msra.mxu0 0.0
      %6224 = vmatprep.subr.mxu0 0.0
      %6225 = vmatpush1.msra.mxu0 0.0
      %6226 = vmatprep.subr.mxu0 0.0
      %6227 = vmatpush1.msra.mxu0 0.0
      %6228 = vmatprep.subr.mxu0 0.0
      %6229 = vmatpush1.msra.mxu0 0.0
      %6230 = vmatprep.subr.mxu0 0.0
      %6231 = vmatpush1.msra.mxu0 0.0
      %6232 = vmatprep.subr.mxu0 0.0
      %6233 = vmatpush1.msra.mxu0 0.0
      %6234 = vmatprep.subr.mxu0 0.0
      %6235 = vmatpush1.msra.mxu0 0.0
      %6236 = vmatprep.subr.mxu0 0.0
      %6237 = vmatpush1.msra.mxu0 0.0
      %6238 = vmatprep.subr.mxu0 0.0
      %6239 = vmatpush1.msra.mxu0 0.0
      %6240 = vmatprep.subr.mxu0 0.0
      %6241 = vmatpush1.msra.mxu0 0.0
      %6242 = vmatprep.subr.mxu0 0.0
      %6243 = vmatpush1.msra.mxu0 %v6210
      %6244 = vmatprep.subr.mxu0 0.0
      %6245 = vmatpush2.msra.mxu0 0.0
      %6246 = vmatprep.subr.mxu0 0.0
      %6247 = vmatpush2.msra.mxu0 0.0
      %6248 = vmatprep.subr.mxu0 0.0
      %6249 = vmatpush2.msra.mxu0 0.0
      %6250 = vmatprep.subr.mxu0 0.0
      %6251 = vmatpush2.msra.mxu0 0.0
      %6252 = vmatprep.subr.mxu0 0.0
      %6253 = vmatpush2.msra.mxu0 0.0
      %6254 = vmatprep.subr.mxu0 0.0
      %6255 = vmatpush2.msra.mxu0 0.0
      %6256 = vmatprep.subr.mxu0 0.0
      %6257 = vmatpush2.msra.mxu0 0.0
      %6258 = vmatprep.subr.mxu0 0.0
      %6259 = vmatpush2.msra.mxu0 0.0
      %6260 = vmatprep.subr.mxu0 0.0
      %6261 = vmatpush2.msra.mxu0 0.0
      %6262 = vmatprep.subr.mxu0 0.0
      %6263 = vmatpush2.msra.mxu0 0.0
      %6264 = vmatprep.subr.mxu0 0.0
      %6265 = vmatpush2.msra.mxu0 0.0
      %6266 = vmatprep.subr.mxu0 0.0
      %6267 = vmatpush2.msra.mxu0 0.0
      %6268 = vmatprep.subr.mxu0 0.0
      %6269 = vmatpush2.msra.mxu0 0.0
      %6270 = vmatprep.subr.mxu0 0.0
      %6271 = vmatpush2.msra.mxu0 0.0
      %6272 = vmatprep.subr.mxu0 0.0
      %6273 = vmatpush2.msra.mxu0 0.0
      %6274 = vmatprep.subr.mxu0 0.0
      %6275 = vmatpush2.msra.mxu0 0.0
      %6276 = vmatprep.mubr.f32.mxu0 0.0
      %6277 = vmatmul.mubr.f32.gmra.mxu0 %v6130
      %v6278 = vpop.f32.mrf.mxu0
      %v6279 = vadd.f32 0.0, %v6278
      %v6280 = vpop.f32.mrf.mxu0
      %6281 = vdwg.mxu0
      %v6282 = vsel %vm5651, %v6279, 0.0
      %6283 = vadd.xlane.f32.xlu0 %v6282
      %v6284 = vpop.xlane.xlu0 %6283
      %v6285 = vmul.f32 %v6284, 0.25
      %vm6286 = vcmp.eq.s32.totalorder %v702, 4
      %v6287 = vsel %vm6286, %v6208, %v5469
      %vm6288 = vcmp.eq.s32.totalorder %v702, 9
      %v6289 = vsel %vm6288, %v6285, %v6287
      %6290 = vst [vmem:[%s651] sm:$0xff] %v6289
      %p6291 = scmp.lt.s32.totalorder %s31, 1
      %s6292 = scalar_select %p6291, %s31, 1
      %s6293 = smul.addr %s6292, 8
      %s6294 = scalar_lea.vmem %s20, %s6293
      // Predicated region
      $region101: #{msssim_loss.1} parent=99 // pred_check
        %p6295 = pneg %p479
      $region102: #{msssim_loss.1} parent=99 // pred_check_branch
        %6297 = sbr.rel (%p6295) target = $region104
      $region103: #{msssim_loss.1} parent=99 // pred_region
        _
      $region104: #{msssim_loss.1} parent=99 // pred_fallthru
        _
    $region100: #{msssim_loss.1} parent=5 // pred_fallthru
      _
    %p6298 = scmp.le.s32.totalorder 2, %s26
    // Predicated region
    $region105: #{msssim_loss.1} parent=5 // pred_check
      %p6299 = pneg %p6298
    $region106: #{msssim_loss.1} parent=5 // pred_check_branch
      %6301 = sbr.rel (%p6299) target = $region108
    $region107: #{msssim_loss.1} parent=5 // pred_region
      %s6302 = ssub.s32 %s26, 2
      // Predicated region
      $region109: #{msssim_loss.1} parent=107 // pred_check
        %p6303 = pneg %p485
      $region110: #{msssim_loss.1} parent=107 // pred_check_branch
        %6305 = sbr.rel (%p6303) target = $region112
      $region111: #{msssim_loss.1} parent=107 // pred_region
        %p6306 = scmp.lt.s32.totalorder %s32, 1
        %s6307 = scalar_select %p6306, %s32, 1
        %s6308 = smul.addr %s6307, 8
        %s6309 = scalar_lea.vmem %s20, %s6308
      $region112: #{msssim_loss.1} parent=107 // pred_fallthru
        _
    $region108: #{msssim_loss.1} parent=5 // pred_fallthru
      _
  $region6: #{msssim_loss.1} parent=0 // loop_footer
    %s30 = sadd.s32 1, %s26
  $region7: #{msssim_loss.1} parent=0 // loop_footer_branch
    %25 = sbr.rel target = $region3
  $region8: #{msssim_loss.1} parent=0 // loop_exit
    _

</llo_original>
